<compile_context>
chip_gen: v7x
topology: tpu7x:2x2x1
jax: 0.10.0
libtpu: 0.0.40
codegen_flags: <defaults>
</compile_context>

<pallas_src>
import math
import jax
import jax.numpy as jnp
from jax.experimental import pallas as pl
from jax.experimental.pallas import tpu as pltpu

# TODO(synk): reference calls an undefined `activation`; LeakyReLU(0.2) assumed.
LEAKY_SLOPE = 0.2
BN_EPS = 1e-5


# ------------------------------ model config -------------------------------

def conv_out_dim(in_planes, out_planes, h, w, k, padding, stride):
    ho = (h + 2 * padding - k) // stride + 1
    wo = (w + 2 * padding - k) // stride + 1
    return out_planes, ho, wo


def make_config(input_dims):
    ndf = 64
    planes = [ndf, ndf * 2, ndf * 4, ndf * 4]
    kernels = [3, 3, 3, 3]
    strides = [2, 2, 2, 1]
    pads = [1, 1, 0, 0] if input_dims[-1] >= 16 else [1, 1, 1, 1]
    out_dims = [tuple(input_dims)]
    for l in range(len(planes)):
        in_p, in_h, in_w = out_dims[-1]
        out_dims.append(conv_out_dim(in_p, planes[l], in_h, in_w,
                                     kernels[l], pads[l], strides[l]))
    return dict(planes=planes, kernels=kernels, strides=strides, pads=pads,
                out_dims=out_dims)


# ---------------------------- parameter handling ----------------------------

def init_params(key, input_dims, hidden_dim, cfg):
    params = {}
    planes, kernels, out_dims = cfg["planes"], cfg["kernels"], cfg["out_dims"]

    def uniform(k_, shape, fan_in):
        bound = 1.0 / math.sqrt(fan_in)
        return jax.random.uniform(k_, shape, jnp.float32, -bound, bound)

    for l in range(len(planes)):
        cin = out_dims[l][0]
        cout = planes[l]
        k = kernels[l]
        key, kw, kb = jax.random.split(key, 3)
        fan_in = cin * k * k
        params[f"conv{l}_w"] = uniform(kw, (cout, cin, k, k), fan_in)
        params[f"conv{l}_b"] = uniform(kb, (cout,), fan_in)
        if l < len(planes) - 1:
            params[f"bn{l}_gamma"] = jnp.ones((cout,), jnp.float32)
            params[f"bn{l}_beta"] = jnp.zeros((cout,), jnp.float32)

    flat = int(out_dims[-1][0] * out_dims[-1][1] * out_dims[-1][2])
    key, k1, k2, k3, k4, k5, k6 = jax.random.split(key, 7)
    params["lin_w"] = uniform(k1, (hidden_dim, flat), flat)
    params["lin_b"] = uniform(k2, (hidden_dim,), flat)
    params["mg_w"] = uniform(k3, (hidden_dim, hidden_dim), hidden_dim)
    params["mg_b"] = uniform(k4, (hidden_dim,), hidden_dim)
    params["mu_w"] = uniform(k5, (hidden_dim, hidden_dim), hidden_dim)
    params["mu_b"] = uniform(k6, (hidden_dim,), hidden_dim)
    return params


def pack_params(params, cfg):
    """One-time weight packing: MXU-friendly layouts + bf16 weights."""
    packed = []
    planes, out_dims = cfg["planes"], cfg["out_dims"]
    for l in range(len(planes)):
        w = params[f"conv{l}_w"]                       # (Cout, Cin, k, k)
        cout, cin, k, _ = w.shape
        # rows ordered (ki, kj, ci) to match the in-kernel patch columns
        w_mat = w.transpose(2, 3, 1, 0).reshape(k * k * cin, cout)
        packed.append(w_mat.astype(jnp.bfloat16))
        packed.append(params[f"conv{l}_b"].reshape(1, cout).astype(jnp.float32))
        if l < len(planes) - 1:
            packed.append(params[f"bn{l}_gamma"].reshape(1, cout).astype(jnp.float32))
            packed.append(params[f"bn{l}_beta"].reshape(1, cout).astype(jnp.float32))

    c_last, h_last, w_last = out_dims[-1]
    hidden = params["lin_b"].shape[0]
    # reorder input_lin rows from PyTorch flat order (c, h, w) to the kernel's
    # flatten order (h, w, c); identity when h_last == w_last == 1
    lin_wt = params["lin_w"].T.reshape(c_last, h_last, w_last, hidden)
    lin_wt = lin_wt.transpose(1, 2, 0, 3).reshape(h_last * w_last * c_last, hidden)
    packed.append(lin_wt.astype(jnp.bfloat16))
    packed.append(params["lin_b"].reshape(1, hidden).astype(jnp.float32))
    packed.append(params["mg_w"].T.astype(jnp.bfloat16))
    packed.append(params["mg_b"].reshape(1, hidden).astype(jnp.float32))
    packed.append(params["mu_w"].T.astype(jnp.bfloat16))
    packed.append(params["mu_b"].reshape(1, hidden).astype(jnp.float32))
    return tuple(packed)


# ------------------------------ fused kernel --------------------------------

def make_fused_kernel(cfg, n_batch):
    kernels = cfg["kernels"]
    strides = cfg["strides"]
    pads = cfg["pads"]
    out_dims = cfg["out_dims"]
    n_layers = len(cfg["planes"])
    N = n_batch

    def leaky(v):
        return jnp.where(v > 0, v, LEAKY_SLOPE * v)

    def kernel(*refs):
        it = iter(refs)
        x_ref = next(it)
        layer_p = []
        for l in range(n_layers):
            w_ref, b_ref = next(it), next(it)
            if l < n_layers - 1:
                g_ref, be_ref = next(it), next(it)
            else:
                g_ref = be_ref = None
            layer_p.append((w_ref, b_ref, g_ref, be_ref))
        lin_w, lin_b = next(it), next(it)
        mg_w, mg_b = next(it), next(it)
        mu_w, mu_b = next(it), next(it)
        mu_ref = next(it)
        pbufs = list(it)                 # one (R_l, k*k*Cin_l) patch matrix per layer

        # zero once: taps falling in the zero-padding ring simply stay 0
        for pb in pbufs:
            pb[...] = jnp.zeros(pb.shape, pb.dtype)

        def fill_patches(l, src_fn):
            # Scatter (N, Cin) channel blocks into layer l's patch matrix.
            # Rows ordered (output position, batch); columns (ki, kj, ci).
            k, s, p = kernels[l], strides[l], pads[l]
            cin, h_in, w_in = out_dims[l]
            _, ho, wo = out_dims[l + 1]
            pb = pbufs[l]
            for oh in range(ho):
                for ow in range(wo):
                    r0 = (oh * wo + ow) * N
                    for ki in range(k):
                        for kj in range(k):
                            ih = oh * s + ki - p
                            iw = ow * s + kj - p
                            if 0 <= ih < h_in and 0 <= iw < w_in:
                                c0 = (ki * k + kj) * cin
                                pb[r0:r0 + N, c0:c0 + cin] = src_fn(ih, iw)

        # layer-0 patches straight from the (H*W, N, C) input
        w_in0 = out_dims[0][2]
        fill_patches(0, lambda ih, iw: x_ref[ih * w_in0 + iw])

        y = None
        for l in range(n_layers):
            w_ref, b_ref, g_ref, be_ref = layer_p[l]
            # conv as a single MXU matmul: bf16 operands, f32 accumulation
            y = jnp.dot(pbufs[l][...].astype(jnp.bfloat16), w_ref[...],
                        preferred_element_type=jnp.float32) + b_ref[...]
            if g_ref is not None:
                # BatchNorm2d (batch stats, biased var), one-pass, f32
                mean = jnp.mean(y, axis=0, keepdims=True)
                var = jnp.mean(y * y, axis=0, keepdims=True) - mean * mean
                y = (y - mean) * jax.lax.rsqrt(var + BN_EPS) * g_ref[...] + be_ref[...]
            y = leaky(y)
            if l + 1 < n_layers:
                # scatter this layer's output rows straight into the next
                # layer's patch matrix (in-kernel im2col, all static slices)
                _, ho, wo = out_dims[l + 1]
                fill_patches(
                    l + 1,
                    lambda ih, iw, y=y, wo=wo:
                        y[(ih * wo + iw) * N:(ih * wo + iw + 1) * N, :])

        # flatten: columns ordered (pos, channel) to match the packed lin_w
        _, h_last, w_last = out_dims[-1]
        hw = h_last * w_last
        if hw == 1:
            flat = y
        else:
            flat = jnp.concatenate(
                [y[pos * N:(pos + 1) * N, :] for pos in range(hw)], axis=-1)

        # head: input_lin -> act -> merged_lin -> act -> lin_mu
        h1 = leaky(jnp.dot(flat.astype(jnp.bfloat16), lin_w[...],
                           preferred_element_type=jnp.float32) + lin_b[...])
        h2 = leaky(jnp.dot(h1.astype(jnp.bfloat16), mg_w[...],
                           preferred_element_type=jnp.float32) + mg_b[...])
        mu_ref[...] = jnp.dot(h2.astype(jnp.bfloat16), mu_w[...],
                              preferred_element_type=jnp.float32) + mu_b[...]

    return kernel


def forward(packed_params, x_nchw, cfg, hidden_dim):
    n, c, h, w = x_nchw.shape
    # one-time input layout prep: channels-last (spatial, batch, channel)
    x_sp = jnp.transpose(x_nchw, (2, 3, 0, 1)).reshape(h * w, n, c)

    out_dims, kernels = cfg["out_dims"], cfg["kernels"]
    n_layers = len(cfg["planes"])
    scratch = []
    for l in range(n_layers):
        cin = out_dims[l][0]
        _, ho, wo = out_dims[l + 1]
        scratch.append(
            pltpu.VMEM((ho * wo * n, kernels[l] * kernels[l] * cin), jnp.float32))

    vmem = pl.BlockSpec(memory_space=pltpu.MemorySpace.VMEM)
    return pl.pallas_call(
        make_fused_kernel(cfg, n),
        out_shape=jax.ShapeDtypeStruct((n, hidden_dim), jnp.float32),
        in_specs=[vmem] * (1 + len(packed_params)),
        out_specs=vmem,
        scratch_shapes=scratch,
    )(x_sp, *packed_params)


# ------------------------- plain-JAX reference model ------------------------

def reference_forward(params, x, cfg):
    cur = x
    n = x.shape[0]
    n_layers = len(cfg["planes"])
    for l in range(n_layers):
        w = params[f"conv{l}_w"]
        b = params[f"conv{l}_b"]
        s, p = cfg["strides"][l], cfg["pads"][l]
        cur = jax.lax.conv_general_dilated(
            cur, w, window_strides=(s, s), padding=[(p, p), (p, p)],
            dimension_numbers=("NCHW", "OIHW", "NCHW"))
        cur = cur + b.reshape(1, -1, 1, 1)
        if l < n_layers - 1:
            mean = jnp.mean(cur, axis=(0, 2, 3), keepdims=True)
            var = jnp.mean(jnp.square(cur - mean), axis=(0, 2, 3), keepdims=True)
            cur = (cur - mean) * jax.lax.rsqrt(var + BN_EPS)
            cur = (cur * params[f"bn{l}_gamma"].reshape(1, -1, 1, 1)
                   + params[f"bn{l}_beta"].reshape(1, -1, 1, 1))
        cur = jnp.where(cur > 0, cur, LEAKY_SLOPE * cur)
    flat = cur.reshape(n, -1)
    h1 = flat @ params["lin_w"].T + params["lin_b"]
    h1 = jnp.where(h1 > 0, h1, LEAKY_SLOPE * h1)
    h2 = h1 @ params["mg_w"].T + params["mg_b"]
    h2 = jnp.where(h2 > 0, h2, LEAKY_SLOPE * h2)
    return h2 @ params["mu_w"].T + params["mu_b"]


# --------------------------------- driver ----------------------------------

if __name__ == "__main__":
    # input_dims[-1] < 16 -> pads = [1,1,1,1]; (4, 8, 8) keeps spatial dims
    # valid through all four convs (a 16x16 input goes negative at layer 3).
    batch = 2
    input_dims = (4, 8, 8)
    hidden_dim = 32

    cfg = make_config(input_dims)

    key = jax.random.PRNGKey(0)
    key, kx, kp = jax.random.split(key, 3)
    params = init_params(kp, input_dims, hidden_dim, cfg)
    packed = pack_params(params, cfg)
    x_t = jax.random.normal(kx, (batch,) + input_dims, dtype=jnp.float32)

    fwd = jax.jit(lambda pp, xx: forward(pp, xx, cfg, hidden_dim))
    mu = fwd(packed, x_t)
    jax.block_until_ready(mu)

    assert mu.shape == (batch, hidden_dim)
    assert bool(jnp.all(jnp.isfinite(mu)))

    # loose tolerance: kernel feeds bf16 operands to the MXU (f32 accumulate)
    mu_ref = reference_forward(params, x_t, cfg)
    assert bool(jnp.allclose(mu, mu_ref, rtol=5e-2, atol=5e-2))

    print("KERNEL_OK")
</pallas_src>

<mosaic_0001>
module attributes {stable_mosaic.version = 11 : i64} {
  func.func @kernel(%arg0: memref<64x2x4xf32, #tpu.memory_space<vmem>>, %arg1: memref<36x64xbf16, #tpu.memory_space<vmem>>, %arg2: memref<1x64xf32, #tpu.memory_space<vmem>>, %arg3: memref<1x64xf32, #tpu.memory_space<vmem>>, %arg4: memref<1x64xf32, #tpu.memory_space<vmem>>, %arg5: memref<576x128xbf16, #tpu.memory_space<vmem>>, %arg6: memref<1x128xf32, #tpu.memory_space<vmem>>, %arg7: memref<1x128xf32, #tpu.memory_space<vmem>>, %arg8: memref<1x128xf32, #tpu.memory_space<vmem>>, %arg9: memref<1152x256xbf16, #tpu.memory_space<vmem>>, %arg10: memref<1x256xf32, #tpu.memory_space<vmem>>, %arg11: memref<1x256xf32, #tpu.memory_space<vmem>>, %arg12: memref<1x256xf32, #tpu.memory_space<vmem>>, %arg13: memref<2304x256xbf16, #tpu.memory_space<vmem>>, %arg14: memref<1x256xf32, #tpu.memory_space<vmem>>, %arg15: memref<256x32xbf16, #tpu.memory_space<vmem>>, %arg16: memref<1x32xf32, #tpu.memory_space<vmem>>, %arg17: memref<32x32xbf16, #tpu.memory_space<vmem>>, %arg18: memref<1x32xf32, #tpu.memory_space<vmem>>, %arg19: memref<32x32xbf16, #tpu.memory_space<vmem>>, %arg20: memref<1x32xf32, #tpu.memory_space<vmem>>, %arg21: memref<2x32xf32, #tpu.memory_space<vmem>>, %arg22: memref<32x36xf32, #tpu.memory_space<vmem>>, %arg23: memref<8x576xf32, #tpu.memory_space<vmem>>, %arg24: memref<2x1152xf32, #tpu.memory_space<vmem>>, %arg25: memref<2x2304xf32, #tpu.memory_space<vmem>>) attributes {dimension_semantics = [], scalar_prefetch = 0 : i64, scratch_operands = 4 : i64, tpu.core_type = #tpu.core_type<tc>} {
    %cst = arith.constant 0.000000e+00 : f32
    %0 = vector.broadcast %cst : f32 to vector<32x36xf32>
    %c0 = arith.constant 0 : index
    %c0_0 = arith.constant 0 : index
    %1 = vector.load %arg22[%c0, %c0_0] : memref<32x36xf32, #tpu.memory_space<vmem>>, vector<32x36xf32>
    tpu.vector_store %arg22[%c0, %c0_0], %0 {strides = array<i32>} : memref<32x36xf32, #tpu.memory_space<vmem>>, vector<32x36xf32>,
    %cst_1 = arith.constant 0.000000e+00 : f32
    %2 = vector.broadcast %cst_1 : f32 to vector<8x576xf32>
    %c0_2 = arith.constant 0 : index
    %c0_3 = arith.constant 0 : index
    %3 = vector.load %arg23[%c0_2, %c0_3] : memref<8x576xf32, #tpu.memory_space<vmem>>, vector<8x576xf32>
    tpu.vector_store %arg23[%c0_2, %c0_3], %2 {strides = array<i32>} : memref<8x576xf32, #tpu.memory_space<vmem>>, vector<8x576xf32>,
    %cst_4 = arith.constant 0.000000e+00 : f32
    %4 = vector.broadcast %cst_4 : f32 to vector<2x1152xf32>
    %c0_5 = arith.constant 0 : index
    %c0_6 = arith.constant 0 : index
    %5 = vector.load %arg24[%c0_5, %c0_6] : memref<2x1152xf32, #tpu.memory_space<vmem>>, vector<2x1152xf32>
    tpu.vector_store %arg24[%c0_5, %c0_6], %4 {strides = array<i32>} : memref<2x1152xf32, #tpu.memory_space<vmem>>, vector<2x1152xf32>,
    %cst_7 = arith.constant 0.000000e+00 : f32
    %6 = vector.broadcast %cst_7 : f32 to vector<2x2304xf32>
    %c0_8 = arith.constant 0 : index
    %c0_9 = arith.constant 0 : index
    %7 = vector.load %arg25[%c0_8, %c0_9] : memref<2x2304xf32, #tpu.memory_space<vmem>>, vector<2x2304xf32>
    tpu.vector_store %arg25[%c0_8, %c0_9], %6 {strides = array<i32>} : memref<2x2304xf32, #tpu.memory_space<vmem>>, vector<2x2304xf32>,
    %c0_10 = arith.constant 0 : index
    %c0_11 = arith.constant 0 : index
    %c0_12 = arith.constant 0 : index
    %8 = vector.load %arg0[%c0_10, %c0_11, %c0_12] : memref<64x2x4xf32, #tpu.memory_space<vmem>>, vector<1x2x4xf32>
    %9 = vector.shape_cast %8 : vector<1x2x4xf32> to vector<2x4xf32>
    %c0_13 = arith.constant 0 : index
    %c16 = arith.constant 16 : index
    %10 = vector.load %arg22[%c0_13, %c16] : memref<32x36xf32, #tpu.memory_space<vmem>>, vector<2x4xf32>
    tpu.vector_store %arg22[%c0_13, %c16], %9 {strides = array<i32>} : memref<32x36xf32, #tpu.memory_space<vmem>>, vector<2x4xf32>,
    %c1 = arith.constant 1 : index
    %c0_14 = arith.constant 0 : index
    %c0_15 = arith.constant 0 : index
    %11 = vector.load %arg0[%c1, %c0_14, %c0_15] : memref<64x2x4xf32, #tpu.memory_space<vmem>>, vector<1x2x4xf32>
    %12 = vector.shape_cast %11 : vector<1x2x4xf32> to vector<2x4xf32>
    %c0_16 = arith.constant 0 : index
    %c20 = arith.constant 20 : index
    %13 = vector.load %arg22[%c0_16, %c20] : memref<32x36xf32, #tpu.memory_space<vmem>>, vector<2x4xf32>
    tpu.vector_store %arg22[%c0_16, %c20], %12 {strides = array<i32>} : memref<32x36xf32, #tpu.memory_space<vmem>>, vector<2x4xf32>,
    %c8 = arith.constant 8 : index
    %c0_17 = arith.constant 0 : index
    %c0_18 = arith.constant 0 : index
    %14 = vector.load %arg0[%c8, %c0_17, %c0_18] : memref<64x2x4xf32, #tpu.memory_space<vmem>>, vector<1x2x4xf32>
    %15 = vector.shape_cast %14 : vector<1x2x4xf32> to vector<2x4xf32>
    %c0_19 = arith.constant 0 : index
    %c28 = arith.constant 28 : index
    %16 = vector.load %arg22[%c0_19, %c28] : memref<32x36xf32, #tpu.memory_space<vmem>>, vector<2x4xf32>
    tpu.vector_store %arg22[%c0_19, %c28], %15 {strides = array<i32>} : memref<32x36xf32, #tpu.memory_space<vmem>>, vector<2x4xf32>,
    %c9 = arith.constant 9 : index
    %c0_20 = arith.constant 0 : index
    %c0_21 = arith.constant 0 : index
    %17 = vector.load %arg0[%c9, %c0_20, %c0_21] : memref<64x2x4xf32, #tpu.memory_space<vmem>>, vector<1x2x4xf32>
    %18 = vector.shape_cast %17 : vector<1x2x4xf32> to vector<2x4xf32>
    %c0_22 = arith.constant 0 : index
    %c32 = arith.constant 32 : index
    %19 = vector.load %arg22[%c0_22, %c32] : memref<32x36xf32, #tpu.memory_space<vmem>>, vector<2x4xf32>
    tpu.vector_store %arg22[%c0_22, %c32], %18 {strides = array<i32>} : memref<32x36xf32, #tpu.memory_space<vmem>>, vector<2x4xf32>,
    %c1_23 = arith.constant 1 : index
    %c0_24 = arith.constant 0 : index
    %c0_25 = arith.constant 0 : index
    %20 = vector.load %arg0[%c1_23, %c0_24, %c0_25] : memref<64x2x4xf32, #tpu.memory_space<vmem>>, vector<1x2x4xf32>
    %21 = vector.shape_cast %20 : vector<1x2x4xf32> to vector<2x4xf32>
    %c2 = arith.constant 2 : index
    %c12 = arith.constant 12 : index
    %22 = vector.load %arg22[%c2, %c12] : memref<32x36xf32, #tpu.memory_space<vmem>>, vector<2x4xf32>
    tpu.vector_store %arg22[%c2, %c12], %21 {strides = array<i32>} : memref<32x36xf32, #tpu.memory_space<vmem>>, vector<2x4xf32>,
    %c2_26 = arith.constant 2 : index
    %c0_27 = arith.constant 0 : index
    %c0_28 = arith.constant 0 : index
    %23 = vector.load %arg0[%c2_26, %c0_27, %c0_28] : memref<64x2x4xf32, #tpu.memory_space<vmem>>, vector<1x2x4xf32>
    %24 = vector.shape_cast %23 : vector<1x2x4xf32> to vector<2x4xf32>
    %c2_29 = arith.constant 2 : index
    %c16_30 = arith.constant 16 : index
    %25 = vector.load %arg22[%c2_29, %c16_30] : memref<32x36xf32, #tpu.memory_space<vmem>>, vector<2x4xf32>
    tpu.vector_store %arg22[%c2_29, %c16_30], %24 {strides = array<i32>} : memref<32x36xf32, #tpu.memory_space<vmem>>, vector<2x4xf32>,
    %c3 = arith.constant 3 : index
    %c0_31 = arith.constant 0 : index
    %c0_32 = arith.constant 0 : index
    %26 = vector.load %arg0[%c3, %c0_31, %c0_32] : memref<64x2x4xf32, #tpu.memory_space<vmem>>, vector<1x2x4xf32>
    %27 = vector.shape_cast %26 : vector<1x2x4xf32> to vector<2x4xf32>
    %c2_33 = arith.constant 2 : index
    %c20_34 = arith.constant 20 : index
    %28 = vector.load %arg22[%c2_33, %c20_34] : memref<32x36xf32, #tpu.memory_space<vmem>>, vector<2x4xf32>
    tpu.vector_store %arg22[%c2_33, %c20_34], %27 {strides = array<i32>} : memref<32x36xf32, #tpu.memory_space<vmem>>, vector<2x4xf32>,
    %c9_35 = arith.constant 9 : index
    %c0_36 = arith.constant 0 : index
    %c0_37 = arith.constant 0 : index
    %29 = vector.load %arg0[%c9_35, %c0_36, %c0_37] : memref<64x2x4xf32, #tpu.memory_space<vmem>>, vector<1x2x4xf32>
    %30 = vector.shape_cast %29 : vector<1x2x4xf32> to vector<2x4xf32>
    %c2_38 = arith.constant 2 : index
    %c24 = arith.constant 24 : index
    %31 = vector.load %arg22[%c2_38, %c24] : memref<32x36xf32, #tpu.memory_space<vmem>>, vector<2x4xf32>
    tpu.vector_store %arg22[%c2_38, %c24], %30 {strides = array<i32>} : memref<32x36xf32, #tpu.memory_space<vmem>>, vector<2x4xf32>,
    %c10 = arith.constant 10 : index
    %c0_39 = arith.constant 0 : index
    %c0_40 = arith.constant 0 : index
    %32 = vector.load %arg0[%c10, %c0_39, %c0_40] : memref<64x2x4xf32, #tpu.memory_space<vmem>>, vector<1x2x4xf32>
    %33 = vector.shape_cast %32 : vector<1x2x4xf32> to vector<2x4xf32>
    %c2_41 = arith.constant 2 : index
    %c28_42 = arith.constant 28 : index
    %34 = vector.load %arg22[%c2_41, %c28_42] : memref<32x36xf32, #tpu.memory_space<vmem>>, vector<2x4xf32>
    tpu.vector_store %arg22[%c2_41, %c28_42], %33 {strides = array<i32>} : memref<32x36xf32, #tpu.memory_space<vmem>>, vector<2x4xf32>,
    %c11 = arith.constant 11 : index
    %c0_43 = arith.constant 0 : index
    %c0_44 = arith.constant 0 : index
    %35 = vector.load %arg0[%c11, %c0_43, %c0_44] : memref<64x2x4xf32, #tpu.memory_space<vmem>>, vector<1x2x4xf32>
    %36 = vector.shape_cast %35 : vector<1x2x4xf32> to vector<2x4xf32>
    %c2_45 = arith.constant 2 : index
    %c32_46 = arith.constant 32 : index
    %37 = vector.load %arg22[%c2_45, %c32_46] : memref<32x36xf32, #tpu.memory_space<vmem>>, vector<2x4xf32>
    tpu.vector_store %arg22[%c2_45, %c32_46], %36 {strides = array<i32>} : memref<32x36xf32, #tpu.memory_space<vmem>>, vector<2x4xf32>,
    %c3_47 = arith.constant 3 : index
    %c0_48 = arith.constant 0 : index
    %c0_49 = arith.constant 0 : index
    %38 = vector.load %arg0[%c3_47, %c0_48, %c0_49] : memref<64x2x4xf32, #tpu.memory_space<vmem>>, vector<1x2x4xf32>
    %39 = vector.shape_cast %38 : vector<1x2x4xf32> to vector<2x4xf32>
    %c4 = arith.constant 4 : index
    %c12_50 = arith.constant 12 : index
    %40 = vector.load %arg22[%c4, %c12_50] : memref<32x36xf32, #tpu.memory_space<vmem>>, vector<2x4xf32>
    tpu.vector_store %arg22[%c4, %c12_50], %39 {strides = array<i32>} : memref<32x36xf32, #tpu.memory_space<vmem>>, vector<2x4xf32>,
    %c4_51 = arith.constant 4 : index
    %c0_52 = arith.constant 0 : index
    %c0_53 = arith.constant 0 : index
    %41 = vector.load %arg0[%c4_51, %c0_52, %c0_53] : memref<64x2x4xf32, #tpu.memory_space<vmem>>, vector<1x2x4xf32>
    %42 = vector.shape_cast %41 : vector<1x2x4xf32> to vector<2x4xf32>
    %c4_54 = arith.constant 4 : index
    %c16_55 = arith.constant 16 : index
    %43 = vector.load %arg22[%c4_54, %c16_55] : memref<32x36xf32, #tpu.memory_space<vmem>>, vector<2x4xf32>
    tpu.vector_store %arg22[%c4_54, %c16_55], %42 {strides = array<i32>} : memref<32x36xf32, #tpu.memory_space<vmem>>, vector<2x4xf32>,
    %c5 = arith.constant 5 : index
    %c0_56 = arith.constant 0 : index
    %c0_57 = arith.constant 0 : index
    %44 = vector.load %arg0[%c5, %c0_56, %c0_57] : memref<64x2x4xf32, #tpu.memory_space<vmem>>, vector<1x2x4xf32>
    %45 = vector.shape_cast %44 : vector<1x2x4xf32> to vector<2x4xf32>
    %c4_58 = arith.constant 4 : index
    %c20_59 = arith.constant 20 : index
    %46 = vector.load %arg22[%c4_58, %c20_59] : memref<32x36xf32, #tpu.memory_space<vmem>>, vector<2x4xf32>
    tpu.vector_store %arg22[%c4_58, %c20_59], %45 {strides = array<i32>} : memref<32x36xf32, #tpu.memory_space<vmem>>, vector<2x4xf32>,
    %c11_60 = arith.constant 11 : index
    %c0_61 = arith.constant 0 : index
    %c0_62 = arith.constant 0 : index
    %47 = vector.load %arg0[%c11_60, %c0_61, %c0_62] : memref<64x2x4xf32, #tpu.memory_space<vmem>>, vector<1x2x4xf32>
    %48 = vector.shape_cast %47 : vector<1x2x4xf32> to vector<2x4xf32>
    %c4_63 = arith.constant 4 : index
    %c24_64 = arith.constant 24 : index
    %49 = vector.load %arg22[%c4_63, %c24_64] : memref<32x36xf32, #tpu.memory_space<vmem>>, vector<2x4xf32>
    tpu.vector_store %arg22[%c4_63, %c24_64], %48 {strides = array<i32>} : memref<32x36xf32, #tpu.memory_space<vmem>>, vector<2x4xf32>,
    %c12_65 = arith.constant 12 : index
    %c0_66 = arith.constant 0 : index
    %c0_67 = arith.constant 0 : index
    %50 = vector.load %arg0[%c12_65, %c0_66, %c0_67] : memref<64x2x4xf32, #tpu.memory_space<vmem>>, vector<1x2x4xf32>
    %51 = vector.shape_cast %50 : vector<1x2x4xf32> to vector<2x4xf32>
    %c4_68 = arith.constant 4 : index
    %c28_69 = arith.constant 28 : index
    %52 = vector.load %arg22[%c4_68, %c28_69] : memref<32x36xf32, #tpu.memory_space<vmem>>, vector<2x4xf32>
    tpu.vector_store %arg22[%c4_68, %c28_69], %51 {strides = array<i32>} : memref<32x36xf32, #tpu.memory_space<vmem>>, vector<2x4xf32>,
    %c13 = arith.constant 13 : index
    %c0_70 = arith.constant 0 : index
    %c0_71 = arith.constant 0 : index
    %53 = vector.load %arg0[%c13, %c0_70, %c0_71] : memref<64x2x4xf32, #tpu.memory_space<vmem>>, vector<1x2x4xf32>
    %54 = vector.shape_cast %53 : vector<1x2x4xf32> to vector<2x4xf32>
    %c4_72 = arith.constant 4 : index
    %c32_73 = arith.constant 32 : index
    %55 = vector.load %arg22[%c4_72, %c32_73] : memref<32x36xf32, #tpu.memory_space<vmem>>, vector<2x4xf32>
    tpu.vector_store %arg22[%c4_72, %c32_73], %54 {strides = array<i32>} : memref<32x36xf32, #tpu.memory_space<vmem>>, vector<2x4xf32>,
    %c5_74 = arith.constant 5 : index
    %c0_75 = arith.constant 0 : index
    %c0_76 = arith.constant 0 : index
    %56 = vector.load %arg0[%c5_74, %c0_75, %c0_76] : memref<64x2x4xf32, #tpu.memory_space<vmem>>, vector<1x2x4xf32>
    %57 = vector.shape_cast %56 : vector<1x2x4xf32> to vector<2x4xf32>
    %c6 = arith.constant 6 : index
    %c12_77 = arith.constant 12 : index
    %58 = vector.load %arg22[%c6, %c12_77] : memref<32x36xf32, #tpu.memory_space<vmem>>, vector<2x4xf32>
    tpu.vector_store %arg22[%c6, %c12_77], %57 {strides = array<i32>} : memref<32x36xf32, #tpu.memory_space<vmem>>, vector<2x4xf32>,
    %c6_78 = arith.constant 6 : index
    %c0_79 = arith.constant 0 : index
    %c0_80 = arith.constant 0 : index
    %59 = vector.load %arg0[%c6_78, %c0_79, %c0_80] : memref<64x2x4xf32, #tpu.memory_space<vmem>>, vector<1x2x4xf32>
    %60 = vector.shape_cast %59 : vector<1x2x4xf32> to vector<2x4xf32>
    %c6_81 = arith.constant 6 : index
    %c16_82 = arith.constant 16 : index
    %61 = vector.load %arg22[%c6_81, %c16_82] : memref<32x36xf32, #tpu.memory_space<vmem>>, vector<2x4xf32>
    tpu.vector_store %arg22[%c6_81, %c16_82], %60 {strides = array<i32>} : memref<32x36xf32, #tpu.memory_space<vmem>>, vector<2x4xf32>,
    %c7 = arith.constant 7 : index
    %c0_83 = arith.constant 0 : index
    %c0_84 = arith.constant 0 : index
    %62 = vector.load %arg0[%c7, %c0_83, %c0_84] : memref<64x2x4xf32, #tpu.memory_space<vmem>>, vector<1x2x4xf32>
    %63 = vector.shape_cast %62 : vector<1x2x4xf32> to vector<2x4xf32>
    %c6_85 = arith.constant 6 : index
    %c20_86 = arith.constant 20 : index
    %64 = vector.load %arg22[%c6_85, %c20_86] : memref<32x36xf32, #tpu.memory_space<vmem>>, vector<2x4xf32>
    tpu.vector_store %arg22[%c6_85, %c20_86], %63 {strides = array<i32>} : memref<32x36xf32, #tpu.memory_space<vmem>>, vector<2x4xf32>,
    %c13_87 = arith.constant 13 : index
    %c0_88 = arith.constant 0 : index
    %c0_89 = arith.constant 0 : index
    %65 = vector.load %arg0[%c13_87, %c0_88, %c0_89] : memref<64x2x4xf32, #tpu.memory_space<vmem>>, vector<1x2x4xf32>
    %66 = vector.shape_cast %65 : vector<1x2x4xf32> to vector<2x4xf32>
    %c6_90 = arith.constant 6 : index
    %c24_91 = arith.constant 24 : index
    %67 = vector.load %arg22[%c6_90, %c24_91] : memref<32x36xf32, #tpu.memory_space<vmem>>, vector<2x4xf32>
    tpu.vector_store %arg22[%c6_90, %c24_91], %66 {strides = array<i32>} : memref<32x36xf32, #tpu.memory_space<vmem>>, vector<2x4xf32>,
    %c14 = arith.constant 14 : index
    %c0_92 = arith.constant 0 : index
    %c0_93 = arith.constant 0 : index
    %68 = vector.load %arg0[%c14, %c0_92, %c0_93] : memref<64x2x4xf32, #tpu.memory_space<vmem>>, vector<1x2x4xf32>
    %69 = vector.shape_cast %68 : vector<1x2x4xf32> to vector<2x4xf32>
    %c6_94 = arith.constant 6 : index
    %c28_95 = arith.constant 28 : index
    %70 = vector.load %arg22[%c6_94, %c28_95] : memref<32x36xf32, #tpu.memory_space<vmem>>, vector<2x4xf32>
    tpu.vector_store %arg22[%c6_94, %c28_95], %69 {strides = array<i32>} : memref<32x36xf32, #tpu.memory_space<vmem>>, vector<2x4xf32>,
    %c15 = arith.constant 15 : index
    %c0_96 = arith.constant 0 : index
    %c0_97 = arith.constant 0 : index
    %71 = vector.load %arg0[%c15, %c0_96, %c0_97] : memref<64x2x4xf32, #tpu.memory_space<vmem>>, vector<1x2x4xf32>
    %72 = vector.shape_cast %71 : vector<1x2x4xf32> to vector<2x4xf32>
    %c6_98 = arith.constant 6 : index
    %c32_99 = arith.constant 32 : index
    %73 = vector.load %arg22[%c6_98, %c32_99] : memref<32x36xf32, #tpu.memory_space<vmem>>, vector<2x4xf32>
    tpu.vector_store %arg22[%c6_98, %c32_99], %72 {strides = array<i32>} : memref<32x36xf32, #tpu.memory_space<vmem>>, vector<2x4xf32>,
    %c8_100 = arith.constant 8 : index
    %c0_101 = arith.constant 0 : index
    %c0_102 = arith.constant 0 : index
    %74 = vector.load %arg0[%c8_100, %c0_101, %c0_102] : memref<64x2x4xf32, #tpu.memory_space<vmem>>, vector<1x2x4xf32>
    %75 = vector.shape_cast %74 : vector<1x2x4xf32> to vector<2x4xf32>
    %c8_103 = arith.constant 8 : index
    %c4_104 = arith.constant 4 : index
    %76 = vector.load %arg22[%c8_103, %c4_104] : memref<32x36xf32, #tpu.memory_space<vmem>>, vector<2x4xf32>
    tpu.vector_store %arg22[%c8_103, %c4_104], %75 {strides = array<i32>} : memref<32x36xf32, #tpu.memory_space<vmem>>, vector<2x4xf32>,
    %c9_105 = arith.constant 9 : index
    %c0_106 = arith.constant 0 : index
    %c0_107 = arith.constant 0 : index
    %77 = vector.load %arg0[%c9_105, %c0_106, %c0_107] : memref<64x2x4xf32, #tpu.memory_space<vmem>>, vector<1x2x4xf32>
    %78 = vector.shape_cast %77 : vector<1x2x4xf32> to vector<2x4xf32>
    %c8_108 = arith.constant 8 : index
    %c8_109 = arith.constant 8 : index
    %79 = vector.load %arg22[%c8_108, %c8_109] : memref<32x36xf32, #tpu.memory_space<vmem>>, vector<2x4xf32>
    tpu.vector_store %arg22[%c8_108, %c8_109], %78 {strides = array<i32>} : memref<32x36xf32, #tpu.memory_space<vmem>>, vector<2x4xf32>,
    %c16_110 = arith.constant 16 : index
    %c0_111 = arith.constant 0 : index
    %c0_112 = arith.constant 0 : index
    %80 = vector.load %arg0[%c16_110, %c0_111, %c0_112] : memref<64x2x4xf32, #tpu.memory_space<vmem>>, vector<1x2x4xf32>
    %81 = vector.shape_cast %80 : vector<1x2x4xf32> to vector<2x4xf32>
    %c8_113 = arith.constant 8 : index
    %c16_114 = arith.constant 16 : index
    %82 = vector.load %arg22[%c8_113, %c16_114] : memref<32x36xf32, #tpu.memory_space<vmem>>, vector<2x4xf32>
    tpu.vector_store %arg22[%c8_113, %c16_114], %81 {strides = array<i32>} : memref<32x36xf32, #tpu.memory_space<vmem>>, vector<2x4xf32>,
    %c17 = arith.constant 17 : index
    %c0_115 = arith.constant 0 : index
    %c0_116 = arith.constant 0 : index
    %83 = vector.load %arg0[%c17, %c0_115, %c0_116] : memref<64x2x4xf32, #tpu.memory_space<vmem>>, vector<1x2x4xf32>
    %84 = vector.shape_cast %83 : vector<1x2x4xf32> to vector<2x4xf32>
    %c8_117 = arith.constant 8 : index
    %c20_118 = arith.constant 20 : index
    %85 = vector.load %arg22[%c8_117, %c20_118] : memref<32x36xf32, #tpu.memory_space<vmem>>, vector<2x4xf32>
    tpu.vector_store %arg22[%c8_117, %c20_118], %84 {strides = array<i32>} : memref<32x36xf32, #tpu.memory_space<vmem>>, vector<2x4xf32>,
    %c24_119 = arith.constant 24 : index
    %c0_120 = arith.constant 0 : index
    %c0_121 = arith.constant 0 : index
    %86 = vector.load %arg0[%c24_119, %c0_120, %c0_121] : memref<64x2x4xf32, #tpu.memory_space<vmem>>, vector<1x2x4xf32>
    %87 = vector.shape_cast %86 : vector<1x2x4xf32> to vector<2x4xf32>
    %c8_122 = arith.constant 8 : index
    %c28_123 = arith.constant 28 : index
    %88 = vector.load %arg22[%c8_122, %c28_123] : memref<32x36xf32, #tpu.memory_space<vmem>>, vector<2x4xf32>
    tpu.vector_store %arg22[%c8_122, %c28_123], %87 {strides = array<i32>} : memref<32x36xf32, #tpu.memory_space<vmem>>, vector<2x4xf32>,
    %c25 = arith.constant 25 : index
    %c0_124 = arith.constant 0 : index
    %c0_125 = arith.constant 0 : index
    %89 = vector.load %arg0[%c25, %c0_124, %c0_125] : memref<64x2x4xf32, #tpu.memory_space<vmem>>, vector<1x2x4xf32>
    %90 = vector.shape_cast %89 : vector<1x2x4xf32> to vector<2x4xf32>
    %c8_126 = arith.constant 8 : index
    %c32_127 = arith.constant 32 : index
    %91 = vector.load %arg22[%c8_126, %c32_127] : memref<32x36xf32, #tpu.memory_space<vmem>>, vector<2x4xf32>
    tpu.vector_store %arg22[%c8_126, %c32_127], %90 {strides = array<i32>} : memref<32x36xf32, #tpu.memory_space<vmem>>, vector<2x4xf32>,
    %c9_128 = arith.constant 9 : index
    %c0_129 = arith.constant 0 : index
    %c0_130 = arith.constant 0 : index
    %92 = vector.load %arg0[%c9_128, %c0_129, %c0_130] : memref<64x2x4xf32, #tpu.memory_space<vmem>>, vector<1x2x4xf32>
    %93 = vector.shape_cast %92 : vector<1x2x4xf32> to vector<2x4xf32>
    %c10_131 = arith.constant 10 : index
    %c0_132 = arith.constant 0 : index
    %94 = vector.load %arg22[%c10_131, %c0_132] : memref<32x36xf32, #tpu.memory_space<vmem>>, vector<2x4xf32>
    tpu.vector_store %arg22[%c10_131, %c0_132], %93 {strides = array<i32>} : memref<32x36xf32, #tpu.memory_space<vmem>>, vector<2x4xf32>,
    %c10_133 = arith.constant 10 : index
    %c0_134 = arith.constant 0 : index
    %c0_135 = arith.constant 0 : index
    %95 = vector.load %arg0[%c10_133, %c0_134, %c0_135] : memref<64x2x4xf32, #tpu.memory_space<vmem>>, vector<1x2x4xf32>
    %96 = vector.shape_cast %95 : vector<1x2x4xf32> to vector<2x4xf32>
    %c10_136 = arith.constant 10 : index
    %c4_137 = arith.constant 4 : index
    %97 = vector.load %arg22[%c10_136, %c4_137] : memref<32x36xf32, #tpu.memory_space<vmem>>, vector<2x4xf32>
    tpu.vector_store %arg22[%c10_136, %c4_137], %96 {strides = array<i32>} : memref<32x36xf32, #tpu.memory_space<vmem>>, vector<2x4xf32>,
    %c11_138 = arith.constant 11 : index
    %c0_139 = arith.constant 0 : index
    %c0_140 = arith.constant 0 : index
    %98 = vector.load %arg0[%c11_138, %c0_139, %c0_140] : memref<64x2x4xf32, #tpu.memory_space<vmem>>, vector<1x2x4xf32>
    %99 = vector.shape_cast %98 : vector<1x2x4xf32> to vector<2x4xf32>
    %c10_141 = arith.constant 10 : index
    %c8_142 = arith.constant 8 : index
    %100 = vector.load %arg22[%c10_141, %c8_142] : memref<32x36xf32, #tpu.memory_space<vmem>>, vector<2x4xf32>
    tpu.vector_store %arg22[%c10_141, %c8_142], %99 {strides = array<i32>} : memref<32x36xf32, #tpu.memory_space<vmem>>, vector<2x4xf32>,
    %c17_143 = arith.constant 17 : index
    %c0_144 = arith.constant 0 : index
    %c0_145 = arith.constant 0 : index
    %101 = vector.load %arg0[%c17_143, %c0_144, %c0_145] : memref<64x2x4xf32, #tpu.memory_space<vmem>>, vector<1x2x4xf32>
    %102 = vector.shape_cast %101 : vector<1x2x4xf32> to vector<2x4xf32>
    %c10_146 = arith.constant 10 : index
    %c12_147 = arith.constant 12 : index
    %103 = vector.load %arg22[%c10_146, %c12_147] : memref<32x36xf32, #tpu.memory_space<vmem>>, vector<2x4xf32>
    tpu.vector_store %arg22[%c10_146, %c12_147], %102 {strides = array<i32>} : memref<32x36xf32, #tpu.memory_space<vmem>>, vector<2x4xf32>,
    %c18 = arith.constant 18 : index
    %c0_148 = arith.constant 0 : index
    %c0_149 = arith.constant 0 : index
    %104 = vector.load %arg0[%c18, %c0_148, %c0_149] : memref<64x2x4xf32, #tpu.memory_space<vmem>>, vector<1x2x4xf32>
    %105 = vector.shape_cast %104 : vector<1x2x4xf32> to vector<2x4xf32>
    %c10_150 = arith.constant 10 : index
    %c16_151 = arith.constant 16 : index
    %106 = vector.load %arg22[%c10_150, %c16_151] : memref<32x36xf32, #tpu.memory_space<vmem>>, vector<2x4xf32>
    tpu.vector_store %arg22[%c10_150, %c16_151], %105 {strides = array<i32>} : memref<32x36xf32, #tpu.memory_space<vmem>>, vector<2x4xf32>,
    %c19 = arith.constant 19 : index
    %c0_152 = arith.constant 0 : index
    %c0_153 = arith.constant 0 : index
    %107 = vector.load %arg0[%c19, %c0_152, %c0_153] : memref<64x2x4xf32, #tpu.memory_space<vmem>>, vector<1x2x4xf32>
    %108 = vector.shape_cast %107 : vector<1x2x4xf32> to vector<2x4xf32>
    %c10_154 = arith.constant 10 : index
    %c20_155 = arith.constant 20 : index
    %109 = vector.load %arg22[%c10_154, %c20_155] : memref<32x36xf32, #tpu.memory_space<vmem>>, vector<2x4xf32>
    tpu.vector_store %arg22[%c10_154, %c20_155], %108 {strides = array<i32>} : memref<32x36xf32, #tpu.memory_space<vmem>>, vector<2x4xf32>,
    %c25_156 = arith.constant 25 : index
    %c0_157 = arith.constant 0 : index
    %c0_158 = arith.constant 0 : index
    %110 = vector.load %arg0[%c25_156, %c0_157, %c0_158] : memref<64x2x4xf32, #tpu.memory_space<vmem>>, vector<1x2x4xf32>
    %111 = vector.shape_cast %110 : vector<1x2x4xf32> to vector<2x4xf32>
    %c10_159 = arith.constant 10 : index
    %c24_160 = arith.constant 24 : index
    %112 = vector.load %arg22[%c10_159, %c24_160] : memref<32x36xf32, #tpu.memory_space<vmem>>, vector<2x4xf32>
    tpu.vector_store %arg22[%c10_159, %c24_160], %111 {strides = array<i32>} : memref<32x36xf32, #tpu.memory_space<vmem>>, vector<2x4xf32>,
    %c26 = arith.constant 26 : index
    %c0_161 = arith.constant 0 : index
    %c0_162 = arith.constant 0 : index
    %113 = vector.load %arg0[%c26, %c0_161, %c0_162] : memref<64x2x4xf32, #tpu.memory_space<vmem>>, vector<1x2x4xf32>
    %114 = vector.shape_cast %113 : vector<1x2x4xf32> to vector<2x4xf32>
    %c10_163 = arith.constant 10 : index
    %c28_164 = arith.constant 28 : index
    %115 = vector.load %arg22[%c10_163, %c28_164] : memref<32x36xf32, #tpu.memory_space<vmem>>, vector<2x4xf32>
    tpu.vector_store %arg22[%c10_163, %c28_164], %114 {strides = array<i32>} : memref<32x36xf32, #tpu.memory_space<vmem>>, vector<2x4xf32>,
    %c27 = arith.constant 27 : index
    %c0_165 = arith.constant 0 : index
    %c0_166 = arith.constant 0 : index
    %116 = vector.load %arg0[%c27, %c0_165, %c0_166] : memref<64x2x4xf32, #tpu.memory_space<vmem>>, vector<1x2x4xf32>
    %117 = vector.shape_cast %116 : vector<1x2x4xf32> to vector<2x4xf32>
    %c10_167 = arith.constant 10 : index
    %c32_168 = arith.constant 32 : index
    %118 = vector.load %arg22[%c10_167, %c32_168] : memref<32x36xf32, #tpu.memory_space<vmem>>, vector<2x4xf32>
    tpu.vector_store %arg22[%c10_167, %c32_168], %117 {strides = array<i32>} : memref<32x36xf32, #tpu.memory_space<vmem>>, vector<2x4xf32>,
    %c11_169 = arith.constant 11 : index
    %c0_170 = arith.constant 0 : index
    %c0_171 = arith.constant 0 : index
    %119 = vector.load %arg0[%c11_169, %c0_170, %c0_171] : memref<64x2x4xf32, #tpu.memory_space<vmem>>, vector<1x2x4xf32>
    %120 = vector.shape_cast %119 : vector<1x2x4xf32> to vector<2x4xf32>
    %c12_172 = arith.constant 12 : index
    %c0_173 = arith.constant 0 : index
    %121 = vector.load %arg22[%c12_172, %c0_173] : memref<32x36xf32, #tpu.memory_space<vmem>>, vector<2x4xf32>
    tpu.vector_store %arg22[%c12_172, %c0_173], %120 {strides = array<i32>} : memref<32x36xf32, #tpu.memory_space<vmem>>, vector<2x4xf32>,
    %c12_174 = arith.constant 12 : index
    %c0_175 = arith.constant 0 : index
    %c0_176 = arith.constant 0 : index
    %122 = vector.load %arg0[%c12_174, %c0_175, %c0_176] : memref<64x2x4xf32, #tpu.memory_space<vmem>>, vector<1x2x4xf32>
    %123 = vector.shape_cast %122 : vector<1x2x4xf32> to vector<2x4xf32>
    %c12_177 = arith.constant 12 : index
    %c4_178 = arith.constant 4 : index
    %124 = vector.load %arg22[%c12_177, %c4_178] : memref<32x36xf32, #tpu.memory_space<vmem>>, vector<2x4xf32>
    tpu.vector_store %arg22[%c12_177, %c4_178], %123 {strides = array<i32>} : memref<32x36xf32, #tpu.memory_space<vmem>>, vector<2x4xf32>,
    %c13_179 = arith.constant 13 : index
    %c0_180 = arith.constant 0 : index
    %c0_181 = arith.constant 0 : index
    %125 = vector.load %arg0[%c13_179, %c0_180, %c0_181] : memref<64x2x4xf32, #tpu.memory_space<vmem>>, vector<1x2x4xf32>
    %126 = vector.shape_cast %125 : vector<1x2x4xf32> to vector<2x4xf32>
    %c12_182 = arith.constant 12 : index
    %c8_183 = arith.constant 8 : index
    %127 = vector.load %arg22[%c12_182, %c8_183] : memref<32x36xf32, #tpu.memory_space<vmem>>, vector<2x4xf32>
    tpu.vector_store %arg22[%c12_182, %c8_183], %126 {strides = array<i32>} : memref<32x36xf32, #tpu.memory_space<vmem>>, vector<2x4xf32>,
    %c19_184 = arith.constant 19 : index
    %c0_185 = arith.constant 0 : index
    %c0_186 = arith.constant 0 : index
    %128 = vector.load %arg0[%c19_184, %c0_185, %c0_186] : memref<64x2x4xf32, #tpu.memory_space<vmem>>, vector<1x2x4xf32>
    %129 = vector.shape_cast %128 : vector<1x2x4xf32> to vector<2x4xf32>
    %c12_187 = arith.constant 12 : index
    %c12_188 = arith.constant 12 : index
    %130 = vector.load %arg22[%c12_187, %c12_188] : memref<32x36xf32, #tpu.memory_space<vmem>>, vector<2x4xf32>
    tpu.vector_store %arg22[%c12_187, %c12_188], %129 {strides = array<i32>} : memref<32x36xf32, #tpu.memory_space<vmem>>, vector<2x4xf32>,
    %c20_189 = arith.constant 20 : index
    %c0_190 = arith.constant 0 : index
    %c0_191 = arith.constant 0 : index
    %131 = vector.load %arg0[%c20_189, %c0_190, %c0_191] : memref<64x2x4xf32, #tpu.memory_space<vmem>>, vector<1x2x4xf32>
    %132 = vector.shape_cast %131 : vector<1x2x4xf32> to vector<2x4xf32>
    %c12_192 = arith.constant 12 : index
    %c16_193 = arith.constant 16 : index
    %133 = vector.load %arg22[%c12_192, %c16_193] : memref<32x36xf32, #tpu.memory_space<vmem>>, vector<2x4xf32>
    tpu.vector_store %arg22[%c12_192, %c16_193], %132 {strides = array<i32>} : memref<32x36xf32, #tpu.memory_space<vmem>>, vector<2x4xf32>,
    %c21 = arith.constant 21 : index
    %c0_194 = arith.constant 0 : index
    %c0_195 = arith.constant 0 : index
    %134 = vector.load %arg0[%c21, %c0_194, %c0_195] : memref<64x2x4xf32, #tpu.memory_space<vmem>>, vector<1x2x4xf32>
    %135 = vector.shape_cast %134 : vector<1x2x4xf32> to vector<2x4xf32>
    %c12_196 = arith.constant 12 : index
    %c20_197 = arith.constant 20 : index
    %136 = vector.load %arg22[%c12_196, %c20_197] : memref<32x36xf32, #tpu.memory_space<vmem>>, vector<2x4xf32>
    tpu.vector_store %arg22[%c12_196, %c20_197], %135 {strides = array<i32>} : memref<32x36xf32, #tpu.memory_space<vmem>>, vector<2x4xf32>,
    %c27_198 = arith.constant 27 : index
    %c0_199 = arith.constant 0 : index
    %c0_200 = arith.constant 0 : index
    %137 = vector.load %arg0[%c27_198, %c0_199, %c0_200] : memref<64x2x4xf32, #tpu.memory_space<vmem>>, vector<1x2x4xf32>
    %138 = vector.shape_cast %137 : vector<1x2x4xf32> to vector<2x4xf32>
    %c12_201 = arith.constant 12 : index
    %c24_202 = arith.constant 24 : index
    %139 = vector.load %arg22[%c12_201, %c24_202] : memref<32x36xf32, #tpu.memory_space<vmem>>, vector<2x4xf32>
    tpu.vector_store %arg22[%c12_201, %c24_202], %138 {strides = array<i32>} : memref<32x36xf32, #tpu.memory_space<vmem>>, vector<2x4xf32>,
    %c28_203 = arith.constant 28 : index
    %c0_204 = arith.constant 0 : index
    %c0_205 = arith.constant 0 : index
    %140 = vector.load %arg0[%c28_203, %c0_204, %c0_205] : memref<64x2x4xf32, #tpu.memory_space<vmem>>, vector<1x2x4xf32>
    %141 = vector.shape_cast %140 : vector<1x2x4xf32> to vector<2x4xf32>
    %c12_206 = arith.constant 12 : index
    %c28_207 = arith.constant 28 : index
    %142 = vector.load %arg22[%c12_206, %c28_207] : memref<32x36xf32, #tpu.memory_space<vmem>>, vector<2x4xf32>
    tpu.vector_store %arg22[%c12_206, %c28_207], %141 {strides = array<i32>} : memref<32x36xf32, #tpu.memory_space<vmem>>, vector<2x4xf32>,
    %c29 = arith.constant 29 : index
    %c0_208 = arith.constant 0 : index
    %c0_209 = arith.constant 0 : index
    %143 = vector.load %arg0[%c29, %c0_208, %c0_209] : memref<64x2x4xf32, #tpu.memory_space<vmem>>, vector<1x2x4xf32>
    %144 = vector.shape_cast %143 : vector<1x2x4xf32> to vector<2x4xf32>
    %c12_210 = arith.constant 12 : index
    %c32_211 = arith.constant 32 : index
    %145 = vector.load %arg22[%c12_210, %c32_211] : memref<32x36xf32, #tpu.memory_space<vmem>>, vector<2x4xf32>
    tpu.vector_store %arg22[%c12_210, %c32_211], %144 {strides = array<i32>} : memref<32x36xf32, #tpu.memory_space<vmem>>, vector<2x4xf32>,
    %c13_212 = arith.constant 13 : index
    %c0_213 = arith.constant 0 : index
    %c0_214 = arith.constant 0 : index
    %146 = vector.load %arg0[%c13_212, %c0_213, %c0_214] : memref<64x2x4xf32, #tpu.memory_space<vmem>>, vector<1x2x4xf32>
    %147 = vector.shape_cast %146 : vector<1x2x4xf32> to vector<2x4xf32>
    %c14_215 = arith.constant 14 : index
    %c0_216 = arith.constant 0 : index
    %148 = vector.load %arg22[%c14_215, %c0_216] : memref<32x36xf32, #tpu.memory_space<vmem>>, vector<2x4xf32>
    tpu.vector_store %arg22[%c14_215, %c0_216], %147 {strides = array<i32>} : memref<32x36xf32, #tpu.memory_space<vmem>>, vector<2x4xf32>,
    %c14_217 = arith.constant 14 : index
    %c0_218 = arith.constant 0 : index
    %c0_219 = arith.constant 0 : index
    %149 = vector.load %arg0[%c14_217, %c0_218, %c0_219] : memref<64x2x4xf32, #tpu.memory_space<vmem>>, vector<1x2x4xf32>
    %150 = vector.shape_cast %149 : vector<1x2x4xf32> to vector<2x4xf32>
    %c14_220 = arith.constant 14 : index
    %c4_221 = arith.constant 4 : index
    %151 = vector.load %arg22[%c14_220, %c4_221] : memref<32x36xf32, #tpu.memory_space<vmem>>, vector<2x4xf32>
    tpu.vector_store %arg22[%c14_220, %c4_221], %150 {strides = array<i32>} : memref<32x36xf32, #tpu.memory_space<vmem>>, vector<2x4xf32>,
    %c15_222 = arith.constant 15 : index
    %c0_223 = arith.constant 0 : index
    %c0_224 = arith.constant 0 : index
    %152 = vector.load %arg0[%c15_222, %c0_223, %c0_224] : memref<64x2x4xf32, #tpu.memory_space<vmem>>, vector<1x2x4xf32>
    %153 = vector.shape_cast %152 : vector<1x2x4xf32> to vector<2x4xf32>
    %c14_225 = arith.constant 14 : index
    %c8_226 = arith.constant 8 : index
    %154 = vector.load %arg22[%c14_225, %c8_226] : memref<32x36xf32, #tpu.memory_space<vmem>>, vector<2x4xf32>
    tpu.vector_store %arg22[%c14_225, %c8_226], %153 {strides = array<i32>} : memref<32x36xf32, #tpu.memory_space<vmem>>, vector<2x4xf32>,
    %c21_227 = arith.constant 21 : index
    %c0_228 = arith.constant 0 : index
    %c0_229 = arith.constant 0 : index
    %155 = vector.load %arg0[%c21_227, %c0_228, %c0_229] : memref<64x2x4xf32, #tpu.memory_space<vmem>>, vector<1x2x4xf32>
    %156 = vector.shape_cast %155 : vector<1x2x4xf32> to vector<2x4xf32>
    %c14_230 = arith.constant 14 : index
    %c12_231 = arith.constant 12 : index
    %157 = vector.load %arg22[%c14_230, %c12_231] : memref<32x36xf32, #tpu.memory_space<vmem>>, vector<2x4xf32>
    tpu.vector_store %arg22[%c14_230, %c12_231], %156 {strides = array<i32>} : memref<32x36xf32, #tpu.memory_space<vmem>>, vector<2x4xf32>,
    %c22 = arith.constant 22 : index
    %c0_232 = arith.constant 0 : index
    %c0_233 = arith.constant 0 : index
    %158 = vector.load %arg0[%c22, %c0_232, %c0_233] : memref<64x2x4xf32, #tpu.memory_space<vmem>>, vector<1x2x4xf32>
    %159 = vector.shape_cast %158 : vector<1x2x4xf32> to vector<2x4xf32>
    %c14_234 = arith.constant 14 : index
    %c16_235 = arith.constant 16 : index
    %160 = vector.load %arg22[%c14_234, %c16_235] : memref<32x36xf32, #tpu.memory_space<vmem>>, vector<2x4xf32>
    tpu.vector_store %arg22[%c14_234, %c16_235], %159 {strides = array<i32>} : memref<32x36xf32, #tpu.memory_space<vmem>>, vector<2x4xf32>,
    %c23 = arith.constant 23 : index
    %c0_236 = arith.constant 0 : index
    %c0_237 = arith.constant 0 : index
    %161 = vector.load %arg0[%c23, %c0_236, %c0_237] : memref<64x2x4xf32, #tpu.memory_space<vmem>>, vector<1x2x4xf32>
    %162 = vector.shape_cast %161 : vector<1x2x4xf32> to vector<2x4xf32>
    %c14_238 = arith.constant 14 : index
    %c20_239 = arith.constant 20 : index
    %163 = vector.load %arg22[%c14_238, %c20_239] : memref<32x36xf32, #tpu.memory_space<vmem>>, vector<2x4xf32>
    tpu.vector_store %arg22[%c14_238, %c20_239], %162 {strides = array<i32>} : memref<32x36xf32, #tpu.memory_space<vmem>>, vector<2x4xf32>,
    %c29_240 = arith.constant 29 : index
    %c0_241 = arith.constant 0 : index
    %c0_242 = arith.constant 0 : index
    %164 = vector.load %arg0[%c29_240, %c0_241, %c0_242] : memref<64x2x4xf32, #tpu.memory_space<vmem>>, vector<1x2x4xf32>
    %165 = vector.shape_cast %164 : vector<1x2x4xf32> to vector<2x4xf32>
    %c14_243 = arith.constant 14 : index
    %c24_244 = arith.constant 24 : index
    %166 = vector.load %arg22[%c14_243, %c24_244] : memref<32x36xf32, #tpu.memory_space<vmem>>, vector<2x4xf32>
    tpu.vector_store %arg22[%c14_243, %c24_244], %165 {strides = array<i32>} : memref<32x36xf32, #tpu.memory_space<vmem>>, vector<2x4xf32>,
    %c30 = arith.constant 30 : index
    %c0_245 = arith.constant 0 : index
    %c0_246 = arith.constant 0 : index
    %167 = vector.load %arg0[%c30, %c0_245, %c0_246] : memref<64x2x4xf32, #tpu.memory_space<vmem>>, vector<1x2x4xf32>
    %168 = vector.shape_cast %167 : vector<1x2x4xf32> to vector<2x4xf32>
    %c14_247 = arith.constant 14 : index
    %c28_248 = arith.constant 28 : index
    %169 = vector.load %arg22[%c14_247, %c28_248] : memref<32x36xf32, #tpu.memory_space<vmem>>, vector<2x4xf32>
    tpu.vector_store %arg22[%c14_247, %c28_248], %168 {strides = array<i32>} : memref<32x36xf32, #tpu.memory_space<vmem>>, vector<2x4xf32>,
    %c31 = arith.constant 31 : index
    %c0_249 = arith.constant 0 : index
    %c0_250 = arith.constant 0 : index
    %170 = vector.load %arg0[%c31, %c0_249, %c0_250] : memref<64x2x4xf32, #tpu.memory_space<vmem>>, vector<1x2x4xf32>
    %171 = vector.shape_cast %170 : vector<1x2x4xf32> to vector<2x4xf32>
    %c14_251 = arith.constant 14 : index
    %c32_252 = arith.constant 32 : index
    %172 = vector.load %arg22[%c14_251, %c32_252] : memref<32x36xf32, #tpu.memory_space<vmem>>, vector<2x4xf32>
    tpu.vector_store %arg22[%c14_251, %c32_252], %171 {strides = array<i32>} : memref<32x36xf32, #tpu.memory_space<vmem>>, vector<2x4xf32>,
    %c24_253 = arith.constant 24 : index
    %c0_254 = arith.constant 0 : index
    %c0_255 = arith.constant 0 : index
    %173 = vector.load %arg0[%c24_253, %c0_254, %c0_255] : memref<64x2x4xf32, #tpu.memory_space<vmem>>, vector<1x2x4xf32>
    %174 = vector.shape_cast %173 : vector<1x2x4xf32> to vector<2x4xf32>
    %c16_256 = arith.constant 16 : index
    %c4_257 = arith.constant 4 : index
    %175 = vector.load %arg22[%c16_256, %c4_257] : memref<32x36xf32, #tpu.memory_space<vmem>>, vector<2x4xf32>
    tpu.vector_store %arg22[%c16_256, %c4_257], %174 {strides = array<i32>} : memref<32x36xf32, #tpu.memory_space<vmem>>, vector<2x4xf32>,
    %c25_258 = arith.constant 25 : index
    %c0_259 = arith.constant 0 : index
    %c0_260 = arith.constant 0 : index
    %176 = vector.load %arg0[%c25_258, %c0_259, %c0_260] : memref<64x2x4xf32, #tpu.memory_space<vmem>>, vector<1x2x4xf32>
    %177 = vector.shape_cast %176 : vector<1x2x4xf32> to vector<2x4xf32>
    %c16_261 = arith.constant 16 : index
    %c8_262 = arith.constant 8 : index
    %178 = vector.load %arg22[%c16_261, %c8_262] : memref<32x36xf32, #tpu.memory_space<vmem>>, vector<2x4xf32>
    tpu.vector_store %arg22[%c16_261, %c8_262], %177 {strides = array<i32>} : memref<32x36xf32, #tpu.memory_space<vmem>>, vector<2x4xf32>,
    %c32_263 = arith.constant 32 : index
    %c0_264 = arith.constant 0 : index
    %c0_265 = arith.constant 0 : index
    %179 = vector.load %arg0[%c32_263, %c0_264, %c0_265] : memref<64x2x4xf32, #tpu.memory_space<vmem>>, vector<1x2x4xf32>
    %180 = vector.shape_cast %179 : vector<1x2x4xf32> to vector<2x4xf32>
    %c16_266 = arith.constant 16 : index
    %c16_267 = arith.constant 16 : index
    %181 = vector.load %arg22[%c16_266, %c16_267] : memref<32x36xf32, #tpu.memory_space<vmem>>, vector<2x4xf32>
    tpu.vector_store %arg22[%c16_266, %c16_267], %180 {strides = array<i32>} : memref<32x36xf32, #tpu.memory_space<vmem>>, vector<2x4xf32>,
    %c33 = arith.constant 33 : index
    %c0_268 = arith.constant 0 : index
    %c0_269 = arith.constant 0 : index
    %182 = vector.load %arg0[%c33, %c0_268, %c0_269] : memref<64x2x4xf32, #tpu.memory_space<vmem>>, vector<1x2x4xf32>
    %183 = vector.shape_cast %182 : vector<1x2x4xf32> to vector<2x4xf32>
    %c16_270 = arith.constant 16 : index
    %c20_271 = arith.constant 20 : index
    %184 = vector.load %arg22[%c16_270, %c20_271] : memref<32x36xf32, #tpu.memory_space<vmem>>, vector<2x4xf32>
    tpu.vector_store %arg22[%c16_270, %c20_271], %183 {strides = array<i32>} : memref<32x36xf32, #tpu.memory_space<vmem>>, vector<2x4xf32>,
    %c40 = arith.constant 40 : index
    %c0_272 = arith.constant 0 : index
    %c0_273 = arith.constant 0 : index
    %185 = vector.load %arg0[%c40, %c0_272, %c0_273] : memref<64x2x4xf32, #tpu.memory_space<vmem>>, vector<1x2x4xf32>
    %186 = vector.shape_cast %185 : vector<1x2x4xf32> to vector<2x4xf32>
    %c16_274 = arith.constant 16 : index
    %c28_275 = arith.constant 28 : index
    %187 = vector.load %arg22[%c16_274, %c28_275] : memref<32x36xf32, #tpu.memory_space<vmem>>, vector<2x4xf32>
    tpu.vector_store %arg22[%c16_274, %c28_275], %186 {strides = array<i32>} : memref<32x36xf32, #tpu.memory_space<vmem>>, vector<2x4xf32>,
    %c41 = arith.constant 41 : index
    %c0_276 = arith.constant 0 : index
    %c0_277 = arith.constant 0 : index
    %188 = vector.load %arg0[%c41, %c0_276, %c0_277] : memref<64x2x4xf32, #tpu.memory_space<vmem>>, vector<1x2x4xf32>
    %189 = vector.shape_cast %188 : vector<1x2x4xf32> to vector<2x4xf32>
    %c16_278 = arith.constant 16 : index
    %c32_279 = arith.constant 32 : index
    %190 = vector.load %arg22[%c16_278, %c32_279] : memref<32x36xf32, #tpu.memory_space<vmem>>, vector<2x4xf32>
    tpu.vector_store %arg22[%c16_278, %c32_279], %189 {strides = array<i32>} : memref<32x36xf32, #tpu.memory_space<vmem>>, vector<2x4xf32>,
    %c25_280 = arith.constant 25 : index
    %c0_281 = arith.constant 0 : index
    %c0_282 = arith.constant 0 : index
    %191 = vector.load %arg0[%c25_280, %c0_281, %c0_282] : memref<64x2x4xf32, #tpu.memory_space<vmem>>, vector<1x2x4xf32>
    %192 = vector.shape_cast %191 : vector<1x2x4xf32> to vector<2x4xf32>
    %c18_283 = arith.constant 18 : index
    %c0_284 = arith.constant 0 : index
    %193 = vector.load %arg22[%c18_283, %c0_284] : memref<32x36xf32, #tpu.memory_space<vmem>>, vector<2x4xf32>
    tpu.vector_store %arg22[%c18_283, %c0_284], %192 {strides = array<i32>} : memref<32x36xf32, #tpu.memory_space<vmem>>, vector<2x4xf32>,
    %c26_285 = arith.constant 26 : index
    %c0_286 = arith.constant 0 : index
    %c0_287 = arith.constant 0 : index
    %194 = vector.load %arg0[%c26_285, %c0_286, %c0_287] : memref<64x2x4xf32, #tpu.memory_space<vmem>>, vector<1x2x4xf32>
    %195 = vector.shape_cast %194 : vector<1x2x4xf32> to vector<2x4xf32>
    %c18_288 = arith.constant 18 : index
    %c4_289 = arith.constant 4 : index
    %196 = vector.load %arg22[%c18_288, %c4_289] : memref<32x36xf32, #tpu.memory_space<vmem>>, vector<2x4xf32>
    tpu.vector_store %arg22[%c18_288, %c4_289], %195 {strides = array<i32>} : memref<32x36xf32, #tpu.memory_space<vmem>>, vector<2x4xf32>,
    %c27_290 = arith.constant 27 : index
    %c0_291 = arith.constant 0 : index
    %c0_292 = arith.constant 0 : index
    %197 = vector.load %arg0[%c27_290, %c0_291, %c0_292] : memref<64x2x4xf32, #tpu.memory_space<vmem>>, vector<1x2x4xf32>
    %198 = vector.shape_cast %197 : vector<1x2x4xf32> to vector<2x4xf32>
    %c18_293 = arith.constant 18 : index
    %c8_294 = arith.constant 8 : index
    %199 = vector.load %arg22[%c18_293, %c8_294] : memref<32x36xf32, #tpu.memory_space<vmem>>, vector<2x4xf32>
    tpu.vector_store %arg22[%c18_293, %c8_294], %198 {strides = array<i32>} : memref<32x36xf32, #tpu.memory_space<vmem>>, vector<2x4xf32>,
    %c33_295 = arith.constant 33 : index
    %c0_296 = arith.constant 0 : index
    %c0_297 = arith.constant 0 : index
    %200 = vector.load %arg0[%c33_295, %c0_296, %c0_297] : memref<64x2x4xf32, #tpu.memory_space<vmem>>, vector<1x2x4xf32>
    %201 = vector.shape_cast %200 : vector<1x2x4xf32> to vector<2x4xf32>
    %c18_298 = arith.constant 18 : index
    %c12_299 = arith.constant 12 : index
    %202 = vector.load %arg22[%c18_298, %c12_299] : memref<32x36xf32, #tpu.memory_space<vmem>>, vector<2x4xf32>
    tpu.vector_store %arg22[%c18_298, %c12_299], %201 {strides = array<i32>} : memref<32x36xf32, #tpu.memory_space<vmem>>, vector<2x4xf32>,
    %c34 = arith.constant 34 : index
    %c0_300 = arith.constant 0 : index
    %c0_301 = arith.constant 0 : index
    %203 = vector.load %arg0[%c34, %c0_300, %c0_301] : memref<64x2x4xf32, #tpu.memory_space<vmem>>, vector<1x2x4xf32>
    %204 = vector.shape_cast %203 : vector<1x2x4xf32> to vector<2x4xf32>
    %c18_302 = arith.constant 18 : index
    %c16_303 = arith.constant 16 : index
    %205 = vector.load %arg22[%c18_302, %c16_303] : memref<32x36xf32, #tpu.memory_space<vmem>>, vector<2x4xf32>
    tpu.vector_store %arg22[%c18_302, %c16_303], %204 {strides = array<i32>} : memref<32x36xf32, #tpu.memory_space<vmem>>, vector<2x4xf32>,
    %c35 = arith.constant 35 : index
    %c0_304 = arith.constant 0 : index
    %c0_305 = arith.constant 0 : index
    %206 = vector.load %arg0[%c35, %c0_304, %c0_305] : memref<64x2x4xf32, #tpu.memory_space<vmem>>, vector<1x2x4xf32>
    %207 = vector.shape_cast %206 : vector<1x2x4xf32> to vector<2x4xf32>
    %c18_306 = arith.constant 18 : index
    %c20_307 = arith.constant 20 : index
    %208 = vector.load %arg22[%c18_306, %c20_307] : memref<32x36xf32, #tpu.memory_space<vmem>>, vector<2x4xf32>
    tpu.vector_store %arg22[%c18_306, %c20_307], %207 {strides = array<i32>} : memref<32x36xf32, #tpu.memory_space<vmem>>, vector<2x4xf32>,
    %c41_308 = arith.constant 41 : index
    %c0_309 = arith.constant 0 : index
    %c0_310 = arith.constant 0 : index
    %209 = vector.load %arg0[%c41_308, %c0_309, %c0_310] : memref<64x2x4xf32, #tpu.memory_space<vmem>>, vector<1x2x4xf32>
    %210 = vector.shape_cast %209 : vector<1x2x4xf32> to vector<2x4xf32>
    %c18_311 = arith.constant 18 : index
    %c24_312 = arith.constant 24 : index
    %211 = vector.load %arg22[%c18_311, %c24_312] : memref<32x36xf32, #tpu.memory_space<vmem>>, vector<2x4xf32>
    tpu.vector_store %arg22[%c18_311, %c24_312], %210 {strides = array<i32>} : memref<32x36xf32, #tpu.memory_space<vmem>>, vector<2x4xf32>,
    %c42 = arith.constant 42 : index
    %c0_313 = arith.constant 0 : index
    %c0_314 = arith.constant 0 : index
    %212 = vector.load %arg0[%c42, %c0_313, %c0_314] : memref<64x2x4xf32, #tpu.memory_space<vmem>>, vector<1x2x4xf32>
    %213 = vector.shape_cast %212 : vector<1x2x4xf32> to vector<2x4xf32>
    %c18_315 = arith.constant 18 : index
    %c28_316 = arith.constant 28 : index
    %214 = vector.load %arg22[%c18_315, %c28_316] : memref<32x36xf32, #tpu.memory_space<vmem>>, vector<2x4xf32>
    tpu.vector_store %arg22[%c18_315, %c28_316], %213 {strides = array<i32>} : memref<32x36xf32, #tpu.memory_space<vmem>>, vector<2x4xf32>,
    %c43 = arith.constant 43 : index
    %c0_317 = arith.constant 0 : index
    %c0_318 = arith.constant 0 : index
    %215 = vector.load %arg0[%c43, %c0_317, %c0_318] : memref<64x2x4xf32, #tpu.memory_space<vmem>>, vector<1x2x4xf32>
    %216 = vector.shape_cast %215 : vector<1x2x4xf32> to vector<2x4xf32>
    %c18_319 = arith.constant 18 : index
    %c32_320 = arith.constant 32 : index
    %217 = vector.load %arg22[%c18_319, %c32_320] : memref<32x36xf32, #tpu.memory_space<vmem>>, vector<2x4xf32>
    tpu.vector_store %arg22[%c18_319, %c32_320], %216 {strides = array<i32>} : memref<32x36xf32, #tpu.memory_space<vmem>>, vector<2x4xf32>,
    %c27_321 = arith.constant 27 : index
    %c0_322 = arith.constant 0 : index
    %c0_323 = arith.constant 0 : index
    %218 = vector.load %arg0[%c27_321, %c0_322, %c0_323] : memref<64x2x4xf32, #tpu.memory_space<vmem>>, vector<1x2x4xf32>
    %219 = vector.shape_cast %218 : vector<1x2x4xf32> to vector<2x4xf32>
    %c20_324 = arith.constant 20 : index
    %c0_325 = arith.constant 0 : index
    %220 = vector.load %arg22[%c20_324, %c0_325] : memref<32x36xf32, #tpu.memory_space<vmem>>, vector<2x4xf32>
    tpu.vector_store %arg22[%c20_324, %c0_325], %219 {strides = array<i32>} : memref<32x36xf32, #tpu.memory_space<vmem>>, vector<2x4xf32>,
    %c28_326 = arith.constant 28 : index
    %c0_327 = arith.constant 0 : index
    %c0_328 = arith.constant 0 : index
    %221 = vector.load %arg0[%c28_326, %c0_327, %c0_328] : memref<64x2x4xf32, #tpu.memory_space<vmem>>, vector<1x2x4xf32>
    %222 = vector.shape_cast %221 : vector<1x2x4xf32> to vector<2x4xf32>
    %c20_329 = arith.constant 20 : index
    %c4_330 = arith.constant 4 : index
    %223 = vector.load %arg22[%c20_329, %c4_330] : memref<32x36xf32, #tpu.memory_space<vmem>>, vector<2x4xf32>
    tpu.vector_store %arg22[%c20_329, %c4_330], %222 {strides = array<i32>} : memref<32x36xf32, #tpu.memory_space<vmem>>, vector<2x4xf32>,
    %c29_331 = arith.constant 29 : index
    %c0_332 = arith.constant 0 : index
    %c0_333 = arith.constant 0 : index
    %224 = vector.load %arg0[%c29_331, %c0_332, %c0_333] : memref<64x2x4xf32, #tpu.memory_space<vmem>>, vector<1x2x4xf32>
    %225 = vector.shape_cast %224 : vector<1x2x4xf32> to vector<2x4xf32>
    %c20_334 = arith.constant 20 : index
    %c8_335 = arith.constant 8 : index
    %226 = vector.load %arg22[%c20_334, %c8_335] : memref<32x36xf32, #tpu.memory_space<vmem>>, vector<2x4xf32>
    tpu.vector_store %arg22[%c20_334, %c8_335], %225 {strides = array<i32>} : memref<32x36xf32, #tpu.memory_space<vmem>>, vector<2x4xf32>,
    %c35_336 = arith.constant 35 : index
    %c0_337 = arith.constant 0 : index
    %c0_338 = arith.constant 0 : index
    %227 = vector.load %arg0[%c35_336, %c0_337, %c0_338] : memref<64x2x4xf32, #tpu.memory_space<vmem>>, vector<1x2x4xf32>
    %228 = vector.shape_cast %227 : vector<1x2x4xf32> to vector<2x4xf32>
    %c20_339 = arith.constant 20 : index
    %c12_340 = arith.constant 12 : index
    %229 = vector.load %arg22[%c20_339, %c12_340] : memref<32x36xf32, #tpu.memory_space<vmem>>, vector<2x4xf32>
    tpu.vector_store %arg22[%c20_339, %c12_340], %228 {strides = array<i32>} : memref<32x36xf32, #tpu.memory_space<vmem>>, vector<2x4xf32>,
    %c36 = arith.constant 36 : index
    %c0_341 = arith.constant 0 : index
    %c0_342 = arith.constant 0 : index
    %230 = vector.load %arg0[%c36, %c0_341, %c0_342] : memref<64x2x4xf32, #tpu.memory_space<vmem>>, vector<1x2x4xf32>
    %231 = vector.shape_cast %230 : vector<1x2x4xf32> to vector<2x4xf32>
    %c20_343 = arith.constant 20 : index
    %c16_344 = arith.constant 16 : index
    %232 = vector.load %arg22[%c20_343, %c16_344] : memref<32x36xf32, #tpu.memory_space<vmem>>, vector<2x4xf32>
    tpu.vector_store %arg22[%c20_343, %c16_344], %231 {strides = array<i32>} : memref<32x36xf32, #tpu.memory_space<vmem>>, vector<2x4xf32>,
    %c37 = arith.constant 37 : index
    %c0_345 = arith.constant 0 : index
    %c0_346 = arith.constant 0 : index
    %233 = vector.load %arg0[%c37, %c0_345, %c0_346] : memref<64x2x4xf32, #tpu.memory_space<vmem>>, vector<1x2x4xf32>
    %234 = vector.shape_cast %233 : vector<1x2x4xf32> to vector<2x4xf32>
    %c20_347 = arith.constant 20 : index
    %c20_348 = arith.constant 20 : index
    %235 = vector.load %arg22[%c20_347, %c20_348] : memref<32x36xf32, #tpu.memory_space<vmem>>, vector<2x4xf32>
    tpu.vector_store %arg22[%c20_347, %c20_348], %234 {strides = array<i32>} : memref<32x36xf32, #tpu.memory_space<vmem>>, vector<2x4xf32>,
    %c43_349 = arith.constant 43 : index
    %c0_350 = arith.constant 0 : index
    %c0_351 = arith.constant 0 : index
    %236 = vector.load %arg0[%c43_349, %c0_350, %c0_351] : memref<64x2x4xf32, #tpu.memory_space<vmem>>, vector<1x2x4xf32>
    %237 = vector.shape_cast %236 : vector<1x2x4xf32> to vector<2x4xf32>
    %c20_352 = arith.constant 20 : index
    %c24_353 = arith.constant 24 : index
    %238 = vector.load %arg22[%c20_352, %c24_353] : memref<32x36xf32, #tpu.memory_space<vmem>>, vector<2x4xf32>
    tpu.vector_store %arg22[%c20_352, %c24_353], %237 {strides = array<i32>} : memref<32x36xf32, #tpu.memory_space<vmem>>, vector<2x4xf32>,
    %c44 = arith.constant 44 : index
    %c0_354 = arith.constant 0 : index
    %c0_355 = arith.constant 0 : index
    %239 = vector.load %arg0[%c44, %c0_354, %c0_355] : memref<64x2x4xf32, #tpu.memory_space<vmem>>, vector<1x2x4xf32>
    %240 = vector.shape_cast %239 : vector<1x2x4xf32> to vector<2x4xf32>
    %c20_356 = arith.constant 20 : index
    %c28_357 = arith.constant 28 : index
    %241 = vector.load %arg22[%c20_356, %c28_357] : memref<32x36xf32, #tpu.memory_space<vmem>>, vector<2x4xf32>
    tpu.vector_store %arg22[%c20_356, %c28_357], %240 {strides = array<i32>} : memref<32x36xf32, #tpu.memory_space<vmem>>, vector<2x4xf32>,
    %c45 = arith.constant 45 : index
    %c0_358 = arith.constant 0 : index
    %c0_359 = arith.constant 0 : index
    %242 = vector.load %arg0[%c45, %c0_358, %c0_359] : memref<64x2x4xf32, #tpu.memory_space<vmem>>, vector<1x2x4xf32>
    %243 = vector.shape_cast %242 : vector<1x2x4xf32> to vector<2x4xf32>
    %c20_360 = arith.constant 20 : index
    %c32_361 = arith.constant 32 : index
    %244 = vector.load %arg22[%c20_360, %c32_361] : memref<32x36xf32, #tpu.memory_space<vmem>>, vector<2x4xf32>
    tpu.vector_store %arg22[%c20_360, %c32_361], %243 {strides = array<i32>} : memref<32x36xf32, #tpu.memory_space<vmem>>, vector<2x4xf32>,
    %c29_362 = arith.constant 29 : index
    %c0_363 = arith.constant 0 : index
    %c0_364 = arith.constant 0 : index
    %245 = vector.load %arg0[%c29_362, %c0_363, %c0_364] : memref<64x2x4xf32, #tpu.memory_space<vmem>>, vector<1x2x4xf32>
    %246 = vector.shape_cast %245 : vector<1x2x4xf32> to vector<2x4xf32>
    %c22_365 = arith.constant 22 : index
    %c0_366 = arith.constant 0 : index
    %247 = vector.load %arg22[%c22_365, %c0_366] : memref<32x36xf32, #tpu.memory_space<vmem>>, vector<2x4xf32>
    tpu.vector_store %arg22[%c22_365, %c0_366], %246 {strides = array<i32>} : memref<32x36xf32, #tpu.memory_space<vmem>>, vector<2x4xf32>,
    %c30_367 = arith.constant 30 : index
    %c0_368 = arith.constant 0 : index
    %c0_369 = arith.constant 0 : index
    %248 = vector.load %arg0[%c30_367, %c0_368, %c0_369] : memref<64x2x4xf32, #tpu.memory_space<vmem>>, vector<1x2x4xf32>
    %249 = vector.shape_cast %248 : vector<1x2x4xf32> to vector<2x4xf32>
    %c22_370 = arith.constant 22 : index
    %c4_371 = arith.constant 4 : index
    %250 = vector.load %arg22[%c22_370, %c4_371] : memref<32x36xf32, #tpu.memory_space<vmem>>, vector<2x4xf32>
    tpu.vector_store %arg22[%c22_370, %c4_371], %249 {strides = array<i32>} : memref<32x36xf32, #tpu.memory_space<vmem>>, vector<2x4xf32>,
    %c31_372 = arith.constant 31 : index
    %c0_373 = arith.constant 0 : index
    %c0_374 = arith.constant 0 : index
    %251 = vector.load %arg0[%c31_372, %c0_373, %c0_374] : memref<64x2x4xf32, #tpu.memory_space<vmem>>, vector<1x2x4xf32>
    %252 = vector.shape_cast %251 : vector<1x2x4xf32> to vector<2x4xf32>
    %c22_375 = arith.constant 22 : index
    %c8_376 = arith.constant 8 : index
    %253 = vector.load %arg22[%c22_375, %c8_376] : memref<32x36xf32, #tpu.memory_space<vmem>>, vector<2x4xf32>
    tpu.vector_store %arg22[%c22_375, %c8_376], %252 {strides = array<i32>} : memref<32x36xf32, #tpu.memory_space<vmem>>, vector<2x4xf32>,
    %c37_377 = arith.constant 37 : index
    %c0_378 = arith.constant 0 : index
    %c0_379 = arith.constant 0 : index
    %254 = vector.load %arg0[%c37_377, %c0_378, %c0_379] : memref<64x2x4xf32, #tpu.memory_space<vmem>>, vector<1x2x4xf32>
    %255 = vector.shape_cast %254 : vector<1x2x4xf32> to vector<2x4xf32>
    %c22_380 = arith.constant 22 : index
    %c12_381 = arith.constant 12 : index
    %256 = vector.load %arg22[%c22_380, %c12_381] : memref<32x36xf32, #tpu.memory_space<vmem>>, vector<2x4xf32>
    tpu.vector_store %arg22[%c22_380, %c12_381], %255 {strides = array<i32>} : memref<32x36xf32, #tpu.memory_space<vmem>>, vector<2x4xf32>,
    %c38 = arith.constant 38 : index
    %c0_382 = arith.constant 0 : index
    %c0_383 = arith.constant 0 : index
    %257 = vector.load %arg0[%c38, %c0_382, %c0_383] : memref<64x2x4xf32, #tpu.memory_space<vmem>>, vector<1x2x4xf32>
    %258 = vector.shape_cast %257 : vector<1x2x4xf32> to vector<2x4xf32>
    %c22_384 = arith.constant 22 : index
    %c16_385 = arith.constant 16 : index
    %259 = vector.load %arg22[%c22_384, %c16_385] : memref<32x36xf32, #tpu.memory_space<vmem>>, vector<2x4xf32>
    tpu.vector_store %arg22[%c22_384, %c16_385], %258 {strides = array<i32>} : memref<32x36xf32, #tpu.memory_space<vmem>>, vector<2x4xf32>,
    %c39 = arith.constant 39 : index
    %c0_386 = arith.constant 0 : index
    %c0_387 = arith.constant 0 : index
    %260 = vector.load %arg0[%c39, %c0_386, %c0_387] : memref<64x2x4xf32, #tpu.memory_space<vmem>>, vector<1x2x4xf32>
    %261 = vector.shape_cast %260 : vector<1x2x4xf32> to vector<2x4xf32>
    %c22_388 = arith.constant 22 : index
    %c20_389 = arith.constant 20 : index
    %262 = vector.load %arg22[%c22_388, %c20_389] : memref<32x36xf32, #tpu.memory_space<vmem>>, vector<2x4xf32>
    tpu.vector_store %arg22[%c22_388, %c20_389], %261 {strides = array<i32>} : memref<32x36xf32, #tpu.memory_space<vmem>>, vector<2x4xf32>,
    %c45_390 = arith.constant 45 : index
    %c0_391 = arith.constant 0 : index
    %c0_392 = arith.constant 0 : index
    %263 = vector.load %arg0[%c45_390, %c0_391, %c0_392] : memref<64x2x4xf32, #tpu.memory_space<vmem>>, vector<1x2x4xf32>
    %264 = vector.shape_cast %263 : vector<1x2x4xf32> to vector<2x4xf32>
    %c22_393 = arith.constant 22 : index
    %c24_394 = arith.constant 24 : index
    %265 = vector.load %arg22[%c22_393, %c24_394] : memref<32x36xf32, #tpu.memory_space<vmem>>, vector<2x4xf32>
    tpu.vector_store %arg22[%c22_393, %c24_394], %264 {strides = array<i32>} : memref<32x36xf32, #tpu.memory_space<vmem>>, vector<2x4xf32>,
    %c46 = arith.constant 46 : index
    %c0_395 = arith.constant 0 : index
    %c0_396 = arith.constant 0 : index
    %266 = vector.load %arg0[%c46, %c0_395, %c0_396] : memref<64x2x4xf32, #tpu.memory_space<vmem>>, vector<1x2x4xf32>
    %267 = vector.shape_cast %266 : vector<1x2x4xf32> to vector<2x4xf32>
    %c22_397 = arith.constant 22 : index
    %c28_398 = arith.constant 28 : index
    %268 = vector.load %arg22[%c22_397, %c28_398] : memref<32x36xf32, #tpu.memory_space<vmem>>, vector<2x4xf32>
    tpu.vector_store %arg22[%c22_397, %c28_398], %267 {strides = array<i32>} : memref<32x36xf32, #tpu.memory_space<vmem>>, vector<2x4xf32>,
    %c47 = arith.constant 47 : index
    %c0_399 = arith.constant 0 : index
    %c0_400 = arith.constant 0 : index
    %269 = vector.load %arg0[%c47, %c0_399, %c0_400] : memref<64x2x4xf32, #tpu.memory_space<vmem>>, vector<1x2x4xf32>
    %270 = vector.shape_cast %269 : vector<1x2x4xf32> to vector<2x4xf32>
    %c22_401 = arith.constant 22 : index
    %c32_402 = arith.constant 32 : index
    %271 = vector.load %arg22[%c22_401, %c32_402] : memref<32x36xf32, #tpu.memory_space<vmem>>, vector<2x4xf32>
    tpu.vector_store %arg22[%c22_401, %c32_402], %270 {strides = array<i32>} : memref<32x36xf32, #tpu.memory_space<vmem>>, vector<2x4xf32>,
    %c40_403 = arith.constant 40 : index
    %c0_404 = arith.constant 0 : index
    %c0_405 = arith.constant 0 : index
    %272 = vector.load %arg0[%c40_403, %c0_404, %c0_405] : memref<64x2x4xf32, #tpu.memory_space<vmem>>, vector<1x2x4xf32>
    %273 = vector.shape_cast %272 : vector<1x2x4xf32> to vector<2x4xf32>
    %c24_406 = arith.constant 24 : index
    %c4_407 = arith.constant 4 : index
    %274 = vector.load %arg22[%c24_406, %c4_407] : memref<32x36xf32, #tpu.memory_space<vmem>>, vector<2x4xf32>
    tpu.vector_store %arg22[%c24_406, %c4_407], %273 {strides = array<i32>} : memref<32x36xf32, #tpu.memory_space<vmem>>, vector<2x4xf32>,
    %c41_408 = arith.constant 41 : index
    %c0_409 = arith.constant 0 : index
    %c0_410 = arith.constant 0 : index
    %275 = vector.load %arg0[%c41_408, %c0_409, %c0_410] : memref<64x2x4xf32, #tpu.memory_space<vmem>>, vector<1x2x4xf32>
    %276 = vector.shape_cast %275 : vector<1x2x4xf32> to vector<2x4xf32>
    %c24_411 = arith.constant 24 : index
    %c8_412 = arith.constant 8 : index
    %277 = vector.load %arg22[%c24_411, %c8_412] : memref<32x36xf32, #tpu.memory_space<vmem>>, vector<2x4xf32>
    tpu.vector_store %arg22[%c24_411, %c8_412], %276 {strides = array<i32>} : memref<32x36xf32, #tpu.memory_space<vmem>>, vector<2x4xf32>,
    %c48 = arith.constant 48 : index
    %c0_413 = arith.constant 0 : index
    %c0_414 = arith.constant 0 : index
    %278 = vector.load %arg0[%c48, %c0_413, %c0_414] : memref<64x2x4xf32, #tpu.memory_space<vmem>>, vector<1x2x4xf32>
    %279 = vector.shape_cast %278 : vector<1x2x4xf32> to vector<2x4xf32>
    %c24_415 = arith.constant 24 : index
    %c16_416 = arith.constant 16 : index
    %280 = vector.load %arg22[%c24_415, %c16_416] : memref<32x36xf32, #tpu.memory_space<vmem>>, vector<2x4xf32>
    tpu.vector_store %arg22[%c24_415, %c16_416], %279 {strides = array<i32>} : memref<32x36xf32, #tpu.memory_space<vmem>>, vector<2x4xf32>,
    %c49 = arith.constant 49 : index
    %c0_417 = arith.constant 0 : index
    %c0_418 = arith.constant 0 : index
    %281 = vector.load %arg0[%c49, %c0_417, %c0_418] : memref<64x2x4xf32, #tpu.memory_space<vmem>>, vector<1x2x4xf32>
    %282 = vector.shape_cast %281 : vector<1x2x4xf32> to vector<2x4xf32>
    %c24_419 = arith.constant 24 : index
    %c20_420 = arith.constant 20 : index
    %283 = vector.load %arg22[%c24_419, %c20_420] : memref<32x36xf32, #tpu.memory_space<vmem>>, vector<2x4xf32>
    tpu.vector_store %arg22[%c24_419, %c20_420], %282 {strides = array<i32>} : memref<32x36xf32, #tpu.memory_space<vmem>>, vector<2x4xf32>,
    %c56 = arith.constant 56 : index
    %c0_421 = arith.constant 0 : index
    %c0_422 = arith.constant 0 : index
    %284 = vector.load %arg0[%c56, %c0_421, %c0_422] : memref<64x2x4xf32, #tpu.memory_space<vmem>>, vector<1x2x4xf32>
    %285 = vector.shape_cast %284 : vector<1x2x4xf32> to vector<2x4xf32>
    %c24_423 = arith.constant 24 : index
    %c28_424 = arith.constant 28 : index
    %286 = vector.load %arg22[%c24_423, %c28_424] : memref<32x36xf32, #tpu.memory_space<vmem>>, vector<2x4xf32>
    tpu.vector_store %arg22[%c24_423, %c28_424], %285 {strides = array<i32>} : memref<32x36xf32, #tpu.memory_space<vmem>>, vector<2x4xf32>,
    %c57 = arith.constant 57 : index
    %c0_425 = arith.constant 0 : index
    %c0_426 = arith.constant 0 : index
    %287 = vector.load %arg0[%c57, %c0_425, %c0_426] : memref<64x2x4xf32, #tpu.memory_space<vmem>>, vector<1x2x4xf32>
    %288 = vector.shape_cast %287 : vector<1x2x4xf32> to vector<2x4xf32>
    %c24_427 = arith.constant 24 : index
    %c32_428 = arith.constant 32 : index
    %289 = vector.load %arg22[%c24_427, %c32_428] : memref<32x36xf32, #tpu.memory_space<vmem>>, vector<2x4xf32>
    tpu.vector_store %arg22[%c24_427, %c32_428], %288 {strides = array<i32>} : memref<32x36xf32, #tpu.memory_space<vmem>>, vector<2x4xf32>,
    %c41_429 = arith.constant 41 : index
    %c0_430 = arith.constant 0 : index
    %c0_431 = arith.constant 0 : index
    %290 = vector.load %arg0[%c41_429, %c0_430, %c0_431] : memref<64x2x4xf32, #tpu.memory_space<vmem>>, vector<1x2x4xf32>
    %291 = vector.shape_cast %290 : vector<1x2x4xf32> to vector<2x4xf32>
    %c26_432 = arith.constant 26 : index
    %c0_433 = arith.constant 0 : index
    %292 = vector.load %arg22[%c26_432, %c0_433] : memref<32x36xf32, #tpu.memory_space<vmem>>, vector<2x4xf32>
    tpu.vector_store %arg22[%c26_432, %c0_433], %291 {strides = array<i32>} : memref<32x36xf32, #tpu.memory_space<vmem>>, vector<2x4xf32>,
    %c42_434 = arith.constant 42 : index
    %c0_435 = arith.constant 0 : index
    %c0_436 = arith.constant 0 : index
    %293 = vector.load %arg0[%c42_434, %c0_435, %c0_436] : memref<64x2x4xf32, #tpu.memory_space<vmem>>, vector<1x2x4xf32>
    %294 = vector.shape_cast %293 : vector<1x2x4xf32> to vector<2x4xf32>
    %c26_437 = arith.constant 26 : index
    %c4_438 = arith.constant 4 : index
    %295 = vector.load %arg22[%c26_437, %c4_438] : memref<32x36xf32, #tpu.memory_space<vmem>>, vector<2x4xf32>
    tpu.vector_store %arg22[%c26_437, %c4_438], %294 {strides = array<i32>} : memref<32x36xf32, #tpu.memory_space<vmem>>, vector<2x4xf32>,
    %c43_439 = arith.constant 43 : index
    %c0_440 = arith.constant 0 : index
    %c0_441 = arith.constant 0 : index
    %296 = vector.load %arg0[%c43_439, %c0_440, %c0_441] : memref<64x2x4xf32, #tpu.memory_space<vmem>>, vector<1x2x4xf32>
    %297 = vector.shape_cast %296 : vector<1x2x4xf32> to vector<2x4xf32>
    %c26_442 = arith.constant 26 : index
    %c8_443 = arith.constant 8 : index
    %298 = vector.load %arg22[%c26_442, %c8_443] : memref<32x36xf32, #tpu.memory_space<vmem>>, vector<2x4xf32>
    tpu.vector_store %arg22[%c26_442, %c8_443], %297 {strides = array<i32>} : memref<32x36xf32, #tpu.memory_space<vmem>>, vector<2x4xf32>,
    %c49_444 = arith.constant 49 : index
    %c0_445 = arith.constant 0 : index
    %c0_446 = arith.constant 0 : index
    %299 = vector.load %arg0[%c49_444, %c0_445, %c0_446] : memref<64x2x4xf32, #tpu.memory_space<vmem>>, vector<1x2x4xf32>
    %300 = vector.shape_cast %299 : vector<1x2x4xf32> to vector<2x4xf32>
    %c26_447 = arith.constant 26 : index
    %c12_448 = arith.constant 12 : index
    %301 = vector.load %arg22[%c26_447, %c12_448] : memref<32x36xf32, #tpu.memory_space<vmem>>, vector<2x4xf32>
    tpu.vector_store %arg22[%c26_447, %c12_448], %300 {strides = array<i32>} : memref<32x36xf32, #tpu.memory_space<vmem>>, vector<2x4xf32>,
    %c50 = arith.constant 50 : index
    %c0_449 = arith.constant 0 : index
    %c0_450 = arith.constant 0 : index
    %302 = vector.load %arg0[%c50, %c0_449, %c0_450] : memref<64x2x4xf32, #tpu.memory_space<vmem>>, vector<1x2x4xf32>
    %303 = vector.shape_cast %302 : vector<1x2x4xf32> to vector<2x4xf32>
    %c26_451 = arith.constant 26 : index
    %c16_452 = arith.constant 16 : index
    %304 = vector.load %arg22[%c26_451, %c16_452] : memref<32x36xf32, #tpu.memory_space<vmem>>, vector<2x4xf32>
    tpu.vector_store %arg22[%c26_451, %c16_452], %303 {strides = array<i32>} : memref<32x36xf32, #tpu.memory_space<vmem>>, vector<2x4xf32>,
    %c51 = arith.constant 51 : index
    %c0_453 = arith.constant 0 : index
    %c0_454 = arith.constant 0 : index
    %305 = vector.load %arg0[%c51, %c0_453, %c0_454] : memref<64x2x4xf32, #tpu.memory_space<vmem>>, vector<1x2x4xf32>
    %306 = vector.shape_cast %305 : vector<1x2x4xf32> to vector<2x4xf32>
    %c26_455 = arith.constant 26 : index
    %c20_456 = arith.constant 20 : index
    %307 = vector.load %arg22[%c26_455, %c20_456] : memref<32x36xf32, #tpu.memory_space<vmem>>, vector<2x4xf32>
    tpu.vector_store %arg22[%c26_455, %c20_456], %306 {strides = array<i32>} : memref<32x36xf32, #tpu.memory_space<vmem>>, vector<2x4xf32>,
    %c57_457 = arith.constant 57 : index
    %c0_458 = arith.constant 0 : index
    %c0_459 = arith.constant 0 : index
    %308 = vector.load %arg0[%c57_457, %c0_458, %c0_459] : memref<64x2x4xf32, #tpu.memory_space<vmem>>, vector<1x2x4xf32>
    %309 = vector.shape_cast %308 : vector<1x2x4xf32> to vector<2x4xf32>
    %c26_460 = arith.constant 26 : index
    %c24_461 = arith.constant 24 : index
    %310 = vector.load %arg22[%c26_460, %c24_461] : memref<32x36xf32, #tpu.memory_space<vmem>>, vector<2x4xf32>
    tpu.vector_store %arg22[%c26_460, %c24_461], %309 {strides = array<i32>} : memref<32x36xf32, #tpu.memory_space<vmem>>, vector<2x4xf32>,
    %c58 = arith.constant 58 : index
    %c0_462 = arith.constant 0 : index
    %c0_463 = arith.constant 0 : index
    %311 = vector.load %arg0[%c58, %c0_462, %c0_463] : memref<64x2x4xf32, #tpu.memory_space<vmem>>, vector<1x2x4xf32>
    %312 = vector.shape_cast %311 : vector<1x2x4xf32> to vector<2x4xf32>
    %c26_464 = arith.constant 26 : index
    %c28_465 = arith.constant 28 : index
    %313 = vector.load %arg22[%c26_464, %c28_465] : memref<32x36xf32, #tpu.memory_space<vmem>>, vector<2x4xf32>
    tpu.vector_store %arg22[%c26_464, %c28_465], %312 {strides = array<i32>} : memref<32x36xf32, #tpu.memory_space<vmem>>, vector<2x4xf32>,
    %c59 = arith.constant 59 : index
    %c0_466 = arith.constant 0 : index
    %c0_467 = arith.constant 0 : index
    %314 = vector.load %arg0[%c59, %c0_466, %c0_467] : memref<64x2x4xf32, #tpu.memory_space<vmem>>, vector<1x2x4xf32>
    %315 = vector.shape_cast %314 : vector<1x2x4xf32> to vector<2x4xf32>
    %c26_468 = arith.constant 26 : index
    %c32_469 = arith.constant 32 : index
    %316 = vector.load %arg22[%c26_468, %c32_469] : memref<32x36xf32, #tpu.memory_space<vmem>>, vector<2x4xf32>
    tpu.vector_store %arg22[%c26_468, %c32_469], %315 {strides = array<i32>} : memref<32x36xf32, #tpu.memory_space<vmem>>, vector<2x4xf32>,
    %c43_470 = arith.constant 43 : index
    %c0_471 = arith.constant 0 : index
    %c0_472 = arith.constant 0 : index
    %317 = vector.load %arg0[%c43_470, %c0_471, %c0_472] : memref<64x2x4xf32, #tpu.memory_space<vmem>>, vector<1x2x4xf32>
    %318 = vector.shape_cast %317 : vector<1x2x4xf32> to vector<2x4xf32>
    %c28_473 = arith.constant 28 : index
    %c0_474 = arith.constant 0 : index
    %319 = vector.load %arg22[%c28_473, %c0_474] : memref<32x36xf32, #tpu.memory_space<vmem>>, vector<2x4xf32>
    tpu.vector_store %arg22[%c28_473, %c0_474], %318 {strides = array<i32>} : memref<32x36xf32, #tpu.memory_space<vmem>>, vector<2x4xf32>,
    %c44_475 = arith.constant 44 : index
    %c0_476 = arith.constant 0 : index
    %c0_477 = arith.constant 0 : index
    %320 = vector.load %arg0[%c44_475, %c0_476, %c0_477] : memref<64x2x4xf32, #tpu.memory_space<vmem>>, vector<1x2x4xf32>
    %321 = vector.shape_cast %320 : vector<1x2x4xf32> to vector<2x4xf32>
    %c28_478 = arith.constant 28 : index
    %c4_479 = arith.constant 4 : index
    %322 = vector.load %arg22[%c28_478, %c4_479] : memref<32x36xf32, #tpu.memory_space<vmem>>, vector<2x4xf32>
    tpu.vector_store %arg22[%c28_478, %c4_479], %321 {strides = array<i32>} : memref<32x36xf32, #tpu.memory_space<vmem>>, vector<2x4xf32>,
    %c45_480 = arith.constant 45 : index
    %c0_481 = arith.constant 0 : index
    %c0_482 = arith.constant 0 : index
    %323 = vector.load %arg0[%c45_480, %c0_481, %c0_482] : memref<64x2x4xf32, #tpu.memory_space<vmem>>, vector<1x2x4xf32>
    %324 = vector.shape_cast %323 : vector<1x2x4xf32> to vector<2x4xf32>
    %c28_483 = arith.constant 28 : index
    %c8_484 = arith.constant 8 : index
    %325 = vector.load %arg22[%c28_483, %c8_484] : memref<32x36xf32, #tpu.memory_space<vmem>>, vector<2x4xf32>
    tpu.vector_store %arg22[%c28_483, %c8_484], %324 {strides = array<i32>} : memref<32x36xf32, #tpu.memory_space<vmem>>, vector<2x4xf32>,
    %c51_485 = arith.constant 51 : index
    %c0_486 = arith.constant 0 : index
    %c0_487 = arith.constant 0 : index
    %326 = vector.load %arg0[%c51_485, %c0_486, %c0_487] : memref<64x2x4xf32, #tpu.memory_space<vmem>>, vector<1x2x4xf32>
    %327 = vector.shape_cast %326 : vector<1x2x4xf32> to vector<2x4xf32>
    %c28_488 = arith.constant 28 : index
    %c12_489 = arith.constant 12 : index
    %328 = vector.load %arg22[%c28_488, %c12_489] : memref<32x36xf32, #tpu.memory_space<vmem>>, vector<2x4xf32>
    tpu.vector_store %arg22[%c28_488, %c12_489], %327 {strides = array<i32>} : memref<32x36xf32, #tpu.memory_space<vmem>>, vector<2x4xf32>,
    %c52 = arith.constant 52 : index
    %c0_490 = arith.constant 0 : index
    %c0_491 = arith.constant 0 : index
    %329 = vector.load %arg0[%c52, %c0_490, %c0_491] : memref<64x2x4xf32, #tpu.memory_space<vmem>>, vector<1x2x4xf32>
    %330 = vector.shape_cast %329 : vector<1x2x4xf32> to vector<2x4xf32>
    %c28_492 = arith.constant 28 : index
    %c16_493 = arith.constant 16 : index
    %331 = vector.load %arg22[%c28_492, %c16_493] : memref<32x36xf32, #tpu.memory_space<vmem>>, vector<2x4xf32>
    tpu.vector_store %arg22[%c28_492, %c16_493], %330 {strides = array<i32>} : memref<32x36xf32, #tpu.memory_space<vmem>>, vector<2x4xf32>,
    %c53 = arith.constant 53 : index
    %c0_494 = arith.constant 0 : index
    %c0_495 = arith.constant 0 : index
    %332 = vector.load %arg0[%c53, %c0_494, %c0_495] : memref<64x2x4xf32, #tpu.memory_space<vmem>>, vector<1x2x4xf32>
    %333 = vector.shape_cast %332 : vector<1x2x4xf32> to vector<2x4xf32>
    %c28_496 = arith.constant 28 : index
    %c20_497 = arith.constant 20 : index
    %334 = vector.load %arg22[%c28_496, %c20_497] : memref<32x36xf32, #tpu.memory_space<vmem>>, vector<2x4xf32>
    tpu.vector_store %arg22[%c28_496, %c20_497], %333 {strides = array<i32>} : memref<32x36xf32, #tpu.memory_space<vmem>>, vector<2x4xf32>,
    %c59_498 = arith.constant 59 : index
    %c0_499 = arith.constant 0 : index
    %c0_500 = arith.constant 0 : index
    %335 = vector.load %arg0[%c59_498, %c0_499, %c0_500] : memref<64x2x4xf32, #tpu.memory_space<vmem>>, vector<1x2x4xf32>
    %336 = vector.shape_cast %335 : vector<1x2x4xf32> to vector<2x4xf32>
    %c28_501 = arith.constant 28 : index
    %c24_502 = arith.constant 24 : index
    %337 = vector.load %arg22[%c28_501, %c24_502] : memref<32x36xf32, #tpu.memory_space<vmem>>, vector<2x4xf32>
    tpu.vector_store %arg22[%c28_501, %c24_502], %336 {strides = array<i32>} : memref<32x36xf32, #tpu.memory_space<vmem>>, vector<2x4xf32>,
    %c60 = arith.constant 60 : index
    %c0_503 = arith.constant 0 : index
    %c0_504 = arith.constant 0 : index
    %338 = vector.load %arg0[%c60, %c0_503, %c0_504] : memref<64x2x4xf32, #tpu.memory_space<vmem>>, vector<1x2x4xf32>
    %339 = vector.shape_cast %338 : vector<1x2x4xf32> to vector<2x4xf32>
    %c28_505 = arith.constant 28 : index
    %c28_506 = arith.constant 28 : index
    %340 = vector.load %arg22[%c28_505, %c28_506] : memref<32x36xf32, #tpu.memory_space<vmem>>, vector<2x4xf32>
    tpu.vector_store %arg22[%c28_505, %c28_506], %339 {strides = array<i32>} : memref<32x36xf32, #tpu.memory_space<vmem>>, vector<2x4xf32>,
    %c61 = arith.constant 61 : index
    %c0_507 = arith.constant 0 : index
    %c0_508 = arith.constant 0 : index
    %341 = vector.load %arg0[%c61, %c0_507, %c0_508] : memref<64x2x4xf32, #tpu.memory_space<vmem>>, vector<1x2x4xf32>
    %342 = vector.shape_cast %341 : vector<1x2x4xf32> to vector<2x4xf32>
    %c28_509 = arith.constant 28 : index
    %c32_510 = arith.constant 32 : index
    %343 = vector.load %arg22[%c28_509, %c32_510] : memref<32x36xf32, #tpu.memory_space<vmem>>, vector<2x4xf32>
    tpu.vector_store %arg22[%c28_509, %c32_510], %342 {strides = array<i32>} : memref<32x36xf32, #tpu.memory_space<vmem>>, vector<2x4xf32>,
    %c45_511 = arith.constant 45 : index
    %c0_512 = arith.constant 0 : index
    %c0_513 = arith.constant 0 : index
    %344 = vector.load %arg0[%c45_511, %c0_512, %c0_513] : memref<64x2x4xf32, #tpu.memory_space<vmem>>, vector<1x2x4xf32>
    %345 = vector.shape_cast %344 : vector<1x2x4xf32> to vector<2x4xf32>
    %c30_514 = arith.constant 30 : index
    %c0_515 = arith.constant 0 : index
    %346 = vector.load %arg22[%c30_514, %c0_515] : memref<32x36xf32, #tpu.memory_space<vmem>>, vector<2x4xf32>
    tpu.vector_store %arg22[%c30_514, %c0_515], %345 {strides = array<i32>} : memref<32x36xf32, #tpu.memory_space<vmem>>, vector<2x4xf32>,
    %c46_516 = arith.constant 46 : index
    %c0_517 = arith.constant 0 : index
    %c0_518 = arith.constant 0 : index
    %347 = vector.load %arg0[%c46_516, %c0_517, %c0_518] : memref<64x2x4xf32, #tpu.memory_space<vmem>>, vector<1x2x4xf32>
    %348 = vector.shape_cast %347 : vector<1x2x4xf32> to vector<2x4xf32>
    %c30_519 = arith.constant 30 : index
    %c4_520 = arith.constant 4 : index
    %349 = vector.load %arg22[%c30_519, %c4_520] : memref<32x36xf32, #tpu.memory_space<vmem>>, vector<2x4xf32>
    tpu.vector_store %arg22[%c30_519, %c4_520], %348 {strides = array<i32>} : memref<32x36xf32, #tpu.memory_space<vmem>>, vector<2x4xf32>,
    %c47_521 = arith.constant 47 : index
    %c0_522 = arith.constant 0 : index
    %c0_523 = arith.constant 0 : index
    %350 = vector.load %arg0[%c47_521, %c0_522, %c0_523] : memref<64x2x4xf32, #tpu.memory_space<vmem>>, vector<1x2x4xf32>
    %351 = vector.shape_cast %350 : vector<1x2x4xf32> to vector<2x4xf32>
    %c30_524 = arith.constant 30 : index
    %c8_525 = arith.constant 8 : index
    %352 = vector.load %arg22[%c30_524, %c8_525] : memref<32x36xf32, #tpu.memory_space<vmem>>, vector<2x4xf32>
    tpu.vector_store %arg22[%c30_524, %c8_525], %351 {strides = array<i32>} : memref<32x36xf32, #tpu.memory_space<vmem>>, vector<2x4xf32>,
    %c53_526 = arith.constant 53 : index
    %c0_527 = arith.constant 0 : index
    %c0_528 = arith.constant 0 : index
    %353 = vector.load %arg0[%c53_526, %c0_527, %c0_528] : memref<64x2x4xf32, #tpu.memory_space<vmem>>, vector<1x2x4xf32>
    %354 = vector.shape_cast %353 : vector<1x2x4xf32> to vector<2x4xf32>
    %c30_529 = arith.constant 30 : index
    %c12_530 = arith.constant 12 : index
    %355 = vector.load %arg22[%c30_529, %c12_530] : memref<32x36xf32, #tpu.memory_space<vmem>>, vector<2x4xf32>
    tpu.vector_store %arg22[%c30_529, %c12_530], %354 {strides = array<i32>} : memref<32x36xf32, #tpu.memory_space<vmem>>, vector<2x4xf32>,
    %c54 = arith.constant 54 : index
    %c0_531 = arith.constant 0 : index
    %c0_532 = arith.constant 0 : index
    %356 = vector.load %arg0[%c54, %c0_531, %c0_532] : memref<64x2x4xf32, #tpu.memory_space<vmem>>, vector<1x2x4xf32>
    %357 = vector.shape_cast %356 : vector<1x2x4xf32> to vector<2x4xf32>
    %c30_533 = arith.constant 30 : index
    %c16_534 = arith.constant 16 : index
    %358 = vector.load %arg22[%c30_533, %c16_534] : memref<32x36xf32, #tpu.memory_space<vmem>>, vector<2x4xf32>
    tpu.vector_store %arg22[%c30_533, %c16_534], %357 {strides = array<i32>} : memref<32x36xf32, #tpu.memory_space<vmem>>, vector<2x4xf32>,
    %c55 = arith.constant 55 : index
    %c0_535 = arith.constant 0 : index
    %c0_536 = arith.constant 0 : index
    %359 = vector.load %arg0[%c55, %c0_535, %c0_536] : memref<64x2x4xf32, #tpu.memory_space<vmem>>, vector<1x2x4xf32>
    %360 = vector.shape_cast %359 : vector<1x2x4xf32> to vector<2x4xf32>
    %c30_537 = arith.constant 30 : index
    %c20_538 = arith.constant 20 : index
    %361 = vector.load %arg22[%c30_537, %c20_538] : memref<32x36xf32, #tpu.memory_space<vmem>>, vector<2x4xf32>
    tpu.vector_store %arg22[%c30_537, %c20_538], %360 {strides = array<i32>} : memref<32x36xf32, #tpu.memory_space<vmem>>, vector<2x4xf32>,
    %c61_539 = arith.constant 61 : index
    %c0_540 = arith.constant 0 : index
    %c0_541 = arith.constant 0 : index
    %362 = vector.load %arg0[%c61_539, %c0_540, %c0_541] : memref<64x2x4xf32, #tpu.memory_space<vmem>>, vector<1x2x4xf32>
    %363 = vector.shape_cast %362 : vector<1x2x4xf32> to vector<2x4xf32>
    %c30_542 = arith.constant 30 : index
    %c24_543 = arith.constant 24 : index
    %364 = vector.load %arg22[%c30_542, %c24_543] : memref<32x36xf32, #tpu.memory_space<vmem>>, vector<2x4xf32>
    tpu.vector_store %arg22[%c30_542, %c24_543], %363 {strides = array<i32>} : memref<32x36xf32, #tpu.memory_space<vmem>>, vector<2x4xf32>,
    %c62 = arith.constant 62 : index
    %c0_544 = arith.constant 0 : index
    %c0_545 = arith.constant 0 : index
    %365 = vector.load %arg0[%c62, %c0_544, %c0_545] : memref<64x2x4xf32, #tpu.memory_space<vmem>>, vector<1x2x4xf32>
    %366 = vector.shape_cast %365 : vector<1x2x4xf32> to vector<2x4xf32>
    %c30_546 = arith.constant 30 : index
    %c28_547 = arith.constant 28 : index
    %367 = vector.load %arg22[%c30_546, %c28_547] : memref<32x36xf32, #tpu.memory_space<vmem>>, vector<2x4xf32>
    tpu.vector_store %arg22[%c30_546, %c28_547], %366 {strides = array<i32>} : memref<32x36xf32, #tpu.memory_space<vmem>>, vector<2x4xf32>,
    %c63 = arith.constant 63 : index
    %c0_548 = arith.constant 0 : index
    %c0_549 = arith.constant 0 : index
    %368 = vector.load %arg0[%c63, %c0_548, %c0_549] : memref<64x2x4xf32, #tpu.memory_space<vmem>>, vector<1x2x4xf32>
    %369 = vector.shape_cast %368 : vector<1x2x4xf32> to vector<2x4xf32>
    %c30_550 = arith.constant 30 : index
    %c32_551 = arith.constant 32 : index
    %370 = vector.load %arg22[%c30_550, %c32_551] : memref<32x36xf32, #tpu.memory_space<vmem>>, vector<2x4xf32>
    tpu.vector_store %arg22[%c30_550, %c32_551], %369 {strides = array<i32>} : memref<32x36xf32, #tpu.memory_space<vmem>>, vector<2x4xf32>,
    %c0_552 = arith.constant 0 : index
    %c0_553 = arith.constant 0 : index
    %371 = vector.load %arg22[%c0_552, %c0_553] : memref<32x36xf32, #tpu.memory_space<vmem>>, vector<32x36xf32>
    %372 = arith.truncf %371 : vector<32x36xf32> to vector<32x36xbf16>
    %c0_554 = arith.constant 0 : index
    %c0_555 = arith.constant 0 : index
    %373 = vector.load %arg1[%c0_554, %c0_555] : memref<36x64xbf16, #tpu.memory_space<vmem>>, vector<36x64xbf16>
    %cst_556 = arith.constant dense<0.000000e+00> : vector<32x64xf32>
    %374 = tpu.matmul %372, %373, %cst_556 {dimension_numbers = #tpu.dot_dimension_numbers<[1], [0], [0], [1], [0, 0, 1, 1], [], []>} : vector<32x36xbf16>, vector<36x64xbf16>, vector<32x64xf32> -> vector<32x64xf32>
    %c0_557 = arith.constant 0 : index
    %c0_558 = arith.constant 0 : index
    %375 = vector.load %arg2[%c0_557, %c0_558] : memref<1x64xf32, #tpu.memory_space<vmem>>, vector<1x64xf32>
    %376 = vector.broadcast %375 : vector<1x64xf32> to vector<32x64xf32>
    %377 = arith.addf %374, %376 : vector<32x64xf32>
    %cst_559 = arith.constant dense<0.000000e+00> : vector<64xf32>
    %378 = vector.multi_reduction <add>, %377, %cst_559 [0] : vector<32x64xf32> to vector<64xf32>
    %379 = vector.shape_cast %378 : vector<64xf32> to vector<1x64xf32>
    %cst_560 = arith.constant 3.200000e+01 : f32
    %380 = vector.broadcast %cst_560 : f32 to vector<1x64xf32>
    %381 = arith.divf %379, %380 : vector<1x64xf32>
    %382 = arith.mulf %377, %377 : vector<32x64xf32>
    %cst_561 = arith.constant dense<0.000000e+00> : vector<64xf32>
    %383 = vector.multi_reduction <add>, %382, %cst_561 [0] : vector<32x64xf32> to vector<64xf32>
    %384 = vector.shape_cast %383 : vector<64xf32> to vector<1x64xf32>
    %cst_562 = arith.constant 3.200000e+01 : f32
    %385 = vector.broadcast %cst_562 : f32 to vector<1x64xf32>
    %386 = arith.divf %384, %385 : vector<1x64xf32>
    %387 = arith.mulf %381, %381 : vector<1x64xf32>
    %388 = arith.subf %386, %387 : vector<1x64xf32>
    %389 = vector.broadcast %381 : vector<1x64xf32> to vector<32x64xf32>
    %390 = arith.subf %377, %389 : vector<32x64xf32>
    %cst_563 = arith.constant 9.99999974E-6 : f32
    %391 = vector.broadcast %cst_563 : f32 to vector<1x64xf32>
    %392 = arith.addf %388, %391 : vector<1x64xf32>
    %393 = math.rsqrt %392 : vector<1x64xf32>
    %394 = vector.broadcast %393 : vector<1x64xf32> to vector<32x64xf32>
    %395 = arith.mulf %390, %394 : vector<32x64xf32>
    %c0_564 = arith.constant 0 : index
    %c0_565 = arith.constant 0 : index
    %396 = vector.load %arg3[%c0_564, %c0_565] : memref<1x64xf32, #tpu.memory_space<vmem>>, vector<1x64xf32>
    %397 = vector.broadcast %396 : vector<1x64xf32> to vector<32x64xf32>
    %398 = arith.mulf %395, %397 : vector<32x64xf32>
    %c0_566 = arith.constant 0 : index
    %c0_567 = arith.constant 0 : index
    %399 = vector.load %arg4[%c0_566, %c0_567] : memref<1x64xf32, #tpu.memory_space<vmem>>, vector<1x64xf32>
    %400 = vector.broadcast %399 : vector<1x64xf32> to vector<32x64xf32>
    %401 = arith.addf %398, %400 : vector<32x64xf32>
    %cst_568 = arith.constant 0.000000e+00 : f32
    %402 = vector.broadcast %cst_568 : f32 to vector<32x64xf32>
    %403 = arith.cmpf ogt, %401, %402 : vector<32x64xf32>
    %cst_569 = arith.constant 2.000000e-01 : f32
    %404 = vector.broadcast %cst_569 : f32 to vector<32x64xf32>
    %405 = arith.mulf %404, %401 : vector<32x64xf32>
    %406 = arith.select %403, %401, %405 : vector<32x64xi1>, vector<32x64xf32>
    %407 = vector.extract_strided_slice %406 {offsets = [0, 0], sizes = [2, 64], strides = [1, 1]} : vector<32x64xf32> to vector<2x64xf32>
    %c0_570 = arith.constant 0 : index
    %c256 = arith.constant 256 : index
    %408 = vector.load %arg23[%c0_570, %c256] : memref<8x576xf32, #tpu.memory_space<vmem>>, vector<2x64xf32>
    tpu.vector_store %arg23[%c0_570, %c256], %407 {strides = array<i32>} : memref<8x576xf32, #tpu.memory_space<vmem>>, vector<2x64xf32>,
    %409 = vector.extract_strided_slice %406 {offsets = [2, 0], sizes = [2, 64], strides = [1, 1]} : vector<32x64xf32> to vector<2x64xf32>
    %c0_571 = arith.constant 0 : index
    %c320 = arith.constant 320 : index
    %410 = vector.load %arg23[%c0_571, %c320] : memref<8x576xf32, #tpu.memory_space<vmem>>, vector<2x64xf32>
    tpu.vector_store %arg23[%c0_571, %c320], %409 {strides = array<i32>} : memref<8x576xf32, #tpu.memory_space<vmem>>, vector<2x64xf32>,
    %411 = vector.extract_strided_slice %406 {offsets = [8, 0], sizes = [2, 64], strides = [1, 1]} : vector<32x64xf32> to vector<2x64xf32>
    %c0_572 = arith.constant 0 : index
    %c448 = arith.constant 448 : index
    %412 = vector.load %arg23[%c0_572, %c448] : memref<8x576xf32, #tpu.memory_space<vmem>>, vector<2x64xf32>
    tpu.vector_store %arg23[%c0_572, %c448], %411 {strides = array<i32>} : memref<8x576xf32, #tpu.memory_space<vmem>>, vector<2x64xf32>,
    %413 = vector.extract_strided_slice %406 {offsets = [10, 0], sizes = [2, 64], strides = [1, 1]} : vector<32x64xf32> to vector<2x64xf32>
    %c0_573 = arith.constant 0 : index
    %c512 = arith.constant 512 : index
    %414 = vector.load %arg23[%c0_573, %c512] : memref<8x576xf32, #tpu.memory_space<vmem>>, vector<2x64xf32>
    tpu.vector_store %arg23[%c0_573, %c512], %413 {strides = array<i32>} : memref<8x576xf32, #tpu.memory_space<vmem>>, vector<2x64xf32>,
    %415 = vector.extract_strided_slice %406 {offsets = [2, 0], sizes = [2, 64], strides = [1, 1]} : vector<32x64xf32> to vector<2x64xf32>
    %c2_574 = arith.constant 2 : index
    %c192 = arith.constant 192 : index
    %416 = vector.load %arg23[%c2_574, %c192] : memref<8x576xf32, #tpu.memory_space<vmem>>, vector<2x64xf32>
    tpu.vector_store %arg23[%c2_574, %c192], %415 {strides = array<i32>} : memref<8x576xf32, #tpu.memory_space<vmem>>, vector<2x64xf32>,
    %417 = vector.extract_strided_slice %406 {offsets = [4, 0], sizes = [2, 64], strides = [1, 1]} : vector<32x64xf32> to vector<2x64xf32>
    %c2_575 = arith.constant 2 : index
    %c256_576 = arith.constant 256 : index
    %418 = vector.load %arg23[%c2_575, %c256_576] : memref<8x576xf32, #tpu.memory_space<vmem>>, vector<2x64xf32>
    tpu.vector_store %arg23[%c2_575, %c256_576], %417 {strides = array<i32>} : memref<8x576xf32, #tpu.memory_space<vmem>>, vector<2x64xf32>,
    %419 = vector.extract_strided_slice %406 {offsets = [6, 0], sizes = [2, 64], strides = [1, 1]} : vector<32x64xf32> to vector<2x64xf32>
    %c2_577 = arith.constant 2 : index
    %c320_578 = arith.constant 320 : index
    %420 = vector.load %arg23[%c2_577, %c320_578] : memref<8x576xf32, #tpu.memory_space<vmem>>, vector<2x64xf32>
    tpu.vector_store %arg23[%c2_577, %c320_578], %419 {strides = array<i32>} : memref<8x576xf32, #tpu.memory_space<vmem>>, vector<2x64xf32>,
    %421 = vector.extract_strided_slice %406 {offsets = [10, 0], sizes = [2, 64], strides = [1, 1]} : vector<32x64xf32> to vector<2x64xf32>
    %c2_579 = arith.constant 2 : index
    %c384 = arith.constant 384 : index
    %422 = vector.load %arg23[%c2_579, %c384] : memref<8x576xf32, #tpu.memory_space<vmem>>, vector<2x64xf32>
    tpu.vector_store %arg23[%c2_579, %c384], %421 {strides = array<i32>} : memref<8x576xf32, #tpu.memory_space<vmem>>, vector<2x64xf32>,
    %423 = vector.extract_strided_slice %406 {offsets = [12, 0], sizes = [2, 64], strides = [1, 1]} : vector<32x64xf32> to vector<2x64xf32>
    %c2_580 = arith.constant 2 : index
    %c448_581 = arith.constant 448 : index
    %424 = vector.load %arg23[%c2_580, %c448_581] : memref<8x576xf32, #tpu.memory_space<vmem>>, vector<2x64xf32>
    tpu.vector_store %arg23[%c2_580, %c448_581], %423 {strides = array<i32>} : memref<8x576xf32, #tpu.memory_space<vmem>>, vector<2x64xf32>,
    %425 = vector.extract_strided_slice %406 {offsets = [14, 0], sizes = [2, 64], strides = [1, 1]} : vector<32x64xf32> to vector<2x64xf32>
    %c2_582 = arith.constant 2 : index
    %c512_583 = arith.constant 512 : index
    %426 = vector.load %arg23[%c2_582, %c512_583] : memref<8x576xf32, #tpu.memory_space<vmem>>, vector<2x64xf32>
    tpu.vector_store %arg23[%c2_582, %c512_583], %425 {strides = array<i32>} : memref<8x576xf32, #tpu.memory_space<vmem>>, vector<2x64xf32>,
    %427 = vector.extract_strided_slice %406 {offsets = [8, 0], sizes = [2, 64], strides = [1, 1]} : vector<32x64xf32> to vector<2x64xf32>
    %c4_584 = arith.constant 4 : index
    %c64 = arith.constant 64 : index
    %428 = vector.load %arg23[%c4_584, %c64] : memref<8x576xf32, #tpu.memory_space<vmem>>, vector<2x64xf32>
    tpu.vector_store %arg23[%c4_584, %c64], %427 {strides = array<i32>} : memref<8x576xf32, #tpu.memory_space<vmem>>, vector<2x64xf32>,
    %429 = vector.extract_strided_slice %406 {offsets = [10, 0], sizes = [2, 64], strides = [1, 1]} : vector<32x64xf32> to vector<2x64xf32>
    %c4_585 = arith.constant 4 : index
    %c128 = arith.constant 128 : index
    %430 = vector.load %arg23[%c4_585, %c128] : memref<8x576xf32, #tpu.memory_space<vmem>>, vector<2x64xf32>
    tpu.vector_store %arg23[%c4_585, %c128], %429 {strides = array<i32>} : memref<8x576xf32, #tpu.memory_space<vmem>>, vector<2x64xf32>,
    %431 = vector.extract_strided_slice %406 {offsets = [16, 0], sizes = [2, 64], strides = [1, 1]} : vector<32x64xf32> to vector<2x64xf32>
    %c4_586 = arith.constant 4 : index
    %c256_587 = arith.constant 256 : index
    %432 = vector.load %arg23[%c4_586, %c256_587] : memref<8x576xf32, #tpu.memory_space<vmem>>, vector<2x64xf32>
    tpu.vector_store %arg23[%c4_586, %c256_587], %431 {strides = array<i32>} : memref<8x576xf32, #tpu.memory_space<vmem>>, vector<2x64xf32>,
    %433 = vector.extract_strided_slice %406 {offsets = [18, 0], sizes = [2, 64], strides = [1, 1]} : vector<32x64xf32> to vector<2x64xf32>
    %c4_588 = arith.constant 4 : index
    %c320_589 = arith.constant 320 : index
    %434 = vector.load %arg23[%c4_588, %c320_589] : memref<8x576xf32, #tpu.memory_space<vmem>>, vector<2x64xf32>
    tpu.vector_store %arg23[%c4_588, %c320_589], %433 {strides = array<i32>} : memref<8x576xf32, #tpu.memory_space<vmem>>, vector<2x64xf32>,
    %435 = vector.extract_strided_slice %406 {offsets = [24, 0], sizes = [2, 64], strides = [1, 1]} : vector<32x64xf32> to vector<2x64xf32>
    %c4_590 = arith.constant 4 : index
    %c448_591 = arith.constant 448 : index
    %436 = vector.load %arg23[%c4_590, %c448_591] : memref<8x576xf32, #tpu.memory_space<vmem>>, vector<2x64xf32>
    tpu.vector_store %arg23[%c4_590, %c448_591], %435 {strides = array<i32>} : memref<8x576xf32, #tpu.memory_space<vmem>>, vector<2x64xf32>,
    %437 = vector.extract_strided_slice %406 {offsets = [26, 0], sizes = [2, 64], strides = [1, 1]} : vector<32x64xf32> to vector<2x64xf32>
    %c4_592 = arith.constant 4 : index
    %c512_593 = arith.constant 512 : index
    %438 = vector.load %arg23[%c4_592, %c512_593] : memref<8x576xf32, #tpu.memory_space<vmem>>, vector<2x64xf32>
    tpu.vector_store %arg23[%c4_592, %c512_593], %437 {strides = array<i32>} : memref<8x576xf32, #tpu.memory_space<vmem>>, vector<2x64xf32>,
    %439 = vector.extract_strided_slice %406 {offsets = [10, 0], sizes = [2, 64], strides = [1, 1]} : vector<32x64xf32> to vector<2x64xf32>
    %c6_594 = arith.constant 6 : index
    %c0_595 = arith.constant 0 : index
    %440 = vector.load %arg23[%c6_594, %c0_595] : memref<8x576xf32, #tpu.memory_space<vmem>>, vector<2x64xf32>
    tpu.vector_store %arg23[%c6_594, %c0_595], %439 {strides = array<i32>} : memref<8x576xf32, #tpu.memory_space<vmem>>, vector<2x64xf32>,
    %441 = vector.extract_strided_slice %406 {offsets = [12, 0], sizes = [2, 64], strides = [1, 1]} : vector<32x64xf32> to vector<2x64xf32>
    %c6_596 = arith.constant 6 : index
    %c64_597 = arith.constant 64 : index
    %442 = vector.load %arg23[%c6_596, %c64_597] : memref<8x576xf32, #tpu.memory_space<vmem>>, vector<2x64xf32>
    tpu.vector_store %arg23[%c6_596, %c64_597], %441 {strides = array<i32>} : memref<8x576xf32, #tpu.memory_space<vmem>>, vector<2x64xf32>,
    %443 = vector.extract_strided_slice %406 {offsets = [14, 0], sizes = [2, 64], strides = [1, 1]} : vector<32x64xf32> to vector<2x64xf32>
    %c6_598 = arith.constant 6 : index
    %c128_599 = arith.constant 128 : index
    %444 = vector.load %arg23[%c6_598, %c128_599] : memref<8x576xf32, #tpu.memory_space<vmem>>, vector<2x64xf32>
    tpu.vector_store %arg23[%c6_598, %c128_599], %443 {strides = array<i32>} : memref<8x576xf32, #tpu.memory_space<vmem>>, vector<2x64xf32>,
    %445 = vector.extract_strided_slice %406 {offsets = [18, 0], sizes = [2, 64], strides = [1, 1]} : vector<32x64xf32> to vector<2x64xf32>
    %c6_600 = arith.constant 6 : index
    %c192_601 = arith.constant 192 : index
    %446 = vector.load %arg23[%c6_600, %c192_601] : memref<8x576xf32, #tpu.memory_space<vmem>>, vector<2x64xf32>
    tpu.vector_store %arg23[%c6_600, %c192_601], %445 {strides = array<i32>} : memref<8x576xf32, #tpu.memory_space<vmem>>, vector<2x64xf32>,
    %447 = vector.extract_strided_slice %406 {offsets = [20, 0], sizes = [2, 64], strides = [1, 1]} : vector<32x64xf32> to vector<2x64xf32>
    %c6_602 = arith.constant 6 : index
    %c256_603 = arith.constant 256 : index
    %448 = vector.load %arg23[%c6_602, %c256_603] : memref<8x576xf32, #tpu.memory_space<vmem>>, vector<2x64xf32>
    tpu.vector_store %arg23[%c6_602, %c256_603], %447 {strides = array<i32>} : memref<8x576xf32, #tpu.memory_space<vmem>>, vector<2x64xf32>,
    %449 = vector.extract_strided_slice %406 {offsets = [22, 0], sizes = [2, 64], strides = [1, 1]} : vector<32x64xf32> to vector<2x64xf32>
    %c6_604 = arith.constant 6 : index
    %c320_605 = arith.constant 320 : index
    %450 = vector.load %arg23[%c6_604, %c320_605] : memref<8x576xf32, #tpu.memory_space<vmem>>, vector<2x64xf32>
    tpu.vector_store %arg23[%c6_604, %c320_605], %449 {strides = array<i32>} : memref<8x576xf32, #tpu.memory_space<vmem>>, vector<2x64xf32>,
    %451 = vector.extract_strided_slice %406 {offsets = [26, 0], sizes = [2, 64], strides = [1, 1]} : vector<32x64xf32> to vector<2x64xf32>
    %c6_606 = arith.constant 6 : index
    %c384_607 = arith.constant 384 : index
    %452 = vector.load %arg23[%c6_606, %c384_607] : memref<8x576xf32, #tpu.memory_space<vmem>>, vector<2x64xf32>
    tpu.vector_store %arg23[%c6_606, %c384_607], %451 {strides = array<i32>} : memref<8x576xf32, #tpu.memory_space<vmem>>, vector<2x64xf32>,
    %453 = vector.extract_strided_slice %406 {offsets = [28, 0], sizes = [2, 64], strides = [1, 1]} : vector<32x64xf32> to vector<2x64xf32>
    %c6_608 = arith.constant 6 : index
    %c448_609 = arith.constant 448 : index
    %454 = vector.load %arg23[%c6_608, %c448_609] : memref<8x576xf32, #tpu.memory_space<vmem>>, vector<2x64xf32>
    tpu.vector_store %arg23[%c6_608, %c448_609], %453 {strides = array<i32>} : memref<8x576xf32, #tpu.memory_space<vmem>>, vector<2x64xf32>,
    %455 = vector.extract_strided_slice %406 {offsets = [30, 0], sizes = [2, 64], strides = [1, 1]} : vector<32x64xf32> to vector<2x64xf32>
    %c6_610 = arith.constant 6 : index
    %c512_611 = arith.constant 512 : index
    %456 = vector.load %arg23[%c6_610, %c512_611] : memref<8x576xf32, #tpu.memory_space<vmem>>, vector<2x64xf32>
    tpu.vector_store %arg23[%c6_610, %c512_611], %455 {strides = array<i32>} : memref<8x576xf32, #tpu.memory_space<vmem>>, vector<2x64xf32>,
    %c0_612 = arith.constant 0 : index
    %c0_613 = arith.constant 0 : index
    %457 = vector.load %arg23[%c0_612, %c0_613] : memref<8x576xf32, #tpu.memory_space<vmem>>, vector<8x576xf32>
    %458 = arith.truncf %457 : vector<8x576xf32> to vector<8x576xbf16>
    %c0_614 = arith.constant 0 : index
    %c0_615 = arith.constant 0 : index
    %459 = vector.load %arg5[%c0_614, %c0_615] : memref<576x128xbf16, #tpu.memory_space<vmem>>, vector<576x128xbf16>
    %cst_616 = arith.constant dense<0.000000e+00> : vector<8x128xf32>
    %460 = tpu.matmul %458, %459, %cst_616 {dimension_numbers = #tpu.dot_dimension_numbers<[1], [0], [0], [1], [0, 0, 1, 1], [], []>} : vector<8x576xbf16>, vector<576x128xbf16>, vector<8x128xf32> -> vector<8x128xf32>
    %c0_617 = arith.constant 0 : index
    %c0_618 = arith.constant 0 : index
    %461 = vector.load %arg6[%c0_617, %c0_618] : memref<1x128xf32, #tpu.memory_space<vmem>>, vector<1x128xf32>
    %462 = vector.broadcast %461 : vector<1x128xf32> to vector<8x128xf32>
    %463 = arith.addf %460, %462 : vector<8x128xf32>
    %cst_619 = arith.constant dense<0.000000e+00> : vector<128xf32>
    %464 = vector.multi_reduction <add>, %463, %cst_619 [0] : vector<8x128xf32> to vector<128xf32>
    %465 = vector.shape_cast %464 : vector<128xf32> to vector<1x128xf32>
    %cst_620 = arith.constant 8.000000e+00 : f32
    %466 = vector.broadcast %cst_620 : f32 to vector<1x128xf32>
    %467 = arith.divf %465, %466 : vector<1x128xf32>
    %468 = arith.mulf %463, %463 : vector<8x128xf32>
    %cst_621 = arith.constant dense<0.000000e+00> : vector<128xf32>
    %469 = vector.multi_reduction <add>, %468, %cst_621 [0] : vector<8x128xf32> to vector<128xf32>
    %470 = vector.shape_cast %469 : vector<128xf32> to vector<1x128xf32>
    %cst_622 = arith.constant 8.000000e+00 : f32
    %471 = vector.broadcast %cst_622 : f32 to vector<1x128xf32>
    %472 = arith.divf %470, %471 : vector<1x128xf32>
    %473 = arith.mulf %467, %467 : vector<1x128xf32>
    %474 = arith.subf %472, %473 : vector<1x128xf32>
    %475 = vector.broadcast %467 : vector<1x128xf32> to vector<8x128xf32>
    %476 = arith.subf %463, %475 : vector<8x128xf32>
    %cst_623 = arith.constant 9.99999974E-6 : f32
    %477 = vector.broadcast %cst_623 : f32 to vector<1x128xf32>
    %478 = arith.addf %474, %477 : vector<1x128xf32>
    %479 = math.rsqrt %478 : vector<1x128xf32>
    %480 = vector.broadcast %479 : vector<1x128xf32> to vector<8x128xf32>
    %481 = arith.mulf %476, %480 : vector<8x128xf32>
    %c0_624 = arith.constant 0 : index
    %c0_625 = arith.constant 0 : index
    %482 = vector.load %arg7[%c0_624, %c0_625] : memref<1x128xf32, #tpu.memory_space<vmem>>, vector<1x128xf32>
    %483 = vector.broadcast %482 : vector<1x128xf32> to vector<8x128xf32>
    %484 = arith.mulf %481, %483 : vector<8x128xf32>
    %c0_626 = arith.constant 0 : index
    %c0_627 = arith.constant 0 : index
    %485 = vector.load %arg8[%c0_626, %c0_627] : memref<1x128xf32, #tpu.memory_space<vmem>>, vector<1x128xf32>
    %486 = vector.broadcast %485 : vector<1x128xf32> to vector<8x128xf32>
    %487 = arith.addf %484, %486 : vector<8x128xf32>
    %cst_628 = arith.constant 0.000000e+00 : f32
    %488 = vector.broadcast %cst_628 : f32 to vector<8x128xf32>
    %489 = arith.cmpf ogt, %487, %488 : vector<8x128xf32>
    %cst_629 = arith.constant 2.000000e-01 : f32
    %490 = vector.broadcast %cst_629 : f32 to vector<8x128xf32>
    %491 = arith.mulf %490, %487 : vector<8x128xf32>
    %492 = arith.select %489, %487, %491 : vector<8x128xi1>, vector<8x128xf32>
    %493 = vector.extract_strided_slice %492 {offsets = [0, 0], sizes = [2, 128], strides = [1, 1]} : vector<8x128xf32> to vector<2x128xf32>
    %c0_630 = arith.constant 0 : index
    %c512_631 = arith.constant 512 : index
    %494 = vector.load %arg24[%c0_630, %c512_631] : memref<2x1152xf32, #tpu.memory_space<vmem>>, vector<2x128xf32>
    tpu.vector_store %arg24[%c0_630, %c512_631], %493 {strides = array<i32>} : memref<2x1152xf32, #tpu.memory_space<vmem>>, vector<2x128xf32>,
    %495 = vector.extract_strided_slice %492 {offsets = [2, 0], sizes = [2, 128], strides = [1, 1]} : vector<8x128xf32> to vector<2x128xf32>
    %c0_632 = arith.constant 0 : index
    %c640 = arith.constant 640 : index
    %496 = vector.load %arg24[%c0_632, %c640] : memref<2x1152xf32, #tpu.memory_space<vmem>>, vector<2x128xf32>
    tpu.vector_store %arg24[%c0_632, %c640], %495 {strides = array<i32>} : memref<2x1152xf32, #tpu.memory_space<vmem>>, vector<2x128xf32>,
    %497 = vector.extract_strided_slice %492 {offsets = [4, 0], sizes = [2, 128], strides = [1, 1]} : vector<8x128xf32> to vector<2x128xf32>
    %c0_633 = arith.constant 0 : index
    %c896 = arith.constant 896 : index
    %498 = vector.load %arg24[%c0_633, %c896] : memref<2x1152xf32, #tpu.memory_space<vmem>>, vector<2x128xf32>
    tpu.vector_store %arg24[%c0_633, %c896], %497 {strides = array<i32>} : memref<2x1152xf32, #tpu.memory_space<vmem>>, vector<2x128xf32>,
    %499 = vector.extract_strided_slice %492 {offsets = [6, 0], sizes = [2, 128], strides = [1, 1]} : vector<8x128xf32> to vector<2x128xf32>
    %c0_634 = arith.constant 0 : index
    %c1024 = arith.constant 1024 : index
    %500 = vector.load %arg24[%c0_634, %c1024] : memref<2x1152xf32, #tpu.memory_space<vmem>>, vector<2x128xf32>
    tpu.vector_store %arg24[%c0_634, %c1024], %499 {strides = array<i32>} : memref<2x1152xf32, #tpu.memory_space<vmem>>, vector<2x128xf32>,
    %c0_635 = arith.constant 0 : index
    %c0_636 = arith.constant 0 : index
    %501 = vector.load %arg24[%c0_635, %c0_636] : memref<2x1152xf32, #tpu.memory_space<vmem>>, vector<2x1152xf32>
    %502 = arith.truncf %501 : vector<2x1152xf32> to vector<2x1152xbf16>
    %c0_637 = arith.constant 0 : index
    %c0_638 = arith.constant 0 : index
    %503 = vector.load %arg9[%c0_637, %c0_638] : memref<1152x256xbf16, #tpu.memory_space<vmem>>, vector<1152x256xbf16>
    %cst_639 = arith.constant dense<0.000000e+00> : vector<2x256xf32>
    %504 = tpu.matmul %502, %503, %cst_639 {dimension_numbers = #tpu.dot_dimension_numbers<[1], [0], [0], [1], [0, 0, 1, 1], [], []>} : vector<2x1152xbf16>, vector<1152x256xbf16>, vector<2x256xf32> -> vector<2x256xf32>
    %c0_640 = arith.constant 0 : index
    %c0_641 = arith.constant 0 : index
    %505 = vector.load %arg10[%c0_640, %c0_641] : memref<1x256xf32, #tpu.memory_space<vmem>>, vector<1x256xf32>
    %506 = vector.broadcast %505 : vector<1x256xf32> to vector<2x256xf32>
    %507 = arith.addf %504, %506 : vector<2x256xf32>
    %cst_642 = arith.constant dense<0.000000e+00> : vector<256xf32>
    %508 = vector.multi_reduction <add>, %507, %cst_642 [0] : vector<2x256xf32> to vector<256xf32>
    %509 = vector.shape_cast %508 : vector<256xf32> to vector<1x256xf32>
    %cst_643 = arith.constant 2.000000e+00 : f32
    %510 = vector.broadcast %cst_643 : f32 to vector<1x256xf32>
    %511 = arith.divf %509, %510 : vector<1x256xf32>
    %512 = arith.mulf %507, %507 : vector<2x256xf32>
    %cst_644 = arith.constant dense<0.000000e+00> : vector<256xf32>
    %513 = vector.multi_reduction <add>, %512, %cst_644 [0] : vector<2x256xf32> to vector<256xf32>
    %514 = vector.shape_cast %513 : vector<256xf32> to vector<1x256xf32>
    %cst_645 = arith.constant 2.000000e+00 : f32
    %515 = vector.broadcast %cst_645 : f32 to vector<1x256xf32>
    %516 = arith.divf %514, %515 : vector<1x256xf32>
    %517 = arith.mulf %511, %511 : vector<1x256xf32>
    %518 = arith.subf %516, %517 : vector<1x256xf32>
    %519 = vector.broadcast %511 : vector<1x256xf32> to vector<2x256xf32>
    %520 = arith.subf %507, %519 : vector<2x256xf32>
    %cst_646 = arith.constant 9.99999974E-6 : f32
    %521 = vector.broadcast %cst_646 : f32 to vector<1x256xf32>
    %522 = arith.addf %518, %521 : vector<1x256xf32>
    %523 = math.rsqrt %522 : vector<1x256xf32>
    %524 = vector.broadcast %523 : vector<1x256xf32> to vector<2x256xf32>
    %525 = arith.mulf %520, %524 : vector<2x256xf32>
    %c0_647 = arith.constant 0 : index
    %c0_648 = arith.constant 0 : index
    %526 = vector.load %arg11[%c0_647, %c0_648] : memref<1x256xf32, #tpu.memory_space<vmem>>, vector<1x256xf32>
    %527 = vector.broadcast %526 : vector<1x256xf32> to vector<2x256xf32>
    %528 = arith.mulf %525, %527 : vector<2x256xf32>
    %c0_649 = arith.constant 0 : index
    %c0_650 = arith.constant 0 : index
    %529 = vector.load %arg12[%c0_649, %c0_650] : memref<1x256xf32, #tpu.memory_space<vmem>>, vector<1x256xf32>
    %530 = vector.broadcast %529 : vector<1x256xf32> to vector<2x256xf32>
    %531 = arith.addf %528, %530 : vector<2x256xf32>
    %cst_651 = arith.constant 0.000000e+00 : f32
    %532 = vector.broadcast %cst_651 : f32 to vector<2x256xf32>
    %533 = arith.cmpf ogt, %531, %532 : vector<2x256xf32>
    %cst_652 = arith.constant 2.000000e-01 : f32
    %534 = vector.broadcast %cst_652 : f32 to vector<2x256xf32>
    %535 = arith.mulf %534, %531 : vector<2x256xf32>
    %536 = arith.select %533, %531, %535 : vector<2x256xi1>, vector<2x256xf32>
    %c0_653 = arith.constant 0 : index
    %c1024_654 = arith.constant 1024 : index
    %537 = vector.load %arg25[%c0_653, %c1024_654] : memref<2x2304xf32, #tpu.memory_space<vmem>>, vector<2x256xf32>
    tpu.vector_store %arg25[%c0_653, %c1024_654], %536 {strides = array<i32>} : memref<2x2304xf32, #tpu.memory_space<vmem>>, vector<2x256xf32>,
    %c0_655 = arith.constant 0 : index
    %c0_656 = arith.constant 0 : index
    %538 = vector.load %arg25[%c0_655, %c0_656] : memref<2x2304xf32, #tpu.memory_space<vmem>>, vector<2x2304xf32>
    %539 = arith.truncf %538 : vector<2x2304xf32> to vector<2x2304xbf16>
    %c0_657 = arith.constant 0 : index
    %c0_658 = arith.constant 0 : index
    %540 = vector.load %arg13[%c0_657, %c0_658] : memref<2304x256xbf16, #tpu.memory_space<vmem>>, vector<2304x256xbf16>
    %cst_659 = arith.constant dense<0.000000e+00> : vector<2x256xf32>
    %541 = tpu.matmul %539, %540, %cst_659 {dimension_numbers = #tpu.dot_dimension_numbers<[1], [0], [0], [1], [0, 0, 1, 1], [], []>} : vector<2x2304xbf16>, vector<2304x256xbf16>, vector<2x256xf32> -> vector<2x256xf32>
    %c0_660 = arith.constant 0 : index
    %c0_661 = arith.constant 0 : index
    %542 = vector.load %arg14[%c0_660, %c0_661] : memref<1x256xf32, #tpu.memory_space<vmem>>, vector<1x256xf32>
    %543 = vector.broadcast %542 : vector<1x256xf32> to vector<2x256xf32>
    %544 = arith.addf %541, %543 : vector<2x256xf32>
    %cst_662 = arith.constant 0.000000e+00 : f32
    %545 = vector.broadcast %cst_662 : f32 to vector<2x256xf32>
    %546 = arith.cmpf ogt, %544, %545 : vector<2x256xf32>
    %cst_663 = arith.constant 2.000000e-01 : f32
    %547 = vector.broadcast %cst_663 : f32 to vector<2x256xf32>
    %548 = arith.mulf %547, %544 : vector<2x256xf32>
    %549 = arith.select %546, %544, %548 : vector<2x256xi1>, vector<2x256xf32>
    %550 = arith.truncf %549 : vector<2x256xf32> to vector<2x256xbf16>
    %c0_664 = arith.constant 0 : index
    %c0_665 = arith.constant 0 : index
    %551 = vector.load %arg15[%c0_664, %c0_665] : memref<256x32xbf16, #tpu.memory_space<vmem>>, vector<256x32xbf16>
    %cst_666 = arith.constant dense<0.000000e+00> : vector<2x32xf32>
    %552 = tpu.matmul %550, %551, %cst_666 {dimension_numbers = #tpu.dot_dimension_numbers<[1], [0], [0], [1], [0, 0, 1, 1], [], []>} : vector<2x256xbf16>, vector<256x32xbf16>, vector<2x32xf32> -> vector<2x32xf32>
    %c0_667 = arith.constant 0 : index
    %c0_668 = arith.constant 0 : index
    %553 = vector.load %arg16[%c0_667, %c0_668] : memref<1x32xf32, #tpu.memory_space<vmem>>, vector<1x32xf32>
    %554 = vector.broadcast %553 : vector<1x32xf32> to vector<2x32xf32>
    %555 = arith.addf %552, %554 : vector<2x32xf32>
    %cst_669 = arith.constant 0.000000e+00 : f32
    %556 = vector.broadcast %cst_669 : f32 to vector<2x32xf32>
    %557 = arith.cmpf ogt, %555, %556 : vector<2x32xf32>
    %cst_670 = arith.constant 2.000000e-01 : f32
    %558 = vector.broadcast %cst_670 : f32 to vector<2x32xf32>
    %559 = arith.mulf %558, %555 : vector<2x32xf32>
    %560 = arith.select %557, %555, %559 : vector<2x32xi1>, vector<2x32xf32>
    %561 = arith.truncf %560 : vector<2x32xf32> to vector<2x32xbf16>
    %c0_671 = arith.constant 0 : index
    %c0_672 = arith.constant 0 : index
    %562 = vector.load %arg17[%c0_671, %c0_672] : memref<32x32xbf16, #tpu.memory_space<vmem>>, vector<32x32xbf16>
    %cst_673 = arith.constant dense<0.000000e+00> : vector<2x32xf32>
    %563 = tpu.matmul %561, %562, %cst_673 {dimension_numbers = #tpu.dot_dimension_numbers<[1], [0], [0], [1], [0, 0, 1, 1], [], []>} : vector<2x32xbf16>, vector<32x32xbf16>, vector<2x32xf32> -> vector<2x32xf32>
    %c0_674 = arith.constant 0 : index
    %c0_675 = arith.constant 0 : index
    %564 = vector.load %arg18[%c0_674, %c0_675] : memref<1x32xf32, #tpu.memory_space<vmem>>, vector<1x32xf32>
    %565 = vector.broadcast %564 : vector<1x32xf32> to vector<2x32xf32>
    %566 = arith.addf %563, %565 : vector<2x32xf32>
    %cst_676 = arith.constant 0.000000e+00 : f32
    %567 = vector.broadcast %cst_676 : f32 to vector<2x32xf32>
    %568 = arith.cmpf ogt, %566, %567 : vector<2x32xf32>
    %cst_677 = arith.constant 2.000000e-01 : f32
    %569 = vector.broadcast %cst_677 : f32 to vector<2x32xf32>
    %570 = arith.mulf %569, %566 : vector<2x32xf32>
    %571 = arith.select %568, %566, %570 : vector<2x32xi1>, vector<2x32xf32>
    %572 = arith.truncf %571 : vector<2x32xf32> to vector<2x32xbf16>
    %c0_678 = arith.constant 0 : index
    %c0_679 = arith.constant 0 : index
    %573 = vector.load %arg19[%c0_678, %c0_679] : memref<32x32xbf16, #tpu.memory_space<vmem>>, vector<32x32xbf16>
    %cst_680 = arith.constant dense<0.000000e+00> : vector<2x32xf32>
    %574 = tpu.matmul %572, %573, %cst_680 {dimension_numbers = #tpu.dot_dimension_numbers<[1], [0], [0], [1], [0, 0, 1, 1], [], []>} : vector<2x32xbf16>, vector<32x32xbf16>, vector<2x32xf32> -> vector<2x32xf32>
    %c0_681 = arith.constant 0 : index
    %c0_682 = arith.constant 0 : index
    %575 = vector.load %arg20[%c0_681, %c0_682] : memref<1x32xf32, #tpu.memory_space<vmem>>, vector<1x32xf32>
    %576 = vector.broadcast %575 : vector<1x32xf32> to vector<2x32xf32>
    %577 = arith.addf %574, %576 : vector<2x32xf32>
    %c0_683 = arith.constant 0 : index
    %c0_684 = arith.constant 0 : index
    %578 = vector.load %arg21[%c0_683, %c0_684] : memref<2x32xf32, #tpu.memory_space<vmem>>, vector<2x32xf32>
    tpu.vector_store %arg21[%c0_683, %c0_684], %577 {strides = array<i32>} : memref<2x32xf32, #tpu.memory_space<vmem>>, vector<2x32xf32>,
    return
  }
}

</mosaic_0001>

<llo_original>
// kernel: _lambda_.1
$region0: #{_lambda_.1}
  #allocation0 [shape = 'u32[]', space=smem, size = 0x4, offset = 0x4, fixed_abs, tag = 'smem constant byte address 0x4 - core index']
  #allocation1 [shape = 'u32[144,128]{1,0:T(1,128)}', space=vmem, size = 0x12000, scoped, tag = 'internal scratch']
  #allocation2 [shape = 'f32[32,36]{1,0:T(8,128)}', space=vmem, size = 0x4000, scoped, tag = 'scratch operand']
  #allocation3 [shape = 'f32[8,576]{1,0:T(8,128)}', space=vmem, size = 0x5000, scoped, tag = 'scratch operand']
  #allocation4 [shape = 'f32[2,1152]{1,0:T(2,128)}', space=vmem, size = 0x2400, scoped, tag = 'scratch operand']
  #allocation5 [shape = 'f32[2,2304]{1,0:T(2,128)}', space=vmem, size = 0x4800, scoped, tag = 'scratch operand']
  %s0 = inlined_call_operand.vmem [shape: f32[64,2,4], index: 0, kind: input, shape index: {}]
  %s1 = inlined_call_operand.hbm [shape: bf16[36,64], index: 1, kind: input, shape index: {}]
  %s2 = inlined_call_operand.hbm [shape: f32[1,64], index: 2, kind: input, shape index: {}]
  %s3 = inlined_call_operand.hbm [shape: f32[1,64], index: 3, kind: input, shape index: {}]
  %s4 = inlined_call_operand.hbm [shape: f32[1,64], index: 4, kind: input, shape index: {}]
  %s5 = inlined_call_operand.hbm [shape: bf16[576,128], index: 5, kind: input, shape index: {}]
  %s6 = inlined_call_operand.hbm [shape: f32[1,128], index: 6, kind: input, shape index: {}]
  %s7 = inlined_call_operand.hbm [shape: f32[1,128], index: 7, kind: input, shape index: {}]
  %s8 = inlined_call_operand.hbm [shape: f32[1,128], index: 8, kind: input, shape index: {}]
  %s9 = inlined_call_operand.hbm [shape: bf16[1152,256], index: 9, kind: input, shape index: {}]
  %s10 = inlined_call_operand.hbm [shape: f32[1,256], index: 10, kind: input, shape index: {}]
  %s11 = inlined_call_operand.hbm [shape: f32[1,256], index: 11, kind: input, shape index: {}]
  %s12 = inlined_call_operand.hbm [shape: f32[1,256], index: 12, kind: input, shape index: {}]
  %s13 = inlined_call_operand.hbm [shape: bf16[2304,256], index: 13, kind: input, shape index: {}]
  %s14 = inlined_call_operand.hbm [shape: f32[1,256], index: 14, kind: input, shape index: {}]
  %s15 = inlined_call_operand.vmem [shape: bf16[256,32], index: 15, kind: input, shape index: {}]
  %s16 = inlined_call_operand.hbm [shape: f32[1,32], index: 16, kind: input, shape index: {}]
  %s17 = inlined_call_operand.hbm [shape: bf16[32,32], index: 17, kind: input, shape index: {}]
  %s18 = inlined_call_operand.hbm [shape: f32[1,32], index: 18, kind: input, shape index: {}]
  %s19 = inlined_call_operand.hbm [shape: bf16[32,32], index: 19, kind: input, shape index: {}]
  %s20 = inlined_call_operand.hbm [shape: f32[1,32], index: 20, kind: input, shape index: {}]
  %s21 = inlined_call_operand.hbm [shape: f32[2,32], index: 21, kind: output, shape index: {}]
  %s22 = sld [smem:[#allocation0]]
  $region170: #{_lambda_.1} parent=0
    _
  %s24 = ssub.s32 1, %s22
  %s25 = scalar_select 0, %s24, %s22
  $region1: #{_lambda_.1} parent=0
    #allocation6 [shape = 'u8[10240]{0}', space=vmem, size = 0x2800, scoped, tag = 'input window, operand 1, single buffered']
    #allocation7 [shape = 's32[1]{0}', space=sflag, size = 0x4, scoped, tag = 'scoped memory for _lambda_.1']
    #allocation8 [shape = 's32[1]{0}', space=sflag, size = 0x4, scoped, tag = 'scoped memory for _lambda_.1']
    #allocation9 [shape = 'u8[512]{0}', space=vmem, size = 0x400, scoped, tag = 'input window, operand 2, single buffered']
    #allocation10 [shape = 's32[1]{0}', space=sflag, size = 0x4, scoped, tag = 'scoped memory for _lambda_.1']
    #allocation11 [shape = 'u8[512]{0}', space=vmem, size = 0x400, scoped, tag = 'input window, operand 3, single buffered']
    #allocation12 [shape = 'u8[512]{0}', space=vmem, size = 0x400, scoped, tag = 'input window, operand 4, single buffered']
    #allocation13 [shape = 's32[1]{0}', space=sflag, size = 0x4, scoped, tag = 'scoped memory for _lambda_.1']
    #allocation14 [shape = 'u8[147456]{0}', space=vmem, size = 0x24000, scoped, tag = 'input window, operand 5, single buffered']
    #allocation15 [shape = 'u8[512]{0}', space=vmem, size = 0x400, scoped, tag = 'input window, operand 6, single buffered']
    #allocation16 [shape = 's32[1]{0}', space=sflag, size = 0x4, scoped, tag = 'scoped memory for _lambda_.1']
    #allocation17 [shape = 'u8[512]{0}', space=vmem, size = 0x400, scoped, tag = 'input window, operand 7, single buffered']
    #allocation18 [shape = 'u8[512]{0}', space=vmem, size = 0x400, scoped, tag = 'input window, operand 8, single buffered']
    #allocation19 [shape = 's32[1]{0}', space=sflag, size = 0x4, scoped, tag = 'scoped memory for _lambda_.1']
    #allocation20 [shape = 'u8[589824]{0}', space=vmem, size = 0x90000, scoped, tag = 'input window, operand 9, single buffered']
    #allocation21 [shape = 'u8[1024]{0}', space=vmem, size = 0x400, scoped, tag = 'input window, operand 10, single buffered']
    #allocation22 [shape = 's32[1]{0}', space=sflag, size = 0x4, scoped, tag = 'scoped memory for _lambda_.1']
    #allocation23 [shape = 'u8[1024]{0}', space=vmem, size = 0x400, scoped, tag = 'input window, operand 11, single buffered']
    #allocation24 [shape = 'u8[1024]{0}', space=vmem, size = 0x400, scoped, tag = 'input window, operand 12, single buffered']
    #allocation25 [shape = 's32[1]{0}', space=sflag, size = 0x4, scoped, tag = 'scoped memory for _lambda_.1']
    #allocation26 [shape = 'u8[1179648]{0}', space=vmem, size = 0x120000, scoped, tag = 'input window, operand 13, single buffered']
    #allocation27 [shape = 'u8[1024]{0}', space=vmem, size = 0x400, scoped, tag = 'input window, operand 14, single buffered']
    #allocation28 [shape = 's32[1]{0}', space=sflag, size = 0x4, scoped, tag = 'scoped memory for _lambda_.1']
    #allocation29 [shape = 'u8[512]{0}', space=vmem, size = 0x400, scoped, tag = 'input window, operand 16, single buffered']
    #allocation30 [shape = 'u8[8192]{0}', space=vmem, size = 0x2000, scoped, tag = 'input window, operand 17, single buffered']
    #allocation31 [shape = 's32[1]{0}', space=sflag, size = 0x4, scoped, tag = 'scoped memory for _lambda_.1']
    #allocation32 [shape = 'u8[512]{0}', space=vmem, size = 0x400, scoped, tag = 'input window, operand 18, single buffered']
    #allocation33 [shape = 'u8[8192]{0}', space=vmem, size = 0x2000, scoped, tag = 'input window, operand 19, single buffered']
    #allocation34 [shape = 's32[1]{0}', space=sflag, size = 0x4, scoped, tag = 'scoped memory for _lambda_.1']
    #allocation35 [shape = 'u8[512]{0}', space=vmem, size = 0x400, scoped, tag = 'input window, operand 20, single buffered']
    #allocation36 [shape = 'u8[1024]{0}', space=vmem, size = 0x400, scoped, tag = 'output window, operand 0, single buffered']
    %26 = vsyncpa [#allocation7], 0
    %27 = vsyncpa [#allocation10], 0
    %28 = vsyncpa [#allocation13], 0
    %29 = vsyncpa [#allocation16], 0
    %30 = vsyncpa [#allocation19], 0
    %31 = vsyncpa [#allocation22], 0
    %32 = vsyncpa [#allocation25], 0
    %33 = vsyncpa [#allocation28], 0
    %34 = vsyncpa [#allocation31], 0
    %35 = vsyncpa [#allocation34], 0
    %36 = vsyncpa [#allocation8], 0
    // Predicated region
    $region2: #{_lambda_.1} parent=1 // pred_check
      _
    $region3: #{_lambda_.1} parent=1 // pred_check_branch
      %38 = sbr.rel (0) target = $region5
    $region4: #{_lambda_.1} parent=1 // pred_region
      _
    $region5: #{_lambda_.1} parent=1 // pred_fallthru
      _
    // Predicated region
    $region6: #{_lambda_.1} parent=1 // pred_check
      _
    $region7: #{_lambda_.1} parent=1 // pred_check_branch
      %40 = sbr.rel (0) target = $region9
    $region8: #{_lambda_.1} parent=1 // pred_region
      %s42 = ssub.s32 320, 320
      %43 = vsyncadd [#allocation7], %s42
      %s44 = sshll.u32 [#allocation6], 4
      %s45 = int_to_ptr.vmem [resolvable:$true] %s44
      %50 = dma.hbm_to_vmem [thread:$0]  %s1, 320, %s45, [#allocation7], 64, 64, 4
    $region9: #{_lambda_.1} parent=1 // pred_fallthru
      _
    // Predicated region
    $region10: #{_lambda_.1} parent=1 // pred_check
      _
    $region11: #{_lambda_.1} parent=1 // pred_check_branch
      %52 = sbr.rel (0) target = $region13
    $region12: #{_lambda_.1} parent=1 // pred_region
      %s54 = ssub.s32 16, 16
      %55 = vsyncadd [#allocation10], %s54
      %s57 = sshll.u32 [#allocation9], 4
      %s58 = int_to_ptr.vmem [resolvable:$true] %s57
      %60 = dma.hbm_to_vmem [thread:$0]  %s2, 16, %s58, [#allocation10]
    $region13: #{_lambda_.1} parent=1 // pred_fallthru
      _
    // Predicated region
    $region14: #{_lambda_.1} parent=1 // pred_check
      _
    $region15: #{_lambda_.1} parent=1 // pred_check_branch
      %62 = sbr.rel (0) target = $region17
    $region16: #{_lambda_.1} parent=1 // pred_region
      %s64 = ssub.s32 16, 16
      %65 = vsyncadd [#allocation10], %s64
      %s67 = sshll.u32 [#allocation11], 4
      %s68 = int_to_ptr.vmem [resolvable:$true] %s67
      %70 = dma.hbm_to_vmem [thread:$0]  %s3, 16, %s68, [#allocation10]
    $region17: #{_lambda_.1} parent=1 // pred_fallthru
      _
    // Predicated region
    $region18: #{_lambda_.1} parent=1 // pred_check
      _
    $region19: #{_lambda_.1} parent=1 // pred_check_branch
      %72 = sbr.rel (0) target = $region21
    $region20: #{_lambda_.1} parent=1 // pred_region
      %s74 = ssub.s32 16, 16
      %75 = vsyncadd [#allocation13], %s74
      %s77 = sshll.u32 [#allocation12], 4
      %s78 = int_to_ptr.vmem [resolvable:$true] %s77
      %80 = dma.hbm_to_vmem [thread:$0]  %s4, 16, %s78, [#allocation13]
    $region21: #{_lambda_.1} parent=1 // pred_fallthru
      _
    // Predicated region
    $region22: #{_lambda_.1} parent=1 // pred_check
      _
    $region23: #{_lambda_.1} parent=1 // pred_check_branch
      %82 = sbr.rel (0) target = $region25
    $region24: #{_lambda_.1} parent=1 // pred_region
      %s84 = ssub.s32 4608, 4608
      %85 = vsyncadd [#allocation13], %s84
      %s86 = sshll.u32 [#allocation14], 4
      %s87 = int_to_ptr.vmem [resolvable:$true] %s86
      %92 = dma.hbm_to_vmem [thread:$0]  %s5, 4608, %s87, [#allocation13], 64, 64, 4
    $region25: #{_lambda_.1} parent=1 // pred_fallthru
      _
    // Predicated region
    $region26: #{_lambda_.1} parent=1 // pred_check
      _
    $region27: #{_lambda_.1} parent=1 // pred_check_branch
      %94 = sbr.rel (0) target = $region29
    $region28: #{_lambda_.1} parent=1 // pred_region
      %s96 = ssub.s32 16, 16
      %97 = vsyncadd [#allocation16], %s96
      %s99 = sshll.u32 [#allocation15], 4
      %s100 = int_to_ptr.vmem [resolvable:$true] %s99
      %102 = dma.hbm_to_vmem [thread:$0]  %s6, 16, %s100, [#allocation16]
    $region29: #{_lambda_.1} parent=1 // pred_fallthru
      _
    // Predicated region
    $region30: #{_lambda_.1} parent=1 // pred_check
      _
    $region31: #{_lambda_.1} parent=1 // pred_check_branch
      %104 = sbr.rel (0) target = $region33
    $region32: #{_lambda_.1} parent=1 // pred_region
      %s106 = ssub.s32 16, 16
      %107 = vsyncadd [#allocation16], %s106
      %s109 = sshll.u32 [#allocation17], 4
      %s110 = int_to_ptr.vmem [resolvable:$true] %s109
      %112 = dma.hbm_to_vmem [thread:$0]  %s7, 16, %s110, [#allocation16]
    $region33: #{_lambda_.1} parent=1 // pred_fallthru
      _
    // Predicated region
    $region34: #{_lambda_.1} parent=1 // pred_check
      _
    $region35: #{_lambda_.1} parent=1 // pred_check_branch
      %114 = sbr.rel (0) target = $region37
    $region36: #{_lambda_.1} parent=1 // pred_region
      %s116 = ssub.s32 16, 16
      %117 = vsyncadd [#allocation19], %s116
      %s119 = sshll.u32 [#allocation18], 4
      %s120 = int_to_ptr.vmem [resolvable:$true] %s119
      %122 = dma.hbm_to_vmem [thread:$0]  %s8, 16, %s120, [#allocation19]
    $region37: #{_lambda_.1} parent=1 // pred_fallthru
      _
    // Predicated region
    $region38: #{_lambda_.1} parent=1 // pred_check
      _
    $region39: #{_lambda_.1} parent=1 // pred_check_branch
      %124 = sbr.rel (0) target = $region41
    $region40: #{_lambda_.1} parent=1 // pred_region
      %s126 = ssub.s32 18432, 18432
      %127 = vsyncadd [#allocation19], %s126
      %s128 = sshll.u32 [#allocation20], 4
      %s129 = int_to_ptr.vmem [resolvable:$true] %s128
      %134 = dma.hbm_to_vmem [thread:$0]  %s9, 18432, %s129, [#allocation19], 128, 128, 8
    $region41: #{_lambda_.1} parent=1 // pred_fallthru
      _
    // Predicated region
    $region42: #{_lambda_.1} parent=1 // pred_check
      _
    $region43: #{_lambda_.1} parent=1 // pred_check_branch
      %136 = sbr.rel (0) target = $region45
    $region44: #{_lambda_.1} parent=1 // pred_region
      %s138 = ssub.s32 32, 32
      %139 = vsyncadd [#allocation22], %s138
      %s141 = sshll.u32 [#allocation21], 4
      %s142 = int_to_ptr.vmem [resolvable:$true] %s141
      %144 = dma.hbm_to_vmem [thread:$0]  %s10, 32, %s142, [#allocation22]
    $region45: #{_lambda_.1} parent=1 // pred_fallthru
      _
    // Predicated region
    $region46: #{_lambda_.1} parent=1 // pred_check
      _
    $region47: #{_lambda_.1} parent=1 // pred_check_branch
      %146 = sbr.rel (0) target = $region49
    $region48: #{_lambda_.1} parent=1 // pred_region
      %s148 = ssub.s32 32, 32
      %149 = vsyncadd [#allocation22], %s148
      %s151 = sshll.u32 [#allocation23], 4
      %s152 = int_to_ptr.vmem [resolvable:$true] %s151
      %154 = dma.hbm_to_vmem [thread:$0]  %s11, 32, %s152, [#allocation22]
    $region49: #{_lambda_.1} parent=1 // pred_fallthru
      _
    // Predicated region
    $region50: #{_lambda_.1} parent=1 // pred_check
      _
    $region51: #{_lambda_.1} parent=1 // pred_check_branch
      %156 = sbr.rel (0) target = $region53
    $region52: #{_lambda_.1} parent=1 // pred_region
      %s158 = ssub.s32 32, 32
      %159 = vsyncadd [#allocation25], %s158
      %s161 = sshll.u32 [#allocation24], 4
      %s162 = int_to_ptr.vmem [resolvable:$true] %s161
      %164 = dma.hbm_to_vmem [thread:$0]  %s12, 32, %s162, [#allocation25]
    $region53: #{_lambda_.1} parent=1 // pred_fallthru
      _
    // Predicated region
    $region54: #{_lambda_.1} parent=1 // pred_check
      _
    $region55: #{_lambda_.1} parent=1 // pred_check_branch
      %166 = sbr.rel (0) target = $region57
    $region56: #{_lambda_.1} parent=1 // pred_region
      %s168 = ssub.s32 36864, 36864
      %169 = vsyncadd [#allocation25], %s168
      %s170 = sshll.u32 [#allocation26], 4
      %s171 = int_to_ptr.vmem [resolvable:$true] %s170
      %176 = dma.hbm_to_vmem [thread:$0]  %s13, 36864, %s171, [#allocation25], 128, 128, 8
    $region57: #{_lambda_.1} parent=1 // pred_fallthru
      _
    // Predicated region
    $region58: #{_lambda_.1} parent=1 // pred_check
      _
    $region59: #{_lambda_.1} parent=1 // pred_check_branch
      %178 = sbr.rel (0) target = $region61
    $region60: #{_lambda_.1} parent=1 // pred_region
      %s180 = ssub.s32 32, 32
      %181 = vsyncadd [#allocation28], %s180
      %s183 = sshll.u32 [#allocation27], 4
      %s184 = int_to_ptr.vmem [resolvable:$true] %s183
      %186 = dma.hbm_to_vmem [thread:$0]  %s14, 32, %s184, [#allocation28]
    $region61: #{_lambda_.1} parent=1 // pred_fallthru
      _
    // Predicated region
    $region62: #{_lambda_.1} parent=1 // pred_check
      _
    $region63: #{_lambda_.1} parent=1 // pred_check_branch
      %188 = sbr.rel (0) target = $region65
    $region64: #{_lambda_.1} parent=1 // pred_region
      _
    $region65: #{_lambda_.1} parent=1 // pred_fallthru
      _
    // Predicated region
    $region66: #{_lambda_.1} parent=1 // pred_check
      _
    $region67: #{_lambda_.1} parent=1 // pred_check_branch
      %190 = sbr.rel (0) target = $region69
    $region68: #{_lambda_.1} parent=1 // pred_region
      %s192 = ssub.s32 16, 16
      %193 = vsyncadd [#allocation28], %s192
      %s195 = sshll.u32 [#allocation29], 4
      %s196 = int_to_ptr.vmem [resolvable:$true] %s195
      %198 = dma.hbm_to_vmem [thread:$0]  %s16, 16, %s196, [#allocation28]
    $region69: #{_lambda_.1} parent=1 // pred_fallthru
      _
    // Predicated region
    $region70: #{_lambda_.1} parent=1 // pred_check
      _
    $region71: #{_lambda_.1} parent=1 // pred_check_branch
      %200 = sbr.rel (0) target = $region73
    $region72: #{_lambda_.1} parent=1 // pred_region
      %s202 = ssub.s32 256, 256
      %203 = vsyncadd [#allocation31], %s202
      %s204 = sshll.u32 [#allocation30], 4
      %s205 = int_to_ptr.vmem [resolvable:$true] %s204
      %210 = dma.hbm_to_vmem [thread:$0]  %s17, 256, %s205, [#allocation31], 64, 64, 4
    $region73: #{_lambda_.1} parent=1 // pred_fallthru
      _
    // Predicated region
    $region74: #{_lambda_.1} parent=1 // pred_check
      _
    $region75: #{_lambda_.1} parent=1 // pred_check_branch
      %212 = sbr.rel (0) target = $region77
    $region76: #{_lambda_.1} parent=1 // pred_region
      %s214 = ssub.s32 16, 16
      %215 = vsyncadd [#allocation31], %s214
      %s217 = sshll.u32 [#allocation32], 4
      %s218 = int_to_ptr.vmem [resolvable:$true] %s217
      %220 = dma.hbm_to_vmem [thread:$0]  %s18, 16, %s218, [#allocation31]
    $region77: #{_lambda_.1} parent=1 // pred_fallthru
      _
    // Predicated region
    $region78: #{_lambda_.1} parent=1 // pred_check
      _
    $region79: #{_lambda_.1} parent=1 // pred_check_branch
      %222 = sbr.rel (0) target = $region81
    $region80: #{_lambda_.1} parent=1 // pred_region
      %s224 = ssub.s32 256, 256
      %225 = vsyncadd [#allocation34], %s224
      %s226 = sshll.u32 [#allocation33], 4
      %s227 = int_to_ptr.vmem [resolvable:$true] %s226
      %232 = dma.hbm_to_vmem [thread:$0]  %s19, 256, %s227, [#allocation34], 64, 64, 4
    $region81: #{_lambda_.1} parent=1 // pred_fallthru
      _
    // Predicated region
    $region82: #{_lambda_.1} parent=1 // pred_check
      _
    $region83: #{_lambda_.1} parent=1 // pred_check_branch
      %234 = sbr.rel (0) target = $region85
    $region84: #{_lambda_.1} parent=1 // pred_region
      %s236 = ssub.s32 16, 16
      %237 = vsyncadd [#allocation34], %s236
      %s239 = sshll.u32 [#allocation35], 4
      %s240 = int_to_ptr.vmem [resolvable:$true] %s239
      %242 = dma.hbm_to_vmem [thread:$0]  %s20, 16, %s240, [#allocation34]
    $region85: #{_lambda_.1} parent=1 // pred_fallthru
      _
    // Predicated region
    $region86: #{_lambda_.1} parent=1 // pred_check
      _
    $region87: #{_lambda_.1} parent=1 // pred_check_branch
      %244 = sbr.rel (0) target = $region89
    $region88: #{_lambda_.1} parent=1 // pred_region
      %245 = dma.done [#allocation7], 320
    $region89: #{_lambda_.1} parent=1 // pred_fallthru
      _
    // Predicated region
    $region90: #{_lambda_.1} parent=1 // pred_check
      _
    $region91: #{_lambda_.1} parent=1 // pred_check_branch
      %247 = sbr.rel (0) target = $region93
    $region92: #{_lambda_.1} parent=1 // pred_region
      %248 = dma.done [#allocation10], 16
    $region93: #{_lambda_.1} parent=1 // pred_fallthru
      _
    // Predicated region
    $region94: #{_lambda_.1} parent=1 // pred_check
      _
    $region95: #{_lambda_.1} parent=1 // pred_check_branch
      %250 = sbr.rel (0) target = $region97
    $region96: #{_lambda_.1} parent=1 // pred_region
      %251 = dma.done [#allocation10], 16
    $region97: #{_lambda_.1} parent=1 // pred_fallthru
      _
    // Predicated region
    $region98: #{_lambda_.1} parent=1 // pred_check
      _
    $region99: #{_lambda_.1} parent=1 // pred_check_branch
      %253 = sbr.rel (0) target = $region101
    $region100: #{_lambda_.1} parent=1 // pred_region
      %254 = dma.done [#allocation13], 16
    $region101: #{_lambda_.1} parent=1 // pred_fallthru
      _
    // Predicated region
    $region102: #{_lambda_.1} parent=1 // pred_check
      _
    $region103: #{_lambda_.1} parent=1 // pred_check_branch
      %256 = sbr.rel (0) target = $region105
    $region104: #{_lambda_.1} parent=1 // pred_region
      %257 = dma.done [#allocation13], 4608
    $region105: #{_lambda_.1} parent=1 // pred_fallthru
      _
    // Predicated region
    $region106: #{_lambda_.1} parent=1 // pred_check
      _
    $region107: #{_lambda_.1} parent=1 // pred_check_branch
      %259 = sbr.rel (0) target = $region109
    $region108: #{_lambda_.1} parent=1 // pred_region
      %260 = dma.done [#allocation16], 16
    $region109: #{_lambda_.1} parent=1 // pred_fallthru
      _
    // Predicated region
    $region110: #{_lambda_.1} parent=1 // pred_check
      _
    $region111: #{_lambda_.1} parent=1 // pred_check_branch
      %262 = sbr.rel (0) target = $region113
    $region112: #{_lambda_.1} parent=1 // pred_region
      %263 = dma.done [#allocation16], 16
    $region113: #{_lambda_.1} parent=1 // pred_fallthru
      _
    // Predicated region
    $region114: #{_lambda_.1} parent=1 // pred_check
      _
    $region115: #{_lambda_.1} parent=1 // pred_check_branch
      %265 = sbr.rel (0) target = $region117
    $region116: #{_lambda_.1} parent=1 // pred_region
      %266 = dma.done [#allocation19], 16
    $region117: #{_lambda_.1} parent=1 // pred_fallthru
      _
    // Predicated region
    $region118: #{_lambda_.1} parent=1 // pred_check
      _
    $region119: #{_lambda_.1} parent=1 // pred_check_branch
      %268 = sbr.rel (0) target = $region121
    $region120: #{_lambda_.1} parent=1 // pred_region
      %269 = dma.done [#allocation19], 18432
    $region121: #{_lambda_.1} parent=1 // pred_fallthru
      _
    // Predicated region
    $region122: #{_lambda_.1} parent=1 // pred_check
      _
    $region123: #{_lambda_.1} parent=1 // pred_check_branch
      %271 = sbr.rel (0) target = $region125
    $region124: #{_lambda_.1} parent=1 // pred_region
      %272 = dma.done [#allocation22], 32
    $region125: #{_lambda_.1} parent=1 // pred_fallthru
      _
    // Predicated region
    $region126: #{_lambda_.1} parent=1 // pred_check
      _
    $region127: #{_lambda_.1} parent=1 // pred_check_branch
      %274 = sbr.rel (0) target = $region129
    $region128: #{_lambda_.1} parent=1 // pred_region
      %275 = dma.done [#allocation22], 32
    $region129: #{_lambda_.1} parent=1 // pred_fallthru
      _
    // Predicated region
    $region130: #{_lambda_.1} parent=1 // pred_check
      _
    $region131: #{_lambda_.1} parent=1 // pred_check_branch
      %277 = sbr.rel (0) target = $region133
    $region132: #{_lambda_.1} parent=1 // pred_region
      %278 = dma.done [#allocation25], 32
    $region133: #{_lambda_.1} parent=1 // pred_fallthru
      _
    // Predicated region
    $region134: #{_lambda_.1} parent=1 // pred_check
      _
    $region135: #{_lambda_.1} parent=1 // pred_check_branch
      %280 = sbr.rel (0) target = $region137
    $region136: #{_lambda_.1} parent=1 // pred_region
      %281 = dma.done [#allocation25], 36864
    $region137: #{_lambda_.1} parent=1 // pred_fallthru
      _
    // Predicated region
    $region138: #{_lambda_.1} parent=1 // pred_check
      _
    $region139: #{_lambda_.1} parent=1 // pred_check_branch
      %283 = sbr.rel (0) target = $region141
    $region140: #{_lambda_.1} parent=1 // pred_region
      %284 = dma.done [#allocation28], 32
    $region141: #{_lambda_.1} parent=1 // pred_fallthru
      _
    // Predicated region
    $region142: #{_lambda_.1} parent=1 // pred_check
      _
    $region143: #{_lambda_.1} parent=1 // pred_check_branch
      %286 = sbr.rel (0) target = $region145
    $region144: #{_lambda_.1} parent=1 // pred_region
      %287 = dma.done [#allocation28], 16
    $region145: #{_lambda_.1} parent=1 // pred_fallthru
      _
    // Predicated region
    $region146: #{_lambda_.1} parent=1 // pred_check
      _
    $region147: #{_lambda_.1} parent=1 // pred_check_branch
      %289 = sbr.rel (0) target = $region149
    $region148: #{_lambda_.1} parent=1 // pred_region
      %290 = dma.done [#allocation31], 256
    $region149: #{_lambda_.1} parent=1 // pred_fallthru
      _
    // Predicated region
    $region150: #{_lambda_.1} parent=1 // pred_check
      _
    $region151: #{_lambda_.1} parent=1 // pred_check_branch
      %292 = sbr.rel (0) target = $region153
    $region152: #{_lambda_.1} parent=1 // pred_region
      %293 = dma.done [#allocation31], 16
    $region153: #{_lambda_.1} parent=1 // pred_fallthru
      _
    // Predicated region
    $region154: #{_lambda_.1} parent=1 // pred_check
      _
    $region155: #{_lambda_.1} parent=1 // pred_check_branch
      %295 = sbr.rel (0) target = $region157
    $region156: #{_lambda_.1} parent=1 // pred_region
      %296 = dma.done [#allocation34], 256
    $region157: #{_lambda_.1} parent=1 // pred_fallthru
      _
    // Predicated region
    $region158: #{_lambda_.1} parent=1 // pred_check
      _
    $region159: #{_lambda_.1} parent=1 // pred_check_branch
      %298 = sbr.rel (0) target = $region161
    $region160: #{_lambda_.1} parent=1 // pred_region
      %299 = dma.done [#allocation34], 16
    $region161: #{_lambda_.1} parent=1 // pred_fallthru
      _
    %vm301 = vcmask 293888
    %302 = vst.msk [vmem:[#allocation2] sm:$0xff] %vm301, 0.0
    %303 = vst.msk [vmem:[#allocation2 + $0x8] sm:$0xff] %vm301, 0.0
    %304 = vst.msk [vmem:[#allocation2 + $0x10] sm:$0xff] %vm301, 0.0
    %305 = vst.msk [vmem:[#allocation2 + $0x18] sm:$0xff] %vm301, 0.0
    %306 = vst [vmem:[#allocation3] sm:$0xff] 0.0
    %307 = vst [vmem:[#allocation3 + $0x8] sm:$0xff] 0.0
    %308 = vst [vmem:[#allocation3 + $0x10] sm:$0xff] 0.0
    %309 = vst [vmem:[#allocation3 + $0x18] sm:$0xff] 0.0
    %vm310 = vcmask 523264
    %311 = vst.msk [vmem:[#allocation3 + $0x20] sm:$0xff] %vm310, 0.0
    %312 = vst [vmem:[#allocation4] sm:$0xff] 0.0
    %313 = vst [vmem:[#allocation4 + $0x8] sm:$0xff] 0.0
    %314 = vst [vmem:[#allocation4 + $0x10] sm:$0x3] 0.0
    %315 = vst [vmem:[#allocation5] sm:$0xff] 0.0
    %316 = vst [vmem:[#allocation5 + $0x8] sm:$0xff] 0.0
    %317 = vst [vmem:[#allocation5 + $0x10] sm:$0xff] 0.0
    %318 = vst [vmem:[#allocation5 + $0x18] sm:$0xff] 0.0
    %319 = vst [vmem:[#allocation5 + $0x20] sm:$0xf] 0.0
    %v320 = vld [vmem:[%s0] sm:$0x3]
    %322 = vrot.lane.b32.xlu0 %v320, 16
    %v323 = vpop.permute.xlu0 %322
    %vm325 = vcmask 156800
    %326 = vst.msk [vmem:[#allocation2] sm:$0x3] %vm325, %v323
    %s327 = scalar_lea.vmem %s0, 2
    %v328 = vld [vmem:[%s327] sm:$0x3]
    %330 = vrot.lane.b32.xlu0 %v328, 20
    %v331 = vpop.permute.xlu0 %330
    %vm333 = vcmask 189600
    %334 = vst.msk [vmem:[#allocation2] sm:$0x3] %vm333, %v331
    %s335 = scalar_lea.vmem %s0, 16
    %v336 = vld [vmem:[%s335] sm:$0x3]
    %338 = vrot.lane.b32.xlu0 %v336, 28
    %v339 = vpop.permute.xlu0 %338
    %vm341 = vcmask 255200
    %342 = vst.msk [vmem:[#allocation2] sm:$0x3] %vm341, %v339
    %s343 = scalar_lea.vmem %s0, 18
    %v344 = vld [vmem:[%s343] sm:$0x3]
    %346 = vrot.lane.b32.xlu0 %v344, 32
    %v347 = vpop.permute.xlu0 %346
    %vm349 = vcmask 288000
    %350 = vst.msk [vmem:[#allocation2] sm:$0x3] %vm349, %v347
    %v351 = vld [vmem:[%s327] sm:$0x3]
    %353 = vrot.lane.b32.xlu0 %v351, 12
    %v354 = vpop.permute.xlu0 %353
    %vm356 = vcmask 124000
    %357 = vst.msk [vmem:[#allocation2 + $0x2] sm:$0x3] %vm356, %v354
    %s358 = scalar_lea.vmem %s0, 4
    %v359 = vld [vmem:[%s358] sm:$0x3]
    %361 = vrot.lane.b32.xlu0 %v359, 16
    %v362 = vpop.permute.xlu0 %361
    %364 = vst.msk [vmem:[#allocation2 + $0x2] sm:$0x3] %vm325, %v362
    %s365 = scalar_lea.vmem %s0, 6
    %v366 = vld [vmem:[%s365] sm:$0x3]
    %368 = vrot.lane.b32.xlu0 %v366, 20
    %v369 = vpop.permute.xlu0 %368
    %371 = vst.msk [vmem:[#allocation2 + $0x2] sm:$0x3] %vm333, %v369
    %v372 = vld [vmem:[%s343] sm:$0x3]
    %374 = vrot.lane.b32.xlu0 %v372, 24
    %v375 = vpop.permute.xlu0 %374
    %vm377 = vcmask 222400
    %378 = vst.msk [vmem:[#allocation2 + $0x2] sm:$0x3] %vm377, %v375
    %s379 = scalar_lea.vmem %s0, 20
    %v380 = vld [vmem:[%s379] sm:$0x3]
    %382 = vrot.lane.b32.xlu0 %v380, 28
    %v383 = vpop.permute.xlu0 %382
    %385 = vst.msk [vmem:[#allocation2 + $0x2] sm:$0x3] %vm341, %v383
    %s386 = scalar_lea.vmem %s0, 22
    %v387 = vld [vmem:[%s386] sm:$0x3]
    %389 = vrot.lane.b32.xlu0 %v387, 32
    %v390 = vpop.permute.xlu0 %389
    %392 = vst.msk [vmem:[#allocation2 + $0x2] sm:$0x3] %vm349, %v390
    %v393 = vld [vmem:[%s365] sm:$0x3]
    %395 = vrot.lane.b32.xlu0 %v393, 12
    %v396 = vpop.permute.xlu0 %395
    %398 = vst.msk [vmem:[#allocation2 + $0x4] sm:$0x3] %vm356, %v396
    %s399 = scalar_lea.vmem %s0, 8
    %v400 = vld [vmem:[%s399] sm:$0x3]
    %402 = vrot.lane.b32.xlu0 %v400, 16
    %v403 = vpop.permute.xlu0 %402
    %405 = vst.msk [vmem:[#allocation2 + $0x4] sm:$0x3] %vm325, %v403
    %s406 = scalar_lea.vmem %s0, 10
    %v407 = vld [vmem:[%s406] sm:$0x3]
    %409 = vrot.lane.b32.xlu0 %v407, 20
    %v410 = vpop.permute.xlu0 %409
    %412 = vst.msk [vmem:[#allocation2 + $0x4] sm:$0x3] %vm333, %v410
    %v413 = vld [vmem:[%s386] sm:$0x3]
    %415 = vrot.lane.b32.xlu0 %v413, 24
    %v416 = vpop.permute.xlu0 %415
    %418 = vst.msk [vmem:[#allocation2 + $0x4] sm:$0x3] %vm377, %v416
    %s419 = scalar_lea.vmem %s0, 24
    %v420 = vld [vmem:[%s419] sm:$0x3]
    %422 = vrot.lane.b32.xlu0 %v420, 28
    %v423 = vpop.permute.xlu0 %422
    %425 = vst.msk [vmem:[#allocation2 + $0x4] sm:$0x3] %vm341, %v423
    %s426 = scalar_lea.vmem %s0, 26
    %v427 = vld [vmem:[%s426] sm:$0x3]
    %429 = vrot.lane.b32.xlu0 %v427, 32
    %v430 = vpop.permute.xlu0 %429
    %432 = vst.msk [vmem:[#allocation2 + $0x4] sm:$0x3] %vm349, %v430
    %v433 = vld [vmem:[%s406] sm:$0x3]
    %435 = vrot.lane.b32.xlu0 %v433, 12
    %v436 = vpop.permute.xlu0 %435
    %438 = vst.msk [vmem:[#allocation2 + $0x6] sm:$0x3] %vm356, %v436
    %s439 = scalar_lea.vmem %s0, 12
    %v440 = vld [vmem:[%s439] sm:$0x3]
    %442 = vrot.lane.b32.xlu0 %v440, 16
    %v443 = vpop.permute.xlu0 %442
    %445 = vst.msk [vmem:[#allocation2 + $0x6] sm:$0x3] %vm325, %v443
    %s446 = scalar_lea.vmem %s0, 14
    %v447 = vld [vmem:[%s446] sm:$0x3]
    %449 = vrot.lane.b32.xlu0 %v447, 20
    %v450 = vpop.permute.xlu0 %449
    %452 = vst.msk [vmem:[#allocation2 + $0x6] sm:$0x3] %vm333, %v450
    %v453 = vld [vmem:[%s426] sm:$0x3]
    %455 = vrot.lane.b32.xlu0 %v453, 24
    %v456 = vpop.permute.xlu0 %455
    %458 = vst.msk [vmem:[#allocation2 + $0x6] sm:$0x3] %vm377, %v456
    %s459 = scalar_lea.vmem %s0, 28
    %v460 = vld [vmem:[%s459] sm:$0x3]
    %462 = vrot.lane.b32.xlu0 %v460, 28
    %v463 = vpop.permute.xlu0 %462
    %465 = vst.msk [vmem:[#allocation2 + $0x6] sm:$0x3] %vm341, %v463
    %s466 = scalar_lea.vmem %s0, 30
    %v467 = vld [vmem:[%s466] sm:$0x3]
    %469 = vrot.lane.b32.xlu0 %v467, 32
    %v470 = vpop.permute.xlu0 %469
    %472 = vst.msk [vmem:[#allocation2 + $0x6] sm:$0x3] %vm349, %v470
    %v473 = vld [vmem:[%s335] sm:$0x3]
    %475 = vrot.lane.b32.xlu0 %v473, 4
    %v476 = vpop.permute.xlu0 %475
    %vm478 = vcmask 58400
    %479 = vst.msk [vmem:[#allocation2 + $0x8] sm:$0x3] %vm478, %v476
    %v480 = vld [vmem:[%s343] sm:$0x3]
    %482 = vrot.lane.b32.xlu0 %v480, 8
    %v483 = vpop.permute.xlu0 %482
    %vm485 = vcmask 91200
    %486 = vst.msk [vmem:[#allocation2 + $0x8] sm:$0x3] %vm485, %v483
    %s487 = scalar_lea.vmem %s0, 32
    %v488 = vld [vmem:[%s487] sm:$0x3]
    %490 = vrot.lane.b32.xlu0 %v488, 16
    %v491 = vpop.permute.xlu0 %490
    %493 = vst.msk [vmem:[#allocation2 + $0x8] sm:$0x3] %vm325, %v491
    %s494 = scalar_lea.vmem %s0, 34
    %v495 = vld [vmem:[%s494] sm:$0x3]
    %497 = vrot.lane.b32.xlu0 %v495, 20
    %v498 = vpop.permute.xlu0 %497
    %500 = vst.msk [vmem:[#allocation2 + $0x8] sm:$0x3] %vm333, %v498
    %s501 = scalar_lea.vmem %s0, 48
    %v502 = vld [vmem:[%s501] sm:$0x3]
    %504 = vrot.lane.b32.xlu0 %v502, 28
    %v505 = vpop.permute.xlu0 %504
    %507 = vst.msk [vmem:[#allocation2 + $0x8] sm:$0x3] %vm341, %v505
    %s508 = scalar_lea.vmem %s0, 50
    %v509 = vld [vmem:[%s508] sm:$0x3]
    %511 = vrot.lane.b32.xlu0 %v509, 32
    %v512 = vpop.permute.xlu0 %511
    %514 = vst.msk [vmem:[#allocation2 + $0x8] sm:$0x3] %vm349, %v512
    %v515 = vld [vmem:[%s343] sm:$0x3]
    %vm516 = vcmask 25600
    %517 = vst.msk [vmem:[#allocation2 + $0xa] sm:$0x3] %vm516, %v515
    %v518 = vld [vmem:[%s379] sm:$0x3]
    %520 = vrot.lane.b32.xlu0 %v518, 4
    %v521 = vpop.permute.xlu0 %520
    %523 = vst.msk [vmem:[#allocation2 + $0xa] sm:$0x3] %vm478, %v521
    %v524 = vld [vmem:[%s386] sm:$0x3]
    %526 = vrot.lane.b32.xlu0 %v524, 8
    %v527 = vpop.permute.xlu0 %526
    %529 = vst.msk [vmem:[#allocation2 + $0xa] sm:$0x3] %vm485, %v527
    %v530 = vld [vmem:[%s494] sm:$0x3]
    %532 = vrot.lane.b32.xlu0 %v530, 12
    %v533 = vpop.permute.xlu0 %532
    %535 = vst.msk [vmem:[#allocation2 + $0xa] sm:$0x3] %vm356, %v533
    %s536 = scalar_lea.vmem %s0, 36
    %v537 = vld [vmem:[%s536] sm:$0x3]
    %539 = vrot.lane.b32.xlu0 %v537, 16
    %v540 = vpop.permute.xlu0 %539
    %542 = vst.msk [vmem:[#allocation2 + $0xa] sm:$0x3] %vm325, %v540
    %s543 = scalar_lea.vmem %s0, 38
    %v544 = vld [vmem:[%s543] sm:$0x3]
    %546 = vrot.lane.b32.xlu0 %v544, 20
    %v547 = vpop.permute.xlu0 %546
    %549 = vst.msk [vmem:[#allocation2 + $0xa] sm:$0x3] %vm333, %v547
    %v550 = vld [vmem:[%s508] sm:$0x3]
    %552 = vrot.lane.b32.xlu0 %v550, 24
    %v553 = vpop.permute.xlu0 %552
    %555 = vst.msk [vmem:[#allocation2 + $0xa] sm:$0x3] %vm377, %v553
    %s556 = scalar_lea.vmem %s0, 52
    %v557 = vld [vmem:[%s556] sm:$0x3]
    %559 = vrot.lane.b32.xlu0 %v557, 28
    %v560 = vpop.permute.xlu0 %559
    %562 = vst.msk [vmem:[#allocation2 + $0xa] sm:$0x3] %vm341, %v560
    %s563 = scalar_lea.vmem %s0, 54
    %v564 = vld [vmem:[%s563] sm:$0x3]
    %566 = vrot.lane.b32.xlu0 %v564, 32
    %v567 = vpop.permute.xlu0 %566
    %569 = vst.msk [vmem:[#allocation2 + $0xa] sm:$0x3] %vm349, %v567
    %v570 = vld [vmem:[%s386] sm:$0x3]
    %571 = vst.msk [vmem:[#allocation2 + $0xc] sm:$0x3] %vm516, %v570
    %v572 = vld [vmem:[%s419] sm:$0x3]
    %574 = vrot.lane.b32.xlu0 %v572, 4
    %v575 = vpop.permute.xlu0 %574
    %577 = vst.msk [vmem:[#allocation2 + $0xc] sm:$0x3] %vm478, %v575
    %v578 = vld [vmem:[%s426] sm:$0x3]
    %580 = vrot.lane.b32.xlu0 %v578, 8
    %v581 = vpop.permute.xlu0 %580
    %583 = vst.msk [vmem:[#allocation2 + $0xc] sm:$0x3] %vm485, %v581
    %v584 = vld [vmem:[%s543] sm:$0x3]
    %586 = vrot.lane.b32.xlu0 %v584, 12
    %v587 = vpop.permute.xlu0 %586
    %589 = vst.msk [vmem:[#allocation2 + $0xc] sm:$0x3] %vm356, %v587
    %s590 = scalar_lea.vmem %s0, 40
    %v591 = vld [vmem:[%s590] sm:$0x3]
    %593 = vrot.lane.b32.xlu0 %v591, 16
    %v594 = vpop.permute.xlu0 %593
    %596 = vst.msk [vmem:[#allocation2 + $0xc] sm:$0x3] %vm325, %v594
    %s597 = scalar_lea.vmem %s0, 42
    %v598 = vld [vmem:[%s597] sm:$0x3]
    %600 = vrot.lane.b32.xlu0 %v598, 20
    %v601 = vpop.permute.xlu0 %600
    %603 = vst.msk [vmem:[#allocation2 + $0xc] sm:$0x3] %vm333, %v601
    %v604 = vld [vmem:[%s563] sm:$0x3]
    %606 = vrot.lane.b32.xlu0 %v604, 24
    %v607 = vpop.permute.xlu0 %606
    %609 = vst.msk [vmem:[#allocation2 + $0xc] sm:$0x3] %vm377, %v607
    %s610 = scalar_lea.vmem %s0, 56
    %v611 = vld [vmem:[%s610] sm:$0x3]
    %613 = vrot.lane.b32.xlu0 %v611, 28
    %v614 = vpop.permute.xlu0 %613
    %616 = vst.msk [vmem:[#allocation2 + $0xc] sm:$0x3] %vm341, %v614
    %s617 = scalar_lea.vmem %s0, 58
    %v618 = vld [vmem:[%s617] sm:$0x3]
    %620 = vrot.lane.b32.xlu0 %v618, 32
    %v621 = vpop.permute.xlu0 %620
    %623 = vst.msk [vmem:[#allocation2 + $0xc] sm:$0x3] %vm349, %v621
    %v624 = vld [vmem:[%s426] sm:$0x3]
    %625 = vst.msk [vmem:[#allocation2 + $0xe] sm:$0x3] %vm516, %v624
    %v626 = vld [vmem:[%s459] sm:$0x3]
    %628 = vrot.lane.b32.xlu0 %v626, 4
    %v629 = vpop.permute.xlu0 %628
    %631 = vst.msk [vmem:[#allocation2 + $0xe] sm:$0x3] %vm478, %v629
    %v632 = vld [vmem:[%s466] sm:$0x3]
    %634 = vrot.lane.b32.xlu0 %v632, 8
    %v635 = vpop.permute.xlu0 %634
    %637 = vst.msk [vmem:[#allocation2 + $0xe] sm:$0x3] %vm485, %v635
    %v638 = vld [vmem:[%s597] sm:$0x3]
    %640 = vrot.lane.b32.xlu0 %v638, 12
    %v641 = vpop.permute.xlu0 %640
    %643 = vst.msk [vmem:[#allocation2 + $0xe] sm:$0x3] %vm356, %v641
    %s644 = scalar_lea.vmem %s0, 44
    %v645 = vld [vmem:[%s644] sm:$0x3]
    %647 = vrot.lane.b32.xlu0 %v645, 16
    %v648 = vpop.permute.xlu0 %647
    %650 = vst.msk [vmem:[#allocation2 + $0xe] sm:$0x3] %vm325, %v648
    %s651 = scalar_lea.vmem %s0, 46
    %v652 = vld [vmem:[%s651] sm:$0x3]
    %654 = vrot.lane.b32.xlu0 %v652, 20
    %v655 = vpop.permute.xlu0 %654
    %657 = vst.msk [vmem:[#allocation2 + $0xe] sm:$0x3] %vm333, %v655
    %v658 = vld [vmem:[%s617] sm:$0x3]
    %660 = vrot.lane.b32.xlu0 %v658, 24
    %v661 = vpop.permute.xlu0 %660
    %663 = vst.msk [vmem:[#allocation2 + $0xe] sm:$0x3] %vm377, %v661
    %s664 = scalar_lea.vmem %s0, 60
    %v665 = vld [vmem:[%s664] sm:$0x3]
    %667 = vrot.lane.b32.xlu0 %v665, 28
    %v668 = vpop.permute.xlu0 %667
    %670 = vst.msk [vmem:[#allocation2 + $0xe] sm:$0x3] %vm341, %v668
    %s671 = scalar_lea.vmem %s0, 62
    %v672 = vld [vmem:[%s671] sm:$0x3]
    %674 = vrot.lane.b32.xlu0 %v672, 32
    %v675 = vpop.permute.xlu0 %674
    %677 = vst.msk [vmem:[#allocation2 + $0xe] sm:$0x3] %vm349, %v675
    %v678 = vld [vmem:[%s501] sm:$0x3]
    %680 = vrot.lane.b32.xlu0 %v678, 4
    %v681 = vpop.permute.xlu0 %680
    %683 = vst.msk [vmem:[#allocation2 + $0x10] sm:$0x3] %vm478, %v681
    %v684 = vld [vmem:[%s508] sm:$0x3]
    %686 = vrot.lane.b32.xlu0 %v684, 8
    %v687 = vpop.permute.xlu0 %686
    %689 = vst.msk [vmem:[#allocation2 + $0x10] sm:$0x3] %vm485, %v687
    %s690 = scalar_lea.vmem %s0, 64
    %v691 = vld [vmem:[%s690] sm:$0x3]
    %693 = vrot.lane.b32.xlu0 %v691, 16
    %v694 = vpop.permute.xlu0 %693
    %696 = vst.msk [vmem:[#allocation2 + $0x10] sm:$0x3] %vm325, %v694
    %s697 = scalar_lea.vmem %s0, 66
    %v698 = vld [vmem:[%s697] sm:$0x3]
    %700 = vrot.lane.b32.xlu0 %v698, 20
    %v701 = vpop.permute.xlu0 %700
    %703 = vst.msk [vmem:[#allocation2 + $0x10] sm:$0x3] %vm333, %v701
    %s704 = scalar_lea.vmem %s0, 80
    %v705 = vld [vmem:[%s704] sm:$0x3]
    %707 = vrot.lane.b32.xlu0 %v705, 28
    %v708 = vpop.permute.xlu0 %707
    %710 = vst.msk [vmem:[#allocation2 + $0x10] sm:$0x3] %vm341, %v708
    %s711 = scalar_lea.vmem %s0, 82
    %v712 = vld [vmem:[%s711] sm:$0x3]
    %714 = vrot.lane.b32.xlu0 %v712, 32
    %v715 = vpop.permute.xlu0 %714
    %717 = vst.msk [vmem:[#allocation2 + $0x10] sm:$0x3] %vm349, %v715
    %v718 = vld [vmem:[%s508] sm:$0x3]
    %719 = vst.msk [vmem:[#allocation2 + $0x12] sm:$0x3] %vm516, %v718
    %v720 = vld [vmem:[%s556] sm:$0x3]
    %722 = vrot.lane.b32.xlu0 %v720, 4
    %v723 = vpop.permute.xlu0 %722
    %725 = vst.msk [vmem:[#allocation2 + $0x12] sm:$0x3] %vm478, %v723
    %v726 = vld [vmem:[%s563] sm:$0x3]
    %728 = vrot.lane.b32.xlu0 %v726, 8
    %v729 = vpop.permute.xlu0 %728
    %731 = vst.msk [vmem:[#allocation2 + $0x12] sm:$0x3] %vm485, %v729
    %v732 = vld [vmem:[%s697] sm:$0x3]
    %734 = vrot.lane.b32.xlu0 %v732, 12
    %v735 = vpop.permute.xlu0 %734
    %737 = vst.msk [vmem:[#allocation2 + $0x12] sm:$0x3] %vm356, %v735
    %s738 = scalar_lea.vmem %s0, 68
    %v739 = vld [vmem:[%s738] sm:$0x3]
    %741 = vrot.lane.b32.xlu0 %v739, 16
    %v742 = vpop.permute.xlu0 %741
    %744 = vst.msk [vmem:[#allocation2 + $0x12] sm:$0x3] %vm325, %v742
    %s745 = scalar_lea.vmem %s0, 70
    %v746 = vld [vmem:[%s745] sm:$0x3]
    %748 = vrot.lane.b32.xlu0 %v746, 20
    %v749 = vpop.permute.xlu0 %748
    %751 = vst.msk [vmem:[#allocation2 + $0x12] sm:$0x3] %vm333, %v749
    %v752 = vld [vmem:[%s711] sm:$0x3]
    %754 = vrot.lane.b32.xlu0 %v752, 24
    %v755 = vpop.permute.xlu0 %754
    %757 = vst.msk [vmem:[#allocation2 + $0x12] sm:$0x3] %vm377, %v755
    %s758 = scalar_lea.vmem %s0, 84
    %v759 = vld [vmem:[%s758] sm:$0x3]
    %761 = vrot.lane.b32.xlu0 %v759, 28
    %v762 = vpop.permute.xlu0 %761
    %764 = vst.msk [vmem:[#allocation2 + $0x12] sm:$0x3] %vm341, %v762
    %s765 = scalar_lea.vmem %s0, 86
    %v766 = vld [vmem:[%s765] sm:$0x3]
    %768 = vrot.lane.b32.xlu0 %v766, 32
    %v769 = vpop.permute.xlu0 %768
    %771 = vst.msk [vmem:[#allocation2 + $0x12] sm:$0x3] %vm349, %v769
    %v772 = vld [vmem:[%s563] sm:$0x3]
    %773 = vst.msk [vmem:[#allocation2 + $0x14] sm:$0x3] %vm516, %v772
    %v774 = vld [vmem:[%s610] sm:$0x3]
    %776 = vrot.lane.b32.xlu0 %v774, 4
    %v777 = vpop.permute.xlu0 %776
    %779 = vst.msk [vmem:[#allocation2 + $0x14] sm:$0x3] %vm478, %v777
    %v780 = vld [vmem:[%s617] sm:$0x3]
    %782 = vrot.lane.b32.xlu0 %v780, 8
    %v783 = vpop.permute.xlu0 %782
    %785 = vst.msk [vmem:[#allocation2 + $0x14] sm:$0x3] %vm485, %v783
    %v786 = vld [vmem:[%s745] sm:$0x3]
    %788 = vrot.lane.b32.xlu0 %v786, 12
    %v789 = vpop.permute.xlu0 %788
    %791 = vst.msk [vmem:[#allocation2 + $0x14] sm:$0x3] %vm356, %v789
    %s792 = scalar_lea.vmem %s0, 72
    %v793 = vld [vmem:[%s792] sm:$0x3]
    %795 = vrot.lane.b32.xlu0 %v793, 16
    %v796 = vpop.permute.xlu0 %795
    %798 = vst.msk [vmem:[#allocation2 + $0x14] sm:$0x3] %vm325, %v796
    %s799 = scalar_lea.vmem %s0, 74
    %v800 = vld [vmem:[%s799] sm:$0x3]
    %802 = vrot.lane.b32.xlu0 %v800, 20
    %v803 = vpop.permute.xlu0 %802
    %805 = vst.msk [vmem:[#allocation2 + $0x14] sm:$0x3] %vm333, %v803
    %v806 = vld [vmem:[%s765] sm:$0x3]
    %808 = vrot.lane.b32.xlu0 %v806, 24
    %v809 = vpop.permute.xlu0 %808
    %811 = vst.msk [vmem:[#allocation2 + $0x14] sm:$0x3] %vm377, %v809
    %s812 = scalar_lea.vmem %s0, 88
    %v813 = vld [vmem:[%s812] sm:$0x3]
    %815 = vrot.lane.b32.xlu0 %v813, 28
    %v816 = vpop.permute.xlu0 %815
    %818 = vst.msk [vmem:[#allocation2 + $0x14] sm:$0x3] %vm341, %v816
    %s819 = scalar_lea.vmem %s0, 90
    %v820 = vld [vmem:[%s819] sm:$0x3]
    %822 = vrot.lane.b32.xlu0 %v820, 32
    %v823 = vpop.permute.xlu0 %822
    %825 = vst.msk [vmem:[#allocation2 + $0x14] sm:$0x3] %vm349, %v823
    %v826 = vld [vmem:[%s617] sm:$0x3]
    %827 = vst.msk [vmem:[#allocation2 + $0x16] sm:$0x3] %vm516, %v826
    %v828 = vld [vmem:[%s664] sm:$0x3]
    %830 = vrot.lane.b32.xlu0 %v828, 4
    %v831 = vpop.permute.xlu0 %830
    %833 = vst.msk [vmem:[#allocation2 + $0x16] sm:$0x3] %vm478, %v831
    %v834 = vld [vmem:[%s671] sm:$0x3]
    %836 = vrot.lane.b32.xlu0 %v834, 8
    %v837 = vpop.permute.xlu0 %836
    %839 = vst.msk [vmem:[#allocation2 + $0x16] sm:$0x3] %vm485, %v837
    %v840 = vld [vmem:[%s799] sm:$0x3]
    %842 = vrot.lane.b32.xlu0 %v840, 12
    %v843 = vpop.permute.xlu0 %842
    %845 = vst.msk [vmem:[#allocation2 + $0x16] sm:$0x3] %vm356, %v843
    %s846 = scalar_lea.vmem %s0, 76
    %v847 = vld [vmem:[%s846] sm:$0x3]
    %849 = vrot.lane.b32.xlu0 %v847, 16
    %v850 = vpop.permute.xlu0 %849
    %852 = vst.msk [vmem:[#allocation2 + $0x16] sm:$0x3] %vm325, %v850
    %s853 = scalar_lea.vmem %s0, 78
    %v854 = vld [vmem:[%s853] sm:$0x3]
    %856 = vrot.lane.b32.xlu0 %v854, 20
    %v857 = vpop.permute.xlu0 %856
    %859 = vst.msk [vmem:[#allocation2 + $0x16] sm:$0x3] %vm333, %v857
    %v860 = vld [vmem:[%s819] sm:$0x3]
    %862 = vrot.lane.b32.xlu0 %v860, 24
    %v863 = vpop.permute.xlu0 %862
    %865 = vst.msk [vmem:[#allocation2 + $0x16] sm:$0x3] %vm377, %v863
    %s866 = scalar_lea.vmem %s0, 92
    %v867 = vld [vmem:[%s866] sm:$0x3]
    %869 = vrot.lane.b32.xlu0 %v867, 28
    %v870 = vpop.permute.xlu0 %869
    %872 = vst.msk [vmem:[#allocation2 + $0x16] sm:$0x3] %vm341, %v870
    %s873 = scalar_lea.vmem %s0, 94
    %v874 = vld [vmem:[%s873] sm:$0x3]
    %876 = vrot.lane.b32.xlu0 %v874, 32
    %v877 = vpop.permute.xlu0 %876
    %879 = vst.msk [vmem:[#allocation2 + $0x16] sm:$0x3] %vm349, %v877
    %v880 = vld [vmem:[%s704] sm:$0x3]
    %882 = vrot.lane.b32.xlu0 %v880, 4
    %v883 = vpop.permute.xlu0 %882
    %885 = vst.msk [vmem:[#allocation2 + $0x18] sm:$0x3] %vm478, %v883
    %v886 = vld [vmem:[%s711] sm:$0x3]
    %888 = vrot.lane.b32.xlu0 %v886, 8
    %v889 = vpop.permute.xlu0 %888
    %891 = vst.msk [vmem:[#allocation2 + $0x18] sm:$0x3] %vm485, %v889
    %s892 = scalar_lea.vmem %s0, 96
    %v893 = vld [vmem:[%s892] sm:$0x3]
    %895 = vrot.lane.b32.xlu0 %v893, 16
    %v896 = vpop.permute.xlu0 %895
    %898 = vst.msk [vmem:[#allocation2 + $0x18] sm:$0x3] %vm325, %v896
    %s899 = scalar_lea.vmem %s0, 98
    %v900 = vld [vmem:[%s899] sm:$0x3]
    %902 = vrot.lane.b32.xlu0 %v900, 20
    %v903 = vpop.permute.xlu0 %902
    %905 = vst.msk [vmem:[#allocation2 + $0x18] sm:$0x3] %vm333, %v903
    %s906 = scalar_lea.vmem %s0, 112
    %v907 = vld [vmem:[%s906] sm:$0x3]
    %909 = vrot.lane.b32.xlu0 %v907, 28
    %v910 = vpop.permute.xlu0 %909
    %912 = vst.msk [vmem:[#allocation2 + $0x18] sm:$0x3] %vm341, %v910
    %s913 = scalar_lea.vmem %s0, 114
    %v914 = vld [vmem:[%s913] sm:$0x3]
    %916 = vrot.lane.b32.xlu0 %v914, 32
    %v917 = vpop.permute.xlu0 %916
    %919 = vst.msk [vmem:[#allocation2 + $0x18] sm:$0x3] %vm349, %v917
    %v920 = vld [vmem:[%s711] sm:$0x3]
    %921 = vst.msk [vmem:[#allocation2 + $0x1a] sm:$0x3] %vm516, %v920
    %v922 = vld [vmem:[%s758] sm:$0x3]
    %924 = vrot.lane.b32.xlu0 %v922, 4
    %v925 = vpop.permute.xlu0 %924
    %927 = vst.msk [vmem:[#allocation2 + $0x1a] sm:$0x3] %vm478, %v925
    %v928 = vld [vmem:[%s765] sm:$0x3]
    %930 = vrot.lane.b32.xlu0 %v928, 8
    %v931 = vpop.permute.xlu0 %930
    %933 = vst.msk [vmem:[#allocation2 + $0x1a] sm:$0x3] %vm485, %v931
    %v934 = vld [vmem:[%s899] sm:$0x3]
    %936 = vrot.lane.b32.xlu0 %v934, 12
    %v937 = vpop.permute.xlu0 %936
    %939 = vst.msk [vmem:[#allocation2 + $0x1a] sm:$0x3] %vm356, %v937
    %s940 = scalar_lea.vmem %s0, 100
    %v941 = vld [vmem:[%s940] sm:$0x3]
    %943 = vrot.lane.b32.xlu0 %v941, 16
    %v944 = vpop.permute.xlu0 %943
    %946 = vst.msk [vmem:[#allocation2 + $0x1a] sm:$0x3] %vm325, %v944
    %s947 = scalar_lea.vmem %s0, 102
    %v948 = vld [vmem:[%s947] sm:$0x3]
    %950 = vrot.lane.b32.xlu0 %v948, 20
    %v951 = vpop.permute.xlu0 %950
    %953 = vst.msk [vmem:[#allocation2 + $0x1a] sm:$0x3] %vm333, %v951
    %v954 = vld [vmem:[%s913] sm:$0x3]
    %956 = vrot.lane.b32.xlu0 %v954, 24
    %v957 = vpop.permute.xlu0 %956
    %959 = vst.msk [vmem:[#allocation2 + $0x1a] sm:$0x3] %vm377, %v957
    %s960 = scalar_lea.vmem %s0, 116
    %v961 = vld [vmem:[%s960] sm:$0x3]
    %963 = vrot.lane.b32.xlu0 %v961, 28
    %v964 = vpop.permute.xlu0 %963
    %966 = vst.msk [vmem:[#allocation2 + $0x1a] sm:$0x3] %vm341, %v964
    %s967 = scalar_lea.vmem %s0, 118
    %v968 = vld [vmem:[%s967] sm:$0x3]
    %970 = vrot.lane.b32.xlu0 %v968, 32
    %v971 = vpop.permute.xlu0 %970
    %973 = vst.msk [vmem:[#allocation2 + $0x1a] sm:$0x3] %vm349, %v971
    %v974 = vld [vmem:[%s765] sm:$0x3]
    %975 = vst.msk [vmem:[#allocation2 + $0x1c] sm:$0x3] %vm516, %v974
    %v976 = vld [vmem:[%s812] sm:$0x3]
    %978 = vrot.lane.b32.xlu0 %v976, 4
    %v979 = vpop.permute.xlu0 %978
    %981 = vst.msk [vmem:[#allocation2 + $0x1c] sm:$0x3] %vm478, %v979
    %v982 = vld [vmem:[%s819] sm:$0x3]
    %984 = vrot.lane.b32.xlu0 %v982, 8
    %v985 = vpop.permute.xlu0 %984
    %987 = vst.msk [vmem:[#allocation2 + $0x1c] sm:$0x3] %vm485, %v985
    %v988 = vld [vmem:[%s947] sm:$0x3]
    %990 = vrot.lane.b32.xlu0 %v988, 12
    %v991 = vpop.permute.xlu0 %990
    %993 = vst.msk [vmem:[#allocation2 + $0x1c] sm:$0x3] %vm356, %v991
    %s994 = scalar_lea.vmem %s0, 104
    %v995 = vld [vmem:[%s994] sm:$0x3]
    %997 = vrot.lane.b32.xlu0 %v995, 16
    %v998 = vpop.permute.xlu0 %997
    %1000 = vst.msk [vmem:[#allocation2 + $0x1c] sm:$0x3] %vm325, %v998
    %s1001 = scalar_lea.vmem %s0, 106
    %v1002 = vld [vmem:[%s1001] sm:$0x3]
    %1004 = vrot.lane.b32.xlu0 %v1002, 20
    %v1005 = vpop.permute.xlu0 %1004
    %1007 = vst.msk [vmem:[#allocation2 + $0x1c] sm:$0x3] %vm333, %v1005
    %v1008 = vld [vmem:[%s967] sm:$0x3]
    %1010 = vrot.lane.b32.xlu0 %v1008, 24
    %v1011 = vpop.permute.xlu0 %1010
    %1013 = vst.msk [vmem:[#allocation2 + $0x1c] sm:$0x3] %vm377, %v1011
    %s1014 = scalar_lea.vmem %s0, 120
    %v1015 = vld [vmem:[%s1014] sm:$0x3]
    %1017 = vrot.lane.b32.xlu0 %v1015, 28
    %v1018 = vpop.permute.xlu0 %1017
    %1020 = vst.msk [vmem:[#allocation2 + $0x1c] sm:$0x3] %vm341, %v1018
    %s1021 = scalar_lea.vmem %s0, 122
    %v1022 = vld [vmem:[%s1021] sm:$0x3]
    %1024 = vrot.lane.b32.xlu0 %v1022, 32
    %v1025 = vpop.permute.xlu0 %1024
    %1027 = vst.msk [vmem:[#allocation2 + $0x1c] sm:$0x3] %vm349, %v1025
    %v1028 = vld [vmem:[%s819] sm:$0x3]
    %1029 = vst.msk [vmem:[#allocation2 + $0x1e] sm:$0x3] %vm516, %v1028
    %v1030 = vld [vmem:[%s866] sm:$0x3]
    %1032 = vrot.lane.b32.xlu0 %v1030, 4
    %v1033 = vpop.permute.xlu0 %1032
    %1035 = vst.msk [vmem:[#allocation2 + $0x1e] sm:$0x3] %vm478, %v1033
    %v1036 = vld [vmem:[%s873] sm:$0x3]
    %1038 = vrot.lane.b32.xlu0 %v1036, 8
    %v1039 = vpop.permute.xlu0 %1038
    %1041 = vst.msk [vmem:[#allocation2 + $0x1e] sm:$0x3] %vm485, %v1039
    %v1042 = vld [vmem:[%s1001] sm:$0x3]
    %1044 = vrot.lane.b32.xlu0 %v1042, 12
    %v1045 = vpop.permute.xlu0 %1044
    %1047 = vst.msk [vmem:[#allocation2 + $0x1e] sm:$0x3] %vm356, %v1045
    %s1048 = scalar_lea.vmem %s0, 108
    %v1049 = vld [vmem:[%s1048] sm:$0x3]
    %1051 = vrot.lane.b32.xlu0 %v1049, 16
    %v1052 = vpop.permute.xlu0 %1051
    %1054 = vst.msk [vmem:[#allocation2 + $0x1e] sm:$0x3] %vm325, %v1052
    %s1055 = scalar_lea.vmem %s0, 110
    %v1056 = vld [vmem:[%s1055] sm:$0x3]
    %1058 = vrot.lane.b32.xlu0 %v1056, 20
    %v1059 = vpop.permute.xlu0 %1058
    %1061 = vst.msk [vmem:[#allocation2 + $0x1e] sm:$0x3] %vm333, %v1059
    %v1062 = vld [vmem:[%s1021] sm:$0x3]
    %1064 = vrot.lane.b32.xlu0 %v1062, 24
    %v1065 = vpop.permute.xlu0 %1064
    %1067 = vst.msk [vmem:[#allocation2 + $0x1e] sm:$0x3] %vm377, %v1065
    %s1068 = scalar_lea.vmem %s0, 124
    %v1069 = vld [vmem:[%s1068] sm:$0x3]
    %1071 = vrot.lane.b32.xlu0 %v1069, 28
    %v1072 = vpop.permute.xlu0 %1071
    %1074 = vst.msk [vmem:[#allocation2 + $0x1e] sm:$0x3] %vm341, %v1072
    %s1075 = scalar_lea.vmem %s0, 126
    %v1076 = vld [vmem:[%s1075] sm:$0x3]
    %1078 = vrot.lane.b32.xlu0 %v1076, 32
    %v1079 = vpop.permute.xlu0 %1078
    %1081 = vst.msk [vmem:[#allocation2 + $0x1e] sm:$0x3] %vm349, %v1079
    %v1082 = vld [vmem:[#allocation2] sm:$0xff]
    %v1083 = vld [vmem:[#allocation2 + $0x8] sm:$0xff]
    %v1084 = vld [vmem:[#allocation2 + $0x10] sm:$0xff]
    %v1085 = vld [vmem:[#allocation2 + $0x18] sm:$0xff]
    %v1086 = vpack.c.bf16 %v1083, %v1082
    %v1087 = vpack.c.bf16 %v1085, %v1084
    %v1088 = vld [vmem:[#allocation6] sm:$0xf]
    %v1089 = vld [vmem:[#allocation6 + $0x4] sm:$0xf]
    %v1090 = vld [vmem:[#allocation6 + $0x8] sm:$0xf]
    %v1091 = vld [vmem:[#allocation6 + $0xc] sm:$0xf]
    %v1092 = vld [vmem:[#allocation6 + $0x10] sm:$0x3]
    %v1093 = vld [vmem:[#allocation9] sm:$0x1]
    %v1095 = vlaneseq
    %v1096 = vshrl.u32 %v1095, 7
    %v1097 = vsub.s32 0, %v1096
    %v1098 = vrot.slane %v1093, %v1097
    %v1105 = vunpack.c.l.b16 %v1088
    %v1106 = vunpack.c.l.b16 %v1089
    %v1107 = vunpack.c.l.b16 %v1090
    %v1108 = vunpack.c.l.b16 %v1091
    %v1109 = vunpack.c.l.b16 %v1092
    %v1110 = vpack.c.b16 %v1106, %v1105
    %v1111 = vpack.c.b16 %v1108, %v1107
    %v1112 = vpack.c.b16 %v1109, %v1109
    %v1116 = vsel %vm301, %v1086, 0
    %v1119 = vsel %vm301, %v1087, 0
    %vm1121 = vcmask 1041408
    %v1123 = vsel %vm1121, %v1112, 0
    %1125 = vmatprep.subr.bf16.mxu0 0
    %1126 = vmatpush1.bf16.msra.mxu0 %v1110
    %1127 = vmatprep.subr.bf16.mxu0 0
    %1128 = vmatpush1.bf16.msra.mxu0 %v1111
    %1129 = vmatprep.subr.bf16.mxu0 0
    %1130 = vmatpush1.bf16.msra.mxu0 %v1123
    %1131 = vmatprep.subr.bf16.mxu0 0
    %1132 = vmatpush1.bf16.msra.mxu0 0
    %1133 = vmatprep.subr.bf16.mxu0 0
    %1134 = vmatpush1.bf16.msra.mxu0 0
    %1135 = vmatprep.subr.bf16.mxu0 0
    %1136 = vmatpush1.bf16.msra.mxu0 0
    %1137 = vmatprep.subr.bf16.mxu0 0
    %1138 = vmatpush1.bf16.msra.mxu0 0
    %1139 = vmatprep.subr.bf16.mxu0 0
    %1140 = vmatpush1.bf16.msra.mxu0 0
    %1141 = vmatprep.subr.bf16.mxu0 0
    %1142 = vmatpush1.bf16.msra.mxu0 0
    %1143 = vmatprep.subr.bf16.mxu0 0
    %1144 = vmatpush1.bf16.msra.mxu0 0
    %1145 = vmatprep.subr.bf16.mxu0 0
    %1146 = vmatpush1.bf16.msra.mxu0 0
    %1147 = vmatprep.subr.bf16.mxu0 0
    %1148 = vmatpush1.bf16.msra.mxu0 0
    %1149 = vmatprep.subr.bf16.mxu0 0
    %1150 = vmatpush1.bf16.msra.mxu0 0
    %1151 = vmatprep.subr.bf16.mxu0 0
    %1152 = vmatpush1.bf16.msra.mxu0 0
    %1153 = vmatprep.subr.bf16.mxu0 0
    %1154 = vmatpush1.bf16.msra.mxu0 0
    %1155 = vmatprep.subr.bf16.mxu0 0
    %1156 = vmatpush1.bf16.msra.mxu0 0
    %1157 = vmatprep.mubr.bf16.mxu0 0
    %1158 = vmatmul.mubr.bf16.gmra.mrb[0].mxu0 %v1116
    %v1159 = vpop.f32.mrb[0].mxu0
    %v1160 = vadd.f32 %v1098, %v1159
    %v1161 = vpop.f32.mrb[0].mxu0
    %v1162 = vpop.f32.mrb[0].mxu0
    %v1163 = vadd.f32 %v1098, %v1162
    %v1164 = vpop.f32.mrb[0].mxu0
    %1165 = vmatprep.mubr.bf16.mxu0 0
    %1166 = vmatmul.mubr.bf16.gmra.mrb[0].mxu0 %v1119
    %v1167 = vpop.f32.mrb[0].mxu0
    %v1168 = vadd.f32 %v1098, %v1167
    %v1169 = vpop.f32.mrb[0].mxu0
    %v1170 = vpop.f32.mrb[0].mxu0
    %v1171 = vadd.f32 %v1098, %v1170
    %v1172 = vpop.f32.mrb[0].mxu0
    %1173 = vdwg.mxu0
    %v1174 = vsel %vm310, %v1160, 0.0
    %v1175 = vsel %vm310, %v1163, 0.0
    %v1176 = vadd.f32 %v1174, %v1175
    %v1177 = vsel %vm310, %v1168, 0.0
    %v1178 = vadd.f32 %v1176, %v1177
    %v1179 = vsel %vm310, %v1171, 0.0
    %v1180 = vadd.f32 %v1178, %v1179
    %v1181 = vrot.slane %v1180, 4
    %v1182 = vadd.f32 %v1180, %v1181
    %v1183 = vrot.slane %v1182, 2
    %v1184 = vadd.f32 %v1182, %v1183
    %v1185 = vrot.slane %v1184, 1
    %v1186 = vadd.f32 %v1184, %v1185
    %v1187 = vrcp.pop 32.0
    %v1188 = vmul.f32 %v1186, %v1187
    %v1189 = vmul.f32 %v1160, %v1160
    %v1190 = vmul.f32 %v1163, %v1163
    %v1191 = vmul.f32 %v1168, %v1168
    %v1192 = vmul.f32 %v1171, %v1171
    %v1193 = vsel %vm310, %v1189, 0.0
    %v1194 = vsel %vm310, %v1190, 0.0
    %v1195 = vadd.f32 %v1193, %v1194
    %v1196 = vsel %vm310, %v1191, 0.0
    %v1197 = vadd.f32 %v1195, %v1196
    %v1198 = vsel %vm310, %v1192, 0.0
    %v1199 = vadd.f32 %v1197, %v1198
    %v1200 = vrot.slane %v1199, 4
    %v1201 = vadd.f32 %v1199, %v1200
    %v1202 = vrot.slane %v1201, 2
    %v1203 = vadd.f32 %v1201, %v1202
    %v1204 = vrot.slane %v1203, 1
    %v1205 = vadd.f32 %v1203, %v1204
    %v1206 = vmul.f32 %v1205, %v1187
    %v1207 = vmul.f32 %v1188, %v1188
    %v1208 = vsub.f32 %v1206, %v1207
    %v1209 = vsub.f32 %v1160, %v1188
    %v1210 = vsub.f32 %v1163, %v1188
    %v1211 = vsub.f32 %v1168, %v1188
    %v1212 = vsub.f32 %v1171, %v1188
    %v1213 = vadd.f32 %v1208, 1e-05
    %v1214 = vrsqrt.pop %v1213
    %v1215 = vmul.f32 %v1209, %v1214
    %v1216 = vmul.f32 %v1210, %v1214
    %v1217 = vmul.f32 %v1211, %v1214
    %v1218 = vmul.f32 %v1212, %v1214
    %v1219 = vld [vmem:[#allocation11] sm:$0x1]
    %v1221 = vlaneseq
    %v1222 = vshrl.u32 %v1221, 7
    %v1223 = vsub.s32 0, %v1222
    %v1224 = vrot.slane %v1219, %v1223
    %v1226 = vmul.f32 %v1215, %v1224
    %v1227 = vmul.f32 %v1216, %v1224
    %v1228 = vmul.f32 %v1217, %v1224
    %v1229 = vmul.f32 %v1218, %v1224
    %v1230 = vld [vmem:[#allocation12] sm:$0x1]
    %v1232 = vlaneseq
    %v1233 = vshrl.u32 %v1232, 7
    %v1234 = vsub.s32 0, %v1233
    %v1235 = vrot.slane %v1230, %v1234
    %v1237 = vadd.f32 %v1226, %v1235
    %v1238 = vadd.f32 %v1227, %v1235
    %v1239 = vadd.f32 %v1228, %v1235
    %v1240 = vadd.f32 %v1229, %v1235
    %vm1241 = vcmp.gt.f32.partialorder %v1237, 0.0
    %vm1242 = vcmp.gt.f32.partialorder %v1238, 0.0
    %vm1243 = vcmp.gt.f32.partialorder %v1239, 0.0
    %vm1244 = vcmp.gt.f32.partialorder %v1240, 0.0
    %v1245 = vmul.f32 %v1237, 0.2
    %v1246 = vmul.f32 %v1238, 0.2
    %v1247 = vmul.f32 %v1239, 0.2
    %v1248 = vmul.f32 %v1240, 0.2
    %v1249 = vsel %vm1241, %v1237, %v1245
    %v1250 = vsel %vm1242, %v1238, %v1246
    %v1251 = vsel %vm1243, %v1239, %v1247
    %v1252 = vsel %vm1244, %v1240, %v1248
    %vm1253 = vcmask 517120
    %1254 = vst.msk [vmem:[#allocation3 + $0x10] sm:$0x3] %vm1253, %v1249
    %v1256 = vrot.slane %v1249, 2
    %1257 = vrot.lane.b32.xlu0 %v1256, 64
    %v1258 = vpop.permute.xlu0 %1257
    %vm1260 = vcmask 1041920
    %1261 = vst.msk [vmem:[#allocation3 + $0x10] sm:$0x3] %vm1260, %v1258
    %1263 = vrot.lane.b32.xlu0 %v1250, 64
    %v1264 = vpop.permute.xlu0 %1263
    %1266 = vst.msk [vmem:[#allocation3 + $0x18] sm:$0x3] %vm1260, %v1264
    %v1267 = vrot.slane %v1250, 2
    %1269 = vst.msk [vmem:[#allocation3 + $0x20] sm:$0x3] %vm1253, %v1267
    %1270 = vrot.lane.b32.xlu0 %v1249, 64
    %v1271 = vpop.permute.xlu0 %1270
    %vm1273 = vcmask 1043970
    %1274 = vst.msk [vmem:[#allocation3 + $0x8] sm:$0xc] %vm1273, %v1271
    %vm1276 = vcmask 519170
    %1277 = vst.msk [vmem:[#allocation3 + $0x10] sm:$0xc] %vm1276, %v1256
    %v1278 = vrot.slane %v1249, 4
    %1279 = vrot.lane.b32.xlu0 %v1278, 64
    %v1280 = vpop.permute.xlu0 %1279
    %1282 = vst.msk [vmem:[#allocation3 + $0x10] sm:$0xc] %vm1273, %v1280
    %1283 = vst.msk [vmem:[#allocation3 + $0x18] sm:$0xc] %vm1276, %v1250
    %1284 = vrot.lane.b32.xlu0 %v1267, 64
    %v1285 = vpop.permute.xlu0 %1284
    %1287 = vst.msk [vmem:[#allocation3 + $0x18] sm:$0xc] %vm1273, %v1285
    %v1288 = vrot.slane %v1250, 4
    %1290 = vst.msk [vmem:[#allocation3 + $0x20] sm:$0xc] %vm1276, %v1288
    %1291 = vrot.lane.b32.xlu0 %v1288, 64
    %v1292 = vpop.permute.xlu0 %1291
    %vm1294 = vcmask 1046020
    %1295 = vst.msk [vmem:[#allocation3] sm:$0x30] %vm1294, %v1292
    %v1296 = vrot.slane %v1250, 6
    %vm1298 = vcmask 521220
    %1299 = vst.msk [vmem:[#allocation3 + $0x8] sm:$0x30] %vm1298, %v1296
    %v1301 = vrot.slane %v1251, 4
    %1303 = vst.msk [vmem:[#allocation3 + $0x10] sm:$0x30] %vm1298, %v1301
    %v1304 = vrot.slane %v1251, 6
    %1305 = vrot.lane.b32.xlu0 %v1304, 64
    %v1306 = vpop.permute.xlu0 %1305
    %1308 = vst.msk [vmem:[#allocation3 + $0x10] sm:$0x30] %vm1294, %v1306
    %v1310 = vrot.slane %v1252, 4
    %1311 = vrot.lane.b32.xlu0 %v1310, 64
    %v1312 = vpop.permute.xlu0 %1311
    %1314 = vst.msk [vmem:[#allocation3 + $0x18] sm:$0x30] %vm1294, %v1312
    %v1315 = vrot.slane %v1252, 6
    %1317 = vst.msk [vmem:[#allocation3 + $0x20] sm:$0x30] %vm1298, %v1315
    %vm1318 = vcmask 523270
    %1319 = vst.msk [vmem:[#allocation3] sm:$0xc0] %vm1318, %v1288
    %1320 = vrot.lane.b32.xlu0 %v1296, 64
    %v1321 = vpop.permute.xlu0 %1320
    %vm1323 = vcmask 1048070
    %1324 = vst.msk [vmem:[#allocation3] sm:$0xc0] %vm1323, %v1321
    %1325 = vst.msk [vmem:[#allocation3 + $0x8] sm:$0xc0] %vm1318, %v1250
    %1326 = vrot.lane.b32.xlu0 %v1301, 64
    %v1327 = vpop.permute.xlu0 %1326
    %1329 = vst.msk [vmem:[#allocation3 + $0x8] sm:$0xc0] %vm1323, %v1327
    %1331 = vst.msk [vmem:[#allocation3 + $0x10] sm:$0xc0] %vm1318, %v1304
    %1332 = vrot.lane.b32.xlu0 %v1251, 64
    %v1333 = vpop.permute.xlu0 %1332
    %1335 = vst.msk [vmem:[#allocation3 + $0x10] sm:$0xc0] %vm1323, %v1333
    %1337 = vst.msk [vmem:[#allocation3 + $0x18] sm:$0xc0] %vm1318, %v1310
    %1338 = vrot.lane.b32.xlu0 %v1315, 64
    %v1339 = vpop.permute.xlu0 %1338
    %1341 = vst.msk [vmem:[#allocation3 + $0x18] sm:$0xc0] %vm1323, %v1339
    %1342 = vst.msk [vmem:[#allocation3 + $0x20] sm:$0xc0] %vm1318, %v1252
    %v1343 = vld [vmem:[#allocation3] sm:$0xff]
    %v1344 = vld [vmem:[#allocation3 + $0x8] sm:$0xff]
    %v1345 = vld [vmem:[#allocation3 + $0x10] sm:$0xff]
    %v1346 = vld [vmem:[#allocation3 + $0x18] sm:$0xff]
    %v1347 = vld [vmem:[#allocation3 + $0x20] sm:$0xff]
    %v1348 = vpack.c.bf16 %v1343, %v1343
    %v1349 = vpack.c.bf16 %v1344, %v1344
    %v1350 = vpack.c.bf16 %v1345, %v1345
    %v1351 = vpack.c.bf16 %v1346, %v1346
    %v1352 = vpack.c.bf16 %v1347, %v1347
    %v1353 = vld [vmem:[#allocation14] sm:$0xf]
    %v1354 = vld [vmem:[#allocation14 + $0x4] sm:$0xf]
    %v1355 = vld [vmem:[#allocation14 + $0x8] sm:$0xf]
    %v1356 = vld [vmem:[#allocation14 + $0xc] sm:$0xf]
    %v1357 = vld [vmem:[#allocation14 + $0x10] sm:$0xf]
    %v1358 = vld [vmem:[#allocation14 + $0x14] sm:$0xf]
    %v1359 = vld [vmem:[#allocation14 + $0x18] sm:$0xf]
    %v1360 = vld [vmem:[#allocation14 + $0x1c] sm:$0xf]
    %v1361 = vld [vmem:[#allocation14 + $0x20] sm:$0xf]
    %v1362 = vld [vmem:[#allocation14 + $0x24] sm:$0xf]
    %v1363 = vld [vmem:[#allocation14 + $0x28] sm:$0xf]
    %v1364 = vld [vmem:[#allocation14 + $0x2c] sm:$0xf]
    %v1365 = vld [vmem:[#allocation14 + $0x30] sm:$0xf]
    %v1366 = vld [vmem:[#allocation14 + $0x34] sm:$0xf]
    %v1367 = vld [vmem:[#allocation14 + $0x38] sm:$0xf]
    %v1368 = vld [vmem:[#allocation14 + $0x3c] sm:$0xf]
    %v1369 = vld [vmem:[#allocation14 + $0x40] sm:$0xf]
    %v1370 = vld [vmem:[#allocation14 + $0x44] sm:$0xf]
    %v1371 = vld [vmem:[#allocation14 + $0x48] sm:$0xf]
    %v1372 = vld [vmem:[#allocation14 + $0x4c] sm:$0xf]
    %v1373 = vld [vmem:[#allocation14 + $0x50] sm:$0xf]
    %v1374 = vld [vmem:[#allocation14 + $0x54] sm:$0xf]
    %v1375 = vld [vmem:[#allocation14 + $0x58] sm:$0xf]
    %v1376 = vld [vmem:[#allocation14 + $0x5c] sm:$0xf]
    %v1377 = vld [vmem:[#allocation14 + $0x60] sm:$0xf]
    %v1378 = vld [vmem:[#allocation14 + $0x64] sm:$0xf]
    %v1379 = vld [vmem:[#allocation14 + $0x68] sm:$0xf]
    %v1380 = vld [vmem:[#allocation14 + $0x6c] sm:$0xf]
    %v1381 = vld [vmem:[#allocation14 + $0x70] sm:$0xf]
    %v1382 = vld [vmem:[#allocation14 + $0x74] sm:$0xf]
    %v1383 = vld [vmem:[#allocation14 + $0x78] sm:$0xf]
    %v1384 = vld [vmem:[#allocation14 + $0x7c] sm:$0xf]
    %v1385 = vld [vmem:[#allocation14 + $0x80] sm:$0xf]
    %v1386 = vld [vmem:[#allocation14 + $0x84] sm:$0xf]
    %v1387 = vld [vmem:[#allocation14 + $0x88] sm:$0xf]
    %v1388 = vld [vmem:[#allocation14 + $0x8c] sm:$0xf]
    %v1389 = vld [vmem:[#allocation14 + $0x90] sm:$0xf]
    %v1390 = vld [vmem:[#allocation14 + $0x94] sm:$0xf]
    %v1391 = vld [vmem:[#allocation14 + $0x98] sm:$0xf]
    %v1392 = vld [vmem:[#allocation14 + $0x9c] sm:$0xf]
    %v1393 = vld [vmem:[#allocation14 + $0xa0] sm:$0xf]
    %v1394 = vld [vmem:[#allocation14 + $0xa4] sm:$0xf]
    %v1395 = vld [vmem:[#allocation14 + $0xa8] sm:$0xf]
    %v1396 = vld [vmem:[#allocation14 + $0xac] sm:$0xf]
    %v1397 = vld [vmem:[#allocation14 + $0xb0] sm:$0xf]
    %v1398 = vld [vmem:[#allocation14 + $0xb4] sm:$0xf]
    %v1399 = vld [vmem:[#allocation14 + $0xb8] sm:$0xf]
    %v1400 = vld [vmem:[#allocation14 + $0xbc] sm:$0xf]
    %v1401 = vld [vmem:[#allocation14 + $0xc0] sm:$0xf]
    %v1402 = vld [vmem:[#allocation14 + $0xc4] sm:$0xf]
    %v1403 = vld [vmem:[#allocation14 + $0xc8] sm:$0xf]
    %v1404 = vld [vmem:[#allocation14 + $0xcc] sm:$0xf]
    %v1405 = vld [vmem:[#allocation14 + $0xd0] sm:$0xf]
    %v1406 = vld [vmem:[#allocation14 + $0xd4] sm:$0xf]
    %v1407 = vld [vmem:[#allocation14 + $0xd8] sm:$0xf]
    %v1408 = vld [vmem:[#allocation14 + $0xdc] sm:$0xf]
    %v1409 = vld [vmem:[#allocation14 + $0xe0] sm:$0xf]
    %v1410 = vld [vmem:[#allocation14 + $0xe4] sm:$0xf]
    %v1411 = vld [vmem:[#allocation14 + $0xe8] sm:$0xf]
    %v1412 = vld [vmem:[#allocation14 + $0xec] sm:$0xf]
    %v1413 = vld [vmem:[#allocation14 + $0xf0] sm:$0xf]
    %v1414 = vld [vmem:[#allocation14 + $0xf4] sm:$0xf]
    %v1415 = vld [vmem:[#allocation14 + $0xf8] sm:$0xf]
    %v1416 = vld [vmem:[#allocation14 + $0xfc] sm:$0xf]
    %v1417 = vld [vmem:[#allocation14 + $0x100] sm:$0xf]
    %v1418 = vld [vmem:[#allocation14 + $0x104] sm:$0xf]
    %v1419 = vld [vmem:[#allocation14 + $0x108] sm:$0xf]
    %v1420 = vld [vmem:[#allocation14 + $0x10c] sm:$0xf]
    %v1421 = vld [vmem:[#allocation14 + $0x110] sm:$0xf]
    %v1422 = vld [vmem:[#allocation14 + $0x114] sm:$0xf]
    %v1423 = vld [vmem:[#allocation14 + $0x118] sm:$0xf]
    %v1424 = vld [vmem:[#allocation14 + $0x11c] sm:$0xf]
    %v1425 = vld [vmem:[#allocation15] sm:$0x1]
    %v1427 = vlaneseq
    %v1428 = vshrl.u32 %v1427, 7
    %v1429 = vsub.s32 0, %v1428
    %v1430 = vrot.slane %v1425, %v1429
    %v1504 = vunpack.c.l.b16 %v1353
    %v1505 = vunpack.c.l.b16 %v1354
    %v1506 = vunpack.c.l.b16 %v1355
    %v1507 = vunpack.c.l.b16 %v1356
    %v1508 = vunpack.c.l.b16 %v1357
    %v1509 = vunpack.c.l.b16 %v1358
    %v1510 = vunpack.c.l.b16 %v1359
    %v1511 = vunpack.c.l.b16 %v1360
    %v1512 = vunpack.c.l.b16 %v1361
    %v1513 = vunpack.c.l.b16 %v1362
    %v1514 = vunpack.c.l.b16 %v1363
    %v1515 = vunpack.c.l.b16 %v1364
    %v1516 = vunpack.c.l.b16 %v1365
    %v1517 = vunpack.c.l.b16 %v1366
    %v1518 = vunpack.c.l.b16 %v1367
    %v1519 = vunpack.c.l.b16 %v1368
    %v1520 = vunpack.c.l.b16 %v1369
    %v1521 = vunpack.c.l.b16 %v1370
    %v1522 = vunpack.c.l.b16 %v1371
    %v1523 = vunpack.c.l.b16 %v1372
    %v1524 = vunpack.c.l.b16 %v1373
    %v1525 = vunpack.c.l.b16 %v1374
    %v1526 = vunpack.c.l.b16 %v1375
    %v1527 = vunpack.c.l.b16 %v1376
    %v1528 = vunpack.c.l.b16 %v1377
    %v1529 = vunpack.c.l.b16 %v1378
    %v1530 = vunpack.c.l.b16 %v1379
    %v1531 = vunpack.c.l.b16 %v1380
    %v1532 = vunpack.c.l.b16 %v1381
    %v1533 = vunpack.c.l.b16 %v1382
    %v1534 = vunpack.c.l.b16 %v1383
    %v1535 = vunpack.c.l.b16 %v1384
    %v1536 = vunpack.c.l.b16 %v1385
    %v1537 = vunpack.c.l.b16 %v1386
    %v1538 = vunpack.c.l.b16 %v1387
    %v1539 = vunpack.c.l.b16 %v1388
    %v1540 = vunpack.c.l.b16 %v1389
    %v1541 = vunpack.c.l.b16 %v1390
    %v1542 = vunpack.c.l.b16 %v1391
    %v1543 = vunpack.c.l.b16 %v1392
    %v1544 = vunpack.c.l.b16 %v1393
    %v1545 = vunpack.c.l.b16 %v1394
    %v1546 = vunpack.c.l.b16 %v1395
    %v1547 = vunpack.c.l.b16 %v1396
    %v1548 = vunpack.c.l.b16 %v1397
    %v1549 = vunpack.c.l.b16 %v1398
    %v1550 = vunpack.c.l.b16 %v1399
    %v1551 = vunpack.c.l.b16 %v1400
    %v1552 = vunpack.c.l.b16 %v1401
    %v1553 = vunpack.c.l.b16 %v1402
    %v1554 = vunpack.c.l.b16 %v1403
    %v1555 = vunpack.c.l.b16 %v1404
    %v1556 = vunpack.c.l.b16 %v1405
    %v1557 = vunpack.c.l.b16 %v1406
    %v1558 = vunpack.c.l.b16 %v1407
    %v1559 = vunpack.c.l.b16 %v1408
    %v1560 = vunpack.c.l.b16 %v1409
    %v1561 = vunpack.c.l.b16 %v1410
    %v1562 = vunpack.c.l.b16 %v1411
    %v1563 = vunpack.c.l.b16 %v1412
    %v1564 = vunpack.c.l.b16 %v1413
    %v1565 = vunpack.c.l.b16 %v1414
    %v1566 = vunpack.c.l.b16 %v1415
    %v1567 = vunpack.c.l.b16 %v1416
    %v1568 = vunpack.c.l.b16 %v1417
    %v1569 = vunpack.c.l.b16 %v1418
    %v1570 = vunpack.c.l.b16 %v1419
    %v1571 = vunpack.c.l.b16 %v1420
    %v1572 = vunpack.c.l.b16 %v1421
    %v1573 = vunpack.c.l.b16 %v1422
    %v1574 = vunpack.c.l.b16 %v1423
    %v1575 = vunpack.c.l.b16 %v1424
    %v1576 = vpack.c.b16 %v1505, %v1504
    %v1577 = vpack.c.b16 %v1507, %v1506
    %v1578 = vpack.c.b16 %v1509, %v1508
    %v1579 = vpack.c.b16 %v1511, %v1510
    %v1580 = vpack.c.b16 %v1513, %v1512
    %v1581 = vpack.c.b16 %v1515, %v1514
    %v1582 = vpack.c.b16 %v1517, %v1516
    %v1583 = vpack.c.b16 %v1519, %v1518
    %v1584 = vpack.c.b16 %v1521, %v1520
    %v1585 = vpack.c.b16 %v1523, %v1522
    %v1586 = vpack.c.b16 %v1525, %v1524
    %v1587 = vpack.c.b16 %v1527, %v1526
    %v1588 = vpack.c.b16 %v1529, %v1528
    %v1589 = vpack.c.b16 %v1531, %v1530
    %v1590 = vpack.c.b16 %v1533, %v1532
    %v1591 = vpack.c.b16 %v1535, %v1534
    %v1592 = vpack.c.b16 %v1537, %v1536
    %v1593 = vpack.c.b16 %v1539, %v1538
    %v1594 = vpack.c.b16 %v1541, %v1540
    %v1595 = vpack.c.b16 %v1543, %v1542
    %v1596 = vpack.c.b16 %v1545, %v1544
    %v1597 = vpack.c.b16 %v1547, %v1546
    %v1598 = vpack.c.b16 %v1549, %v1548
    %v1599 = vpack.c.b16 %v1551, %v1550
    %v1600 = vpack.c.b16 %v1553, %v1552
    %v1601 = vpack.c.b16 %v1555, %v1554
    %v1602 = vpack.c.b16 %v1557, %v1556
    %v1603 = vpack.c.b16 %v1559, %v1558
    %v1604 = vpack.c.b16 %v1561, %v1560
    %v1605 = vpack.c.b16 %v1563, %v1562
    %v1606 = vpack.c.b16 %v1565, %v1564
    %v1607 = vpack.c.b16 %v1567, %v1566
    %v1608 = vpack.c.b16 %v1569, %v1568
    %v1609 = vpack.c.b16 %v1571, %v1570
    %v1610 = vpack.c.b16 %v1573, %v1572
    %v1611 = vpack.c.b16 %v1575, %v1574
    %v1649 = vsel %vm310, %v1352, 0
    %1651 = vmatprep.subr.bf16.mxu0 0
    %1652 = vmatpush1.bf16.msra.mxu0 %v1576
    %1653 = vmatprep.subr.bf16.mxu0 0
    %1654 = vmatpush1.bf16.msra.mxu0 %v1577
    %1655 = vmatprep.subr.bf16.mxu0 0
    %1656 = vmatpush1.bf16.msra.mxu0 %v1578
    %1657 = vmatprep.subr.bf16.mxu0 0
    %1658 = vmatpush1.bf16.msra.mxu0 %v1579
    %1659 = vmatprep.subr.bf16.mxu0 0
    %1660 = vmatpush1.bf16.msra.mxu0 %v1580
    %1661 = vmatprep.subr.bf16.mxu0 0
    %1662 = vmatpush1.bf16.msra.mxu0 %v1581
    %1663 = vmatprep.subr.bf16.mxu0 0
    %1664 = vmatpush1.bf16.msra.mxu0 %v1582
    %1665 = vmatprep.subr.bf16.mxu0 0
    %1666 = vmatpush1.bf16.msra.mxu0 %v1583
    %1667 = vmatprep.subr.bf16.mxu0 0
    %1668 = vmatpush1.bf16.msra.mxu0 %v1584
    %1669 = vmatprep.subr.bf16.mxu0 0
    %1670 = vmatpush1.bf16.msra.mxu0 %v1585
    %1671 = vmatprep.subr.bf16.mxu0 0
    %1672 = vmatpush1.bf16.msra.mxu0 %v1586
    %1673 = vmatprep.subr.bf16.mxu0 0
    %1674 = vmatpush1.bf16.msra.mxu0 %v1587
    %1675 = vmatprep.subr.bf16.mxu0 0
    %1676 = vmatpush1.bf16.msra.mxu0 %v1588
    %1677 = vmatprep.subr.bf16.mxu0 0
    %1678 = vmatpush1.bf16.msra.mxu0 %v1589
    %1679 = vmatprep.subr.bf16.mxu0 0
    %1680 = vmatpush1.bf16.msra.mxu0 %v1590
    %1681 = vmatprep.subr.bf16.mxu0 0
    %1682 = vmatpush1.bf16.msra.mxu0 %v1591
    %1683 = vmatprep.mubr.bf16.mxu0 %v1349
    %1684 = vmatmul.mubr.bf16.gmra.mrb[0].mxu0 %v1348
    %v1685 = vpop.f32.mrb[0].mxu0
    %v1686 = vadd.f32 %v1430, %v1685
    %v1687 = vpop.f32.mrb[0].mxu0
    %v1688 = vpop.f32.mrb[0].mxu0
    %v1689 = vpop.f32.mrb[0].mxu0
    %1690 = vdwg.mxu0
    %1691 = vmatprep.subr.bf16.mxu0 0
    %1692 = vmatpush1.bf16.msra.mxu0 %v1592
    %1693 = vmatprep.subr.bf16.mxu0 0
    %1694 = vmatpush1.bf16.msra.mxu0 %v1593
    %1695 = vmatprep.subr.bf16.mxu0 0
    %1696 = vmatpush1.bf16.msra.mxu0 %v1594
    %1697 = vmatprep.subr.bf16.mxu0 0
    %1698 = vmatpush1.bf16.msra.mxu0 %v1595
    %1699 = vmatprep.subr.bf16.mxu0 0
    %1700 = vmatpush1.bf16.msra.mxu0 %v1596
    %1701 = vmatprep.subr.bf16.mxu0 0
    %1702 = vmatpush1.bf16.msra.mxu0 %v1597
    %1703 = vmatprep.subr.bf16.mxu0 0
    %1704 = vmatpush1.bf16.msra.mxu0 %v1598
    %1705 = vmatprep.subr.bf16.mxu0 0
    %1706 = vmatpush1.bf16.msra.mxu0 %v1599
    %1707 = vmatprep.subr.bf16.mxu0 0
    %1708 = vmatpush1.bf16.msra.mxu0 %v1600
    %1709 = vmatprep.subr.bf16.mxu0 0
    %1710 = vmatpush1.bf16.msra.mxu0 %v1601
    %1711 = vmatprep.subr.bf16.mxu0 0
    %1712 = vmatpush1.bf16.msra.mxu0 %v1602
    %1713 = vmatprep.subr.bf16.mxu0 0
    %1714 = vmatpush1.bf16.msra.mxu0 %v1603
    %1715 = vmatprep.subr.bf16.mxu0 0
    %1716 = vmatpush1.bf16.msra.mxu0 %v1604
    %1717 = vmatprep.subr.bf16.mxu0 0
    %1718 = vmatpush1.bf16.msra.mxu0 %v1605
    %1719 = vmatprep.subr.bf16.mxu0 0
    %1720 = vmatpush1.bf16.msra.mxu0 %v1606
    %1721 = vmatprep.subr.bf16.mxu0 0
    %1722 = vmatpush1.bf16.msra.mxu0 %v1607
    %1723 = vmatprep.mubr.bf16.mxu0 %v1351
    %1724 = vmatmul.mubr.bf16.gmra.mrb[0].mxu0 %v1350
    %v1725 = vpop.f32.mrb[0].mxu0
    %v1726 = vadd.f32 %v1686, %v1725
    %v1727 = vpop.f32.mrb[0].mxu0
    %v1728 = vpop.f32.mrb[0].mxu0
    %v1729 = vpop.f32.mrb[0].mxu0
    %1730 = vdwg.mxu0
    %1731 = vmatprep.subr.bf16.mxu0 0
    %1732 = vmatpush1.bf16.msra.mxu0 %v1608
    %1733 = vmatprep.subr.bf16.mxu0 0
    %1734 = vmatpush1.bf16.msra.mxu0 %v1609
    %1735 = vmatprep.subr.bf16.mxu0 0
    %1736 = vmatpush1.bf16.msra.mxu0 %v1610
    %1737 = vmatprep.subr.bf16.mxu0 0
    %1738 = vmatpush1.bf16.msra.mxu0 %v1611
    %1739 = vmatprep.subr.bf16.mxu0 0
    %1740 = vmatpush1.bf16.msra.mxu0 0
    %1741 = vmatprep.subr.bf16.mxu0 0
    %1742 = vmatpush1.bf16.msra.mxu0 0
    %1743 = vmatprep.subr.bf16.mxu0 0
    %1744 = vmatpush1.bf16.msra.mxu0 0
    %1745 = vmatprep.subr.bf16.mxu0 0
    %1746 = vmatpush1.bf16.msra.mxu0 0
    %1747 = vmatprep.subr.bf16.mxu0 0
    %1748 = vmatpush1.bf16.msra.mxu0 0
    %1749 = vmatprep.subr.bf16.mxu0 0
    %1750 = vmatpush1.bf16.msra.mxu0 0
    %1751 = vmatprep.subr.bf16.mxu0 0
    %1752 = vmatpush1.bf16.msra.mxu0 0
    %1753 = vmatprep.subr.bf16.mxu0 0
    %1754 = vmatpush1.bf16.msra.mxu0 0
    %1755 = vmatprep.subr.bf16.mxu0 0
    %1756 = vmatpush1.bf16.msra.mxu0 0
    %1757 = vmatprep.subr.bf16.mxu0 0
    %1758 = vmatpush1.bf16.msra.mxu0 0
    %1759 = vmatprep.subr.bf16.mxu0 0
    %1760 = vmatpush1.bf16.msra.mxu0 0
    %1761 = vmatprep.subr.bf16.mxu0 0
    %1762 = vmatpush1.bf16.msra.mxu0 0
    %1763 = vmatprep.mubr.bf16.mxu0 0
    %1764 = vmatmul.mubr.bf16.gmra.mrb[0].mxu0 %v1649
    %v1765 = vpop.f32.mrb[0].mxu0
    %v1766 = vadd.f32 %v1726, %v1765
    %v1767 = vpop.f32.mrb[0].mxu0
    %v1768 = vpop.f32.mrb[0].mxu0
    %v1769 = vpop.f32.mrb[0].mxu0
    %1770 = vdwg.mxu0
    %v1771 = vrot.slane %v1766, 4
    %v1772 = vadd.f32 %v1766, %v1771
    %v1773 = vrot.slane %v1772, 2
    %v1774 = vadd.f32 %v1772, %v1773
    %v1775 = vrot.slane %v1774, 1
    %v1776 = vadd.f32 %v1774, %v1775
    %v1777 = vrcp.pop 8.0
    %v1778 = vmul.f32 %v1776, %v1777
    %v1779 = vmul.f32 %v1766, %v1766
    %v1780 = vrot.slane %v1779, 4
    %v1781 = vadd.f32 %v1779, %v1780
    %v1782 = vrot.slane %v1781, 2
    %v1783 = vadd.f32 %v1781, %v1782
    %v1784 = vrot.slane %v1783, 1
    %v1785 = vadd.f32 %v1783, %v1784
    %v1786 = vmul.f32 %v1785, %v1777
    %v1787 = vmul.f32 %v1778, %v1778
    %v1788 = vsub.f32 %v1786, %v1787
    %v1789 = vsub.f32 %v1766, %v1778
    %v1790 = vadd.f32 %v1788, 1e-05
    %v1791 = vrsqrt.pop %v1790
    %v1792 = vmul.f32 %v1789, %v1791
    %v1793 = vld [vmem:[#allocation17] sm:$0x1]
    %v1795 = vlaneseq
    %v1796 = vshrl.u32 %v1795, 7
    %v1797 = vsub.s32 0, %v1796
    %v1798 = vrot.slane %v1793, %v1797
    %v1800 = vmul.f32 %v1792, %v1798
    %v1801 = vld [vmem:[#allocation18] sm:$0x1]
    %v1803 = vlaneseq
    %v1804 = vshrl.u32 %v1803, 7
    %v1805 = vsub.s32 0, %v1804
    %v1806 = vrot.slane %v1801, %v1805
    %v1808 = vadd.f32 %v1800, %v1806
    %vm1809 = vcmp.gt.f32.partialorder %v1808, 0.0
    %v1810 = vmul.f32 %v1808, 0.2
    %v1811 = vsel %vm1809, %v1808, %v1810
    %1812 = vst [vmem:[#allocation4 + $0x8] sm:$0x3] %v1811
    %v1815 = vunpack.c.l.s4 1983009808
    %v1816 = vunpack.c.0.s8 %v1815
    %v1817 = vlaneseq
    %v1818 = vshrl.u32 %v1817, 7
    %v1819 = vsub.s32 %v1816, %v1818
    %v1820 = vrot.slane %v1811, %v1819
    %v1821 = vcombine.high %v1820, %v1820
    %1823 = vst [vmem:[#allocation4 + $0xa] sm:$0x3] %v1821
    %v1824 = vcombine.high %v1811, %v1811
    %v1826 = vunpack.c.l.s4 1983009808
    %v1827 = vunpack.c.0.s8 %v1826
    %v1828 = vlaneseq
    %v1829 = vshrl.u32 %v1828, 7
    %v1830 = vsub.s32 %v1827, %v1829
    %v1831 = vrot.slane %v1824, %v1830
    %1833 = vst [vmem:[#allocation4 + $0xe] sm:$0x3] %v1831
    %v1834 = vcombine.high %v1831, %v1831
    %1836 = vst [vmem:[#allocation4 + $0x10] sm:$0x3] %v1834
    %v1837 = vld [vmem:[#allocation4] sm:$0xff]
    %v1838 = vld [vmem:[#allocation4 + $0x8] sm:$0xff]
    %v1839 = vld [vmem:[#allocation4 + $0x10] sm:$0x3]
    %v1843 = vcombine.high %v1837, %v1837
    %v1845 = vunpack.c.l.s4 1983009808
    %v1846 = vunpack.c.0.s8 %v1845
    %v1847 = vlaneseq
    %v1848 = vshrl.u32 %v1847, 7
    %v1849 = vsub.s32 %v1846, %v1848
    %v1850 = vrot.slane %v1837, %v1849
    %v1852 = vunpack.c.l.s4 1983009808
    %v1853 = vunpack.c.0.s8 %v1852
    %v1854 = vlaneseq
    %v1855 = vshrl.u32 %v1854, 7
    %v1856 = vsub.s32 %v1853, %v1855
    %v1857 = vrot.slane %v1843, %v1856
    %v1858 = vcombine.high %v1850, %v1850
    %v1859 = vcombine.high %v1857, %v1857
    %v1860 = vcombine.high %v1838, %v1838
    %v1862 = vunpack.c.l.s4 1983009808
    %v1863 = vunpack.c.0.s8 %v1862
    %v1864 = vlaneseq
    %v1865 = vshrl.u32 %v1864, 7
    %v1866 = vsub.s32 %v1863, %v1865
    %v1867 = vrot.slane %v1838, %v1866
    %v1869 = vunpack.c.l.s4 1983009808
    %v1870 = vunpack.c.0.s8 %v1869
    %v1871 = vlaneseq
    %v1872 = vshrl.u32 %v1871, 7
    %v1873 = vsub.s32 %v1870, %v1872
    %v1874 = vrot.slane %v1860, %v1873
    %v1875 = vcombine.high %v1867, %v1867
    %v1876 = vcombine.high %v1874, %v1874
    %v1878 = vunpack.c.l.s4 1983009808
    %v1879 = vunpack.c.0.s8 %v1878
    %v1880 = vlaneseq
    %v1881 = vshrl.u32 %v1880, 7
    %v1882 = vsub.s32 %v1879, %v1881
    %v1883 = vrot.slane %v1839, %v1882
    %v1893 = vpack.c.bf16 %v1850, %v1850
    %v1894 = vpack.c.bf16 %v1858, %v1858
    %v1895 = vpack.c.bf16 %v1857, %v1857
    %v1896 = vpack.c.bf16 %v1859, %v1859
    %v1897 = vpack.c.bf16 %v1867, %v1867
    %v1898 = vpack.c.bf16 %v1875, %v1875
    %v1899 = vpack.c.bf16 %v1874, %v1874
    %v1900 = vpack.c.bf16 %v1876, %v1876
    %v1901 = vpack.c.bf16 %v1883, %v1883
    %v1902 = vld [vmem:[#allocation20] sm:$0xff]
    %v1903 = vld [vmem:[#allocation20 + $0x8] sm:$0xff]
    %v1904 = vld [vmem:[#allocation20 + $0x10] sm:$0xff]
    %v1905 = vld [vmem:[#allocation20 + $0x18] sm:$0xff]
    %v1906 = vld [vmem:[#allocation20 + $0x20] sm:$0xff]
    %v1907 = vld [vmem:[#allocation20 + $0x28] sm:$0xff]
    %v1908 = vld [vmem:[#allocation20 + $0x30] sm:$0xff]
    %v1909 = vld [vmem:[#allocation20 + $0x38] sm:$0xff]
    %v1910 = vld [vmem:[#allocation20 + $0x40] sm:$0xff]
    %v1911 = vld [vmem:[#allocation20 + $0x48] sm:$0xff]
    %v1912 = vld [vmem:[#allocation20 + $0x50] sm:$0xff]
    %v1913 = vld [vmem:[#allocation20 + $0x58] sm:$0xff]
    %v1914 = vld [vmem:[#allocation20 + $0x60] sm:$0xff]
    %v1915 = vld [vmem:[#allocation20 + $0x68] sm:$0xff]
    %v1916 = vld [vmem:[#allocation20 + $0x70] sm:$0xff]
    %v1917 = vld [vmem:[#allocation20 + $0x78] sm:$0xff]
    %v1918 = vld [vmem:[#allocation20 + $0x80] sm:$0xff]
    %v1919 = vld [vmem:[#allocation20 + $0x88] sm:$0xff]
    %v1920 = vld [vmem:[#allocation20 + $0x90] sm:$0xff]
    %v1921 = vld [vmem:[#allocation20 + $0x98] sm:$0xff]
    %v1922 = vld [vmem:[#allocation20 + $0xa0] sm:$0xff]
    %v1923 = vld [vmem:[#allocation20 + $0xa8] sm:$0xff]
    %v1924 = vld [vmem:[#allocation20 + $0xb0] sm:$0xff]
    %v1925 = vld [vmem:[#allocation20 + $0xb8] sm:$0xff]
    %v1926 = vld [vmem:[#allocation20 + $0xc0] sm:$0xff]
    %v1927 = vld [vmem:[#allocation20 + $0xc8] sm:$0xff]
    %v1928 = vld [vmem:[#allocation20 + $0xd0] sm:$0xff]
    %v1929 = vld [vmem:[#allocation20 + $0xd8] sm:$0xff]
    %v1930 = vld [vmem:[#allocation20 + $0xe0] sm:$0xff]
    %v1931 = vld [vmem:[#allocation20 + $0xe8] sm:$0xff]
    %v1932 = vld [vmem:[#allocation20 + $0xf0] sm:$0xff]
    %v1933 = vld [vmem:[#allocation20 + $0xf8] sm:$0xff]
    %v1934 = vld [vmem:[#allocation20 + $0x100] sm:$0xff]
    %v1935 = vld [vmem:[#allocation20 + $0x108] sm:$0xff]
    %v1936 = vld [vmem:[#allocation20 + $0x110] sm:$0xff]
    %v1937 = vld [vmem:[#allocation20 + $0x118] sm:$0xff]
    %v1938 = vld [vmem:[#allocation20 + $0x120] sm:$0xff]
    %v1939 = vld [vmem:[#allocation20 + $0x128] sm:$0xff]
    %v1940 = vld [vmem:[#allocation20 + $0x130] sm:$0xff]
    %v1941 = vld [vmem:[#allocation20 + $0x138] sm:$0xff]
    %v1942 = vld [vmem:[#allocation20 + $0x140] sm:$0xff]
    %v1943 = vld [vmem:[#allocation20 + $0x148] sm:$0xff]
    %v1944 = vld [vmem:[#allocation20 + $0x150] sm:$0xff]
    %v1945 = vld [vmem:[#allocation20 + $0x158] sm:$0xff]
    %v1946 = vld [vmem:[#allocation20 + $0x160] sm:$0xff]
    %v1947 = vld [vmem:[#allocation20 + $0x168] sm:$0xff]
    %v1948 = vld [vmem:[#allocation20 + $0x170] sm:$0xff]
    %v1949 = vld [vmem:[#allocation20 + $0x178] sm:$0xff]
    %v1950 = vld [vmem:[#allocation20 + $0x180] sm:$0xff]
    %v1951 = vld [vmem:[#allocation20 + $0x188] sm:$0xff]
    %v1952 = vld [vmem:[#allocation20 + $0x190] sm:$0xff]
    %v1953 = vld [vmem:[#allocation20 + $0x198] sm:$0xff]
    %v1954 = vld [vmem:[#allocation20 + $0x1a0] sm:$0xff]
    %v1955 = vld [vmem:[#allocation20 + $0x1a8] sm:$0xff]
    %v1956 = vld [vmem:[#allocation20 + $0x1b0] sm:$0xff]
    %v1957 = vld [vmem:[#allocation20 + $0x1b8] sm:$0xff]
    %v1958 = vld [vmem:[#allocation20 + $0x1c0] sm:$0xff]
    %v1959 = vld [vmem:[#allocation20 + $0x1c8] sm:$0xff]
    %v1960 = vld [vmem:[#allocation20 + $0x1d0] sm:$0xff]
    %v1961 = vld [vmem:[#allocation20 + $0x1d8] sm:$0xff]
    %v1962 = vld [vmem:[#allocation20 + $0x1e0] sm:$0xff]
    %v1963 = vld [vmem:[#allocation20 + $0x1e8] sm:$0xff]
    %v1964 = vld [vmem:[#allocation20 + $0x1f0] sm:$0xff]
    %v1965 = vld [vmem:[#allocation20 + $0x1f8] sm:$0xff]
    %v1966 = vld [vmem:[#allocation20 + $0x200] sm:$0xff]
    %v1967 = vld [vmem:[#allocation20 + $0x208] sm:$0xff]
    %v1968 = vld [vmem:[#allocation20 + $0x210] sm:$0xff]
    %v1969 = vld [vmem:[#allocation20 + $0x218] sm:$0xff]
    %v1970 = vld [vmem:[#allocation20 + $0x220] sm:$0xff]
    %v1971 = vld [vmem:[#allocation20 + $0x228] sm:$0xff]
    %v1972 = vld [vmem:[#allocation20 + $0x230] sm:$0xff]
    %v1973 = vld [vmem:[#allocation20 + $0x238] sm:$0xff]
    %v1974 = vld [vmem:[#allocation20 + $0x240] sm:$0xff]
    %v1975 = vld [vmem:[#allocation20 + $0x248] sm:$0xff]
    %v1976 = vld [vmem:[#allocation20 + $0x250] sm:$0xff]
    %v1977 = vld [vmem:[#allocation20 + $0x258] sm:$0xff]
    %v1978 = vld [vmem:[#allocation20 + $0x260] sm:$0xff]
    %v1979 = vld [vmem:[#allocation20 + $0x268] sm:$0xff]
    %v1980 = vld [vmem:[#allocation20 + $0x270] sm:$0xff]
    %v1981 = vld [vmem:[#allocation20 + $0x278] sm:$0xff]
    %v1982 = vld [vmem:[#allocation20 + $0x280] sm:$0xff]
    %v1983 = vld [vmem:[#allocation20 + $0x288] sm:$0xff]
    %v1984 = vld [vmem:[#allocation20 + $0x290] sm:$0xff]
    %v1985 = vld [vmem:[#allocation20 + $0x298] sm:$0xff]
    %v1986 = vld [vmem:[#allocation20 + $0x2a0] sm:$0xff]
    %v1987 = vld [vmem:[#allocation20 + $0x2a8] sm:$0xff]
    %v1988 = vld [vmem:[#allocation20 + $0x2b0] sm:$0xff]
    %v1989 = vld [vmem:[#allocation20 + $0x2b8] sm:$0xff]
    %v1990 = vld [vmem:[#allocation20 + $0x2c0] sm:$0xff]
    %v1991 = vld [vmem:[#allocation20 + $0x2c8] sm:$0xff]
    %v1992 = vld [vmem:[#allocation20 + $0x2d0] sm:$0xff]
    %v1993 = vld [vmem:[#allocation20 + $0x2d8] sm:$0xff]
    %v1994 = vld [vmem:[#allocation20 + $0x2e0] sm:$0xff]
    %v1995 = vld [vmem:[#allocation20 + $0x2e8] sm:$0xff]
    %v1996 = vld [vmem:[#allocation20 + $0x2f0] sm:$0xff]
    %v1997 = vld [vmem:[#allocation20 + $0x2f8] sm:$0xff]
    %v1998 = vld [vmem:[#allocation20 + $0x300] sm:$0xff]
    %v1999 = vld [vmem:[#allocation20 + $0x308] sm:$0xff]
    %v2000 = vld [vmem:[#allocation20 + $0x310] sm:$0xff]
    %v2001 = vld [vmem:[#allocation20 + $0x318] sm:$0xff]
    %v2002 = vld [vmem:[#allocation20 + $0x320] sm:$0xff]
    %v2003 = vld [vmem:[#allocation20 + $0x328] sm:$0xff]
    %v2004 = vld [vmem:[#allocation20 + $0x330] sm:$0xff]
    %v2005 = vld [vmem:[#allocation20 + $0x338] sm:$0xff]
    %v2006 = vld [vmem:[#allocation20 + $0x340] sm:$0xff]
    %v2007 = vld [vmem:[#allocation20 + $0x348] sm:$0xff]
    %v2008 = vld [vmem:[#allocation20 + $0x350] sm:$0xff]
    %v2009 = vld [vmem:[#allocation20 + $0x358] sm:$0xff]
    %v2010 = vld [vmem:[#allocation20 + $0x360] sm:$0xff]
    %v2011 = vld [vmem:[#allocation20 + $0x368] sm:$0xff]
    %v2012 = vld [vmem:[#allocation20 + $0x370] sm:$0xff]
    %v2013 = vld [vmem:[#allocation20 + $0x378] sm:$0xff]
    %v2014 = vld [vmem:[#allocation20 + $0x380] sm:$0xff]
    %v2015 = vld [vmem:[#allocation20 + $0x388] sm:$0xff]
    %v2016 = vld [vmem:[#allocation20 + $0x390] sm:$0xff]
    %v2017 = vld [vmem:[#allocation20 + $0x398] sm:$0xff]
    %v2018 = vld [vmem:[#allocation20 + $0x3a0] sm:$0xff]
    %v2019 = vld [vmem:[#allocation20 + $0x3a8] sm:$0xff]
    %v2020 = vld [vmem:[#allocation20 + $0x3b0] sm:$0xff]
    %v2021 = vld [vmem:[#allocation20 + $0x3b8] sm:$0xff]
    %v2022 = vld [vmem:[#allocation20 + $0x3c0] sm:$0xff]
    %v2023 = vld [vmem:[#allocation20 + $0x3c8] sm:$0xff]
    %v2024 = vld [vmem:[#allocation20 + $0x3d0] sm:$0xff]
    %v2025 = vld [vmem:[#allocation20 + $0x3d8] sm:$0xff]
    %v2026 = vld [vmem:[#allocation20 + $0x3e0] sm:$0xff]
    %v2027 = vld [vmem:[#allocation20 + $0x3e8] sm:$0xff]
    %v2028 = vld [vmem:[#allocation20 + $0x3f0] sm:$0xff]
    %v2029 = vld [vmem:[#allocation20 + $0x3f8] sm:$0xff]
    %v2030 = vld [vmem:[#allocation20 + $0x400] sm:$0xff]
    %v2031 = vld [vmem:[#allocation20 + $0x408] sm:$0xff]
    %v2032 = vld [vmem:[#allocation20 + $0x410] sm:$0xff]
    %v2033 = vld [vmem:[#allocation20 + $0x418] sm:$0xff]
    %v2034 = vld [vmem:[#allocation20 + $0x420] sm:$0xff]
    %v2035 = vld [vmem:[#allocation20 + $0x428] sm:$0xff]
    %v2036 = vld [vmem:[#allocation20 + $0x430] sm:$0xff]
    %v2037 = vld [vmem:[#allocation20 + $0x438] sm:$0xff]
    %v2038 = vld [vmem:[#allocation20 + $0x440] sm:$0xff]
    %v2039 = vld [vmem:[#allocation20 + $0x448] sm:$0xff]
    %v2040 = vld [vmem:[#allocation20 + $0x450] sm:$0xff]
    %v2041 = vld [vmem:[#allocation20 + $0x458] sm:$0xff]
    %v2042 = vld [vmem:[#allocation20 + $0x460] sm:$0xff]
    %v2043 = vld [vmem:[#allocation20 + $0x468] sm:$0xff]
    %v2044 = vld [vmem:[#allocation20 + $0x470] sm:$0xff]
    %v2045 = vld [vmem:[#allocation20 + $0x478] sm:$0xff]
    %v2046 = vld [vmem:[#allocation21] sm:$0x3]
    %v2048 = vlaneseq
    %v2049 = vshrl.u32 %v2048, 7
    %v2050 = vsub.s32 0, %v2049
    %v2051 = vrot.slane %v2046, %v2050
    %v2052 = vlaneseq
    %v2053 = vshrl.u32 %v2052, 7
    %v2054 = vsub.s32 1, %v2053
    %v2055 = vrot.slane %v2046, %v2054
    %v2202 = vunpack.c.l.b16 %v1902
    %v2203 = vunpack.c.h.b16 %v1902
    %v2204 = vunpack.c.l.b16 %v1903
    %v2205 = vunpack.c.h.b16 %v1903
    %v2206 = vunpack.c.l.b16 %v1904
    %v2207 = vunpack.c.h.b16 %v1904
    %v2208 = vunpack.c.l.b16 %v1905
    %v2209 = vunpack.c.h.b16 %v1905
    %v2210 = vunpack.c.l.b16 %v1906
    %v2211 = vunpack.c.h.b16 %v1906
    %v2212 = vunpack.c.l.b16 %v1907
    %v2213 = vunpack.c.h.b16 %v1907
    %v2214 = vunpack.c.l.b16 %v1908
    %v2215 = vunpack.c.h.b16 %v1908
    %v2216 = vunpack.c.l.b16 %v1909
    %v2217 = vunpack.c.h.b16 %v1909
    %v2218 = vunpack.c.l.b16 %v1910
    %v2219 = vunpack.c.h.b16 %v1910
    %v2220 = vunpack.c.l.b16 %v1911
    %v2221 = vunpack.c.h.b16 %v1911
    %v2222 = vunpack.c.l.b16 %v1912
    %v2223 = vunpack.c.h.b16 %v1912
    %v2224 = vunpack.c.l.b16 %v1913
    %v2225 = vunpack.c.h.b16 %v1913
    %v2226 = vunpack.c.l.b16 %v1914
    %v2227 = vunpack.c.h.b16 %v1914
    %v2228 = vunpack.c.l.b16 %v1915
    %v2229 = vunpack.c.h.b16 %v1915
    %v2230 = vunpack.c.l.b16 %v1916
    %v2231 = vunpack.c.h.b16 %v1916
    %v2232 = vunpack.c.l.b16 %v1917
    %v2233 = vunpack.c.h.b16 %v1917
    %v2234 = vunpack.c.l.b16 %v1918
    %v2235 = vunpack.c.h.b16 %v1918
    %v2236 = vunpack.c.l.b16 %v1919
    %v2237 = vunpack.c.h.b16 %v1919
    %v2238 = vunpack.c.l.b16 %v1920
    %v2239 = vunpack.c.h.b16 %v1920
    %v2240 = vunpack.c.l.b16 %v1921
    %v2241 = vunpack.c.h.b16 %v1921
    %v2242 = vunpack.c.l.b16 %v1922
    %v2243 = vunpack.c.h.b16 %v1922
    %v2244 = vunpack.c.l.b16 %v1923
    %v2245 = vunpack.c.h.b16 %v1923
    %v2246 = vunpack.c.l.b16 %v1924
    %v2247 = vunpack.c.h.b16 %v1924
    %v2248 = vunpack.c.l.b16 %v1925
    %v2249 = vunpack.c.h.b16 %v1925
    %v2250 = vunpack.c.l.b16 %v1926
    %v2251 = vunpack.c.h.b16 %v1926
    %v2252 = vunpack.c.l.b16 %v1927
    %v2253 = vunpack.c.h.b16 %v1927
    %v2254 = vunpack.c.l.b16 %v1928
    %v2255 = vunpack.c.h.b16 %v1928
    %v2256 = vunpack.c.l.b16 %v1929
    %v2257 = vunpack.c.h.b16 %v1929
    %v2258 = vunpack.c.l.b16 %v1930
    %v2259 = vunpack.c.h.b16 %v1930
    %v2260 = vunpack.c.l.b16 %v1931
    %v2261 = vunpack.c.h.b16 %v1931
    %v2262 = vunpack.c.l.b16 %v1932
    %v2263 = vunpack.c.h.b16 %v1932
    %v2264 = vunpack.c.l.b16 %v1933
    %v2265 = vunpack.c.h.b16 %v1933
    %v2266 = vunpack.c.l.b16 %v1934
    %v2267 = vunpack.c.h.b16 %v1934
    %v2268 = vunpack.c.l.b16 %v1935
    %v2269 = vunpack.c.h.b16 %v1935
    %v2270 = vunpack.c.l.b16 %v1936
    %v2271 = vunpack.c.h.b16 %v1936
    %v2272 = vunpack.c.l.b16 %v1937
    %v2273 = vunpack.c.h.b16 %v1937
    %v2274 = vunpack.c.l.b16 %v1938
    %v2275 = vunpack.c.h.b16 %v1938
    %v2276 = vunpack.c.l.b16 %v1939
    %v2277 = vunpack.c.h.b16 %v1939
    %v2278 = vunpack.c.l.b16 %v1940
    %v2279 = vunpack.c.h.b16 %v1940
    %v2280 = vunpack.c.l.b16 %v1941
    %v2281 = vunpack.c.h.b16 %v1941
    %v2282 = vunpack.c.l.b16 %v1942
    %v2283 = vunpack.c.h.b16 %v1942
    %v2284 = vunpack.c.l.b16 %v1943
    %v2285 = vunpack.c.h.b16 %v1943
    %v2286 = vunpack.c.l.b16 %v1944
    %v2287 = vunpack.c.h.b16 %v1944
    %v2288 = vunpack.c.l.b16 %v1945
    %v2289 = vunpack.c.h.b16 %v1945
    %v2290 = vunpack.c.l.b16 %v1946
    %v2291 = vunpack.c.h.b16 %v1946
    %v2292 = vunpack.c.l.b16 %v1947
    %v2293 = vunpack.c.h.b16 %v1947
    %v2294 = vunpack.c.l.b16 %v1948
    %v2295 = vunpack.c.h.b16 %v1948
    %v2296 = vunpack.c.l.b16 %v1949
    %v2297 = vunpack.c.h.b16 %v1949
    %v2298 = vunpack.c.l.b16 %v1950
    %v2299 = vunpack.c.h.b16 %v1950
    %v2300 = vunpack.c.l.b16 %v1951
    %v2301 = vunpack.c.h.b16 %v1951
    %v2302 = vunpack.c.l.b16 %v1952
    %v2303 = vunpack.c.h.b16 %v1952
    %v2304 = vunpack.c.l.b16 %v1953
    %v2305 = vunpack.c.h.b16 %v1953
    %v2306 = vunpack.c.l.b16 %v1954
    %v2307 = vunpack.c.h.b16 %v1954
    %v2308 = vunpack.c.l.b16 %v1955
    %v2309 = vunpack.c.h.b16 %v1955
    %v2310 = vunpack.c.l.b16 %v1956
    %v2311 = vunpack.c.h.b16 %v1956
    %v2312 = vunpack.c.l.b16 %v1957
    %v2313 = vunpack.c.h.b16 %v1957
    %v2314 = vunpack.c.l.b16 %v1958
    %v2315 = vunpack.c.h.b16 %v1958
    %v2316 = vunpack.c.l.b16 %v1959
    %v2317 = vunpack.c.h.b16 %v1959
    %v2318 = vunpack.c.l.b16 %v1960
    %v2319 = vunpack.c.h.b16 %v1960
    %v2320 = vunpack.c.l.b16 %v1961
    %v2321 = vunpack.c.h.b16 %v1961
    %v2322 = vunpack.c.l.b16 %v1962
    %v2323 = vunpack.c.h.b16 %v1962
    %v2324 = vunpack.c.l.b16 %v1963
    %v2325 = vunpack.c.h.b16 %v1963
    %v2326 = vunpack.c.l.b16 %v1964
    %v2327 = vunpack.c.h.b16 %v1964
    %v2328 = vunpack.c.l.b16 %v1965
    %v2329 = vunpack.c.h.b16 %v1965
    %v2330 = vunpack.c.l.b16 %v1966
    %v2331 = vunpack.c.h.b16 %v1966
    %v2332 = vunpack.c.l.b16 %v1967
    %v2333 = vunpack.c.h.b16 %v1967
    %v2334 = vunpack.c.l.b16 %v1968
    %v2335 = vunpack.c.h.b16 %v1968
    %v2336 = vunpack.c.l.b16 %v1969
    %v2337 = vunpack.c.h.b16 %v1969
    %v2338 = vunpack.c.l.b16 %v1970
    %v2339 = vunpack.c.h.b16 %v1970
    %v2340 = vunpack.c.l.b16 %v1971
    %v2341 = vunpack.c.h.b16 %v1971
    %v2342 = vunpack.c.l.b16 %v1972
    %v2343 = vunpack.c.h.b16 %v1972
    %v2344 = vunpack.c.l.b16 %v1973
    %v2345 = vunpack.c.h.b16 %v1973
    %v2346 = vunpack.c.l.b16 %v1974
    %v2347 = vunpack.c.h.b16 %v1974
    %v2348 = vunpack.c.l.b16 %v1975
    %v2349 = vunpack.c.h.b16 %v1975
    %v2350 = vunpack.c.l.b16 %v1976
    %v2351 = vunpack.c.h.b16 %v1976
    %v2352 = vunpack.c.l.b16 %v1977
    %v2353 = vunpack.c.h.b16 %v1977
    %v2354 = vunpack.c.l.b16 %v1978
    %v2355 = vunpack.c.h.b16 %v1978
    %v2356 = vunpack.c.l.b16 %v1979
    %v2357 = vunpack.c.h.b16 %v1979
    %v2358 = vunpack.c.l.b16 %v1980
    %v2359 = vunpack.c.h.b16 %v1980
    %v2360 = vunpack.c.l.b16 %v1981
    %v2361 = vunpack.c.h.b16 %v1981
    %v2362 = vunpack.c.l.b16 %v1982
    %v2363 = vunpack.c.h.b16 %v1982
    %v2364 = vunpack.c.l.b16 %v1983
    %v2365 = vunpack.c.h.b16 %v1983
    %v2366 = vunpack.c.l.b16 %v1984
    %v2367 = vunpack.c.h.b16 %v1984
    %v2368 = vunpack.c.l.b16 %v1985
    %v2369 = vunpack.c.h.b16 %v1985
    %v2370 = vunpack.c.l.b16 %v1986
    %v2371 = vunpack.c.h.b16 %v1986
    %v2372 = vunpack.c.l.b16 %v1987
    %v2373 = vunpack.c.h.b16 %v1987
    %v2374 = vunpack.c.l.b16 %v1988
    %v2375 = vunpack.c.h.b16 %v1988
    %v2376 = vunpack.c.l.b16 %v1989
    %v2377 = vunpack.c.h.b16 %v1989
    %v2378 = vunpack.c.l.b16 %v1990
    %v2379 = vunpack.c.h.b16 %v1990
    %v2380 = vunpack.c.l.b16 %v1991
    %v2381 = vunpack.c.h.b16 %v1991
    %v2382 = vunpack.c.l.b16 %v1992
    %v2383 = vunpack.c.h.b16 %v1992
    %v2384 = vunpack.c.l.b16 %v1993
    %v2385 = vunpack.c.h.b16 %v1993
    %v2386 = vunpack.c.l.b16 %v1994
    %v2387 = vunpack.c.h.b16 %v1994
    %v2388 = vunpack.c.l.b16 %v1995
    %v2389 = vunpack.c.h.b16 %v1995
    %v2390 = vunpack.c.l.b16 %v1996
    %v2391 = vunpack.c.h.b16 %v1996
    %v2392 = vunpack.c.l.b16 %v1997
    %v2393 = vunpack.c.h.b16 %v1997
    %v2394 = vunpack.c.l.b16 %v1998
    %v2395 = vunpack.c.h.b16 %v1998
    %v2396 = vunpack.c.l.b16 %v1999
    %v2397 = vunpack.c.h.b16 %v1999
    %v2398 = vunpack.c.l.b16 %v2000
    %v2399 = vunpack.c.h.b16 %v2000
    %v2400 = vunpack.c.l.b16 %v2001
    %v2401 = vunpack.c.h.b16 %v2001
    %v2402 = vunpack.c.l.b16 %v2002
    %v2403 = vunpack.c.h.b16 %v2002
    %v2404 = vunpack.c.l.b16 %v2003
    %v2405 = vunpack.c.h.b16 %v2003
    %v2406 = vunpack.c.l.b16 %v2004
    %v2407 = vunpack.c.h.b16 %v2004
    %v2408 = vunpack.c.l.b16 %v2005
    %v2409 = vunpack.c.h.b16 %v2005
    %v2410 = vunpack.c.l.b16 %v2006
    %v2411 = vunpack.c.h.b16 %v2006
    %v2412 = vunpack.c.l.b16 %v2007
    %v2413 = vunpack.c.h.b16 %v2007
    %v2414 = vunpack.c.l.b16 %v2008
    %v2415 = vunpack.c.h.b16 %v2008
    %v2416 = vunpack.c.l.b16 %v2009
    %v2417 = vunpack.c.h.b16 %v2009
    %v2418 = vunpack.c.l.b16 %v2010
    %v2419 = vunpack.c.h.b16 %v2010
    %v2420 = vunpack.c.l.b16 %v2011
    %v2421 = vunpack.c.h.b16 %v2011
    %v2422 = vunpack.c.l.b16 %v2012
    %v2423 = vunpack.c.h.b16 %v2012
    %v2424 = vunpack.c.l.b16 %v2013
    %v2425 = vunpack.c.h.b16 %v2013
    %v2426 = vunpack.c.l.b16 %v2014
    %v2427 = vunpack.c.h.b16 %v2014
    %v2428 = vunpack.c.l.b16 %v2015
    %v2429 = vunpack.c.h.b16 %v2015
    %v2430 = vunpack.c.l.b16 %v2016
    %v2431 = vunpack.c.h.b16 %v2016
    %v2432 = vunpack.c.l.b16 %v2017
    %v2433 = vunpack.c.h.b16 %v2017
    %v2434 = vunpack.c.l.b16 %v2018
    %v2435 = vunpack.c.h.b16 %v2018
    %v2436 = vunpack.c.l.b16 %v2019
    %v2437 = vunpack.c.h.b16 %v2019
    %v2438 = vunpack.c.l.b16 %v2020
    %v2439 = vunpack.c.h.b16 %v2020
    %v2440 = vunpack.c.l.b16 %v2021
    %v2441 = vunpack.c.h.b16 %v2021
    %v2442 = vunpack.c.l.b16 %v2022
    %v2443 = vunpack.c.h.b16 %v2022
    %v2444 = vunpack.c.l.b16 %v2023
    %v2445 = vunpack.c.h.b16 %v2023
    %v2446 = vunpack.c.l.b16 %v2024
    %v2447 = vunpack.c.h.b16 %v2024
    %v2448 = vunpack.c.l.b16 %v2025
    %v2449 = vunpack.c.h.b16 %v2025
    %v2450 = vunpack.c.l.b16 %v2026
    %v2451 = vunpack.c.h.b16 %v2026
    %v2452 = vunpack.c.l.b16 %v2027
    %v2453 = vunpack.c.h.b16 %v2027
    %v2454 = vunpack.c.l.b16 %v2028
    %v2455 = vunpack.c.h.b16 %v2028
    %v2456 = vunpack.c.l.b16 %v2029
    %v2457 = vunpack.c.h.b16 %v2029
    %v2458 = vunpack.c.l.b16 %v2030
    %v2459 = vunpack.c.h.b16 %v2030
    %v2460 = vunpack.c.l.b16 %v2031
    %v2461 = vunpack.c.h.b16 %v2031
    %v2462 = vunpack.c.l.b16 %v2032
    %v2463 = vunpack.c.h.b16 %v2032
    %v2464 = vunpack.c.l.b16 %v2033
    %v2465 = vunpack.c.h.b16 %v2033
    %v2466 = vunpack.c.l.b16 %v2034
    %v2467 = vunpack.c.h.b16 %v2034
    %v2468 = vunpack.c.l.b16 %v2035
    %v2469 = vunpack.c.h.b16 %v2035
    %v2470 = vunpack.c.l.b16 %v2036
    %v2471 = vunpack.c.h.b16 %v2036
    %v2472 = vunpack.c.l.b16 %v2037
    %v2473 = vunpack.c.h.b16 %v2037
    %v2474 = vunpack.c.l.b16 %v2038
    %v2475 = vunpack.c.h.b16 %v2038
    %v2476 = vunpack.c.l.b16 %v2039
    %v2477 = vunpack.c.h.b16 %v2039
    %v2478 = vunpack.c.l.b16 %v2040
    %v2479 = vunpack.c.h.b16 %v2040
    %v2480 = vunpack.c.l.b16 %v2041
    %v2481 = vunpack.c.h.b16 %v2041
    %v2482 = vunpack.c.l.b16 %v2042
    %v2483 = vunpack.c.h.b16 %v2042
    %v2484 = vunpack.c.l.b16 %v2043
    %v2485 = vunpack.c.h.b16 %v2043
    %v2486 = vunpack.c.l.b16 %v2044
    %v2487 = vunpack.c.h.b16 %v2044
    %v2488 = vunpack.c.l.b16 %v2045
    %v2489 = vunpack.c.h.b16 %v2045
    %v2490 = vpack.c.b16 %v2204, %v2202
    %v2491 = vpack.c.b16 %v2205, %v2203
    %v2492 = vpack.c.b16 %v2208, %v2206
    %v2493 = vpack.c.b16 %v2209, %v2207
    %v2494 = vpack.c.b16 %v2212, %v2210
    %v2495 = vpack.c.b16 %v2213, %v2211
    %v2496 = vpack.c.b16 %v2216, %v2214
    %v2497 = vpack.c.b16 %v2217, %v2215
    %v2498 = vpack.c.b16 %v2220, %v2218
    %v2499 = vpack.c.b16 %v2221, %v2219
    %v2500 = vpack.c.b16 %v2224, %v2222
    %v2501 = vpack.c.b16 %v2225, %v2223
    %v2502 = vpack.c.b16 %v2228, %v2226
    %v2503 = vpack.c.b16 %v2229, %v2227
    %v2504 = vpack.c.b16 %v2232, %v2230
    %v2505 = vpack.c.b16 %v2233, %v2231
    %v2506 = vpack.c.b16 %v2236, %v2234
    %v2507 = vpack.c.b16 %v2237, %v2235
    %v2508 = vpack.c.b16 %v2240, %v2238
    %v2509 = vpack.c.b16 %v2241, %v2239
    %v2510 = vpack.c.b16 %v2244, %v2242
    %v2511 = vpack.c.b16 %v2245, %v2243
    %v2512 = vpack.c.b16 %v2248, %v2246
    %v2513 = vpack.c.b16 %v2249, %v2247
    %v2514 = vpack.c.b16 %v2252, %v2250
    %v2515 = vpack.c.b16 %v2253, %v2251
    %v2516 = vpack.c.b16 %v2256, %v2254
    %v2517 = vpack.c.b16 %v2257, %v2255
    %v2518 = vpack.c.b16 %v2260, %v2258
    %v2519 = vpack.c.b16 %v2261, %v2259
    %v2520 = vpack.c.b16 %v2264, %v2262
    %v2521 = vpack.c.b16 %v2265, %v2263
    %v2522 = vpack.c.b16 %v2268, %v2266
    %v2523 = vpack.c.b16 %v2269, %v2267
    %v2524 = vpack.c.b16 %v2272, %v2270
    %v2525 = vpack.c.b16 %v2273, %v2271
    %v2526 = vpack.c.b16 %v2276, %v2274
    %v2527 = vpack.c.b16 %v2277, %v2275
    %v2528 = vpack.c.b16 %v2280, %v2278
    %v2529 = vpack.c.b16 %v2281, %v2279
    %v2530 = vpack.c.b16 %v2284, %v2282
    %v2531 = vpack.c.b16 %v2285, %v2283
    %v2532 = vpack.c.b16 %v2288, %v2286
    %v2533 = vpack.c.b16 %v2289, %v2287
    %v2534 = vpack.c.b16 %v2292, %v2290
    %v2535 = vpack.c.b16 %v2293, %v2291
    %v2536 = vpack.c.b16 %v2296, %v2294
    %v2537 = vpack.c.b16 %v2297, %v2295
    %v2538 = vpack.c.b16 %v2300, %v2298
    %v2539 = vpack.c.b16 %v2301, %v2299
    %v2540 = vpack.c.b16 %v2304, %v2302
    %v2541 = vpack.c.b16 %v2305, %v2303
    %v2542 = vpack.c.b16 %v2308, %v2306
    %v2543 = vpack.c.b16 %v2309, %v2307
    %v2544 = vpack.c.b16 %v2312, %v2310
    %v2545 = vpack.c.b16 %v2313, %v2311
    %v2546 = vpack.c.b16 %v2316, %v2314
    %v2547 = vpack.c.b16 %v2317, %v2315
    %v2548 = vpack.c.b16 %v2320, %v2318
    %v2549 = vpack.c.b16 %v2321, %v2319
    %v2550 = vpack.c.b16 %v2324, %v2322
    %v2551 = vpack.c.b16 %v2325, %v2323
    %v2552 = vpack.c.b16 %v2328, %v2326
    %v2553 = vpack.c.b16 %v2329, %v2327
    %v2554 = vpack.c.b16 %v2332, %v2330
    %v2555 = vpack.c.b16 %v2333, %v2331
    %v2556 = vpack.c.b16 %v2336, %v2334
    %v2557 = vpack.c.b16 %v2337, %v2335
    %v2558 = vpack.c.b16 %v2340, %v2338
    %v2559 = vpack.c.b16 %v2341, %v2339
    %v2560 = vpack.c.b16 %v2344, %v2342
    %v2561 = vpack.c.b16 %v2345, %v2343
    %v2562 = vpack.c.b16 %v2348, %v2346
    %v2563 = vpack.c.b16 %v2349, %v2347
    %v2564 = vpack.c.b16 %v2352, %v2350
    %v2565 = vpack.c.b16 %v2353, %v2351
    %v2566 = vpack.c.b16 %v2356, %v2354
    %v2567 = vpack.c.b16 %v2357, %v2355
    %v2568 = vpack.c.b16 %v2360, %v2358
    %v2569 = vpack.c.b16 %v2361, %v2359
    %v2570 = vpack.c.b16 %v2364, %v2362
    %v2571 = vpack.c.b16 %v2365, %v2363
    %v2572 = vpack.c.b16 %v2368, %v2366
    %v2573 = vpack.c.b16 %v2369, %v2367
    %v2574 = vpack.c.b16 %v2372, %v2370
    %v2575 = vpack.c.b16 %v2373, %v2371
    %v2576 = vpack.c.b16 %v2376, %v2374
    %v2577 = vpack.c.b16 %v2377, %v2375
    %v2578 = vpack.c.b16 %v2380, %v2378
    %v2579 = vpack.c.b16 %v2381, %v2379
    %v2580 = vpack.c.b16 %v2384, %v2382
    %v2581 = vpack.c.b16 %v2385, %v2383
    %v2582 = vpack.c.b16 %v2388, %v2386
    %v2583 = vpack.c.b16 %v2389, %v2387
    %v2584 = vpack.c.b16 %v2392, %v2390
    %v2585 = vpack.c.b16 %v2393, %v2391
    %v2586 = vpack.c.b16 %v2396, %v2394
    %v2587 = vpack.c.b16 %v2397, %v2395
    %v2588 = vpack.c.b16 %v2400, %v2398
    %v2589 = vpack.c.b16 %v2401, %v2399
    %v2590 = vpack.c.b16 %v2404, %v2402
    %v2591 = vpack.c.b16 %v2405, %v2403
    %v2592 = vpack.c.b16 %v2408, %v2406
    %v2593 = vpack.c.b16 %v2409, %v2407
    %v2594 = vpack.c.b16 %v2412, %v2410
    %v2595 = vpack.c.b16 %v2413, %v2411
    %v2596 = vpack.c.b16 %v2416, %v2414
    %v2597 = vpack.c.b16 %v2417, %v2415
    %v2598 = vpack.c.b16 %v2420, %v2418
    %v2599 = vpack.c.b16 %v2421, %v2419
    %v2600 = vpack.c.b16 %v2424, %v2422
    %v2601 = vpack.c.b16 %v2425, %v2423
    %v2602 = vpack.c.b16 %v2428, %v2426
    %v2603 = vpack.c.b16 %v2429, %v2427
    %v2604 = vpack.c.b16 %v2432, %v2430
    %v2605 = vpack.c.b16 %v2433, %v2431
    %v2606 = vpack.c.b16 %v2436, %v2434
    %v2607 = vpack.c.b16 %v2437, %v2435
    %v2608 = vpack.c.b16 %v2440, %v2438
    %v2609 = vpack.c.b16 %v2441, %v2439
    %v2610 = vpack.c.b16 %v2444, %v2442
    %v2611 = vpack.c.b16 %v2445, %v2443
    %v2612 = vpack.c.b16 %v2448, %v2446
    %v2613 = vpack.c.b16 %v2449, %v2447
    %v2614 = vpack.c.b16 %v2452, %v2450
    %v2615 = vpack.c.b16 %v2453, %v2451
    %v2616 = vpack.c.b16 %v2456, %v2454
    %v2617 = vpack.c.b16 %v2457, %v2455
    %v2618 = vpack.c.b16 %v2460, %v2458
    %v2619 = vpack.c.b16 %v2461, %v2459
    %v2620 = vpack.c.b16 %v2464, %v2462
    %v2621 = vpack.c.b16 %v2465, %v2463
    %v2622 = vpack.c.b16 %v2468, %v2466
    %v2623 = vpack.c.b16 %v2469, %v2467
    %v2624 = vpack.c.b16 %v2472, %v2470
    %v2625 = vpack.c.b16 %v2473, %v2471
    %v2626 = vpack.c.b16 %v2476, %v2474
    %v2627 = vpack.c.b16 %v2477, %v2475
    %v2628 = vpack.c.b16 %v2480, %v2478
    %v2629 = vpack.c.b16 %v2481, %v2479
    %v2630 = vpack.c.b16 %v2484, %v2482
    %v2631 = vpack.c.b16 %v2485, %v2483
    %v2632 = vpack.c.b16 %v2488, %v2486
    %v2633 = vpack.c.b16 %v2489, %v2487
    %2778 = vmatprep.subr.bf16.mxu0 %v2491
    %2779 = vmatpush1.bf16.msra.mxu0 %v2490
    %2780 = vmatprep.subr.bf16.mxu0 %v2493
    %2781 = vmatpush1.bf16.msra.mxu0 %v2492
    %2782 = vmatprep.subr.bf16.mxu0 %v2495
    %2783 = vmatpush1.bf16.msra.mxu0 %v2494
    %2784 = vmatprep.subr.bf16.mxu0 %v2497
    %2785 = vmatpush1.bf16.msra.mxu0 %v2496
    %2786 = vmatprep.subr.bf16.mxu0 %v2499
    %2787 = vmatpush1.bf16.msra.mxu0 %v2498
    %2788 = vmatprep.subr.bf16.mxu0 %v2501
    %2789 = vmatpush1.bf16.msra.mxu0 %v2500
    %2790 = vmatprep.subr.bf16.mxu0 %v2503
    %2791 = vmatpush1.bf16.msra.mxu0 %v2502
    %2792 = vmatprep.subr.bf16.mxu0 %v2505
    %2793 = vmatpush1.bf16.msra.mxu0 %v2504
    %2794 = vmatprep.subr.bf16.mxu0 %v2507
    %2795 = vmatpush1.bf16.msra.mxu0 %v2506
    %2796 = vmatprep.subr.bf16.mxu0 %v2509
    %2797 = vmatpush1.bf16.msra.mxu0 %v2508
    %2798 = vmatprep.subr.bf16.mxu0 %v2511
    %2799 = vmatpush1.bf16.msra.mxu0 %v2510
    %2800 = vmatprep.subr.bf16.mxu0 %v2513
    %2801 = vmatpush1.bf16.msra.mxu0 %v2512
    %2802 = vmatprep.subr.bf16.mxu0 %v2515
    %2803 = vmatpush1.bf16.msra.mxu0 %v2514
    %2804 = vmatprep.subr.bf16.mxu0 %v2517
    %2805 = vmatpush1.bf16.msra.mxu0 %v2516
    %2806 = vmatprep.subr.bf16.mxu0 %v2519
    %2807 = vmatpush1.bf16.msra.mxu0 %v2518
    %2808 = vmatprep.subr.bf16.mxu0 %v2521
    %2809 = vmatpush1.bf16.msra.mxu0 %v2520
    %2810 = vmatprep.mubr.bf16.mxu0 %v1894
    %2811 = vmatmul.mubr.bf16.gmra.mrb[0].mxu0 %v1893
    %v2812 = vpop.f32.mrb[0].mxu0
    %v2813 = vadd.f32 %v2051, %v2812
    %v2814 = vpop.f32.mrb[0].mxu0
    %v2815 = vadd.f32 %v2055, %v2814
    %v2816 = vpop.f32.mrb[0].mxu0
    %v2817 = vpop.f32.mrb[0].mxu0
    %2818 = vdwg.mxu0
    %2819 = vmatprep.subr.bf16.mxu0 %v2523
    %2820 = vmatpush1.bf16.msra.mxu0 %v2522
    %2821 = vmatprep.subr.bf16.mxu0 %v2525
    %2822 = vmatpush1.bf16.msra.mxu0 %v2524
    %2823 = vmatprep.subr.bf16.mxu0 %v2527
    %2824 = vmatpush1.bf16.msra.mxu0 %v2526
    %2825 = vmatprep.subr.bf16.mxu0 %v2529
    %2826 = vmatpush1.bf16.msra.mxu0 %v2528
    %2827 = vmatprep.subr.bf16.mxu0 %v2531
    %2828 = vmatpush1.bf16.msra.mxu0 %v2530
    %2829 = vmatprep.subr.bf16.mxu0 %v2533
    %2830 = vmatpush1.bf16.msra.mxu0 %v2532
    %2831 = vmatprep.subr.bf16.mxu0 %v2535
    %2832 = vmatpush1.bf16.msra.mxu0 %v2534
    %2833 = vmatprep.subr.bf16.mxu0 %v2537
    %2834 = vmatpush1.bf16.msra.mxu0 %v2536
    %2835 = vmatprep.subr.bf16.mxu0 %v2539
    %2836 = vmatpush1.bf16.msra.mxu0 %v2538
    %2837 = vmatprep.subr.bf16.mxu0 %v2541
    %2838 = vmatpush1.bf16.msra.mxu0 %v2540
    %2839 = vmatprep.subr.bf16.mxu0 %v2543
    %2840 = vmatpush1.bf16.msra.mxu0 %v2542
    %2841 = vmatprep.subr.bf16.mxu0 %v2545
    %2842 = vmatpush1.bf16.msra.mxu0 %v2544
    %2843 = vmatprep.subr.bf16.mxu0 %v2547
    %2844 = vmatpush1.bf16.msra.mxu0 %v2546
    %2845 = vmatprep.subr.bf16.mxu0 %v2549
    %2846 = vmatpush1.bf16.msra.mxu0 %v2548
    %2847 = vmatprep.subr.bf16.mxu0 %v2551
    %2848 = vmatpush1.bf16.msra.mxu0 %v2550
    %2849 = vmatprep.subr.bf16.mxu0 %v2553
    %2850 = vmatpush1.bf16.msra.mxu0 %v2552
    %2851 = vmatprep.mubr.bf16.mxu0 %v1896
    %2852 = vmatmul.mubr.bf16.gmra.mrb[0].mxu0 %v1895
    %v2853 = vpop.f32.mrb[0].mxu0
    %v2854 = vadd.f32 %v2813, %v2853
    %v2855 = vpop.f32.mrb[0].mxu0
    %v2856 = vadd.f32 %v2815, %v2855
    %v2857 = vpop.f32.mrb[0].mxu0
    %v2858 = vpop.f32.mrb[0].mxu0
    %2859 = vdwg.mxu0
    %2860 = vmatprep.subr.bf16.mxu0 %v2555
    %2861 = vmatpush1.bf16.msra.mxu0 %v2554
    %2862 = vmatprep.subr.bf16.mxu0 %v2557
    %2863 = vmatpush1.bf16.msra.mxu0 %v2556
    %2864 = vmatprep.subr.bf16.mxu0 %v2559
    %2865 = vmatpush1.bf16.msra.mxu0 %v2558
    %2866 = vmatprep.subr.bf16.mxu0 %v2561
    %2867 = vmatpush1.bf16.msra.mxu0 %v2560
    %2868 = vmatprep.subr.bf16.mxu0 %v2563
    %2869 = vmatpush1.bf16.msra.mxu0 %v2562
    %2870 = vmatprep.subr.bf16.mxu0 %v2565
    %2871 = vmatpush1.bf16.msra.mxu0 %v2564
    %2872 = vmatprep.subr.bf16.mxu0 %v2567
    %2873 = vmatpush1.bf16.msra.mxu0 %v2566
    %2874 = vmatprep.subr.bf16.mxu0 %v2569
    %2875 = vmatpush1.bf16.msra.mxu0 %v2568
    %2876 = vmatprep.subr.bf16.mxu0 %v2571
    %2877 = vmatpush1.bf16.msra.mxu0 %v2570
    %2878 = vmatprep.subr.bf16.mxu0 %v2573
    %2879 = vmatpush1.bf16.msra.mxu0 %v2572
    %2880 = vmatprep.subr.bf16.mxu0 %v2575
    %2881 = vmatpush1.bf16.msra.mxu0 %v2574
    %2882 = vmatprep.subr.bf16.mxu0 %v2577
    %2883 = vmatpush1.bf16.msra.mxu0 %v2576
    %2884 = vmatprep.subr.bf16.mxu0 %v2579
    %2885 = vmatpush1.bf16.msra.mxu0 %v2578
    %2886 = vmatprep.subr.bf16.mxu0 %v2581
    %2887 = vmatpush1.bf16.msra.mxu0 %v2580
    %2888 = vmatprep.subr.bf16.mxu0 %v2583
    %2889 = vmatpush1.bf16.msra.mxu0 %v2582
    %2890 = vmatprep.subr.bf16.mxu0 %v2585
    %2891 = vmatpush1.bf16.msra.mxu0 %v2584
    %2892 = vmatprep.mubr.bf16.mxu0 %v1898
    %2893 = vmatmul.mubr.bf16.gmra.mrb[0].mxu0 %v1897
    %v2894 = vpop.f32.mrb[0].mxu0
    %v2895 = vadd.f32 %v2854, %v2894
    %v2896 = vpop.f32.mrb[0].mxu0
    %v2897 = vadd.f32 %v2856, %v2896
    %v2898 = vpop.f32.mrb[0].mxu0
    %v2899 = vpop.f32.mrb[0].mxu0
    %2900 = vdwg.mxu0
    %2901 = vmatprep.subr.bf16.mxu0 %v2587
    %2902 = vmatpush1.bf16.msra.mxu0 %v2586
    %2903 = vmatprep.subr.bf16.mxu0 %v2589
    %2904 = vmatpush1.bf16.msra.mxu0 %v2588
    %2905 = vmatprep.subr.bf16.mxu0 %v2591
    %2906 = vmatpush1.bf16.msra.mxu0 %v2590
    %2907 = vmatprep.subr.bf16.mxu0 %v2593
    %2908 = vmatpush1.bf16.msra.mxu0 %v2592
    %2909 = vmatprep.subr.bf16.mxu0 %v2595
    %2910 = vmatpush1.bf16.msra.mxu0 %v2594
    %2911 = vmatprep.subr.bf16.mxu0 %v2597
    %2912 = vmatpush1.bf16.msra.mxu0 %v2596
    %2913 = vmatprep.subr.bf16.mxu0 %v2599
    %2914 = vmatpush1.bf16.msra.mxu0 %v2598
    %2915 = vmatprep.subr.bf16.mxu0 %v2601
    %2916 = vmatpush1.bf16.msra.mxu0 %v2600
    %2917 = vmatprep.subr.bf16.mxu0 %v2603
    %2918 = vmatpush1.bf16.msra.mxu0 %v2602
    %2919 = vmatprep.subr.bf16.mxu0 %v2605
    %2920 = vmatpush1.bf16.msra.mxu0 %v2604
    %2921 = vmatprep.subr.bf16.mxu0 %v2607
    %2922 = vmatpush1.bf16.msra.mxu0 %v2606
    %2923 = vmatprep.subr.bf16.mxu0 %v2609
    %2924 = vmatpush1.bf16.msra.mxu0 %v2608
    %2925 = vmatprep.subr.bf16.mxu0 %v2611
    %2926 = vmatpush1.bf16.msra.mxu0 %v2610
    %2927 = vmatprep.subr.bf16.mxu0 %v2613
    %2928 = vmatpush1.bf16.msra.mxu0 %v2612
    %2929 = vmatprep.subr.bf16.mxu0 %v2615
    %2930 = vmatpush1.bf16.msra.mxu0 %v2614
    %2931 = vmatprep.subr.bf16.mxu0 %v2617
    %2932 = vmatpush1.bf16.msra.mxu0 %v2616
    %2933 = vmatprep.mubr.bf16.mxu0 %v1900
    %2934 = vmatmul.mubr.bf16.gmra.mrb[0].mxu0 %v1899
    %v2935 = vpop.f32.mrb[0].mxu0
    %v2936 = vadd.f32 %v2895, %v2935
    %v2937 = vpop.f32.mrb[0].mxu0
    %v2938 = vadd.f32 %v2897, %v2937
    %v2939 = vpop.f32.mrb[0].mxu0
    %v2940 = vpop.f32.mrb[0].mxu0
    %2941 = vdwg.mxu0
    %2942 = vmatprep.subr.bf16.mxu0 %v2619
    %2943 = vmatpush1.bf16.msra.mxu0 %v2618
    %2944 = vmatprep.subr.bf16.mxu0 %v2621
    %2945 = vmatpush1.bf16.msra.mxu0 %v2620
    %2946 = vmatprep.subr.bf16.mxu0 %v2623
    %2947 = vmatpush1.bf16.msra.mxu0 %v2622
    %2948 = vmatprep.subr.bf16.mxu0 %v2625
    %2949 = vmatpush1.bf16.msra.mxu0 %v2624
    %2950 = vmatprep.subr.bf16.mxu0 %v2627
    %2951 = vmatpush1.bf16.msra.mxu0 %v2626
    %2952 = vmatprep.subr.bf16.mxu0 %v2629
    %2953 = vmatpush1.bf16.msra.mxu0 %v2628
    %2954 = vmatprep.subr.bf16.mxu0 %v2631
    %2955 = vmatpush1.bf16.msra.mxu0 %v2630
    %2956 = vmatprep.subr.bf16.mxu0 %v2633
    %2957 = vmatpush1.bf16.msra.mxu0 %v2632
    %2958 = vmatprep.subr.bf16.mxu0 0
    %2959 = vmatpush1.bf16.msra.mxu0 0
    %2960 = vmatprep.subr.bf16.mxu0 0
    %2961 = vmatpush1.bf16.msra.mxu0 0
    %2962 = vmatprep.subr.bf16.mxu0 0
    %2963 = vmatpush1.bf16.msra.mxu0 0
    %2964 = vmatprep.subr.bf16.mxu0 0
    %2965 = vmatpush1.bf16.msra.mxu0 0
    %2966 = vmatprep.subr.bf16.mxu0 0
    %2967 = vmatpush1.bf16.msra.mxu0 0
    %2968 = vmatprep.subr.bf16.mxu0 0
    %2969 = vmatpush1.bf16.msra.mxu0 0
    %2970 = vmatprep.subr.bf16.mxu0 0
    %2971 = vmatpush1.bf16.msra.mxu0 0
    %2972 = vmatprep.subr.bf16.mxu0 0
    %2973 = vmatpush1.bf16.msra.mxu0 0
    %2974 = vmatprep.mubr.bf16.mxu0 0
    %2975 = vmatmul.mubr.bf16.gmra.mrb[0].mxu0 %v1901
    %v2976 = vpop.f32.mrb[0].mxu0
    %v2977 = vadd.f32 %v2936, %v2976
    %v2978 = vpop.f32.mrb[0].mxu0
    %v2979 = vadd.f32 %v2938, %v2978
    %v2980 = vpop.f32.mrb[0].mxu0
    %v2981 = vpop.f32.mrb[0].mxu0
    %2982 = vdwg.mxu0
    %v2983 = vsel %vm1121, %v2977, 0.0
    %v2984 = vrot.slane %v2983, 4
    %v2985 = vadd.f32 %v2983, %v2984
    %v2986 = vrot.slane %v2985, 2
    %v2987 = vadd.f32 %v2985, %v2986
    %v2988 = vrot.slane %v2987, 1
    %v2989 = vadd.f32 %v2987, %v2988
    %v2990 = vsel %vm1121, %v2979, 0.0
    %v2991 = vrot.slane %v2990, 4
    %v2992 = vadd.f32 %v2990, %v2991
    %v2993 = vrot.slane %v2992, 2
    %v2994 = vadd.f32 %v2992, %v2993
    %v2995 = vrot.slane %v2994, 1
    %v2996 = vadd.f32 %v2994, %v2995
    %v2997 = vrcp.pop 2.0
    %v2998 = vmul.f32 %v2989, %v2997
    %v2999 = vmul.f32 %v2996, %v2997
    %v3000 = vmul.f32 %v2977, %v2977
    %v3001 = vmul.f32 %v2979, %v2979
    %v3002 = vsel %vm1121, %v3000, 0.0
    %v3003 = vrot.slane %v3002, 4
    %v3004 = vadd.f32 %v3002, %v3003
    %v3005 = vrot.slane %v3004, 2
    %v3006 = vadd.f32 %v3004, %v3005
    %v3007 = vrot.slane %v3006, 1
    %v3008 = vadd.f32 %v3006, %v3007
    %v3009 = vsel %vm1121, %v3001, 0.0
    %v3010 = vrot.slane %v3009, 4
    %v3011 = vadd.f32 %v3009, %v3010
    %v3012 = vrot.slane %v3011, 2
    %v3013 = vadd.f32 %v3011, %v3012
    %v3014 = vrot.slane %v3013, 1
    %v3015 = vadd.f32 %v3013, %v3014
    %v3016 = vmul.f32 %v3008, %v2997
    %v3017 = vmul.f32 %v3015, %v2997
    %v3018 = vmul.f32 %v2998, %v2998
    %v3019 = vmul.f32 %v2999, %v2999
    %v3020 = vsub.f32 %v3016, %v3018
    %v3021 = vsub.f32 %v3017, %v3019
    %v3022 = vsub.f32 %v2977, %v2998
    %v3023 = vsub.f32 %v2979, %v2999
    %v3024 = vadd.f32 %v3020, 1e-05
    %v3025 = vadd.f32 %v3021, 1e-05
    %v3026 = vrsqrt.pop %v3024
    %v3027 = vrsqrt.pop %v3025
    %v3028 = vmul.f32 %v3022, %v3026
    %v3029 = vmul.f32 %v3023, %v3027
    %v3030 = vld [vmem:[#allocation23] sm:$0x3]
    %v3032 = vlaneseq
    %v3033 = vshrl.u32 %v3032, 7
    %v3034 = vsub.s32 0, %v3033
    %v3035 = vrot.slane %v3030, %v3034
    %v3036 = vlaneseq
    %v3037 = vshrl.u32 %v3036, 7
    %v3038 = vsub.s32 1, %v3037
    %v3039 = vrot.slane %v3030, %v3038
    %v3042 = vmul.f32 %v3028, %v3035
    %v3043 = vmul.f32 %v3029, %v3039
    %v3044 = vld [vmem:[#allocation24] sm:$0x3]
    %v3046 = vlaneseq
    %v3047 = vshrl.u32 %v3046, 7
    %v3048 = vsub.s32 0, %v3047
    %v3049 = vrot.slane %v3044, %v3048
    %v3050 = vlaneseq
    %v3051 = vshrl.u32 %v3050, 7
    %v3052 = vsub.s32 1, %v3051
    %v3053 = vrot.slane %v3044, %v3052
    %v3056 = vadd.f32 %v3042, %v3049
    %v3057 = vadd.f32 %v3043, %v3053
    %vm3058 = vcmp.gt.f32.partialorder %v3056, 0.0
    %vm3059 = vcmp.gt.f32.partialorder %v3057, 0.0
    %v3060 = vmul.f32 %v3056, 0.2
    %v3061 = vmul.f32 %v3057, 0.2
    %v3062 = vsel %vm3058, %v3056, %v3060
    %v3063 = vsel %vm3059, %v3057, %v3061
    %v3066 = vcombine.low %v3062, %v3063
    %v3068 = vunpack.c.l.s4 1983009808
    %v3069 = vunpack.c.0.s8 %v3068
    %v3070 = vlaneseq
    %v3071 = vshrl.u32 %v3070, 7
    %v3072 = vsub.s32 %v3069, %v3071
    %v3073 = vrot.slane %v3066, %v3072
    %3075 = vst [vmem:[#allocation5 + $0x10] sm:$0xf] %v3073
    %v3076 = vld [vmem:[#allocation5] sm:$0xff]
    %v3077 = vld [vmem:[#allocation5 + $0x8] sm:$0xff]
    %v3078 = vld [vmem:[#allocation5 + $0x10] sm:$0xff]
    %v3079 = vld [vmem:[#allocation5 + $0x18] sm:$0xff]
    %v3080 = vld [vmem:[#allocation5 + $0x20] sm:$0xf]
    %v3086 = vcombine.high %v3076, %v3076
    %v3088 = vunpack.c.l.s4 1983009808
    %v3089 = vunpack.c.0.s8 %v3088
    %v3090 = vlaneseq
    %v3091 = vshrl.u32 %v3090, 7
    %v3092 = vsub.s32 %v3089, %v3091
    %v3093 = vrot.slane %v3076, %v3092
    %v3095 = vunpack.c.l.s4 1983009808
    %v3096 = vunpack.c.0.s8 %v3095
    %v3097 = vlaneseq
    %v3098 = vshrl.u32 %v3097, 7
    %v3099 = vsub.s32 %v3096, %v3098
    %v3100 = vrot.slane %v3086, %v3099
    %v3101 = vcombine.high %v3093, %v3093
    %v3102 = vcombine.high %v3100, %v3100
    %v3103 = vcombine.high %v3077, %v3077
    %v3105 = vunpack.c.l.s4 1983009808
    %v3106 = vunpack.c.0.s8 %v3105
    %v3107 = vlaneseq
    %v3108 = vshrl.u32 %v3107, 7
    %v3109 = vsub.s32 %v3106, %v3108
    %v3110 = vrot.slane %v3077, %v3109
    %v3112 = vunpack.c.l.s4 1983009808
    %v3113 = vunpack.c.0.s8 %v3112
    %v3114 = vlaneseq
    %v3115 = vshrl.u32 %v3114, 7
    %v3116 = vsub.s32 %v3113, %v3115
    %v3117 = vrot.slane %v3103, %v3116
    %v3118 = vcombine.high %v3110, %v3110
    %v3119 = vcombine.high %v3117, %v3117
    %v3120 = vcombine.high %v3078, %v3078
    %v3122 = vunpack.c.l.s4 1983009808
    %v3123 = vunpack.c.0.s8 %v3122
    %v3124 = vlaneseq
    %v3125 = vshrl.u32 %v3124, 7
    %v3126 = vsub.s32 %v3123, %v3125
    %v3127 = vrot.slane %v3078, %v3126
    %v3129 = vunpack.c.l.s4 1983009808
    %v3130 = vunpack.c.0.s8 %v3129
    %v3131 = vlaneseq
    %v3132 = vshrl.u32 %v3131, 7
    %v3133 = vsub.s32 %v3130, %v3132
    %v3134 = vrot.slane %v3120, %v3133
    %v3135 = vcombine.high %v3127, %v3127
    %v3136 = vcombine.high %v3134, %v3134
    %v3137 = vcombine.high %v3079, %v3079
    %v3139 = vunpack.c.l.s4 1983009808
    %v3140 = vunpack.c.0.s8 %v3139
    %v3141 = vlaneseq
    %v3142 = vshrl.u32 %v3141, 7
    %v3143 = vsub.s32 %v3140, %v3142
    %v3144 = vrot.slane %v3079, %v3143
    %v3146 = vunpack.c.l.s4 1983009808
    %v3147 = vunpack.c.0.s8 %v3146
    %v3148 = vlaneseq
    %v3149 = vshrl.u32 %v3148, 7
    %v3150 = vsub.s32 %v3147, %v3149
    %v3151 = vrot.slane %v3137, %v3150
    %v3152 = vcombine.high %v3144, %v3144
    %v3153 = vcombine.high %v3151, %v3151
    %v3155 = vunpack.c.l.s4 1983009808
    %v3156 = vunpack.c.0.s8 %v3155
    %v3157 = vlaneseq
    %v3158 = vshrl.u32 %v3157, 7
    %v3159 = vsub.s32 %v3156, %v3158
    %v3160 = vrot.slane %v3080, %v3159
    %v3161 = vcombine.high %v3160, %v3160
    %v3180 = vpack.c.bf16 %v3093, %v3093
    %v3181 = vpack.c.bf16 %v3101, %v3101
    %v3182 = vpack.c.bf16 %v3100, %v3100
    %v3183 = vpack.c.bf16 %v3102, %v3102
    %v3184 = vpack.c.bf16 %v3110, %v3110
    %v3185 = vpack.c.bf16 %v3118, %v3118
    %v3186 = vpack.c.bf16 %v3117, %v3117
    %v3187 = vpack.c.bf16 %v3119, %v3119
    %v3188 = vpack.c.bf16 %v3127, %v3127
    %v3189 = vpack.c.bf16 %v3135, %v3135
    %v3190 = vpack.c.bf16 %v3134, %v3134
    %v3191 = vpack.c.bf16 %v3136, %v3136
    %v3192 = vpack.c.bf16 %v3144, %v3144
    %v3193 = vpack.c.bf16 %v3152, %v3152
    %v3194 = vpack.c.bf16 %v3151, %v3151
    %v3195 = vpack.c.bf16 %v3153, %v3153
    %v3196 = vpack.c.bf16 %v3160, %v3160
    %v3197 = vpack.c.bf16 %v3161, %v3161
    %v3198 = vld [vmem:[#allocation26] sm:$0xff]
    %v3199 = vld [vmem:[#allocation26 + $0x8] sm:$0xff]
    %v3200 = vld [vmem:[#allocation26 + $0x10] sm:$0xff]
    %v3201 = vld [vmem:[#allocation26 + $0x18] sm:$0xff]
    %v3202 = vld [vmem:[#allocation26 + $0x20] sm:$0xff]
    %v3203 = vld [vmem:[#allocation26 + $0x28] sm:$0xff]
    %v3204 = vld [vmem:[#allocation26 + $0x30] sm:$0xff]
    %v3205 = vld [vmem:[#allocation26 + $0x38] sm:$0xff]
    %v3206 = vld [vmem:[#allocation26 + $0x40] sm:$0xff]
    %v3207 = vld [vmem:[#allocation26 + $0x48] sm:$0xff]
    %v3208 = vld [vmem:[#allocation26 + $0x50] sm:$0xff]
    %v3209 = vld [vmem:[#allocation26 + $0x58] sm:$0xff]
    %v3210 = vld [vmem:[#allocation26 + $0x60] sm:$0xff]
    %v3211 = vld [vmem:[#allocation26 + $0x68] sm:$0xff]
    %v3212 = vld [vmem:[#allocation26 + $0x70] sm:$0xff]
    %v3213 = vld [vmem:[#allocation26 + $0x78] sm:$0xff]
    %v3214 = vld [vmem:[#allocation26 + $0x80] sm:$0xff]
    %v3215 = vld [vmem:[#allocation26 + $0x88] sm:$0xff]
    %v3216 = vld [vmem:[#allocation26 + $0x90] sm:$0xff]
    %v3217 = vld [vmem:[#allocation26 + $0x98] sm:$0xff]
    %v3218 = vld [vmem:[#allocation26 + $0xa0] sm:$0xff]
    %v3219 = vld [vmem:[#allocation26 + $0xa8] sm:$0xff]
    %v3220 = vld [vmem:[#allocation26 + $0xb0] sm:$0xff]
    %v3221 = vld [vmem:[#allocation26 + $0xb8] sm:$0xff]
    %v3222 = vld [vmem:[#allocation26 + $0xc0] sm:$0xff]
    %v3223 = vld [vmem:[#allocation26 + $0xc8] sm:$0xff]
    %v3224 = vld [vmem:[#allocation26 + $0xd0] sm:$0xff]
    %v3225 = vld [vmem:[#allocation26 + $0xd8] sm:$0xff]
    %v3226 = vld [vmem:[#allocation26 + $0xe0] sm:$0xff]
    %v3227 = vld [vmem:[#allocation26 + $0xe8] sm:$0xff]
    %v3228 = vld [vmem:[#allocation26 + $0xf0] sm:$0xff]
    %v3229 = vld [vmem:[#allocation26 + $0xf8] sm:$0xff]
    %v3230 = vld [vmem:[#allocation26 + $0x100] sm:$0xff]
    %v3231 = vld [vmem:[#allocation26 + $0x108] sm:$0xff]
    %v3232 = vld [vmem:[#allocation26 + $0x110] sm:$0xff]
    %v3233 = vld [vmem:[#allocation26 + $0x118] sm:$0xff]
    %v3234 = vld [vmem:[#allocation26 + $0x120] sm:$0xff]
    %v3235 = vld [vmem:[#allocation26 + $0x128] sm:$0xff]
    %v3236 = vld [vmem:[#allocation26 + $0x130] sm:$0xff]
    %v3237 = vld [vmem:[#allocation26 + $0x138] sm:$0xff]
    %v3238 = vld [vmem:[#allocation26 + $0x140] sm:$0xff]
    %v3239 = vld [vmem:[#allocation26 + $0x148] sm:$0xff]
    %v3240 = vld [vmem:[#allocation26 + $0x150] sm:$0xff]
    %v3241 = vld [vmem:[#allocation26 + $0x158] sm:$0xff]
    %v3242 = vld [vmem:[#allocation26 + $0x160] sm:$0xff]
    %v3243 = vld [vmem:[#allocation26 + $0x168] sm:$0xff]
    %v3244 = vld [vmem:[#allocation26 + $0x170] sm:$0xff]
    %v3245 = vld [vmem:[#allocation26 + $0x178] sm:$0xff]
    %v3246 = vld [vmem:[#allocation26 + $0x180] sm:$0xff]
    %v3247 = vld [vmem:[#allocation26 + $0x188] sm:$0xff]
    %v3248 = vld [vmem:[#allocation26 + $0x190] sm:$0xff]
    %v3249 = vld [vmem:[#allocation26 + $0x198] sm:$0xff]
    %v3250 = vld [vmem:[#allocation26 + $0x1a0] sm:$0xff]
    %v3251 = vld [vmem:[#allocation26 + $0x1a8] sm:$0xff]
    %v3252 = vld [vmem:[#allocation26 + $0x1b0] sm:$0xff]
    %v3253 = vld [vmem:[#allocation26 + $0x1b8] sm:$0xff]
    %v3254 = vld [vmem:[#allocation26 + $0x1c0] sm:$0xff]
    %v3255 = vld [vmem:[#allocation26 + $0x1c8] sm:$0xff]
    %v3256 = vld [vmem:[#allocation26 + $0x1d0] sm:$0xff]
    %v3257 = vld [vmem:[#allocation26 + $0x1d8] sm:$0xff]
    %v3258 = vld [vmem:[#allocation26 + $0x1e0] sm:$0xff]
    %v3259 = vld [vmem:[#allocation26 + $0x1e8] sm:$0xff]
    %v3260 = vld [vmem:[#allocation26 + $0x1f0] sm:$0xff]
    %v3261 = vld [vmem:[#allocation26 + $0x1f8] sm:$0xff]
    %v3262 = vld [vmem:[#allocation26 + $0x200] sm:$0xff]
    %v3263 = vld [vmem:[#allocation26 + $0x208] sm:$0xff]
    %v3264 = vld [vmem:[#allocation26 + $0x210] sm:$0xff]
    %v3265 = vld [vmem:[#allocation26 + $0x218] sm:$0xff]
    %v3266 = vld [vmem:[#allocation26 + $0x220] sm:$0xff]
    %v3267 = vld [vmem:[#allocation26 + $0x228] sm:$0xff]
    %v3268 = vld [vmem:[#allocation26 + $0x230] sm:$0xff]
    %v3269 = vld [vmem:[#allocation26 + $0x238] sm:$0xff]
    %v3270 = vld [vmem:[#allocation26 + $0x240] sm:$0xff]
    %v3271 = vld [vmem:[#allocation26 + $0x248] sm:$0xff]
    %v3272 = vld [vmem:[#allocation26 + $0x250] sm:$0xff]
    %v3273 = vld [vmem:[#allocation26 + $0x258] sm:$0xff]
    %v3274 = vld [vmem:[#allocation26 + $0x260] sm:$0xff]
    %v3275 = vld [vmem:[#allocation26 + $0x268] sm:$0xff]
    %v3276 = vld [vmem:[#allocation26 + $0x270] sm:$0xff]
    %v3277 = vld [vmem:[#allocation26 + $0x278] sm:$0xff]
    %v3278 = vld [vmem:[#allocation26 + $0x280] sm:$0xff]
    %v3279 = vld [vmem:[#allocation26 + $0x288] sm:$0xff]
    %v3280 = vld [vmem:[#allocation26 + $0x290] sm:$0xff]
    %v3281 = vld [vmem:[#allocation26 + $0x298] sm:$0xff]
    %v3282 = vld [vmem:[#allocation26 + $0x2a0] sm:$0xff]
    %v3283 = vld [vmem:[#allocation26 + $0x2a8] sm:$0xff]
    %v3284 = vld [vmem:[#allocation26 + $0x2b0] sm:$0xff]
    %v3285 = vld [vmem:[#allocation26 + $0x2b8] sm:$0xff]
    %v3286 = vld [vmem:[#allocation26 + $0x2c0] sm:$0xff]
    %v3287 = vld [vmem:[#allocation26 + $0x2c8] sm:$0xff]
    %v3288 = vld [vmem:[#allocation26 + $0x2d0] sm:$0xff]
    %v3289 = vld [vmem:[#allocation26 + $0x2d8] sm:$0xff]
    %v3290 = vld [vmem:[#allocation26 + $0x2e0] sm:$0xff]
    %v3291 = vld [vmem:[#allocation26 + $0x2e8] sm:$0xff]
    %v3292 = vld [vmem:[#allocation26 + $0x2f0] sm:$0xff]
    %v3293 = vld [vmem:[#allocation26 + $0x2f8] sm:$0xff]
    %v3294 = vld [vmem:[#allocation26 + $0x300] sm:$0xff]
    %v3295 = vld [vmem:[#allocation26 + $0x308] sm:$0xff]
    %v3296 = vld [vmem:[#allocation26 + $0x310] sm:$0xff]
    %v3297 = vld [vmem:[#allocation26 + $0x318] sm:$0xff]
    %v3298 = vld [vmem:[#allocation26 + $0x320] sm:$0xff]
    %v3299 = vld [vmem:[#allocation26 + $0x328] sm:$0xff]
    %v3300 = vld [vmem:[#allocation26 + $0x330] sm:$0xff]
    %v3301 = vld [vmem:[#allocation26 + $0x338] sm:$0xff]
    %v3302 = vld [vmem:[#allocation26 + $0x340] sm:$0xff]
    %v3303 = vld [vmem:[#allocation26 + $0x348] sm:$0xff]
    %v3304 = vld [vmem:[#allocation26 + $0x350] sm:$0xff]
    %v3305 = vld [vmem:[#allocation26 + $0x358] sm:$0xff]
    %v3306 = vld [vmem:[#allocation26 + $0x360] sm:$0xff]
    %v3307 = vld [vmem:[#allocation26 + $0x368] sm:$0xff]
    %v3308 = vld [vmem:[#allocation26 + $0x370] sm:$0xff]
    %v3309 = vld [vmem:[#allocation26 + $0x378] sm:$0xff]
    %v3310 = vld [vmem:[#allocation26 + $0x380] sm:$0xff]
    %v3311 = vld [vmem:[#allocation26 + $0x388] sm:$0xff]
    %v3312 = vld [vmem:[#allocation26 + $0x390] sm:$0xff]
    %v3313 = vld [vmem:[#allocation26 + $0x398] sm:$0xff]
    %v3314 = vld [vmem:[#allocation26 + $0x3a0] sm:$0xff]
    %v3315 = vld [vmem:[#allocation26 + $0x3a8] sm:$0xff]
    %v3316 = vld [vmem:[#allocation26 + $0x3b0] sm:$0xff]
    %v3317 = vld [vmem:[#allocation26 + $0x3b8] sm:$0xff]
    %v3318 = vld [vmem:[#allocation26 + $0x3c0] sm:$0xff]
    %v3319 = vld [vmem:[#allocation26 + $0x3c8] sm:$0xff]
    %v3320 = vld [vmem:[#allocation26 + $0x3d0] sm:$0xff]
    %v3321 = vld [vmem:[#allocation26 + $0x3d8] sm:$0xff]
    %v3322 = vld [vmem:[#allocation26 + $0x3e0] sm:$0xff]
    %v3323 = vld [vmem:[#allocation26 + $0x3e8] sm:$0xff]
    %v3324 = vld [vmem:[#allocation26 + $0x3f0] sm:$0xff]
    %v3325 = vld [vmem:[#allocation26 + $0x3f8] sm:$0xff]
    %v3326 = vld [vmem:[#allocation26 + $0x400] sm:$0xff]
    %v3327 = vld [vmem:[#allocation26 + $0x408] sm:$0xff]
    %v3328 = vld [vmem:[#allocation26 + $0x410] sm:$0xff]
    %v3329 = vld [vmem:[#allocation26 + $0x418] sm:$0xff]
    %v3330 = vld [vmem:[#allocation26 + $0x420] sm:$0xff]
    %v3331 = vld [vmem:[#allocation26 + $0x428] sm:$0xff]
    %v3332 = vld [vmem:[#allocation26 + $0x430] sm:$0xff]
    %v3333 = vld [vmem:[#allocation26 + $0x438] sm:$0xff]
    %v3334 = vld [vmem:[#allocation26 + $0x440] sm:$0xff]
    %v3335 = vld [vmem:[#allocation26 + $0x448] sm:$0xff]
    %v3336 = vld [vmem:[#allocation26 + $0x450] sm:$0xff]
    %v3337 = vld [vmem:[#allocation26 + $0x458] sm:$0xff]
    %v3338 = vld [vmem:[#allocation26 + $0x460] sm:$0xff]
    %v3339 = vld [vmem:[#allocation26 + $0x468] sm:$0xff]
    %v3340 = vld [vmem:[#allocation26 + $0x470] sm:$0xff]
    %v3341 = vld [vmem:[#allocation26 + $0x478] sm:$0xff]
    %v3342 = vld [vmem:[#allocation26 + $0x480] sm:$0xff]
    %v3343 = vld [vmem:[#allocation26 + $0x488] sm:$0xff]
    %v3344 = vld [vmem:[#allocation26 + $0x490] sm:$0xff]
    %v3345 = vld [vmem:[#allocation26 + $0x498] sm:$0xff]
    %v3346 = vld [vmem:[#allocation26 + $0x4a0] sm:$0xff]
    %v3347 = vld [vmem:[#allocation26 + $0x4a8] sm:$0xff]
    %v3348 = vld [vmem:[#allocation26 + $0x4b0] sm:$0xff]
    %v3349 = vld [vmem:[#allocation26 + $0x4b8] sm:$0xff]
    %v3350 = vld [vmem:[#allocation26 + $0x4c0] sm:$0xff]
    %v3351 = vld [vmem:[#allocation26 + $0x4c8] sm:$0xff]
    %v3352 = vld [vmem:[#allocation26 + $0x4d0] sm:$0xff]
    %v3353 = vld [vmem:[#allocation26 + $0x4d8] sm:$0xff]
    %v3354 = vld [vmem:[#allocation26 + $0x4e0] sm:$0xff]
    %v3355 = vld [vmem:[#allocation26 + $0x4e8] sm:$0xff]
    %v3356 = vld [vmem:[#allocation26 + $0x4f0] sm:$0xff]
    %v3357 = vld [vmem:[#allocation26 + $0x4f8] sm:$0xff]
    %v3358 = vld [vmem:[#allocation26 + $0x500] sm:$0xff]
    %v3359 = vld [vmem:[#allocation26 + $0x508] sm:$0xff]
    %v3360 = vld [vmem:[#allocation26 + $0x510] sm:$0xff]
    %v3361 = vld [vmem:[#allocation26 + $0x518] sm:$0xff]
    %v3362 = vld [vmem:[#allocation26 + $0x520] sm:$0xff]
    %v3363 = vld [vmem:[#allocation26 + $0x528] sm:$0xff]
    %v3364 = vld [vmem:[#allocation26 + $0x530] sm:$0xff]
    %v3365 = vld [vmem:[#allocation26 + $0x538] sm:$0xff]
    %v3366 = vld [vmem:[#allocation26 + $0x540] sm:$0xff]
    %v3367 = vld [vmem:[#allocation26 + $0x548] sm:$0xff]
    %v3368 = vld [vmem:[#allocation26 + $0x550] sm:$0xff]
    %v3369 = vld [vmem:[#allocation26 + $0x558] sm:$0xff]
    %v3370 = vld [vmem:[#allocation26 + $0x560] sm:$0xff]
    %v3371 = vld [vmem:[#allocation26 + $0x568] sm:$0xff]
    %v3372 = vld [vmem:[#allocation26 + $0x570] sm:$0xff]
    %v3373 = vld [vmem:[#allocation26 + $0x578] sm:$0xff]
    %v3374 = vld [vmem:[#allocation26 + $0x580] sm:$0xff]
    %v3375 = vld [vmem:[#allocation26 + $0x588] sm:$0xff]
    %v3376 = vld [vmem:[#allocation26 + $0x590] sm:$0xff]
    %v3377 = vld [vmem:[#allocation26 + $0x598] sm:$0xff]
    %v3378 = vld [vmem:[#allocation26 + $0x5a0] sm:$0xff]
    %v3379 = vld [vmem:[#allocation26 + $0x5a8] sm:$0xff]
    %v3380 = vld [vmem:[#allocation26 + $0x5b0] sm:$0xff]
    %v3381 = vld [vmem:[#allocation26 + $0x5b8] sm:$0xff]
    %v3382 = vld [vmem:[#allocation26 + $0x5c0] sm:$0xff]
    %v3383 = vld [vmem:[#allocation26 + $0x5c8] sm:$0xff]
    %v3384 = vld [vmem:[#allocation26 + $0x5d0] sm:$0xff]
    %v3385 = vld [vmem:[#allocation26 + $0x5d8] sm:$0xff]
    %v3386 = vld [vmem:[#allocation26 + $0x5e0] sm:$0xff]
    %v3387 = vld [vmem:[#allocation26 + $0x5e8] sm:$0xff]
    %v3388 = vld [vmem:[#allocation26 + $0x5f0] sm:$0xff]
    %v3389 = vld [vmem:[#allocation26 + $0x5f8] sm:$0xff]
    %v3390 = vld [vmem:[#allocation26 + $0x600] sm:$0xff]
    %v3391 = vld [vmem:[#allocation26 + $0x608] sm:$0xff]
    %v3392 = vld [vmem:[#allocation26 + $0x610] sm:$0xff]
    %v3393 = vld [vmem:[#allocation26 + $0x618] sm:$0xff]
    %v3394 = vld [vmem:[#allocation26 + $0x620] sm:$0xff]
    %v3395 = vld [vmem:[#allocation26 + $0x628] sm:$0xff]
    %v3396 = vld [vmem:[#allocation26 + $0x630] sm:$0xff]
    %v3397 = vld [vmem:[#allocation26 + $0x638] sm:$0xff]
    %v3398 = vld [vmem:[#allocation26 + $0x640] sm:$0xff]
    %v3399 = vld [vmem:[#allocation26 + $0x648] sm:$0xff]
    %v3400 = vld [vmem:[#allocation26 + $0x650] sm:$0xff]
    %v3401 = vld [vmem:[#allocation26 + $0x658] sm:$0xff]
    %v3402 = vld [vmem:[#allocation26 + $0x660] sm:$0xff]
    %v3403 = vld [vmem:[#allocation26 + $0x668] sm:$0xff]
    %v3404 = vld [vmem:[#allocation26 + $0x670] sm:$0xff]
    %v3405 = vld [vmem:[#allocation26 + $0x678] sm:$0xff]
    %v3406 = vld [vmem:[#allocation26 + $0x680] sm:$0xff]
    %v3407 = vld [vmem:[#allocation26 + $0x688] sm:$0xff]
    %v3408 = vld [vmem:[#allocation26 + $0x690] sm:$0xff]
    %v3409 = vld [vmem:[#allocation26 + $0x698] sm:$0xff]
    %v3410 = vld [vmem:[#allocation26 + $0x6a0] sm:$0xff]
    %v3411 = vld [vmem:[#allocation26 + $0x6a8] sm:$0xff]
    %v3412 = vld [vmem:[#allocation26 + $0x6b0] sm:$0xff]
    %v3413 = vld [vmem:[#allocation26 + $0x6b8] sm:$0xff]
    %v3414 = vld [vmem:[#allocation26 + $0x6c0] sm:$0xff]
    %v3415 = vld [vmem:[#allocation26 + $0x6c8] sm:$0xff]
    %v3416 = vld [vmem:[#allocation26 + $0x6d0] sm:$0xff]
    %v3417 = vld [vmem:[#allocation26 + $0x6d8] sm:$0xff]
    %v3418 = vld [vmem:[#allocation26 + $0x6e0] sm:$0xff]
    %v3419 = vld [vmem:[#allocation26 + $0x6e8] sm:$0xff]
    %v3420 = vld [vmem:[#allocation26 + $0x6f0] sm:$0xff]
    %v3421 = vld [vmem:[#allocation26 + $0x6f8] sm:$0xff]
    %v3422 = vld [vmem:[#allocation26 + $0x700] sm:$0xff]
    %v3423 = vld [vmem:[#allocation26 + $0x708] sm:$0xff]
    %v3424 = vld [vmem:[#allocation26 + $0x710] sm:$0xff]
    %v3425 = vld [vmem:[#allocation26 + $0x718] sm:$0xff]
    %v3426 = vld [vmem:[#allocation26 + $0x720] sm:$0xff]
    %v3427 = vld [vmem:[#allocation26 + $0x728] sm:$0xff]
    %v3428 = vld [vmem:[#allocation26 + $0x730] sm:$0xff]
    %v3429 = vld [vmem:[#allocation26 + $0x738] sm:$0xff]
    %v3430 = vld [vmem:[#allocation26 + $0x740] sm:$0xff]
    %v3431 = vld [vmem:[#allocation26 + $0x748] sm:$0xff]
    %v3432 = vld [vmem:[#allocation26 + $0x750] sm:$0xff]
    %v3433 = vld [vmem:[#allocation26 + $0x758] sm:$0xff]
    %v3434 = vld [vmem:[#allocation26 + $0x760] sm:$0xff]
    %v3435 = vld [vmem:[#allocation26 + $0x768] sm:$0xff]
    %v3436 = vld [vmem:[#allocation26 + $0x770] sm:$0xff]
    %v3437 = vld [vmem:[#allocation26 + $0x778] sm:$0xff]
    %v3438 = vld [vmem:[#allocation26 + $0x780] sm:$0xff]
    %v3439 = vld [vmem:[#allocation26 + $0x788] sm:$0xff]
    %v3440 = vld [vmem:[#allocation26 + $0x790] sm:$0xff]
    %v3441 = vld [vmem:[#allocation26 + $0x798] sm:$0xff]
    %v3442 = vld [vmem:[#allocation26 + $0x7a0] sm:$0xff]
    %v3443 = vld [vmem:[#allocation26 + $0x7a8] sm:$0xff]
    %v3444 = vld [vmem:[#allocation26 + $0x7b0] sm:$0xff]
    %v3445 = vld [vmem:[#allocation26 + $0x7b8] sm:$0xff]
    %v3446 = vld [vmem:[#allocation26 + $0x7c0] sm:$0xff]
    %v3447 = vld [vmem:[#allocation26 + $0x7c8] sm:$0xff]
    %v3448 = vld [vmem:[#allocation26 + $0x7d0] sm:$0xff]
    %v3449 = vld [vmem:[#allocation26 + $0x7d8] sm:$0xff]
    %v3450 = vld [vmem:[#allocation26 + $0x7e0] sm:$0xff]
    %v3451 = vld [vmem:[#allocation26 + $0x7e8] sm:$0xff]
    %v3452 = vld [vmem:[#allocation26 + $0x7f0] sm:$0xff]
    %v3453 = vld [vmem:[#allocation26 + $0x7f8] sm:$0xff]
    %v3454 = vld [vmem:[#allocation26 + $0x800] sm:$0xff]
    %v3455 = vld [vmem:[#allocation26 + $0x808] sm:$0xff]
    %v3456 = vld [vmem:[#allocation26 + $0x810] sm:$0xff]
    %v3457 = vld [vmem:[#allocation26 + $0x818] sm:$0xff]
    %v3458 = vld [vmem:[#allocation26 + $0x820] sm:$0xff]
    %v3459 = vld [vmem:[#allocation26 + $0x828] sm:$0xff]
    %v3460 = vld [vmem:[#allocation26 + $0x830] sm:$0xff]
    %v3461 = vld [vmem:[#allocation26 + $0x838] sm:$0xff]
    %v3462 = vld [vmem:[#allocation26 + $0x840] sm:$0xff]
    %v3463 = vld [vmem:[#allocation26 + $0x848] sm:$0xff]
    %v3464 = vld [vmem:[#allocation26 + $0x850] sm:$0xff]
    %v3465 = vld [vmem:[#allocation26 + $0x858] sm:$0xff]
    %v3466 = vld [vmem:[#allocation26 + $0x860] sm:$0xff]
    %v3467 = vld [vmem:[#allocation26 + $0x868] sm:$0xff]
    %v3468 = vld [vmem:[#allocation26 + $0x870] sm:$0xff]
    %v3469 = vld [vmem:[#allocation26 + $0x878] sm:$0xff]
    %v3470 = vld [vmem:[#allocation26 + $0x880] sm:$0xff]
    %v3471 = vld [vmem:[#allocation26 + $0x888] sm:$0xff]
    %v3472 = vld [vmem:[#allocation26 + $0x890] sm:$0xff]
    %v3473 = vld [vmem:[#allocation26 + $0x898] sm:$0xff]
    %v3474 = vld [vmem:[#allocation26 + $0x8a0] sm:$0xff]
    %v3475 = vld [vmem:[#allocation26 + $0x8a8] sm:$0xff]
    %v3476 = vld [vmem:[#allocation26 + $0x8b0] sm:$0xff]
    %v3477 = vld [vmem:[#allocation26 + $0x8b8] sm:$0xff]
    %v3478 = vld [vmem:[#allocation26 + $0x8c0] sm:$0xff]
    %v3479 = vld [vmem:[#allocation26 + $0x8c8] sm:$0xff]
    %v3480 = vld [vmem:[#allocation26 + $0x8d0] sm:$0xff]
    %v3481 = vld [vmem:[#allocation26 + $0x8d8] sm:$0xff]
    %v3482 = vld [vmem:[#allocation26 + $0x8e0] sm:$0xff]
    %v3483 = vld [vmem:[#allocation26 + $0x8e8] sm:$0xff]
    %v3484 = vld [vmem:[#allocation26 + $0x8f0] sm:$0xff]
    %v3485 = vld [vmem:[#allocation26 + $0x8f8] sm:$0xff]
    %v3486 = vld [vmem:[#allocation27] sm:$0x3]
    %v3488 = vlaneseq
    %v3489 = vshrl.u32 %v3488, 7
    %v3490 = vsub.s32 0, %v3489
    %v3491 = vrot.slane %v3486, %v3490
    %v3492 = vlaneseq
    %v3493 = vshrl.u32 %v3492, 7
    %v3494 = vsub.s32 1, %v3493
    %v3495 = vrot.slane %v3486, %v3494
    %v3786 = vunpack.c.l.b16 %v3198
    %v3787 = vunpack.c.h.b16 %v3198
    %v3788 = vunpack.c.l.b16 %v3199
    %v3789 = vunpack.c.h.b16 %v3199
    %v3790 = vunpack.c.l.b16 %v3200
    %v3791 = vunpack.c.h.b16 %v3200
    %v3792 = vunpack.c.l.b16 %v3201
    %v3793 = vunpack.c.h.b16 %v3201
    %v3794 = vunpack.c.l.b16 %v3202
    %v3795 = vunpack.c.h.b16 %v3202
    %v3796 = vunpack.c.l.b16 %v3203
    %v3797 = vunpack.c.h.b16 %v3203
    %v3798 = vunpack.c.l.b16 %v3204
    %v3799 = vunpack.c.h.b16 %v3204
    %v3800 = vunpack.c.l.b16 %v3205
    %v3801 = vunpack.c.h.b16 %v3205
    %v3802 = vunpack.c.l.b16 %v3206
    %v3803 = vunpack.c.h.b16 %v3206
    %v3804 = vunpack.c.l.b16 %v3207
    %v3805 = vunpack.c.h.b16 %v3207
    %v3806 = vunpack.c.l.b16 %v3208
    %v3807 = vunpack.c.h.b16 %v3208
    %v3808 = vunpack.c.l.b16 %v3209
    %v3809 = vunpack.c.h.b16 %v3209
    %v3810 = vunpack.c.l.b16 %v3210
    %v3811 = vunpack.c.h.b16 %v3210
    %v3812 = vunpack.c.l.b16 %v3211
    %v3813 = vunpack.c.h.b16 %v3211
    %v3814 = vunpack.c.l.b16 %v3212
    %v3815 = vunpack.c.h.b16 %v3212
    %v3816 = vunpack.c.l.b16 %v3213
    %v3817 = vunpack.c.h.b16 %v3213
    %v3818 = vunpack.c.l.b16 %v3214
    %v3819 = vunpack.c.h.b16 %v3214
    %v3820 = vunpack.c.l.b16 %v3215
    %v3821 = vunpack.c.h.b16 %v3215
    %v3822 = vunpack.c.l.b16 %v3216
    %v3823 = vunpack.c.h.b16 %v3216
    %v3824 = vunpack.c.l.b16 %v3217
    %v3825 = vunpack.c.h.b16 %v3217
    %v3826 = vunpack.c.l.b16 %v3218
    %v3827 = vunpack.c.h.b16 %v3218
    %v3828 = vunpack.c.l.b16 %v3219
    %v3829 = vunpack.c.h.b16 %v3219
    %v3830 = vunpack.c.l.b16 %v3220
    %v3831 = vunpack.c.h.b16 %v3220
    %v3832 = vunpack.c.l.b16 %v3221
    %v3833 = vunpack.c.h.b16 %v3221
    %v3834 = vunpack.c.l.b16 %v3222
    %v3835 = vunpack.c.h.b16 %v3222
    %v3836 = vunpack.c.l.b16 %v3223
    %v3837 = vunpack.c.h.b16 %v3223
    %v3838 = vunpack.c.l.b16 %v3224
    %v3839 = vunpack.c.h.b16 %v3224
    %v3840 = vunpack.c.l.b16 %v3225
    %v3841 = vunpack.c.h.b16 %v3225
    %v3842 = vunpack.c.l.b16 %v3226
    %v3843 = vunpack.c.h.b16 %v3226
    %v3844 = vunpack.c.l.b16 %v3227
    %v3845 = vunpack.c.h.b16 %v3227
    %v3846 = vunpack.c.l.b16 %v3228
    %v3847 = vunpack.c.h.b16 %v3228
    %v3848 = vunpack.c.l.b16 %v3229
    %v3849 = vunpack.c.h.b16 %v3229
    %v3850 = vunpack.c.l.b16 %v3230
    %v3851 = vunpack.c.h.b16 %v3230
    %v3852 = vunpack.c.l.b16 %v3231
    %v3853 = vunpack.c.h.b16 %v3231
    %v3854 = vunpack.c.l.b16 %v3232
    %v3855 = vunpack.c.h.b16 %v3232
    %v3856 = vunpack.c.l.b16 %v3233
    %v3857 = vunpack.c.h.b16 %v3233
    %v3858 = vunpack.c.l.b16 %v3234
    %v3859 = vunpack.c.h.b16 %v3234
    %v3860 = vunpack.c.l.b16 %v3235
    %v3861 = vunpack.c.h.b16 %v3235
    %v3862 = vunpack.c.l.b16 %v3236
    %v3863 = vunpack.c.h.b16 %v3236
    %v3864 = vunpack.c.l.b16 %v3237
    %v3865 = vunpack.c.h.b16 %v3237
    %v3866 = vunpack.c.l.b16 %v3238
    %v3867 = vunpack.c.h.b16 %v3238
    %v3868 = vunpack.c.l.b16 %v3239
    %v3869 = vunpack.c.h.b16 %v3239
    %v3870 = vunpack.c.l.b16 %v3240
    %v3871 = vunpack.c.h.b16 %v3240
    %v3872 = vunpack.c.l.b16 %v3241
    %v3873 = vunpack.c.h.b16 %v3241
    %v3874 = vunpack.c.l.b16 %v3242
    %v3875 = vunpack.c.h.b16 %v3242
    %v3876 = vunpack.c.l.b16 %v3243
    %v3877 = vunpack.c.h.b16 %v3243
    %v3878 = vunpack.c.l.b16 %v3244
    %v3879 = vunpack.c.h.b16 %v3244
    %v3880 = vunpack.c.l.b16 %v3245
    %v3881 = vunpack.c.h.b16 %v3245
    %v3882 = vunpack.c.l.b16 %v3246
    %v3883 = vunpack.c.h.b16 %v3246
    %v3884 = vunpack.c.l.b16 %v3247
    %v3885 = vunpack.c.h.b16 %v3247
    %v3886 = vunpack.c.l.b16 %v3248
    %v3887 = vunpack.c.h.b16 %v3248
    %v3888 = vunpack.c.l.b16 %v3249
    %v3889 = vunpack.c.h.b16 %v3249
    %v3890 = vunpack.c.l.b16 %v3250
    %v3891 = vunpack.c.h.b16 %v3250
    %v3892 = vunpack.c.l.b16 %v3251
    %v3893 = vunpack.c.h.b16 %v3251
    %v3894 = vunpack.c.l.b16 %v3252
    %v3895 = vunpack.c.h.b16 %v3252
    %v3896 = vunpack.c.l.b16 %v3253
    %v3897 = vunpack.c.h.b16 %v3253
    %v3898 = vunpack.c.l.b16 %v3254
    %v3899 = vunpack.c.h.b16 %v3254
    %v3900 = vunpack.c.l.b16 %v3255
    %v3901 = vunpack.c.h.b16 %v3255
    %v3902 = vunpack.c.l.b16 %v3256
    %v3903 = vunpack.c.h.b16 %v3256
    %v3904 = vunpack.c.l.b16 %v3257
    %v3905 = vunpack.c.h.b16 %v3257
    %v3906 = vunpack.c.l.b16 %v3258
    %v3907 = vunpack.c.h.b16 %v3258
    %v3908 = vunpack.c.l.b16 %v3259
    %v3909 = vunpack.c.h.b16 %v3259
    %v3910 = vunpack.c.l.b16 %v3260
    %v3911 = vunpack.c.h.b16 %v3260
    %v3912 = vunpack.c.l.b16 %v3261
    %v3913 = vunpack.c.h.b16 %v3261
    %v3914 = vunpack.c.l.b16 %v3262
    %v3915 = vunpack.c.h.b16 %v3262
    %v3916 = vunpack.c.l.b16 %v3263
    %v3917 = vunpack.c.h.b16 %v3263
    %v3918 = vunpack.c.l.b16 %v3264
    %v3919 = vunpack.c.h.b16 %v3264
    %v3920 = vunpack.c.l.b16 %v3265
    %v3921 = vunpack.c.h.b16 %v3265
    %v3922 = vunpack.c.l.b16 %v3266
    %v3923 = vunpack.c.h.b16 %v3266
    %v3924 = vunpack.c.l.b16 %v3267
    %v3925 = vunpack.c.h.b16 %v3267
    %v3926 = vunpack.c.l.b16 %v3268
    %v3927 = vunpack.c.h.b16 %v3268
    %v3928 = vunpack.c.l.b16 %v3269
    %v3929 = vunpack.c.h.b16 %v3269
    %v3930 = vunpack.c.l.b16 %v3270
    %v3931 = vunpack.c.h.b16 %v3270
    %v3932 = vunpack.c.l.b16 %v3271
    %v3933 = vunpack.c.h.b16 %v3271
    %v3934 = vunpack.c.l.b16 %v3272
    %v3935 = vunpack.c.h.b16 %v3272
    %v3936 = vunpack.c.l.b16 %v3273
    %v3937 = vunpack.c.h.b16 %v3273
    %v3938 = vunpack.c.l.b16 %v3274
    %v3939 = vunpack.c.h.b16 %v3274
    %v3940 = vunpack.c.l.b16 %v3275
    %v3941 = vunpack.c.h.b16 %v3275
    %v3942 = vunpack.c.l.b16 %v3276
    %v3943 = vunpack.c.h.b16 %v3276
    %v3944 = vunpack.c.l.b16 %v3277
    %v3945 = vunpack.c.h.b16 %v3277
    %v3946 = vunpack.c.l.b16 %v3278
    %v3947 = vunpack.c.h.b16 %v3278
    %v3948 = vunpack.c.l.b16 %v3279
    %v3949 = vunpack.c.h.b16 %v3279
    %v3950 = vunpack.c.l.b16 %v3280
    %v3951 = vunpack.c.h.b16 %v3280
    %v3952 = vunpack.c.l.b16 %v3281
    %v3953 = vunpack.c.h.b16 %v3281
    %v3954 = vunpack.c.l.b16 %v3282
    %v3955 = vunpack.c.h.b16 %v3282
    %v3956 = vunpack.c.l.b16 %v3283
    %v3957 = vunpack.c.h.b16 %v3283
    %v3958 = vunpack.c.l.b16 %v3284
    %v3959 = vunpack.c.h.b16 %v3284
    %v3960 = vunpack.c.l.b16 %v3285
    %v3961 = vunpack.c.h.b16 %v3285
    %v3962 = vunpack.c.l.b16 %v3286
    %v3963 = vunpack.c.h.b16 %v3286
    %v3964 = vunpack.c.l.b16 %v3287
    %v3965 = vunpack.c.h.b16 %v3287
    %v3966 = vunpack.c.l.b16 %v3288
    %v3967 = vunpack.c.h.b16 %v3288
    %v3968 = vunpack.c.l.b16 %v3289
    %v3969 = vunpack.c.h.b16 %v3289
    %v3970 = vunpack.c.l.b16 %v3290
    %v3971 = vunpack.c.h.b16 %v3290
    %v3972 = vunpack.c.l.b16 %v3291
    %v3973 = vunpack.c.h.b16 %v3291
    %v3974 = vunpack.c.l.b16 %v3292
    %v3975 = vunpack.c.h.b16 %v3292
    %v3976 = vunpack.c.l.b16 %v3293
    %v3977 = vunpack.c.h.b16 %v3293
    %v3978 = vunpack.c.l.b16 %v3294
    %v3979 = vunpack.c.h.b16 %v3294
    %v3980 = vunpack.c.l.b16 %v3295
    %v3981 = vunpack.c.h.b16 %v3295
    %v3982 = vunpack.c.l.b16 %v3296
    %v3983 = vunpack.c.h.b16 %v3296
    %v3984 = vunpack.c.l.b16 %v3297
    %v3985 = vunpack.c.h.b16 %v3297
    %v3986 = vunpack.c.l.b16 %v3298
    %v3987 = vunpack.c.h.b16 %v3298
    %v3988 = vunpack.c.l.b16 %v3299
    %v3989 = vunpack.c.h.b16 %v3299
    %v3990 = vunpack.c.l.b16 %v3300
    %v3991 = vunpack.c.h.b16 %v3300
    %v3992 = vunpack.c.l.b16 %v3301
    %v3993 = vunpack.c.h.b16 %v3301
    %v3994 = vunpack.c.l.b16 %v3302
    %v3995 = vunpack.c.h.b16 %v3302
    %v3996 = vunpack.c.l.b16 %v3303
    %v3997 = vunpack.c.h.b16 %v3303
    %v3998 = vunpack.c.l.b16 %v3304
    %v3999 = vunpack.c.h.b16 %v3304
    %v4000 = vunpack.c.l.b16 %v3305
    %v4001 = vunpack.c.h.b16 %v3305
    %v4002 = vunpack.c.l.b16 %v3306
    %v4003 = vunpack.c.h.b16 %v3306
    %v4004 = vunpack.c.l.b16 %v3307
    %v4005 = vunpack.c.h.b16 %v3307
    %v4006 = vunpack.c.l.b16 %v3308
    %v4007 = vunpack.c.h.b16 %v3308
    %v4008 = vunpack.c.l.b16 %v3309
    %v4009 = vunpack.c.h.b16 %v3309
    %v4010 = vunpack.c.l.b16 %v3310
    %v4011 = vunpack.c.h.b16 %v3310
    %v4012 = vunpack.c.l.b16 %v3311
    %v4013 = vunpack.c.h.b16 %v3311
    %v4014 = vunpack.c.l.b16 %v3312
    %v4015 = vunpack.c.h.b16 %v3312
    %v4016 = vunpack.c.l.b16 %v3313
    %v4017 = vunpack.c.h.b16 %v3313
    %v4018 = vunpack.c.l.b16 %v3314
    %v4019 = vunpack.c.h.b16 %v3314
    %v4020 = vunpack.c.l.b16 %v3315
    %v4021 = vunpack.c.h.b16 %v3315
    %v4022 = vunpack.c.l.b16 %v3316
    %v4023 = vunpack.c.h.b16 %v3316
    %v4024 = vunpack.c.l.b16 %v3317
    %v4025 = vunpack.c.h.b16 %v3317
    %v4026 = vunpack.c.l.b16 %v3318
    %v4027 = vunpack.c.h.b16 %v3318
    %v4028 = vunpack.c.l.b16 %v3319
    %v4029 = vunpack.c.h.b16 %v3319
    %v4030 = vunpack.c.l.b16 %v3320
    %v4031 = vunpack.c.h.b16 %v3320
    %v4032 = vunpack.c.l.b16 %v3321
    %v4033 = vunpack.c.h.b16 %v3321
    %v4034 = vunpack.c.l.b16 %v3322
    %v4035 = vunpack.c.h.b16 %v3322
    %v4036 = vunpack.c.l.b16 %v3323
    %v4037 = vunpack.c.h.b16 %v3323
    %v4038 = vunpack.c.l.b16 %v3324
    %v4039 = vunpack.c.h.b16 %v3324
    %v4040 = vunpack.c.l.b16 %v3325
    %v4041 = vunpack.c.h.b16 %v3325
    %v4042 = vunpack.c.l.b16 %v3326
    %v4043 = vunpack.c.h.b16 %v3326
    %v4044 = vunpack.c.l.b16 %v3327
    %v4045 = vunpack.c.h.b16 %v3327
    %v4046 = vunpack.c.l.b16 %v3328
    %v4047 = vunpack.c.h.b16 %v3328
    %v4048 = vunpack.c.l.b16 %v3329
    %v4049 = vunpack.c.h.b16 %v3329
    %v4050 = vunpack.c.l.b16 %v3330
    %v4051 = vunpack.c.h.b16 %v3330
    %v4052 = vunpack.c.l.b16 %v3331
    %v4053 = vunpack.c.h.b16 %v3331
    %v4054 = vunpack.c.l.b16 %v3332
    %v4055 = vunpack.c.h.b16 %v3332
    %v4056 = vunpack.c.l.b16 %v3333
    %v4057 = vunpack.c.h.b16 %v3333
    %v4058 = vunpack.c.l.b16 %v3334
    %v4059 = vunpack.c.h.b16 %v3334
    %v4060 = vunpack.c.l.b16 %v3335
    %v4061 = vunpack.c.h.b16 %v3335
    %v4062 = vunpack.c.l.b16 %v3336
    %v4063 = vunpack.c.h.b16 %v3336
    %v4064 = vunpack.c.l.b16 %v3337
    %v4065 = vunpack.c.h.b16 %v3337
    %v4066 = vunpack.c.l.b16 %v3338
    %v4067 = vunpack.c.h.b16 %v3338
    %v4068 = vunpack.c.l.b16 %v3339
    %v4069 = vunpack.c.h.b16 %v3339
    %v4070 = vunpack.c.l.b16 %v3340
    %v4071 = vunpack.c.h.b16 %v3340
    %v4072 = vunpack.c.l.b16 %v3341
    %v4073 = vunpack.c.h.b16 %v3341
    %v4074 = vunpack.c.l.b16 %v3342
    %v4075 = vunpack.c.h.b16 %v3342
    %v4076 = vunpack.c.l.b16 %v3343
    %v4077 = vunpack.c.h.b16 %v3343
    %v4078 = vunpack.c.l.b16 %v3344
    %v4079 = vunpack.c.h.b16 %v3344
    %v4080 = vunpack.c.l.b16 %v3345
    %v4081 = vunpack.c.h.b16 %v3345
    %v4082 = vunpack.c.l.b16 %v3346
    %v4083 = vunpack.c.h.b16 %v3346
    %v4084 = vunpack.c.l.b16 %v3347
    %v4085 = vunpack.c.h.b16 %v3347
    %v4086 = vunpack.c.l.b16 %v3348
    %v4087 = vunpack.c.h.b16 %v3348
    %v4088 = vunpack.c.l.b16 %v3349
    %v4089 = vunpack.c.h.b16 %v3349
    %v4090 = vunpack.c.l.b16 %v3350
    %v4091 = vunpack.c.h.b16 %v3350
    %v4092 = vunpack.c.l.b16 %v3351
    %v4093 = vunpack.c.h.b16 %v3351
    %v4094 = vunpack.c.l.b16 %v3352
    %v4095 = vunpack.c.h.b16 %v3352
    %v4096 = vunpack.c.l.b16 %v3353
    %v4097 = vunpack.c.h.b16 %v3353
    %v4098 = vunpack.c.l.b16 %v3354
    %v4099 = vunpack.c.h.b16 %v3354
    %v4100 = vunpack.c.l.b16 %v3355
    %v4101 = vunpack.c.h.b16 %v3355
    %v4102 = vunpack.c.l.b16 %v3356
    %v4103 = vunpack.c.h.b16 %v3356
    %v4104 = vunpack.c.l.b16 %v3357
    %v4105 = vunpack.c.h.b16 %v3357
    %v4106 = vunpack.c.l.b16 %v3358
    %v4107 = vunpack.c.h.b16 %v3358
    %v4108 = vunpack.c.l.b16 %v3359
    %v4109 = vunpack.c.h.b16 %v3359
    %v4110 = vunpack.c.l.b16 %v3360
    %v4111 = vunpack.c.h.b16 %v3360
    %v4112 = vunpack.c.l.b16 %v3361
    %v4113 = vunpack.c.h.b16 %v3361
    %v4114 = vunpack.c.l.b16 %v3362
    %v4115 = vunpack.c.h.b16 %v3362
    %v4116 = vunpack.c.l.b16 %v3363
    %v4117 = vunpack.c.h.b16 %v3363
    %v4118 = vunpack.c.l.b16 %v3364
    %v4119 = vunpack.c.h.b16 %v3364
    %v4120 = vunpack.c.l.b16 %v3365
    %v4121 = vunpack.c.h.b16 %v3365
    %v4122 = vunpack.c.l.b16 %v3366
    %v4123 = vunpack.c.h.b16 %v3366
    %v4124 = vunpack.c.l.b16 %v3367
    %v4125 = vunpack.c.h.b16 %v3367
    %v4126 = vunpack.c.l.b16 %v3368
    %v4127 = vunpack.c.h.b16 %v3368
    %v4128 = vunpack.c.l.b16 %v3369
    %v4129 = vunpack.c.h.b16 %v3369
    %v4130 = vunpack.c.l.b16 %v3370
    %v4131 = vunpack.c.h.b16 %v3370
    %v4132 = vunpack.c.l.b16 %v3371
    %v4133 = vunpack.c.h.b16 %v3371
    %v4134 = vunpack.c.l.b16 %v3372
    %v4135 = vunpack.c.h.b16 %v3372
    %v4136 = vunpack.c.l.b16 %v3373
    %v4137 = vunpack.c.h.b16 %v3373
    %v4138 = vunpack.c.l.b16 %v3374
    %v4139 = vunpack.c.h.b16 %v3374
    %v4140 = vunpack.c.l.b16 %v3375
    %v4141 = vunpack.c.h.b16 %v3375
    %v4142 = vunpack.c.l.b16 %v3376
    %v4143 = vunpack.c.h.b16 %v3376
    %v4144 = vunpack.c.l.b16 %v3377
    %v4145 = vunpack.c.h.b16 %v3377
    %v4146 = vunpack.c.l.b16 %v3378
    %v4147 = vunpack.c.h.b16 %v3378
    %v4148 = vunpack.c.l.b16 %v3379
    %v4149 = vunpack.c.h.b16 %v3379
    %v4150 = vunpack.c.l.b16 %v3380
    %v4151 = vunpack.c.h.b16 %v3380
    %v4152 = vunpack.c.l.b16 %v3381
    %v4153 = vunpack.c.h.b16 %v3381
    %v4154 = vunpack.c.l.b16 %v3382
    %v4155 = vunpack.c.h.b16 %v3382
    %v4156 = vunpack.c.l.b16 %v3383
    %v4157 = vunpack.c.h.b16 %v3383
    %v4158 = vunpack.c.l.b16 %v3384
    %v4159 = vunpack.c.h.b16 %v3384
    %v4160 = vunpack.c.l.b16 %v3385
    %v4161 = vunpack.c.h.b16 %v3385
    %v4162 = vunpack.c.l.b16 %v3386
    %v4163 = vunpack.c.h.b16 %v3386
    %v4164 = vunpack.c.l.b16 %v3387
    %v4165 = vunpack.c.h.b16 %v3387
    %v4166 = vunpack.c.l.b16 %v3388
    %v4167 = vunpack.c.h.b16 %v3388
    %v4168 = vunpack.c.l.b16 %v3389
    %v4169 = vunpack.c.h.b16 %v3389
    %v4170 = vunpack.c.l.b16 %v3390
    %v4171 = vunpack.c.h.b16 %v3390
    %v4172 = vunpack.c.l.b16 %v3391
    %v4173 = vunpack.c.h.b16 %v3391
    %v4174 = vunpack.c.l.b16 %v3392
    %v4175 = vunpack.c.h.b16 %v3392
    %v4176 = vunpack.c.l.b16 %v3393
    %v4177 = vunpack.c.h.b16 %v3393
    %v4178 = vunpack.c.l.b16 %v3394
    %v4179 = vunpack.c.h.b16 %v3394
    %v4180 = vunpack.c.l.b16 %v3395
    %v4181 = vunpack.c.h.b16 %v3395
    %v4182 = vunpack.c.l.b16 %v3396
    %v4183 = vunpack.c.h.b16 %v3396
    %v4184 = vunpack.c.l.b16 %v3397
    %v4185 = vunpack.c.h.b16 %v3397
    %v4186 = vunpack.c.l.b16 %v3398
    %v4187 = vunpack.c.h.b16 %v3398
    %v4188 = vunpack.c.l.b16 %v3399
    %v4189 = vunpack.c.h.b16 %v3399
    %v4190 = vunpack.c.l.b16 %v3400
    %v4191 = vunpack.c.h.b16 %v3400
    %v4192 = vunpack.c.l.b16 %v3401
    %v4193 = vunpack.c.h.b16 %v3401
    %v4194 = vunpack.c.l.b16 %v3402
    %v4195 = vunpack.c.h.b16 %v3402
    %v4196 = vunpack.c.l.b16 %v3403
    %v4197 = vunpack.c.h.b16 %v3403
    %v4198 = vunpack.c.l.b16 %v3404
    %v4199 = vunpack.c.h.b16 %v3404
    %v4200 = vunpack.c.l.b16 %v3405
    %v4201 = vunpack.c.h.b16 %v3405
    %v4202 = vunpack.c.l.b16 %v3406
    %v4203 = vunpack.c.h.b16 %v3406
    %v4204 = vunpack.c.l.b16 %v3407
    %v4205 = vunpack.c.h.b16 %v3407
    %v4206 = vunpack.c.l.b16 %v3408
    %v4207 = vunpack.c.h.b16 %v3408
    %v4208 = vunpack.c.l.b16 %v3409
    %v4209 = vunpack.c.h.b16 %v3409
    %v4210 = vunpack.c.l.b16 %v3410
    %v4211 = vunpack.c.h.b16 %v3410
    %v4212 = vunpack.c.l.b16 %v3411
    %v4213 = vunpack.c.h.b16 %v3411
    %v4214 = vunpack.c.l.b16 %v3412
    %v4215 = vunpack.c.h.b16 %v3412
    %v4216 = vunpack.c.l.b16 %v3413
    %v4217 = vunpack.c.h.b16 %v3413
    %v4218 = vunpack.c.l.b16 %v3414
    %v4219 = vunpack.c.h.b16 %v3414
    %v4220 = vunpack.c.l.b16 %v3415
    %v4221 = vunpack.c.h.b16 %v3415
    %v4222 = vunpack.c.l.b16 %v3416
    %v4223 = vunpack.c.h.b16 %v3416
    %v4224 = vunpack.c.l.b16 %v3417
    %v4225 = vunpack.c.h.b16 %v3417
    %v4226 = vunpack.c.l.b16 %v3418
    %v4227 = vunpack.c.h.b16 %v3418
    %v4228 = vunpack.c.l.b16 %v3419
    %v4229 = vunpack.c.h.b16 %v3419
    %v4230 = vunpack.c.l.b16 %v3420
    %v4231 = vunpack.c.h.b16 %v3420
    %v4232 = vunpack.c.l.b16 %v3421
    %v4233 = vunpack.c.h.b16 %v3421
    %v4234 = vunpack.c.l.b16 %v3422
    %v4235 = vunpack.c.h.b16 %v3422
    %v4236 = vunpack.c.l.b16 %v3423
    %v4237 = vunpack.c.h.b16 %v3423
    %v4238 = vunpack.c.l.b16 %v3424
    %v4239 = vunpack.c.h.b16 %v3424
    %v4240 = vunpack.c.l.b16 %v3425
    %v4241 = vunpack.c.h.b16 %v3425
    %v4242 = vunpack.c.l.b16 %v3426
    %v4243 = vunpack.c.h.b16 %v3426
    %v4244 = vunpack.c.l.b16 %v3427
    %v4245 = vunpack.c.h.b16 %v3427
    %v4246 = vunpack.c.l.b16 %v3428
    %v4247 = vunpack.c.h.b16 %v3428
    %v4248 = vunpack.c.l.b16 %v3429
    %v4249 = vunpack.c.h.b16 %v3429
    %v4250 = vunpack.c.l.b16 %v3430
    %v4251 = vunpack.c.h.b16 %v3430
    %v4252 = vunpack.c.l.b16 %v3431
    %v4253 = vunpack.c.h.b16 %v3431
    %v4254 = vunpack.c.l.b16 %v3432
    %v4255 = vunpack.c.h.b16 %v3432
    %v4256 = vunpack.c.l.b16 %v3433
    %v4257 = vunpack.c.h.b16 %v3433
    %v4258 = vunpack.c.l.b16 %v3434
    %v4259 = vunpack.c.h.b16 %v3434
    %v4260 = vunpack.c.l.b16 %v3435
    %v4261 = vunpack.c.h.b16 %v3435
    %v4262 = vunpack.c.l.b16 %v3436
    %v4263 = vunpack.c.h.b16 %v3436
    %v4264 = vunpack.c.l.b16 %v3437
    %v4265 = vunpack.c.h.b16 %v3437
    %v4266 = vunpack.c.l.b16 %v3438
    %v4267 = vunpack.c.h.b16 %v3438
    %v4268 = vunpack.c.l.b16 %v3439
    %v4269 = vunpack.c.h.b16 %v3439
    %v4270 = vunpack.c.l.b16 %v3440
    %v4271 = vunpack.c.h.b16 %v3440
    %v4272 = vunpack.c.l.b16 %v3441
    %v4273 = vunpack.c.h.b16 %v3441
    %v4274 = vunpack.c.l.b16 %v3442
    %v4275 = vunpack.c.h.b16 %v3442
    %v4276 = vunpack.c.l.b16 %v3443
    %v4277 = vunpack.c.h.b16 %v3443
    %v4278 = vunpack.c.l.b16 %v3444
    %v4279 = vunpack.c.h.b16 %v3444
    %v4280 = vunpack.c.l.b16 %v3445
    %v4281 = vunpack.c.h.b16 %v3445
    %v4282 = vunpack.c.l.b16 %v3446
    %v4283 = vunpack.c.h.b16 %v3446
    %v4284 = vunpack.c.l.b16 %v3447
    %v4285 = vunpack.c.h.b16 %v3447
    %v4286 = vunpack.c.l.b16 %v3448
    %v4287 = vunpack.c.h.b16 %v3448
    %v4288 = vunpack.c.l.b16 %v3449
    %v4289 = vunpack.c.h.b16 %v3449
    %v4290 = vunpack.c.l.b16 %v3450
    %v4291 = vunpack.c.h.b16 %v3450
    %v4292 = vunpack.c.l.b16 %v3451
    %v4293 = vunpack.c.h.b16 %v3451
    %v4294 = vunpack.c.l.b16 %v3452
    %v4295 = vunpack.c.h.b16 %v3452
    %v4296 = vunpack.c.l.b16 %v3453
    %v4297 = vunpack.c.h.b16 %v3453
    %v4298 = vunpack.c.l.b16 %v3454
    %v4299 = vunpack.c.h.b16 %v3454
    %v4300 = vunpack.c.l.b16 %v3455
    %v4301 = vunpack.c.h.b16 %v3455
    %v4302 = vunpack.c.l.b16 %v3456
    %v4303 = vunpack.c.h.b16 %v3456
    %v4304 = vunpack.c.l.b16 %v3457
    %v4305 = vunpack.c.h.b16 %v3457
    %v4306 = vunpack.c.l.b16 %v3458
    %v4307 = vunpack.c.h.b16 %v3458
    %v4308 = vunpack.c.l.b16 %v3459
    %v4309 = vunpack.c.h.b16 %v3459
    %v4310 = vunpack.c.l.b16 %v3460
    %v4311 = vunpack.c.h.b16 %v3460
    %v4312 = vunpack.c.l.b16 %v3461
    %v4313 = vunpack.c.h.b16 %v3461
    %v4314 = vunpack.c.l.b16 %v3462
    %v4315 = vunpack.c.h.b16 %v3462
    %v4316 = vunpack.c.l.b16 %v3463
    %v4317 = vunpack.c.h.b16 %v3463
    %v4318 = vunpack.c.l.b16 %v3464
    %v4319 = vunpack.c.h.b16 %v3464
    %v4320 = vunpack.c.l.b16 %v3465
    %v4321 = vunpack.c.h.b16 %v3465
    %v4322 = vunpack.c.l.b16 %v3466
    %v4323 = vunpack.c.h.b16 %v3466
    %v4324 = vunpack.c.l.b16 %v3467
    %v4325 = vunpack.c.h.b16 %v3467
    %v4326 = vunpack.c.l.b16 %v3468
    %v4327 = vunpack.c.h.b16 %v3468
    %v4328 = vunpack.c.l.b16 %v3469
    %v4329 = vunpack.c.h.b16 %v3469
    %v4330 = vunpack.c.l.b16 %v3470
    %v4331 = vunpack.c.h.b16 %v3470
    %v4332 = vunpack.c.l.b16 %v3471
    %v4333 = vunpack.c.h.b16 %v3471
    %v4334 = vunpack.c.l.b16 %v3472
    %v4335 = vunpack.c.h.b16 %v3472
    %v4336 = vunpack.c.l.b16 %v3473
    %v4337 = vunpack.c.h.b16 %v3473
    %v4338 = vunpack.c.l.b16 %v3474
    %v4339 = vunpack.c.h.b16 %v3474
    %v4340 = vunpack.c.l.b16 %v3475
    %v4341 = vunpack.c.h.b16 %v3475
    %v4342 = vunpack.c.l.b16 %v3476
    %v4343 = vunpack.c.h.b16 %v3476
    %v4344 = vunpack.c.l.b16 %v3477
    %v4345 = vunpack.c.h.b16 %v3477
    %v4346 = vunpack.c.l.b16 %v3478
    %v4347 = vunpack.c.h.b16 %v3478
    %v4348 = vunpack.c.l.b16 %v3479
    %v4349 = vunpack.c.h.b16 %v3479
    %v4350 = vunpack.c.l.b16 %v3480
    %v4351 = vunpack.c.h.b16 %v3480
    %v4352 = vunpack.c.l.b16 %v3481
    %v4353 = vunpack.c.h.b16 %v3481
    %v4354 = vunpack.c.l.b16 %v3482
    %v4355 = vunpack.c.h.b16 %v3482
    %v4356 = vunpack.c.l.b16 %v3483
    %v4357 = vunpack.c.h.b16 %v3483
    %v4358 = vunpack.c.l.b16 %v3484
    %v4359 = vunpack.c.h.b16 %v3484
    %v4360 = vunpack.c.l.b16 %v3485
    %v4361 = vunpack.c.h.b16 %v3485
    %v4362 = vpack.c.b16 %v3788, %v3786
    %v4363 = vpack.c.b16 %v3789, %v3787
    %v4364 = vpack.c.b16 %v3792, %v3790
    %v4365 = vpack.c.b16 %v3793, %v3791
    %v4366 = vpack.c.b16 %v3796, %v3794
    %v4367 = vpack.c.b16 %v3797, %v3795
    %v4368 = vpack.c.b16 %v3800, %v3798
    %v4369 = vpack.c.b16 %v3801, %v3799
    %v4370 = vpack.c.b16 %v3804, %v3802
    %v4371 = vpack.c.b16 %v3805, %v3803
    %v4372 = vpack.c.b16 %v3808, %v3806
    %v4373 = vpack.c.b16 %v3809, %v3807
    %v4374 = vpack.c.b16 %v3812, %v3810
    %v4375 = vpack.c.b16 %v3813, %v3811
    %v4376 = vpack.c.b16 %v3816, %v3814
    %v4377 = vpack.c.b16 %v3817, %v3815
    %v4378 = vpack.c.b16 %v3820, %v3818
    %v4379 = vpack.c.b16 %v3821, %v3819
    %v4380 = vpack.c.b16 %v3824, %v3822
    %v4381 = vpack.c.b16 %v3825, %v3823
    %v4382 = vpack.c.b16 %v3828, %v3826
    %v4383 = vpack.c.b16 %v3829, %v3827
    %v4384 = vpack.c.b16 %v3832, %v3830
    %v4385 = vpack.c.b16 %v3833, %v3831
    %v4386 = vpack.c.b16 %v3836, %v3834
    %v4387 = vpack.c.b16 %v3837, %v3835
    %v4388 = vpack.c.b16 %v3840, %v3838
    %v4389 = vpack.c.b16 %v3841, %v3839
    %v4390 = vpack.c.b16 %v3844, %v3842
    %v4391 = vpack.c.b16 %v3845, %v3843
    %v4392 = vpack.c.b16 %v3848, %v3846
    %v4393 = vpack.c.b16 %v3849, %v3847
    %v4394 = vpack.c.b16 %v3852, %v3850
    %v4395 = vpack.c.b16 %v3853, %v3851
    %v4396 = vpack.c.b16 %v3856, %v3854
    %v4397 = vpack.c.b16 %v3857, %v3855
    %v4398 = vpack.c.b16 %v3860, %v3858
    %v4399 = vpack.c.b16 %v3861, %v3859
    %v4400 = vpack.c.b16 %v3864, %v3862
    %v4401 = vpack.c.b16 %v3865, %v3863
    %v4402 = vpack.c.b16 %v3868, %v3866
    %v4403 = vpack.c.b16 %v3869, %v3867
    %v4404 = vpack.c.b16 %v3872, %v3870
    %v4405 = vpack.c.b16 %v3873, %v3871
    %v4406 = vpack.c.b16 %v3876, %v3874
    %v4407 = vpack.c.b16 %v3877, %v3875
    %v4408 = vpack.c.b16 %v3880, %v3878
    %v4409 = vpack.c.b16 %v3881, %v3879
    %v4410 = vpack.c.b16 %v3884, %v3882
    %v4411 = vpack.c.b16 %v3885, %v3883
    %v4412 = vpack.c.b16 %v3888, %v3886
    %v4413 = vpack.c.b16 %v3889, %v3887
    %v4414 = vpack.c.b16 %v3892, %v3890
    %v4415 = vpack.c.b16 %v3893, %v3891
    %v4416 = vpack.c.b16 %v3896, %v3894
    %v4417 = vpack.c.b16 %v3897, %v3895
    %v4418 = vpack.c.b16 %v3900, %v3898
    %v4419 = vpack.c.b16 %v3901, %v3899
    %v4420 = vpack.c.b16 %v3904, %v3902
    %v4421 = vpack.c.b16 %v3905, %v3903
    %v4422 = vpack.c.b16 %v3908, %v3906
    %v4423 = vpack.c.b16 %v3909, %v3907
    %v4424 = vpack.c.b16 %v3912, %v3910
    %v4425 = vpack.c.b16 %v3913, %v3911
    %v4426 = vpack.c.b16 %v3916, %v3914
    %v4427 = vpack.c.b16 %v3917, %v3915
    %v4428 = vpack.c.b16 %v3920, %v3918
    %v4429 = vpack.c.b16 %v3921, %v3919
    %v4430 = vpack.c.b16 %v3924, %v3922
    %v4431 = vpack.c.b16 %v3925, %v3923
    %v4432 = vpack.c.b16 %v3928, %v3926
    %v4433 = vpack.c.b16 %v3929, %v3927
    %v4434 = vpack.c.b16 %v3932, %v3930
    %v4435 = vpack.c.b16 %v3933, %v3931
    %v4436 = vpack.c.b16 %v3936, %v3934
    %v4437 = vpack.c.b16 %v3937, %v3935
    %v4438 = vpack.c.b16 %v3940, %v3938
    %v4439 = vpack.c.b16 %v3941, %v3939
    %v4440 = vpack.c.b16 %v3944, %v3942
    %v4441 = vpack.c.b16 %v3945, %v3943
    %v4442 = vpack.c.b16 %v3948, %v3946
    %v4443 = vpack.c.b16 %v3949, %v3947
    %v4444 = vpack.c.b16 %v3952, %v3950
    %v4445 = vpack.c.b16 %v3953, %v3951
    %v4446 = vpack.c.b16 %v3956, %v3954
    %v4447 = vpack.c.b16 %v3957, %v3955
    %v4448 = vpack.c.b16 %v3960, %v3958
    %v4449 = vpack.c.b16 %v3961, %v3959
    %v4450 = vpack.c.b16 %v3964, %v3962
    %v4451 = vpack.c.b16 %v3965, %v3963
    %v4452 = vpack.c.b16 %v3968, %v3966
    %v4453 = vpack.c.b16 %v3969, %v3967
    %v4454 = vpack.c.b16 %v3972, %v3970
    %v4455 = vpack.c.b16 %v3973, %v3971
    %v4456 = vpack.c.b16 %v3976, %v3974
    %v4457 = vpack.c.b16 %v3977, %v3975
    %v4458 = vpack.c.b16 %v3980, %v3978
    %v4459 = vpack.c.b16 %v3981, %v3979
    %v4460 = vpack.c.b16 %v3984, %v3982
    %v4461 = vpack.c.b16 %v3985, %v3983
    %v4462 = vpack.c.b16 %v3988, %v3986
    %v4463 = vpack.c.b16 %v3989, %v3987
    %v4464 = vpack.c.b16 %v3992, %v3990
    %v4465 = vpack.c.b16 %v3993, %v3991
    %v4466 = vpack.c.b16 %v3996, %v3994
    %v4467 = vpack.c.b16 %v3997, %v3995
    %v4468 = vpack.c.b16 %v4000, %v3998
    %v4469 = vpack.c.b16 %v4001, %v3999
    %v4470 = vpack.c.b16 %v4004, %v4002
    %v4471 = vpack.c.b16 %v4005, %v4003
    %v4472 = vpack.c.b16 %v4008, %v4006
    %v4473 = vpack.c.b16 %v4009, %v4007
    %v4474 = vpack.c.b16 %v4012, %v4010
    %v4475 = vpack.c.b16 %v4013, %v4011
    %v4476 = vpack.c.b16 %v4016, %v4014
    %v4477 = vpack.c.b16 %v4017, %v4015
    %v4478 = vpack.c.b16 %v4020, %v4018
    %v4479 = vpack.c.b16 %v4021, %v4019
    %v4480 = vpack.c.b16 %v4024, %v4022
    %v4481 = vpack.c.b16 %v4025, %v4023
    %v4482 = vpack.c.b16 %v4028, %v4026
    %v4483 = vpack.c.b16 %v4029, %v4027
    %v4484 = vpack.c.b16 %v4032, %v4030
    %v4485 = vpack.c.b16 %v4033, %v4031
    %v4486 = vpack.c.b16 %v4036, %v4034
    %v4487 = vpack.c.b16 %v4037, %v4035
    %v4488 = vpack.c.b16 %v4040, %v4038
    %v4489 = vpack.c.b16 %v4041, %v4039
    %v4490 = vpack.c.b16 %v4044, %v4042
    %v4491 = vpack.c.b16 %v4045, %v4043
    %v4492 = vpack.c.b16 %v4048, %v4046
    %v4493 = vpack.c.b16 %v4049, %v4047
    %v4494 = vpack.c.b16 %v4052, %v4050
    %v4495 = vpack.c.b16 %v4053, %v4051
    %v4496 = vpack.c.b16 %v4056, %v4054
    %v4497 = vpack.c.b16 %v4057, %v4055
    %v4498 = vpack.c.b16 %v4060, %v4058
    %v4499 = vpack.c.b16 %v4061, %v4059
    %v4500 = vpack.c.b16 %v4064, %v4062
    %v4501 = vpack.c.b16 %v4065, %v4063
    %v4502 = vpack.c.b16 %v4068, %v4066
    %v4503 = vpack.c.b16 %v4069, %v4067
    %v4504 = vpack.c.b16 %v4072, %v4070
    %v4505 = vpack.c.b16 %v4073, %v4071
    %v4506 = vpack.c.b16 %v4076, %v4074
    %v4507 = vpack.c.b16 %v4077, %v4075
    %v4508 = vpack.c.b16 %v4080, %v4078
    %v4509 = vpack.c.b16 %v4081, %v4079
    %v4510 = vpack.c.b16 %v4084, %v4082
    %v4511 = vpack.c.b16 %v4085, %v4083
    %v4512 = vpack.c.b16 %v4088, %v4086
    %v4513 = vpack.c.b16 %v4089, %v4087
    %v4514 = vpack.c.b16 %v4092, %v4090
    %v4515 = vpack.c.b16 %v4093, %v4091
    %v4516 = vpack.c.b16 %v4096, %v4094
    %v4517 = vpack.c.b16 %v4097, %v4095
    %v4518 = vpack.c.b16 %v4100, %v4098
    %v4519 = vpack.c.b16 %v4101, %v4099
    %v4520 = vpack.c.b16 %v4104, %v4102
    %v4521 = vpack.c.b16 %v4105, %v4103
    %v4522 = vpack.c.b16 %v4108, %v4106
    %v4523 = vpack.c.b16 %v4109, %v4107
    %v4524 = vpack.c.b16 %v4112, %v4110
    %v4525 = vpack.c.b16 %v4113, %v4111
    %v4526 = vpack.c.b16 %v4116, %v4114
    %v4527 = vpack.c.b16 %v4117, %v4115
    %v4528 = vpack.c.b16 %v4120, %v4118
    %v4529 = vpack.c.b16 %v4121, %v4119
    %v4530 = vpack.c.b16 %v4124, %v4122
    %v4531 = vpack.c.b16 %v4125, %v4123
    %v4532 = vpack.c.b16 %v4128, %v4126
    %v4533 = vpack.c.b16 %v4129, %v4127
    %v4534 = vpack.c.b16 %v4132, %v4130
    %v4535 = vpack.c.b16 %v4133, %v4131
    %v4536 = vpack.c.b16 %v4136, %v4134
    %v4537 = vpack.c.b16 %v4137, %v4135
    %v4538 = vpack.c.b16 %v4140, %v4138
    %v4539 = vpack.c.b16 %v4141, %v4139
    %v4540 = vpack.c.b16 %v4144, %v4142
    %v4541 = vpack.c.b16 %v4145, %v4143
    %v4542 = vpack.c.b16 %v4148, %v4146
    %v4543 = vpack.c.b16 %v4149, %v4147
    %v4544 = vpack.c.b16 %v4152, %v4150
    %v4545 = vpack.c.b16 %v4153, %v4151
    %v4546 = vpack.c.b16 %v4156, %v4154
    %v4547 = vpack.c.b16 %v4157, %v4155
    %v4548 = vpack.c.b16 %v4160, %v4158
    %v4549 = vpack.c.b16 %v4161, %v4159
    %v4550 = vpack.c.b16 %v4164, %v4162
    %v4551 = vpack.c.b16 %v4165, %v4163
    %v4552 = vpack.c.b16 %v4168, %v4166
    %v4553 = vpack.c.b16 %v4169, %v4167
    %v4554 = vpack.c.b16 %v4172, %v4170
    %v4555 = vpack.c.b16 %v4173, %v4171
    %v4556 = vpack.c.b16 %v4176, %v4174
    %v4557 = vpack.c.b16 %v4177, %v4175
    %v4558 = vpack.c.b16 %v4180, %v4178
    %v4559 = vpack.c.b16 %v4181, %v4179
    %v4560 = vpack.c.b16 %v4184, %v4182
    %v4561 = vpack.c.b16 %v4185, %v4183
    %v4562 = vpack.c.b16 %v4188, %v4186
    %v4563 = vpack.c.b16 %v4189, %v4187
    %v4564 = vpack.c.b16 %v4192, %v4190
    %v4565 = vpack.c.b16 %v4193, %v4191
    %v4566 = vpack.c.b16 %v4196, %v4194
    %v4567 = vpack.c.b16 %v4197, %v4195
    %v4568 = vpack.c.b16 %v4200, %v4198
    %v4569 = vpack.c.b16 %v4201, %v4199
    %v4570 = vpack.c.b16 %v4204, %v4202
    %v4571 = vpack.c.b16 %v4205, %v4203
    %v4572 = vpack.c.b16 %v4208, %v4206
    %v4573 = vpack.c.b16 %v4209, %v4207
    %v4574 = vpack.c.b16 %v4212, %v4210
    %v4575 = vpack.c.b16 %v4213, %v4211
    %v4576 = vpack.c.b16 %v4216, %v4214
    %v4577 = vpack.c.b16 %v4217, %v4215
    %v4578 = vpack.c.b16 %v4220, %v4218
    %v4579 = vpack.c.b16 %v4221, %v4219
    %v4580 = vpack.c.b16 %v4224, %v4222
    %v4581 = vpack.c.b16 %v4225, %v4223
    %v4582 = vpack.c.b16 %v4228, %v4226
    %v4583 = vpack.c.b16 %v4229, %v4227
    %v4584 = vpack.c.b16 %v4232, %v4230
    %v4585 = vpack.c.b16 %v4233, %v4231
    %v4586 = vpack.c.b16 %v4236, %v4234
    %v4587 = vpack.c.b16 %v4237, %v4235
    %v4588 = vpack.c.b16 %v4240, %v4238
    %v4589 = vpack.c.b16 %v4241, %v4239
    %v4590 = vpack.c.b16 %v4244, %v4242
    %v4591 = vpack.c.b16 %v4245, %v4243
    %v4592 = vpack.c.b16 %v4248, %v4246
    %v4593 = vpack.c.b16 %v4249, %v4247
    %v4594 = vpack.c.b16 %v4252, %v4250
    %v4595 = vpack.c.b16 %v4253, %v4251
    %v4596 = vpack.c.b16 %v4256, %v4254
    %v4597 = vpack.c.b16 %v4257, %v4255
    %v4598 = vpack.c.b16 %v4260, %v4258
    %v4599 = vpack.c.b16 %v4261, %v4259
    %v4600 = vpack.c.b16 %v4264, %v4262
    %v4601 = vpack.c.b16 %v4265, %v4263
    %v4602 = vpack.c.b16 %v4268, %v4266
    %v4603 = vpack.c.b16 %v4269, %v4267
    %v4604 = vpack.c.b16 %v4272, %v4270
    %v4605 = vpack.c.b16 %v4273, %v4271
    %v4606 = vpack.c.b16 %v4276, %v4274
    %v4607 = vpack.c.b16 %v4277, %v4275
    %v4608 = vpack.c.b16 %v4280, %v4278
    %v4609 = vpack.c.b16 %v4281, %v4279
    %v4610 = vpack.c.b16 %v4284, %v4282
    %v4611 = vpack.c.b16 %v4285, %v4283
    %v4612 = vpack.c.b16 %v4288, %v4286
    %v4613 = vpack.c.b16 %v4289, %v4287
    %v4614 = vpack.c.b16 %v4292, %v4290
    %v4615 = vpack.c.b16 %v4293, %v4291
    %v4616 = vpack.c.b16 %v4296, %v4294
    %v4617 = vpack.c.b16 %v4297, %v4295
    %v4618 = vpack.c.b16 %v4300, %v4298
    %v4619 = vpack.c.b16 %v4301, %v4299
    %v4620 = vpack.c.b16 %v4304, %v4302
    %v4621 = vpack.c.b16 %v4305, %v4303
    %v4622 = vpack.c.b16 %v4308, %v4306
    %v4623 = vpack.c.b16 %v4309, %v4307
    %v4624 = vpack.c.b16 %v4312, %v4310
    %v4625 = vpack.c.b16 %v4313, %v4311
    %v4626 = vpack.c.b16 %v4316, %v4314
    %v4627 = vpack.c.b16 %v4317, %v4315
    %v4628 = vpack.c.b16 %v4320, %v4318
    %v4629 = vpack.c.b16 %v4321, %v4319
    %v4630 = vpack.c.b16 %v4324, %v4322
    %v4631 = vpack.c.b16 %v4325, %v4323
    %v4632 = vpack.c.b16 %v4328, %v4326
    %v4633 = vpack.c.b16 %v4329, %v4327
    %v4634 = vpack.c.b16 %v4332, %v4330
    %v4635 = vpack.c.b16 %v4333, %v4331
    %v4636 = vpack.c.b16 %v4336, %v4334
    %v4637 = vpack.c.b16 %v4337, %v4335
    %v4638 = vpack.c.b16 %v4340, %v4338
    %v4639 = vpack.c.b16 %v4341, %v4339
    %v4640 = vpack.c.b16 %v4344, %v4342
    %v4641 = vpack.c.b16 %v4345, %v4343
    %v4642 = vpack.c.b16 %v4348, %v4346
    %v4643 = vpack.c.b16 %v4349, %v4347
    %v4644 = vpack.c.b16 %v4352, %v4350
    %v4645 = vpack.c.b16 %v4353, %v4351
    %v4646 = vpack.c.b16 %v4356, %v4354
    %v4647 = vpack.c.b16 %v4357, %v4355
    %v4648 = vpack.c.b16 %v4360, %v4358
    %v4649 = vpack.c.b16 %v4361, %v4359
    %4938 = vmatprep.subr.bf16.mxu0 %v4363
    %4939 = vmatpush1.bf16.msra.mxu0 %v4362
    %4940 = vmatprep.subr.bf16.mxu0 %v4365
    %4941 = vmatpush1.bf16.msra.mxu0 %v4364
    %4942 = vmatprep.subr.bf16.mxu0 %v4367
    %4943 = vmatpush1.bf16.msra.mxu0 %v4366
    %4944 = vmatprep.subr.bf16.mxu0 %v4369
    %4945 = vmatpush1.bf16.msra.mxu0 %v4368
    %4946 = vmatprep.subr.bf16.mxu0 %v4371
    %4947 = vmatpush1.bf16.msra.mxu0 %v4370
    %4948 = vmatprep.subr.bf16.mxu0 %v4373
    %4949 = vmatpush1.bf16.msra.mxu0 %v4372
    %4950 = vmatprep.subr.bf16.mxu0 %v4375
    %4951 = vmatpush1.bf16.msra.mxu0 %v4374
    %4952 = vmatprep.subr.bf16.mxu0 %v4377
    %4953 = vmatpush1.bf16.msra.mxu0 %v4376
    %4954 = vmatprep.subr.bf16.mxu0 %v4379
    %4955 = vmatpush1.bf16.msra.mxu0 %v4378
    %4956 = vmatprep.subr.bf16.mxu0 %v4381
    %4957 = vmatpush1.bf16.msra.mxu0 %v4380
    %4958 = vmatprep.subr.bf16.mxu0 %v4383
    %4959 = vmatpush1.bf16.msra.mxu0 %v4382
    %4960 = vmatprep.subr.bf16.mxu0 %v4385
    %4961 = vmatpush1.bf16.msra.mxu0 %v4384
    %4962 = vmatprep.subr.bf16.mxu0 %v4387
    %4963 = vmatpush1.bf16.msra.mxu0 %v4386
    %4964 = vmatprep.subr.bf16.mxu0 %v4389
    %4965 = vmatpush1.bf16.msra.mxu0 %v4388
    %4966 = vmatprep.subr.bf16.mxu0 %v4391
    %4967 = vmatpush1.bf16.msra.mxu0 %v4390
    %4968 = vmatprep.subr.bf16.mxu0 %v4393
    %4969 = vmatpush1.bf16.msra.mxu0 %v4392
    %4970 = vmatprep.mubr.bf16.mxu0 %v3181
    %4971 = vmatmul.mubr.bf16.gmra.mrb[0].mxu0 %v3180
    %v4972 = vpop.f32.mrb[0].mxu0
    %v4973 = vadd.f32 %v3491, %v4972
    %v4974 = vpop.f32.mrb[0].mxu0
    %v4975 = vadd.f32 %v3495, %v4974
    %v4976 = vpop.f32.mrb[0].mxu0
    %v4977 = vpop.f32.mrb[0].mxu0
    %4978 = vdwg.mxu0
    %4979 = vmatprep.subr.bf16.mxu0 %v4395
    %4980 = vmatpush1.bf16.msra.mxu0 %v4394
    %4981 = vmatprep.subr.bf16.mxu0 %v4397
    %4982 = vmatpush1.bf16.msra.mxu0 %v4396
    %4983 = vmatprep.subr.bf16.mxu0 %v4399
    %4984 = vmatpush1.bf16.msra.mxu0 %v4398
    %4985 = vmatprep.subr.bf16.mxu0 %v4401
    %4986 = vmatpush1.bf16.msra.mxu0 %v4400
    %4987 = vmatprep.subr.bf16.mxu0 %v4403
    %4988 = vmatpush1.bf16.msra.mxu0 %v4402
    %4989 = vmatprep.subr.bf16.mxu0 %v4405
    %4990 = vmatpush1.bf16.msra.mxu0 %v4404
    %4991 = vmatprep.subr.bf16.mxu0 %v4407
    %4992 = vmatpush1.bf16.msra.mxu0 %v4406
    %4993 = vmatprep.subr.bf16.mxu0 %v4409
    %4994 = vmatpush1.bf16.msra.mxu0 %v4408
    %4995 = vmatprep.subr.bf16.mxu0 %v4411
    %4996 = vmatpush1.bf16.msra.mxu0 %v4410
    %4997 = vmatprep.subr.bf16.mxu0 %v4413
    %4998 = vmatpush1.bf16.msra.mxu0 %v4412
    %4999 = vmatprep.subr.bf16.mxu0 %v4415
    %5000 = vmatpush1.bf16.msra.mxu0 %v4414
    %5001 = vmatprep.subr.bf16.mxu0 %v4417
    %5002 = vmatpush1.bf16.msra.mxu0 %v4416
    %5003 = vmatprep.subr.bf16.mxu0 %v4419
    %5004 = vmatpush1.bf16.msra.mxu0 %v4418
    %5005 = vmatprep.subr.bf16.mxu0 %v4421
    %5006 = vmatpush1.bf16.msra.mxu0 %v4420
    %5007 = vmatprep.subr.bf16.mxu0 %v4423
    %5008 = vmatpush1.bf16.msra.mxu0 %v4422
    %5009 = vmatprep.subr.bf16.mxu0 %v4425
    %5010 = vmatpush1.bf16.msra.mxu0 %v4424
    %5011 = vmatprep.mubr.bf16.mxu0 %v3183
    %5012 = vmatmul.mubr.bf16.gmra.mrb[0].mxu0 %v3182
    %v5013 = vpop.f32.mrb[0].mxu0
    %v5014 = vadd.f32 %v4973, %v5013
    %v5015 = vpop.f32.mrb[0].mxu0
    %v5016 = vadd.f32 %v4975, %v5015
    %v5017 = vpop.f32.mrb[0].mxu0
    %v5018 = vpop.f32.mrb[0].mxu0
    %5019 = vdwg.mxu0
    %5020 = vmatprep.subr.bf16.mxu0 %v4427
    %5021 = vmatpush1.bf16.msra.mxu0 %v4426
    %5022 = vmatprep.subr.bf16.mxu0 %v4429
    %5023 = vmatpush1.bf16.msra.mxu0 %v4428
    %5024 = vmatprep.subr.bf16.mxu0 %v4431
    %5025 = vmatpush1.bf16.msra.mxu0 %v4430
    %5026 = vmatprep.subr.bf16.mxu0 %v4433
    %5027 = vmatpush1.bf16.msra.mxu0 %v4432
    %5028 = vmatprep.subr.bf16.mxu0 %v4435
    %5029 = vmatpush1.bf16.msra.mxu0 %v4434
    %5030 = vmatprep.subr.bf16.mxu0 %v4437
    %5031 = vmatpush1.bf16.msra.mxu0 %v4436
    %5032 = vmatprep.subr.bf16.mxu0 %v4439
    %5033 = vmatpush1.bf16.msra.mxu0 %v4438
    %5034 = vmatprep.subr.bf16.mxu0 %v4441
    %5035 = vmatpush1.bf16.msra.mxu0 %v4440
    %5036 = vmatprep.subr.bf16.mxu0 %v4443
    %5037 = vmatpush1.bf16.msra.mxu0 %v4442
    %5038 = vmatprep.subr.bf16.mxu0 %v4445
    %5039 = vmatpush1.bf16.msra.mxu0 %v4444
    %5040 = vmatprep.subr.bf16.mxu0 %v4447
    %5041 = vmatpush1.bf16.msra.mxu0 %v4446
    %5042 = vmatprep.subr.bf16.mxu0 %v4449
    %5043 = vmatpush1.bf16.msra.mxu0 %v4448
    %5044 = vmatprep.subr.bf16.mxu0 %v4451
    %5045 = vmatpush1.bf16.msra.mxu0 %v4450
    %5046 = vmatprep.subr.bf16.mxu0 %v4453
    %5047 = vmatpush1.bf16.msra.mxu0 %v4452
    %5048 = vmatprep.subr.bf16.mxu0 %v4455
    %5049 = vmatpush1.bf16.msra.mxu0 %v4454
    %5050 = vmatprep.subr.bf16.mxu0 %v4457
    %5051 = vmatpush1.bf16.msra.mxu0 %v4456
    %5052 = vmatprep.mubr.bf16.mxu0 %v3185
    %5053 = vmatmul.mubr.bf16.gmra.mrb[0].mxu0 %v3184
    %v5054 = vpop.f32.mrb[0].mxu0
    %v5055 = vadd.f32 %v5014, %v5054
    %v5056 = vpop.f32.mrb[0].mxu0
    %v5057 = vadd.f32 %v5016, %v5056
    %v5058 = vpop.f32.mrb[0].mxu0
    %v5059 = vpop.f32.mrb[0].mxu0
    %5060 = vdwg.mxu0
    %5061 = vmatprep.subr.bf16.mxu0 %v4459
    %5062 = vmatpush1.bf16.msra.mxu0 %v4458
    %5063 = vmatprep.subr.bf16.mxu0 %v4461
    %5064 = vmatpush1.bf16.msra.mxu0 %v4460
    %5065 = vmatprep.subr.bf16.mxu0 %v4463
    %5066 = vmatpush1.bf16.msra.mxu0 %v4462
    %5067 = vmatprep.subr.bf16.mxu0 %v4465
    %5068 = vmatpush1.bf16.msra.mxu0 %v4464
    %5069 = vmatprep.subr.bf16.mxu0 %v4467
    %5070 = vmatpush1.bf16.msra.mxu0 %v4466
    %5071 = vmatprep.subr.bf16.mxu0 %v4469
    %5072 = vmatpush1.bf16.msra.mxu0 %v4468
    %5073 = vmatprep.subr.bf16.mxu0 %v4471
    %5074 = vmatpush1.bf16.msra.mxu0 %v4470
    %5075 = vmatprep.subr.bf16.mxu0 %v4473
    %5076 = vmatpush1.bf16.msra.mxu0 %v4472
    %5077 = vmatprep.subr.bf16.mxu0 %v4475
    %5078 = vmatpush1.bf16.msra.mxu0 %v4474
    %5079 = vmatprep.subr.bf16.mxu0 %v4477
    %5080 = vmatpush1.bf16.msra.mxu0 %v4476
    %5081 = vmatprep.subr.bf16.mxu0 %v4479
    %5082 = vmatpush1.bf16.msra.mxu0 %v4478
    %5083 = vmatprep.subr.bf16.mxu0 %v4481
    %5084 = vmatpush1.bf16.msra.mxu0 %v4480
    %5085 = vmatprep.subr.bf16.mxu0 %v4483
    %5086 = vmatpush1.bf16.msra.mxu0 %v4482
    %5087 = vmatprep.subr.bf16.mxu0 %v4485
    %5088 = vmatpush1.bf16.msra.mxu0 %v4484
    %5089 = vmatprep.subr.bf16.mxu0 %v4487
    %5090 = vmatpush1.bf16.msra.mxu0 %v4486
    %5091 = vmatprep.subr.bf16.mxu0 %v4489
    %5092 = vmatpush1.bf16.msra.mxu0 %v4488
    %5093 = vmatprep.mubr.bf16.mxu0 %v3187
    %5094 = vmatmul.mubr.bf16.gmra.mrb[0].mxu0 %v3186
    %v5095 = vpop.f32.mrb[0].mxu0
    %v5096 = vadd.f32 %v5055, %v5095
    %v5097 = vpop.f32.mrb[0].mxu0
    %v5098 = vadd.f32 %v5057, %v5097
    %v5099 = vpop.f32.mrb[0].mxu0
    %v5100 = vpop.f32.mrb[0].mxu0
    %5101 = vdwg.mxu0
    %5102 = vmatprep.subr.bf16.mxu0 %v4491
    %5103 = vmatpush1.bf16.msra.mxu0 %v4490
    %5104 = vmatprep.subr.bf16.mxu0 %v4493
    %5105 = vmatpush1.bf16.msra.mxu0 %v4492
    %5106 = vmatprep.subr.bf16.mxu0 %v4495
    %5107 = vmatpush1.bf16.msra.mxu0 %v4494
    %5108 = vmatprep.subr.bf16.mxu0 %v4497
    %5109 = vmatpush1.bf16.msra.mxu0 %v4496
    %5110 = vmatprep.subr.bf16.mxu0 %v4499
    %5111 = vmatpush1.bf16.msra.mxu0 %v4498
    %5112 = vmatprep.subr.bf16.mxu0 %v4501
    %5113 = vmatpush1.bf16.msra.mxu0 %v4500
    %5114 = vmatprep.subr.bf16.mxu0 %v4503
    %5115 = vmatpush1.bf16.msra.mxu0 %v4502
    %5116 = vmatprep.subr.bf16.mxu0 %v4505
    %5117 = vmatpush1.bf16.msra.mxu0 %v4504
    %5118 = vmatprep.subr.bf16.mxu0 %v4507
    %5119 = vmatpush1.bf16.msra.mxu0 %v4506
    %5120 = vmatprep.subr.bf16.mxu0 %v4509
    %5121 = vmatpush1.bf16.msra.mxu0 %v4508
    %5122 = vmatprep.subr.bf16.mxu0 %v4511
    %5123 = vmatpush1.bf16.msra.mxu0 %v4510
    %5124 = vmatprep.subr.bf16.mxu0 %v4513
    %5125 = vmatpush1.bf16.msra.mxu0 %v4512
    %5126 = vmatprep.subr.bf16.mxu0 %v4515
    %5127 = vmatpush1.bf16.msra.mxu0 %v4514
    %5128 = vmatprep.subr.bf16.mxu0 %v4517
    %5129 = vmatpush1.bf16.msra.mxu0 %v4516
    %5130 = vmatprep.subr.bf16.mxu0 %v4519
    %5131 = vmatpush1.bf16.msra.mxu0 %v4518
    %5132 = vmatprep.subr.bf16.mxu0 %v4521
    %5133 = vmatpush1.bf16.msra.mxu0 %v4520
    %5134 = vmatprep.mubr.bf16.mxu0 %v3189
    %5135 = vmatmul.mubr.bf16.gmra.mrb[0].mxu0 %v3188
    %v5136 = vpop.f32.mrb[0].mxu0
    %v5137 = vadd.f32 %v5096, %v5136
    %v5138 = vpop.f32.mrb[0].mxu0
    %v5139 = vadd.f32 %v5098, %v5138
    %v5140 = vpop.f32.mrb[0].mxu0
    %v5141 = vpop.f32.mrb[0].mxu0
    %5142 = vdwg.mxu0
    %5143 = vmatprep.subr.bf16.mxu0 %v4523
    %5144 = vmatpush1.bf16.msra.mxu0 %v4522
    %5145 = vmatprep.subr.bf16.mxu0 %v4525
    %5146 = vmatpush1.bf16.msra.mxu0 %v4524
    %5147 = vmatprep.subr.bf16.mxu0 %v4527
    %5148 = vmatpush1.bf16.msra.mxu0 %v4526
    %5149 = vmatprep.subr.bf16.mxu0 %v4529
    %5150 = vmatpush1.bf16.msra.mxu0 %v4528
    %5151 = vmatprep.subr.bf16.mxu0 %v4531
    %5152 = vmatpush1.bf16.msra.mxu0 %v4530
    %5153 = vmatprep.subr.bf16.mxu0 %v4533
    %5154 = vmatpush1.bf16.msra.mxu0 %v4532
    %5155 = vmatprep.subr.bf16.mxu0 %v4535
    %5156 = vmatpush1.bf16.msra.mxu0 %v4534
    %5157 = vmatprep.subr.bf16.mxu0 %v4537
    %5158 = vmatpush1.bf16.msra.mxu0 %v4536
    %5159 = vmatprep.subr.bf16.mxu0 %v4539
    %5160 = vmatpush1.bf16.msra.mxu0 %v4538
    %5161 = vmatprep.subr.bf16.mxu0 %v4541
    %5162 = vmatpush1.bf16.msra.mxu0 %v4540
    %5163 = vmatprep.subr.bf16.mxu0 %v4543
    %5164 = vmatpush1.bf16.msra.mxu0 %v4542
    %5165 = vmatprep.subr.bf16.mxu0 %v4545
    %5166 = vmatpush1.bf16.msra.mxu0 %v4544
    %5167 = vmatprep.subr.bf16.mxu0 %v4547
    %5168 = vmatpush1.bf16.msra.mxu0 %v4546
    %5169 = vmatprep.subr.bf16.mxu0 %v4549
    %5170 = vmatpush1.bf16.msra.mxu0 %v4548
    %5171 = vmatprep.subr.bf16.mxu0 %v4551
    %5172 = vmatpush1.bf16.msra.mxu0 %v4550
    %5173 = vmatprep.subr.bf16.mxu0 %v4553
    %5174 = vmatpush1.bf16.msra.mxu0 %v4552
    %5175 = vmatprep.mubr.bf16.mxu0 %v3191
    %5176 = vmatmul.mubr.bf16.gmra.mrb[0].mxu0 %v3190
    %v5177 = vpop.f32.mrb[0].mxu0
    %v5178 = vadd.f32 %v5137, %v5177
    %v5179 = vpop.f32.mrb[0].mxu0
    %v5180 = vadd.f32 %v5139, %v5179
    %v5181 = vpop.f32.mrb[0].mxu0
    %v5182 = vpop.f32.mrb[0].mxu0
    %5183 = vdwg.mxu0
    %5184 = vmatprep.subr.bf16.mxu0 %v4555
    %5185 = vmatpush1.bf16.msra.mxu0 %v4554
    %5186 = vmatprep.subr.bf16.mxu0 %v4557
    %5187 = vmatpush1.bf16.msra.mxu0 %v4556
    %5188 = vmatprep.subr.bf16.mxu0 %v4559
    %5189 = vmatpush1.bf16.msra.mxu0 %v4558
    %5190 = vmatprep.subr.bf16.mxu0 %v4561
    %5191 = vmatpush1.bf16.msra.mxu0 %v4560
    %5192 = vmatprep.subr.bf16.mxu0 %v4563
    %5193 = vmatpush1.bf16.msra.mxu0 %v4562
    %5194 = vmatprep.subr.bf16.mxu0 %v4565
    %5195 = vmatpush1.bf16.msra.mxu0 %v4564
    %5196 = vmatprep.subr.bf16.mxu0 %v4567
    %5197 = vmatpush1.bf16.msra.mxu0 %v4566
    %5198 = vmatprep.subr.bf16.mxu0 %v4569
    %5199 = vmatpush1.bf16.msra.mxu0 %v4568
    %5200 = vmatprep.subr.bf16.mxu0 %v4571
    %5201 = vmatpush1.bf16.msra.mxu0 %v4570
    %5202 = vmatprep.subr.bf16.mxu0 %v4573
    %5203 = vmatpush1.bf16.msra.mxu0 %v4572
    %5204 = vmatprep.subr.bf16.mxu0 %v4575
    %5205 = vmatpush1.bf16.msra.mxu0 %v4574
    %5206 = vmatprep.subr.bf16.mxu0 %v4577
    %5207 = vmatpush1.bf16.msra.mxu0 %v4576
    %5208 = vmatprep.subr.bf16.mxu0 %v4579
    %5209 = vmatpush1.bf16.msra.mxu0 %v4578
    %5210 = vmatprep.subr.bf16.mxu0 %v4581
    %5211 = vmatpush1.bf16.msra.mxu0 %v4580
    %5212 = vmatprep.subr.bf16.mxu0 %v4583
    %5213 = vmatpush1.bf16.msra.mxu0 %v4582
    %5214 = vmatprep.subr.bf16.mxu0 %v4585
    %5215 = vmatpush1.bf16.msra.mxu0 %v4584
    %5216 = vmatprep.mubr.bf16.mxu0 %v3193
    %5217 = vmatmul.mubr.bf16.gmra.mrb[0].mxu0 %v3192
    %v5218 = vpop.f32.mrb[0].mxu0
    %v5219 = vadd.f32 %v5178, %v5218
    %v5220 = vpop.f32.mrb[0].mxu0
    %v5221 = vadd.f32 %v5180, %v5220
    %v5222 = vpop.f32.mrb[0].mxu0
    %v5223 = vpop.f32.mrb[0].mxu0
    %5224 = vdwg.mxu0
    %5225 = vmatprep.subr.bf16.mxu0 %v4587
    %5226 = vmatpush1.bf16.msra.mxu0 %v4586
    %5227 = vmatprep.subr.bf16.mxu0 %v4589
    %5228 = vmatpush1.bf16.msra.mxu0 %v4588
    %5229 = vmatprep.subr.bf16.mxu0 %v4591
    %5230 = vmatpush1.bf16.msra.mxu0 %v4590
    %5231 = vmatprep.subr.bf16.mxu0 %v4593
    %5232 = vmatpush1.bf16.msra.mxu0 %v4592
    %5233 = vmatprep.subr.bf16.mxu0 %v4595
    %5234 = vmatpush1.bf16.msra.mxu0 %v4594
    %5235 = vmatprep.subr.bf16.mxu0 %v4597
    %5236 = vmatpush1.bf16.msra.mxu0 %v4596
    %5237 = vmatprep.subr.bf16.mxu0 %v4599
    %5238 = vmatpush1.bf16.msra.mxu0 %v4598
    %5239 = vmatprep.subr.bf16.mxu0 %v4601
    %5240 = vmatpush1.bf16.msra.mxu0 %v4600
    %5241 = vmatprep.subr.bf16.mxu0 %v4603
    %5242 = vmatpush1.bf16.msra.mxu0 %v4602
    %5243 = vmatprep.subr.bf16.mxu0 %v4605
    %5244 = vmatpush1.bf16.msra.mxu0 %v4604
    %5245 = vmatprep.subr.bf16.mxu0 %v4607
    %5246 = vmatpush1.bf16.msra.mxu0 %v4606
    %5247 = vmatprep.subr.bf16.mxu0 %v4609
    %5248 = vmatpush1.bf16.msra.mxu0 %v4608
    %5249 = vmatprep.subr.bf16.mxu0 %v4611
    %5250 = vmatpush1.bf16.msra.mxu0 %v4610
    %5251 = vmatprep.subr.bf16.mxu0 %v4613
    %5252 = vmatpush1.bf16.msra.mxu0 %v4612
    %5253 = vmatprep.subr.bf16.mxu0 %v4615
    %5254 = vmatpush1.bf16.msra.mxu0 %v4614
    %5255 = vmatprep.subr.bf16.mxu0 %v4617
    %5256 = vmatpush1.bf16.msra.mxu0 %v4616
    %5257 = vmatprep.mubr.bf16.mxu0 %v3195
    %5258 = vmatmul.mubr.bf16.gmra.mrb[0].mxu0 %v3194
    %v5259 = vpop.f32.mrb[0].mxu0
    %v5260 = vadd.f32 %v5219, %v5259
    %v5261 = vpop.f32.mrb[0].mxu0
    %v5262 = vadd.f32 %v5221, %v5261
    %v5263 = vpop.f32.mrb[0].mxu0
    %v5264 = vpop.f32.mrb[0].mxu0
    %5265 = vdwg.mxu0
    %5266 = vmatprep.subr.bf16.mxu0 %v4619
    %5267 = vmatpush1.bf16.msra.mxu0 %v4618
    %5268 = vmatprep.subr.bf16.mxu0 %v4621
    %5269 = vmatpush1.bf16.msra.mxu0 %v4620
    %5270 = vmatprep.subr.bf16.mxu0 %v4623
    %5271 = vmatpush1.bf16.msra.mxu0 %v4622
    %5272 = vmatprep.subr.bf16.mxu0 %v4625
    %5273 = vmatpush1.bf16.msra.mxu0 %v4624
    %5274 = vmatprep.subr.bf16.mxu0 %v4627
    %5275 = vmatpush1.bf16.msra.mxu0 %v4626
    %5276 = vmatprep.subr.bf16.mxu0 %v4629
    %5277 = vmatpush1.bf16.msra.mxu0 %v4628
    %5278 = vmatprep.subr.bf16.mxu0 %v4631
    %5279 = vmatpush1.bf16.msra.mxu0 %v4630
    %5280 = vmatprep.subr.bf16.mxu0 %v4633
    %5281 = vmatpush1.bf16.msra.mxu0 %v4632
    %5282 = vmatprep.subr.bf16.mxu0 %v4635
    %5283 = vmatpush1.bf16.msra.mxu0 %v4634
    %5284 = vmatprep.subr.bf16.mxu0 %v4637
    %5285 = vmatpush1.bf16.msra.mxu0 %v4636
    %5286 = vmatprep.subr.bf16.mxu0 %v4639
    %5287 = vmatpush1.bf16.msra.mxu0 %v4638
    %5288 = vmatprep.subr.bf16.mxu0 %v4641
    %5289 = vmatpush1.bf16.msra.mxu0 %v4640
    %5290 = vmatprep.subr.bf16.mxu0 %v4643
    %5291 = vmatpush1.bf16.msra.mxu0 %v4642
    %5292 = vmatprep.subr.bf16.mxu0 %v4645
    %5293 = vmatpush1.bf16.msra.mxu0 %v4644
    %5294 = vmatprep.subr.bf16.mxu0 %v4647
    %5295 = vmatpush1.bf16.msra.mxu0 %v4646
    %5296 = vmatprep.subr.bf16.mxu0 %v4649
    %5297 = vmatpush1.bf16.msra.mxu0 %v4648
    %5298 = vmatprep.mubr.bf16.mxu0 %v3197
    %5299 = vmatmul.mubr.bf16.gmra.mrb[0].mxu0 %v3196
    %v5300 = vpop.f32.mrb[0].mxu0
    %v5301 = vadd.f32 %v5260, %v5300
    %v5302 = vpop.f32.mrb[0].mxu0
    %v5303 = vadd.f32 %v5262, %v5302
    %v5304 = vpop.f32.mrb[0].mxu0
    %v5305 = vpop.f32.mrb[0].mxu0
    %5306 = vdwg.mxu0
    %vm5307 = vcmp.gt.f32.partialorder %v5301, 0.0
    %vm5308 = vcmp.gt.f32.partialorder %v5303, 0.0
    %v5309 = vmul.f32 %v5301, 0.2
    %v5310 = vmul.f32 %v5303, 0.2
    %v5311 = vsel %vm5307, %v5301, %v5309
    %v5312 = vsel %vm5308, %v5303, %v5310
    %v5313 = vpack.c.bf16 %v5311, %v5311
    %v5314 = vpack.c.bf16 %v5312, %v5312
    %v5315 = vld [vmem:[%s15] sm:$0xf]
    %v5316 = vld [vmem:[%s15 + $0x4] sm:$0xf]
    %v5317 = vld [vmem:[%s15 + $0x8] sm:$0xf]
    %v5318 = vld [vmem:[%s15 + $0xc] sm:$0xf]
    %v5319 = vld [vmem:[%s15 + $0x10] sm:$0xf]
    %v5320 = vld [vmem:[%s15 + $0x14] sm:$0xf]
    %v5321 = vld [vmem:[%s15 + $0x18] sm:$0xf]
    %v5322 = vld [vmem:[%s15 + $0x1c] sm:$0xf]
    %v5323 = vld [vmem:[%s15 + $0x20] sm:$0xf]
    %v5324 = vld [vmem:[%s15 + $0x24] sm:$0xf]
    %v5325 = vld [vmem:[%s15 + $0x28] sm:$0xf]
    %v5326 = vld [vmem:[%s15 + $0x2c] sm:$0xf]
    %v5327 = vld [vmem:[%s15 + $0x30] sm:$0xf]
    %v5328 = vld [vmem:[%s15 + $0x34] sm:$0xf]
    %v5329 = vld [vmem:[%s15 + $0x38] sm:$0xf]
    %v5330 = vld [vmem:[%s15 + $0x3c] sm:$0xf]
    %v5331 = vld [vmem:[%s15 + $0x40] sm:$0xf]
    %v5332 = vld [vmem:[%s15 + $0x44] sm:$0xf]
    %v5333 = vld [vmem:[%s15 + $0x48] sm:$0xf]
    %v5334 = vld [vmem:[%s15 + $0x4c] sm:$0xf]
    %v5335 = vld [vmem:[%s15 + $0x50] sm:$0xf]
    %v5336 = vld [vmem:[%s15 + $0x54] sm:$0xf]
    %v5337 = vld [vmem:[%s15 + $0x58] sm:$0xf]
    %v5338 = vld [vmem:[%s15 + $0x5c] sm:$0xf]
    %v5339 = vld [vmem:[%s15 + $0x60] sm:$0xf]
    %v5340 = vld [vmem:[%s15 + $0x64] sm:$0xf]
    %v5341 = vld [vmem:[%s15 + $0x68] sm:$0xf]
    %v5342 = vld [vmem:[%s15 + $0x6c] sm:$0xf]
    %v5343 = vld [vmem:[%s15 + $0x70] sm:$0xf]
    %v5344 = vld [vmem:[%s15 + $0x74] sm:$0xf]
    %v5345 = vld [vmem:[%s15 + $0x78] sm:$0xf]
    %v5346 = vld [vmem:[%s15 + $0x7c] sm:$0xf]
    %v5347 = vld [vmem:[#allocation29] sm:$0x1]
    %v5349 = vlaneseq
    %v5350 = vshrl.u32 %v5349, 7
    %v5351 = vsub.s32 0, %v5350
    %v5352 = vrot.slane %v5347, %v5351
    %v5386 = vunpack.c.l.b16 %v5315
    %v5387 = vunpack.c.l.b16 %v5316
    %v5388 = vunpack.c.l.b16 %v5317
    %v5389 = vunpack.c.l.b16 %v5318
    %v5390 = vunpack.c.l.b16 %v5319
    %v5391 = vunpack.c.l.b16 %v5320
    %v5392 = vunpack.c.l.b16 %v5321
    %v5393 = vunpack.c.l.b16 %v5322
    %v5394 = vunpack.c.l.b16 %v5323
    %v5395 = vunpack.c.l.b16 %v5324
    %v5396 = vunpack.c.l.b16 %v5325
    %v5397 = vunpack.c.l.b16 %v5326
    %v5398 = vunpack.c.l.b16 %v5327
    %v5399 = vunpack.c.l.b16 %v5328
    %v5400 = vunpack.c.l.b16 %v5329
    %v5401 = vunpack.c.l.b16 %v5330
    %v5402 = vunpack.c.l.b16 %v5331
    %v5403 = vunpack.c.l.b16 %v5332
    %v5404 = vunpack.c.l.b16 %v5333
    %v5405 = vunpack.c.l.b16 %v5334
    %v5406 = vunpack.c.l.b16 %v5335
    %v5407 = vunpack.c.l.b16 %v5336
    %v5408 = vunpack.c.l.b16 %v5337
    %v5409 = vunpack.c.l.b16 %v5338
    %v5410 = vunpack.c.l.b16 %v5339
    %v5411 = vunpack.c.l.b16 %v5340
    %v5412 = vunpack.c.l.b16 %v5341
    %v5413 = vunpack.c.l.b16 %v5342
    %v5414 = vunpack.c.l.b16 %v5343
    %v5415 = vunpack.c.l.b16 %v5344
    %v5416 = vunpack.c.l.b16 %v5345
    %v5417 = vunpack.c.l.b16 %v5346
    %v5418 = vpack.c.b16 %v5387, %v5386
    %v5419 = vpack.c.b16 %v5389, %v5388
    %v5420 = vpack.c.b16 %v5391, %v5390
    %v5421 = vpack.c.b16 %v5393, %v5392
    %v5422 = vpack.c.b16 %v5395, %v5394
    %v5423 = vpack.c.b16 %v5397, %v5396
    %v5424 = vpack.c.b16 %v5399, %v5398
    %v5425 = vpack.c.b16 %v5401, %v5400
    %v5426 = vpack.c.b16 %v5403, %v5402
    %v5427 = vpack.c.b16 %v5405, %v5404
    %v5428 = vpack.c.b16 %v5407, %v5406
    %v5429 = vpack.c.b16 %v5409, %v5408
    %v5430 = vpack.c.b16 %v5411, %v5410
    %v5431 = vpack.c.b16 %v5413, %v5412
    %v5432 = vpack.c.b16 %v5415, %v5414
    %v5433 = vpack.c.b16 %v5417, %v5416
    %5450 = vmatprep.subr.bf16.mxu0 0
    %5451 = vmatpush1.bf16.msra.mxu0 %v5418
    %5452 = vmatprep.subr.bf16.mxu0 0
    %5453 = vmatpush1.bf16.msra.mxu0 %v5419
    %5454 = vmatprep.subr.bf16.mxu0 0
    %5455 = vmatpush1.bf16.msra.mxu0 %v5420
    %5456 = vmatprep.subr.bf16.mxu0 0
    %5457 = vmatpush1.bf16.msra.mxu0 %v5421
    %5458 = vmatprep.subr.bf16.mxu0 0
    %5459 = vmatpush1.bf16.msra.mxu0 %v5422
    %5460 = vmatprep.subr.bf16.mxu0 0
    %5461 = vmatpush1.bf16.msra.mxu0 %v5423
    %5462 = vmatprep.subr.bf16.mxu0 0
    %5463 = vmatpush1.bf16.msra.mxu0 %v5424
    %5464 = vmatprep.subr.bf16.mxu0 0
    %5465 = vmatpush1.bf16.msra.mxu0 %v5425
    %5466 = vmatprep.subr.bf16.mxu0 0
    %5467 = vmatpush1.bf16.msra.mxu0 %v5426
    %5468 = vmatprep.subr.bf16.mxu0 0
    %5469 = vmatpush1.bf16.msra.mxu0 %v5427
    %5470 = vmatprep.subr.bf16.mxu0 0
    %5471 = vmatpush1.bf16.msra.mxu0 %v5428
    %5472 = vmatprep.subr.bf16.mxu0 0
    %5473 = vmatpush1.bf16.msra.mxu0 %v5429
    %5474 = vmatprep.subr.bf16.mxu0 0
    %5475 = vmatpush1.bf16.msra.mxu0 %v5430
    %5476 = vmatprep.subr.bf16.mxu0 0
    %5477 = vmatpush1.bf16.msra.mxu0 %v5431
    %5478 = vmatprep.subr.bf16.mxu0 0
    %5479 = vmatpush1.bf16.msra.mxu0 %v5432
    %5480 = vmatprep.subr.bf16.mxu0 0
    %5481 = vmatpush1.bf16.msra.mxu0 %v5433
    %5482 = vmatprep.mubr.bf16.mxu0 %v5314
    %5483 = vmatmul.mubr.bf16.gmra.mrb[0].mxu0 %v5313
    %v5484 = vpop.f32.mrb[0].mxu0
    %v5485 = vadd.f32 %v5352, %v5484
    %v5486 = vpop.f32.mrb[0].mxu0
    %v5487 = vpop.f32.mrb[0].mxu0
    %v5488 = vpop.f32.mrb[0].mxu0
    %5489 = vdwg.mxu0
    %vm5490 = vcmp.gt.f32.partialorder %v5485, 0.0
    %v5491 = vmul.f32 %v5485, 0.2
    %v5492 = vsel %vm5490, %v5485, %v5491
    %v5493 = vpack.c.bf16 %v5492, %v5492
    %v5494 = vld [vmem:[#allocation30] sm:$0xf]
    %v5495 = vld [vmem:[#allocation30 + $0x4] sm:$0xf]
    %v5496 = vld [vmem:[#allocation30 + $0x8] sm:$0xf]
    %v5497 = vld [vmem:[#allocation30 + $0xc] sm:$0xf]
    %v5498 = vld [vmem:[#allocation32] sm:$0x1]
    %v5500 = vlaneseq
    %v5501 = vshrl.u32 %v5500, 7
    %v5502 = vsub.s32 0, %v5501
    %v5503 = vrot.slane %v5498, %v5502
    %v5509 = vunpack.c.l.b16 %v5494
    %v5510 = vunpack.c.l.b16 %v5495
    %v5511 = vunpack.c.l.b16 %v5496
    %v5512 = vunpack.c.l.b16 %v5497
    %v5513 = vpack.c.b16 %v5510, %v5509
    %v5514 = vpack.c.b16 %v5512, %v5511
    %vm5517 = vcmask 261120
    %v5519 = vsel %vm5517, %v5493, 0
    %5521 = vmatprep.subr.bf16.mxu0 0
    %5522 = vmatpush1.bf16.msra.mxu0 %v5513
    %5523 = vmatprep.subr.bf16.mxu0 0
    %5524 = vmatpush1.bf16.msra.mxu0 %v5514
    %5525 = vmatprep.subr.bf16.mxu0 0
    %5526 = vmatpush1.bf16.msra.mxu0 0
    %5527 = vmatprep.subr.bf16.mxu0 0
    %5528 = vmatpush1.bf16.msra.mxu0 0
    %5529 = vmatprep.subr.bf16.mxu0 0
    %5530 = vmatpush1.bf16.msra.mxu0 0
    %5531 = vmatprep.subr.bf16.mxu0 0
    %5532 = vmatpush1.bf16.msra.mxu0 0
    %5533 = vmatprep.subr.bf16.mxu0 0
    %5534 = vmatpush1.bf16.msra.mxu0 0
    %5535 = vmatprep.subr.bf16.mxu0 0
    %5536 = vmatpush1.bf16.msra.mxu0 0
    %5537 = vmatprep.subr.bf16.mxu0 0
    %5538 = vmatpush1.bf16.msra.mxu0 0
    %5539 = vmatprep.subr.bf16.mxu0 0
    %5540 = vmatpush1.bf16.msra.mxu0 0
    %5541 = vmatprep.subr.bf16.mxu0 0
    %5542 = vmatpush1.bf16.msra.mxu0 0
    %5543 = vmatprep.subr.bf16.mxu0 0
    %5544 = vmatpush1.bf16.msra.mxu0 0
    %5545 = vmatprep.subr.bf16.mxu0 0
    %5546 = vmatpush1.bf16.msra.mxu0 0
    %5547 = vmatprep.subr.bf16.mxu0 0
    %5548 = vmatpush1.bf16.msra.mxu0 0
    %5549 = vmatprep.subr.bf16.mxu0 0
    %5550 = vmatpush1.bf16.msra.mxu0 0
    %5551 = vmatprep.subr.bf16.mxu0 0
    %5552 = vmatpush1.bf16.msra.mxu0 0
    %5553 = vmatprep.mubr.bf16.mxu0 0
    %5554 = vmatmul.mubr.bf16.gmra.mrb[0].mxu0 %v5519
    %v5555 = vpop.f32.mrb[0].mxu0
    %v5556 = vadd.f32 %v5503, %v5555
    %v5557 = vpop.f32.mrb[0].mxu0
    %v5558 = vpop.f32.mrb[0].mxu0
    %v5559 = vpop.f32.mrb[0].mxu0
    %5560 = vdwg.mxu0
    %vm5561 = vcmp.gt.f32.partialorder %v5556, 0.0
    %v5562 = vmul.f32 %v5556, 0.2
    %v5563 = vsel %vm5561, %v5556, %v5562
    %v5564 = vpack.c.bf16 %v5563, %v5563
    %v5565 = vld [vmem:[#allocation33] sm:$0xf]
    %v5566 = vld [vmem:[#allocation33 + $0x4] sm:$0xf]
    %v5567 = vld [vmem:[#allocation33 + $0x8] sm:$0xf]
    %v5568 = vld [vmem:[#allocation33 + $0xc] sm:$0xf]
    %v5569 = vld [vmem:[#allocation35] sm:$0x1]
    %v5571 = vlaneseq
    %v5572 = vshrl.u32 %v5571, 7
    %v5573 = vsub.s32 0, %v5572
    %v5574 = vrot.slane %v5569, %v5573
    %v5580 = vunpack.c.l.b16 %v5565
    %v5581 = vunpack.c.l.b16 %v5566
    %v5582 = vunpack.c.l.b16 %v5567
    %v5583 = vunpack.c.l.b16 %v5568
    %v5584 = vpack.c.b16 %v5581, %v5580
    %v5585 = vpack.c.b16 %v5583, %v5582
    %v5589 = vsel %vm5517, %v5564, 0
    %5591 = vmatprep.subr.bf16.mxu0 0
    %5592 = vmatpush1.bf16.msra.mxu0 %v5584
    %5593 = vmatprep.subr.bf16.mxu0 0
    %5594 = vmatpush1.bf16.msra.mxu0 %v5585
    %5595 = vmatprep.subr.bf16.mxu0 0
    %5596 = vmatpush1.bf16.msra.mxu0 0
    %5597 = vmatprep.subr.bf16.mxu0 0
    %5598 = vmatpush1.bf16.msra.mxu0 0
    %5599 = vmatprep.subr.bf16.mxu0 0
    %5600 = vmatpush1.bf16.msra.mxu0 0
    %5601 = vmatprep.subr.bf16.mxu0 0
    %5602 = vmatpush1.bf16.msra.mxu0 0
    %5603 = vmatprep.subr.bf16.mxu0 0
    %5604 = vmatpush1.bf16.msra.mxu0 0
    %5605 = vmatprep.subr.bf16.mxu0 0
    %5606 = vmatpush1.bf16.msra.mxu0 0
    %5607 = vmatprep.subr.bf16.mxu0 0
    %5608 = vmatpush1.bf16.msra.mxu0 0
    %5609 = vmatprep.subr.bf16.mxu0 0
    %5610 = vmatpush1.bf16.msra.mxu0 0
    %5611 = vmatprep.subr.bf16.mxu0 0
    %5612 = vmatpush1.bf16.msra.mxu0 0
    %5613 = vmatprep.subr.bf16.mxu0 0
    %5614 = vmatpush1.bf16.msra.mxu0 0
    %5615 = vmatprep.subr.bf16.mxu0 0
    %5616 = vmatpush1.bf16.msra.mxu0 0
    %5617 = vmatprep.subr.bf16.mxu0 0
    %5618 = vmatpush1.bf16.msra.mxu0 0
    %5619 = vmatprep.subr.bf16.mxu0 0
    %5620 = vmatpush1.bf16.msra.mxu0 0
    %5621 = vmatprep.subr.bf16.mxu0 0
    %5622 = vmatpush1.bf16.msra.mxu0 0
    %5623 = vmatprep.mubr.bf16.mxu0 0
    %5624 = vmatmul.mubr.bf16.gmra.mrb[0].mxu0 %v5589
    %v5625 = vpop.f32.mrb[0].mxu0
    %v5626 = vadd.f32 %v5574, %v5625
    %v5627 = vpop.f32.mrb[0].mxu0
    %v5628 = vpop.f32.mrb[0].mxu0
    %v5629 = vpop.f32.mrb[0].mxu0
    %5630 = vdwg.mxu0
    %vm5631 = vcmask 254976
    %5632 = vst.msk [vmem:[#allocation36] sm:$0x3] %vm5631, %v5626
    // Predicated region
    $region162: #{_lambda_.1} parent=1 // pred_check
      _
    $region163: #{_lambda_.1} parent=1 // pred_check_branch
      %5634 = sbr.rel (0) target = $region165
    $region164: #{_lambda_.1} parent=1 // pred_region
      %s5636 = ssub.s32 32, 32
      %5637 = vsyncadd [#allocation8], %s5636
      %s5639 = sshll.u32 [#allocation36], 4
      %s5640 = int_to_ptr.vmem [resolvable:$true] %s5639
      %5642 = dma.vmem_to_hbm [thread:$0]  %s5640, 32, %s21, [#allocation8]
    $region165: #{_lambda_.1} parent=1 // pred_fallthru
      _
    // Predicated region
    $region166: #{_lambda_.1} parent=1 // pred_check
      _
    $region167: #{_lambda_.1} parent=1 // pred_check_branch
      %5644 = sbr.rel (0) target = $region169
    $region168: #{_lambda_.1} parent=1 // pred_region
      %5645 = dma.done [#allocation8], 32
    $region169: #{_lambda_.1} parent=1 // pred_fallthru
      _
    %5646 = vsyncpa [#allocation7], 1
    %5647 = vsyncpa [#allocation10], 1
    %5648 = vsyncpa [#allocation13], 1
    %5649 = vsyncpa [#allocation16], 1
    %5650 = vsyncpa [#allocation19], 1
    %5651 = vsyncpa [#allocation22], 1
    %5652 = vsyncpa [#allocation25], 1
    %5653 = vsyncpa [#allocation28], 1
    %5654 = vsyncpa [#allocation31], 1
    %5655 = vsyncpa [#allocation34], 1
    %5656 = vsyncpa [#allocation8], 1

</llo_original>
